<compile_context>
chip_gen: v7x
topology: tpu7x:2x2x1
jax: 0.10.0
libtpu: 0.0.40
codegen_flags: <defaults>
</compile_context>

<pallas_src>
import jax
import jax.numpy as jnp
from jax import lax
from jax.experimental import pallas as pl
from jax.experimental.pallas import tpu as pltpu

LANE = 128
SUBLANE = 8


def _round_up(x, m):
    return ((x + m - 1) // m) * m


# ----------------------------- Pallas kernel --------------------------------

def _make_kernel(S, bB, HP, TP):
    """Kernel closure over static dims.

    Refs (per batch block of bB sequences, time-major rows s*bB + j):
      x_ref     : (S*bB, E)      bf16  embeddings
      w_in_ref  : (E, 8*HP)      bf16  [fwd gates i,f,g,o | bwd gates i,f,g,o]
      b_in_ref  : (1, 8*HP)      f32   combined b_ih + b_hh, same layout
      w_rec_ref : (2*HP, 8*HP)   bf16  block-diag recurrent weight
      w_out_ref : (2*HP, 2*TP)   bf16  [fwd tags | bwd tags], zero padded
      b_out_ref : (1, 2*TP)      f32   pad columns = -1e9
      out_ref   : (S*bB, TP)     f32   lane-dense result (tags in [:T])
      zf_ref    : (S*bB, 4*HP)   f32   scratch: fwd input projection
      zb_ref    : (S*bB, 4*HP)   f32   scratch: bwd input projection
      h_ref     : (S*bB, 2*HP)   f32   scratch: [h_f | h_b] per step
    """

    def kernel(x_ref, w_in_ref, b_in_ref, w_rec_ref, w_out_ref, b_out_ref,
               out_ref, zf_ref, zb_ref, h_ref):
        # ---- (1) hoisted input projection: one MXU matmul for all timesteps,
        #          both directions; bias folded in once.
        z_all = jnp.dot(x_ref[...], w_in_ref[...],
                        preferred_element_type=jnp.float32) + b_in_ref[...]
        zf_ref[...] = z_all[:, :4 * HP]
        zb_ref[...] = z_all[:, 4 * HP:]

        def gates(z4, c):
            # z4: (bB, 4*HP) with 128-lane-aligned gate stripes i, f, g, o.
            i = jax.nn.sigmoid(z4[:, 0 * HP:1 * HP])
            f = jax.nn.sigmoid(z4[:, 1 * HP:2 * HP])
            g = jnp.tanh(z4[:, 2 * HP:3 * HP])
            o = jax.nn.sigmoid(z4[:, 3 * HP:4 * HP])
            c_new = f * c + i * g
            return o * jnp.tanh(c_new), c_new

        # ---- (2) serial recurrence: a single fused (block-diagonal) recurrent
        #          matmul per step; gate math / h / c state in f32.
        def step(t, carry):
            hc, c_f, c_b = carry                                  # (bB, 2HP) f32
            if isinstance(t, int):                 # fully-unrolled: static slices
                rf = t * bB
                rb = (S - 1 - t) * bB
            else:                                  # fori_loop: alignment hints
                rf = pl.multiple_of(t * bB, bB)
                rb = pl.multiple_of((S - 1 - t) * bB, bB)
            zr = jnp.dot(hc.astype(jnp.bfloat16), w_rec_ref[...],
                         preferred_element_type=jnp.float32)      # (bB, 8HP)
            z_f = zr[:, :4 * HP] + zf_ref[pl.ds(rf, bB), :]
            z_b = zr[:, 4 * HP:] + zb_ref[pl.ds(rb, bB), :]       # bwd: reversed rows
            h_f, c_f = gates(z_f, c_f)
            h_b, c_b = gates(z_b, c_b)
            hc = jnp.concatenate([h_f, h_b], axis=1)              # (bB, 2HP)
            h_ref[pl.ds(rf, bB), :] = hc
            return hc, c_f, c_b

        hc0 = jnp.zeros((bB, 2 * HP), jnp.float32)
        c0 = jnp.zeros((bB, HP), jnp.float32)
        carry = (hc0, c0, c0)
        if S <= 32:
            # small fixed sequence length: fully unroll -> static aligned
            # slices and full scheduler visibility.
            for t in range(S):
                carry = step(t, carry)
        else:
            lax.fori_loop(0, S, step, carry, unroll=2)

        # ---- (3) hoisted output head: one matmul over all (S*bB) rows, two
        #          lane-aligned log-softmaxes, single lane-dense store.
        logits = jnp.dot(h_ref[...].astype(jnp.bfloat16), w_out_ref[...],
                         preferred_element_type=jnp.float32) + b_out_ref[...]

        def log_softmax_last(x):
            m = jnp.max(x, axis=-1, keepdims=True)
            e = jnp.exp(x - m)
            return x - m - jnp.log(jnp.sum(e, axis=-1, keepdims=True))

        out_ref[...] = (log_softmax_last(logits[:, :TP])
                        + log_softmax_last(logits[:, TP:]))

    return kernel


# --------------------------- parameter packing -------------------------------

def _pad_gates(w, H, HP):
    """(in_dim, 4H) -> (in_dim, 4HP): each gate stripe lane-aligned, zero pad."""
    pad = HP - H
    parts = []
    for k in range(4):
        g = w[:, k * H:(k + 1) * H]
        if pad:
            g = jnp.pad(g, ((0, 0), (0, pad)))
        parts.append(g)
    return jnp.concatenate(parts, axis=1)


def pack_params(params, HP, TP):
    H = params["w_hh_f"].shape[0]
    T = params["w_lin_f"].shape[1]

    w_in = jnp.concatenate([_pad_gates(params["w_ih_f"], H, HP),
                            _pad_gates(params["w_ih_b"], H, HP)], axis=1)
    b_in = jnp.concatenate([_pad_gates(params["b_f"], H, HP),
                            _pad_gates(params["b_b"], H, HP)], axis=1)

    w_rec = jnp.zeros((2 * HP, 8 * HP), jnp.float32)
    w_rec = w_rec.at[:H, :4 * HP].set(_pad_gates(params["w_hh_f"], H, HP))
    w_rec = w_rec.at[HP:HP + H, 4 * HP:].set(_pad_gates(params["w_hh_b"], H, HP))

    w_out = jnp.zeros((2 * HP, 2 * TP), jnp.float32)
    w_out = w_out.at[:H, :T].set(params["w_lin_f"])
    w_out = w_out.at[HP:HP + H, TP:TP + T].set(params["w_lin_b"])

    b_out = jnp.full((1, 2 * TP), -1e9, jnp.float32)   # pad tags -> ~0 prob
    b_out = b_out.at[:, :T].set(params["b_lin_f"])
    b_out = b_out.at[:, TP:TP + T].set(params["b_lin_b"])

    return {"w_in": w_in.astype(jnp.bfloat16),
            "b_in": b_in.astype(jnp.float32),
            "w_rec": w_rec.astype(jnp.bfloat16),
            "w_out": w_out.astype(jnp.bfloat16),
            "b_out": b_out}


# ------------------------------ JAX wrapper ----------------------------------

def network_forward(word_ids, cap_tensor, params):
    """word_ids: (B, S) int32 -> (B, S, T). cap_tensor ignored (include_cap=False)."""
    del cap_tensor
    B, S = word_ids.shape
    H = params["w_hh_f"].shape[0]
    E = params["w_ih_f"].shape[0]
    T = params["w_lin_f"].shape[1]
    HP = _round_up(H, LANE)
    TP = _round_up(T, LANE)

    packed = pack_params(params, HP, TP)

    # Pad batch to a sublane multiple so per-step row slices are 8-aligned.
    BP = _round_up(B, SUBLANE)
    if BP != B:
        word_ids = jnp.pad(word_ids, ((0, BP - B), (0, 0)))

    # batch blocking (grid sharded across TensorCores when clean halves exist)
    bB = BP // 2 if (BP % 16 == 0) else BP
    G = BP // bB

    # embedding gather stays in XLA; time-major, batch-blocked, bf16 operands
    x = jnp.take(params["embedding"], word_ids, axis=0)          # (BP, S, E)
    x = jnp.transpose(x, (1, 0, 2))                              # (S, BP, E)
    x = x.reshape(S, G, bB, E).transpose(1, 0, 2, 3).reshape(G, S * bB, E)
    x = x.astype(jnp.bfloat16)

    kernel = _make_kernel(S, bB, HP, TP)

    flops = 2 * BP * S * (E * 8 * HP + 2 * HP * 8 * HP + 2 * HP * 2 * TP)
    transcend = BP * S * (10 * HP + 2 * TP)
    weight_bytes = (packed["w_in"].size * 2 + packed["w_rec"].size * 2
                    + packed["w_out"].size * 2 + packed["b_in"].size * 4
                    + packed["b_out"].size * 4)
    bytes_accessed = int(x.size * 2 + G * S * bB * TP * 4 + weight_bytes)

    block_bytes = S * bB * E * 2 + S * bB * TP * 4 + weight_bytes
    scratch_bytes = S * bB * (8 * HP + 2 * HP) * 4
    vmem_limit = int(min(max(2 * block_bytes + scratch_bytes + (16 << 20),
                             32 << 20), 100 << 20))

    full = lambda a: pl.BlockSpec(a.shape, lambda g: (0,) * a.ndim)

    out = pl.pallas_call(
        kernel,
        out_shape=jax.ShapeDtypeStruct((G, S * bB, TP), jnp.float32),
        grid=(G,),
        in_specs=[
            pl.BlockSpec((None, S * bB, E), lambda g: (g, 0, 0)),
            full(packed["w_in"]), full(packed["b_in"]), full(packed["w_rec"]),
            full(packed["w_out"]), full(packed["b_out"]),
        ],
        out_specs=pl.BlockSpec((None, S * bB, TP), lambda g: (g, 0, 0)),
        scratch_shapes=[
            pltpu.VMEM((S * bB, 4 * HP), jnp.float32),   # fwd input projection
            pltpu.VMEM((S * bB, 4 * HP), jnp.float32),   # bwd input projection
            pltpu.VMEM((S * bB, 2 * HP), jnp.float32),   # hidden states [hf|hb]
        ],
        compiler_params=pltpu.CompilerParams(
            dimension_semantics=("parallel",),
            vmem_limit_bytes=vmem_limit),
        cost_estimate=pl.CostEstimate(flops=flops, transcendentals=transcend,
                                      bytes_accessed=bytes_accessed),
    )(x, packed["w_in"], packed["b_in"], packed["w_rec"],
      packed["w_out"], packed["b_out"])

    # (G, S*bB, TP) -> (BP, S, TP) -> (B, S, T)
    out = out.reshape(G, S, bB, TP).transpose(0, 2, 1, 3).reshape(BP, S, TP)
    return out[:B, :, :T]


# ------------------------- pure-JAX reference (check) -------------------------
# Mirrors the kernel's numerics: bf16 matmul operands, f32 accumulation,
# f32 cell state and gate nonlinearities.

def network_forward_ref(word_ids, params):
    emb = params["embedding"]
    x_f = jnp.take(emb, word_ids, axis=0).astype(jnp.float32)    # (B, S, E)
    x_b = x_f[:, ::-1]
    H = params["w_hh_f"].shape[0]
    B = word_ids.shape[0]
    bf = jnp.bfloat16

    def run_lstm(x, w_ih, w_hh, b):
        z_in = jnp.einsum("bse,eg->bsg", x.astype(bf), w_ih.astype(bf),
                          preferred_element_type=jnp.float32) + b
        w_hh16 = w_hh.astype(bf)

        def step(carry, z_t):
            h, c = carry
            z = z_t + jnp.dot(h.astype(bf), w_hh16,
                              preferred_element_type=jnp.float32)
            i = jax.nn.sigmoid(z[:, :H])
            f = jax.nn.sigmoid(z[:, H:2 * H])
            g = jnp.tanh(z[:, 2 * H:3 * H])
            o = jax.nn.sigmoid(z[:, 3 * H:])
            c = f * c + i * g
            h = o * jnp.tanh(c)
            return (h, c), h

        h0 = jnp.zeros((B, H), jnp.float32)
        _, hs = lax.scan(step, (h0, h0), jnp.swapaxes(z_in, 0, 1))
        return jnp.swapaxes(hs, 0, 1)                            # (B, S, H)

    o_f = run_lstm(x_f, params["w_ih_f"], params["w_hh_f"], params["b_f"])
    o_b = run_lstm(x_b, params["w_ih_b"], params["w_hh_b"], params["b_b"])
    lf = jax.nn.log_softmax(
        jnp.einsum("bsh,ht->bst", o_f.astype(bf), params["w_lin_f"].astype(bf),
                   preferred_element_type=jnp.float32) + params["b_lin_f"],
        axis=-1)
    lb = jax.nn.log_softmax(
        jnp.einsum("bsh,ht->bst", o_b.astype(bf), params["w_lin_b"].astype(bf),
                   preferred_element_type=jnp.float32) + params["b_lin_b"],
        axis=-1)
    return lf + lb


# ------------------------------- parameters ----------------------------------

def init_params(key, vocab_size, embedding_dim, hidden_size, number_tags):
    keys = jax.random.split(key, 12)
    u = lambda k, shape, s: jax.random.uniform(k, shape, jnp.float32, -s, s)
    scale = 1.0 / jnp.sqrt(hidden_size).astype(jnp.float32)
    E, H, T = embedding_dim, hidden_size, number_tags
    return {
        "embedding": jax.random.normal(keys[0], (vocab_size, E), jnp.float32),
        # LSTM weights stored pre-transposed: (E,4H), (H,4H); bias = b_ih + b_hh
        "w_ih_f": u(keys[1], (E, 4 * H), scale),
        "w_hh_f": u(keys[2], (H, 4 * H), scale),
        "b_f":    u(keys[3], (1, 4 * H), scale),
        "w_ih_b": u(keys[4], (E, 4 * H), scale),
        "w_hh_b": u(keys[5], (H, 4 * H), scale),
        "b_b":    u(keys[6], (1, 4 * H), scale),
        # Linear weights pre-transposed: (H, T)
        "w_lin_f": u(keys[7], (H, T), scale),
        "b_lin_f": u(keys[8], (1, T), scale),
        "w_lin_b": u(keys[9], (H, T), scale),
        "b_lin_b": u(keys[10], (1, T), scale),
        # TODO(synk): transitions / initial_transitions (CRF) are module
        # parameters but unused by forward(); omitted from the hot path.
    }


# ---------------------------------- main --------------------------------------

if __name__ == "__main__":
    VOCAB, TAGS, HIDDEN, EMB = 20, 8, 32, 16
    key = jax.random.PRNGKey(0)
    pkey, ikey = jax.random.split(key)
    params = init_params(pkey, VOCAB, EMB, HIDDEN, TAGS)

    # --- Test 1: module-sized small shapes (unrolled recurrence path) ---
    B, S = 2, 8
    word_ids = jax.random.randint(ikey, (B, S), 0, VOCAB, dtype=jnp.int32)
    cap_tensor = jnp.zeros((B, S), jnp.int32)   # ignored (include_cap=False)

    out = jax.block_until_ready(network_forward(word_ids, cap_tensor, params))
    assert out.shape == (B, S, TAGS)
    # replicate the module's NaN assertion and check vs the pure-JAX reference
    assert not bool(jnp.isnan(out).any())
    ref = network_forward_ref(word_ids, params)
    assert jnp.allclose(out, ref, atol=2e-3, rtol=2e-3), \
        float(jnp.max(jnp.abs(out - ref)))

    # --- Test 2: longer sequence (fori_loop path) + multi-block grid (G=2) ---
    B2, S2 = 16, 48
    word_ids2 = jax.random.randint(jax.random.PRNGKey(1), (B2, S2), 0, VOCAB,
                                   dtype=jnp.int32)
    cap2 = jnp.zeros((B2, S2), jnp.int32)
    out2 = jax.block_until_ready(network_forward(word_ids2, cap2, params))
    assert out2.shape == (B2, S2, TAGS)
    assert not bool(jnp.isnan(out2).any())
    ref2 = network_forward_ref(word_ids2, params)
    assert jnp.allclose(out2, ref2, atol=1e-2, rtol=1e-2), \
        float(jnp.max(jnp.abs(out2 - ref2)))

    print("KERNEL_OK")
</pallas_src>

<mosaic_0001>
module attributes {stable_mosaic.version = 11 : i64} {
  func.func @kernel(%arg0: i32, %arg1: memref<1x64x16xbf16, #tpu.memory_space<vmem>>, %arg2: memref<16x1024xbf16, #tpu.memory_space<vmem>>, %arg3: memref<1x1024xf32, #tpu.memory_space<vmem>>, %arg4: memref<256x1024xbf16, #tpu.memory_space<vmem>>, %arg5: memref<256x256xbf16, #tpu.memory_space<vmem>>, %arg6: memref<1x256xf32, #tpu.memory_space<vmem>>, %arg7: memref<1x64x128xf32, #tpu.memory_space<vmem>>, %arg8: memref<64x512xf32, #tpu.memory_space<vmem>>, %arg9: memref<64x512xf32, #tpu.memory_space<vmem>>, %arg10: memref<64x256xf32, #tpu.memory_space<vmem>>) attributes {dimension_semantics = [#tpu.dimension_semantics<parallel>], iteration_bounds = array<i64: 1>, scalar_prefetch = 0 : i64, scratch_operands = 3 : i64, tpu.core_type = #tpu.core_type<tc>, window_params = [{transform_indices = @transform_0, window_bounds = array<i64: 1, 64, 16>}, {pipeline_mode = #tpu.pipeline_mode<synchronous>, transform_indices = @transform_1, window_bounds = array<i64: 16, 1024>}, {pipeline_mode = #tpu.pipeline_mode<synchronous>, transform_indices = @transform_2, window_bounds = array<i64: 1, 1024>}, {pipeline_mode = #tpu.pipeline_mode<synchronous>, transform_indices = @transform_3, window_bounds = array<i64: 256, 1024>}, {pipeline_mode = #tpu.pipeline_mode<synchronous>, transform_indices = @transform_4, window_bounds = array<i64: 256, 256>}, {pipeline_mode = #tpu.pipeline_mode<synchronous>, transform_indices = @transform_5, window_bounds = array<i64: 1, 256>}, {transform_indices = @transform_6, window_bounds = array<i64: 1, 64, 128>}]} {
    %c0 = arith.constant 0 : index
    %c0_0 = arith.constant 0 : index
    %c0_1 = arith.constant 0 : index
    %0 = vector.load %arg1[%c0, %c0_0, %c0_1] : memref<1x64x16xbf16, #tpu.memory_space<vmem>>, vector<1x64x16xbf16>
    %1 = vector.shape_cast %0 : vector<1x64x16xbf16> to vector<64x16xbf16>
    %c0_2 = arith.constant 0 : index
    %c0_3 = arith.constant 0 : index
    %2 = vector.load %arg2[%c0_2, %c0_3] : memref<16x1024xbf16, #tpu.memory_space<vmem>>, vector<16x1024xbf16>
    %cst = arith.constant dense<0.000000e+00> : vector<64x1024xf32>
    %3 = tpu.matmul %1, %2, %cst {dimension_numbers = #tpu.dot_dimension_numbers<[1], [0], [0], [1], [0, 0, 1, 1], [], []>} : vector<64x16xbf16>, vector<16x1024xbf16>, vector<64x1024xf32> -> vector<64x1024xf32>
    %c0_4 = arith.constant 0 : index
    %c0_5 = arith.constant 0 : index
    %4 = vector.load %arg3[%c0_4, %c0_5] : memref<1x1024xf32, #tpu.memory_space<vmem>>, vector<1x1024xf32>
    %5 = vector.broadcast %4 : vector<1x1024xf32> to vector<64x1024xf32>
    %6 = arith.addf %3, %5 : vector<64x1024xf32>
    %7 = vector.extract_strided_slice %6 {offsets = [0, 0], sizes = [64, 512], strides = [1, 1]} : vector<64x1024xf32> to vector<64x512xf32>
    %c0_6 = arith.constant 0 : index
    %c0_7 = arith.constant 0 : index
    %8 = vector.load %arg8[%c0_6, %c0_7] : memref<64x512xf32, #tpu.memory_space<vmem>>, vector<64x512xf32>
    tpu.vector_store %arg8[%c0_6, %c0_7], %7 {strides = array<i32>} : memref<64x512xf32, #tpu.memory_space<vmem>>, vector<64x512xf32>,
    %9 = vector.extract_strided_slice %6 {offsets = [0, 512], sizes = [64, 512], strides = [1, 1]} : vector<64x1024xf32> to vector<64x512xf32>
    %c0_8 = arith.constant 0 : index
    %c0_9 = arith.constant 0 : index
    %10 = vector.load %arg9[%c0_8, %c0_9] : memref<64x512xf32, #tpu.memory_space<vmem>>, vector<64x512xf32>
    tpu.vector_store %arg9[%c0_8, %c0_9], %9 {strides = array<i32>} : memref<64x512xf32, #tpu.memory_space<vmem>>, vector<64x512xf32>,
    %cst_10 = arith.constant 0.000000e+00 : f32
    %11 = vector.broadcast %cst_10 : f32 to vector<8x256xf32>
    %cst_11 = arith.constant 0.000000e+00 : f32
    %12 = vector.broadcast %cst_11 : f32 to vector<8x128xf32>
    %13 = arith.truncf %11 : vector<8x256xf32> to vector<8x256xbf16>
    %c0_12 = arith.constant 0 : index
    %c0_13 = arith.constant 0 : index
    %14 = vector.load %arg4[%c0_12, %c0_13] : memref<256x1024xbf16, #tpu.memory_space<vmem>>, vector<256x1024xbf16>
    %cst_14 = arith.constant dense<0.000000e+00> : vector<8x1024xf32>
    %15 = tpu.matmul %13, %14, %cst_14 {dimension_numbers = #tpu.dot_dimension_numbers<[1], [0], [0], [1], [0, 0, 1, 1], [], []>} : vector<8x256xbf16>, vector<256x1024xbf16>, vector<8x1024xf32> -> vector<8x1024xf32>
    %16 = vector.extract_strided_slice %15 {offsets = [0, 0], sizes = [8, 512], strides = [1, 1]} : vector<8x1024xf32> to vector<8x512xf32>
    %c0_15 = arith.constant 0 : index
    %c0_16 = arith.constant 0 : index
    %17 = vector.load %arg8[%c0_15, %c0_16] : memref<64x512xf32, #tpu.memory_space<vmem>>, vector<8x512xf32>
    %18 = arith.addf %16, %17 : vector<8x512xf32>
    %19 = vector.extract_strided_slice %15 {offsets = [0, 512], sizes = [8, 512], strides = [1, 1]} : vector<8x1024xf32> to vector<8x512xf32>
    %c56 = arith.constant 56 : index
    %c0_17 = arith.constant 0 : index
    %20 = vector.load %arg9[%c56, %c0_17] : memref<64x512xf32, #tpu.memory_space<vmem>>, vector<8x512xf32>
    %21 = arith.addf %19, %20 : vector<8x512xf32>
    %22 = vector.extract_strided_slice %18 {offsets = [0, 0], sizes = [8, 128], strides = [1, 1]} : vector<8x512xf32> to vector<8x128xf32>
    %23 = arith.negf %22 : vector<8x128xf32>
    %24 = math.exp %23 : vector<8x128xf32>
    %cst_18 = arith.constant 1.000000e+00 : f32
    %25 = vector.broadcast %cst_18 : f32 to vector<8x128xf32>
    %26 = arith.addf %25, %24 : vector<8x128xf32>
    %27 = arith.divf %25, %26 : vector<8x128xf32>
    %28 = vector.extract_strided_slice %18 {offsets = [0, 128], sizes = [8, 128], strides = [1, 1]} : vector<8x512xf32> to vector<8x128xf32>
    %29 = arith.negf %28 : vector<8x128xf32>
    %30 = math.exp %29 : vector<8x128xf32>
    %cst_19 = arith.constant 1.000000e+00 : f32
    %31 = vector.broadcast %cst_19 : f32 to vector<8x128xf32>
    %32 = arith.addf %31, %30 : vector<8x128xf32>
    %33 = arith.divf %31, %32 : vector<8x128xf32>
    %34 = vector.extract_strided_slice %18 {offsets = [0, 256], sizes = [8, 128], strides = [1, 1]} : vector<8x512xf32> to vector<8x128xf32>
    %35 = math.tanh %34 : vector<8x128xf32>
    %36 = vector.extract_strided_slice %18 {offsets = [0, 384], sizes = [8, 128], strides = [1, 1]} : vector<8x512xf32> to vector<8x128xf32>
    %37 = arith.negf %36 : vector<8x128xf32>
    %38 = math.exp %37 : vector<8x128xf32>
    %cst_20 = arith.constant 1.000000e+00 : f32
    %39 = vector.broadcast %cst_20 : f32 to vector<8x128xf32>
    %40 = arith.addf %39, %38 : vector<8x128xf32>
    %41 = arith.divf %39, %40 : vector<8x128xf32>
    %42 = arith.mulf %33, %12 : vector<8x128xf32>
    %43 = arith.mulf %27, %35 : vector<8x128xf32>
    %44 = arith.addf %42, %43 : vector<8x128xf32>
    %45 = math.tanh %44 : vector<8x128xf32>
    %46 = arith.mulf %41, %45 : vector<8x128xf32>
    %47 = vector.extract_strided_slice %21 {offsets = [0, 0], sizes = [8, 128], strides = [1, 1]} : vector<8x512xf32> to vector<8x128xf32>
    %48 = arith.negf %47 : vector<8x128xf32>
    %49 = math.exp %48 : vector<8x128xf32>
    %cst_21 = arith.constant 1.000000e+00 : f32
    %50 = vector.broadcast %cst_21 : f32 to vector<8x128xf32>
    %51 = arith.addf %50, %49 : vector<8x128xf32>
    %52 = arith.divf %50, %51 : vector<8x128xf32>
    %53 = vector.extract_strided_slice %21 {offsets = [0, 128], sizes = [8, 128], strides = [1, 1]} : vector<8x512xf32> to vector<8x128xf32>
    %54 = arith.negf %53 : vector<8x128xf32>
    %55 = math.exp %54 : vector<8x128xf32>
    %cst_22 = arith.constant 1.000000e+00 : f32
    %56 = vector.broadcast %cst_22 : f32 to vector<8x128xf32>
    %57 = arith.addf %56, %55 : vector<8x128xf32>
    %58 = arith.divf %56, %57 : vector<8x128xf32>
    %59 = vector.extract_strided_slice %21 {offsets = [0, 256], sizes = [8, 128], strides = [1, 1]} : vector<8x512xf32> to vector<8x128xf32>
    %60 = math.tanh %59 : vector<8x128xf32>
    %61 = vector.extract_strided_slice %21 {offsets = [0, 384], sizes = [8, 128], strides = [1, 1]} : vector<8x512xf32> to vector<8x128xf32>
    %62 = arith.negf %61 : vector<8x128xf32>
    %63 = math.exp %62 : vector<8x128xf32>
    %cst_23 = arith.constant 1.000000e+00 : f32
    %64 = vector.broadcast %cst_23 : f32 to vector<8x128xf32>
    %65 = arith.addf %64, %63 : vector<8x128xf32>
    %66 = arith.divf %64, %65 : vector<8x128xf32>
    %67 = arith.mulf %58, %12 : vector<8x128xf32>
    %68 = arith.mulf %52, %60 : vector<8x128xf32>
    %69 = arith.addf %67, %68 : vector<8x128xf32>
    %70 = math.tanh %69 : vector<8x128xf32>
    %71 = arith.mulf %66, %70 : vector<8x128xf32>
    %72 = tpu.concatenate %46, %71 in 1 : vector<8x128xf32>, vector<8x128xf32> -> vector<8x256xf32>
    %c0_24 = arith.constant 0 : index
    %c0_25 = arith.constant 0 : index
    %73 = vector.load %arg10[%c0_24, %c0_25] : memref<64x256xf32, #tpu.memory_space<vmem>>, vector<8x256xf32>
    tpu.vector_store %arg10[%c0_24, %c0_25], %72 {strides = array<i32>} : memref<64x256xf32, #tpu.memory_space<vmem>>, vector<8x256xf32>,
    %74 = arith.truncf %72 : vector<8x256xf32> to vector<8x256xbf16>
    %c0_26 = arith.constant 0 : index
    %c0_27 = arith.constant 0 : index
    %75 = vector.load %arg4[%c0_26, %c0_27] : memref<256x1024xbf16, #tpu.memory_space<vmem>>, vector<256x1024xbf16>
    %cst_28 = arith.constant dense<0.000000e+00> : vector<8x1024xf32>
    %76 = tpu.matmul %74, %75, %cst_28 {dimension_numbers = #tpu.dot_dimension_numbers<[1], [0], [0], [1], [0, 0, 1, 1], [], []>} : vector<8x256xbf16>, vector<256x1024xbf16>, vector<8x1024xf32> -> vector<8x1024xf32>
    %77 = vector.extract_strided_slice %76 {offsets = [0, 0], sizes = [8, 512], strides = [1, 1]} : vector<8x1024xf32> to vector<8x512xf32>
    %c8 = arith.constant 8 : index
    %c0_29 = arith.constant 0 : index
    %78 = vector.load %arg8[%c8, %c0_29] : memref<64x512xf32, #tpu.memory_space<vmem>>, vector<8x512xf32>
    %79 = arith.addf %77, %78 : vector<8x512xf32>
    %80 = vector.extract_strided_slice %76 {offsets = [0, 512], sizes = [8, 512], strides = [1, 1]} : vector<8x1024xf32> to vector<8x512xf32>
    %c48 = arith.constant 48 : index
    %c0_30 = arith.constant 0 : index
    %81 = vector.load %arg9[%c48, %c0_30] : memref<64x512xf32, #tpu.memory_space<vmem>>, vector<8x512xf32>
    %82 = arith.addf %80, %81 : vector<8x512xf32>
    %83 = vector.extract_strided_slice %79 {offsets = [0, 0], sizes = [8, 128], strides = [1, 1]} : vector<8x512xf32> to vector<8x128xf32>
    %84 = arith.negf %83 : vector<8x128xf32>
    %85 = math.exp %84 : vector<8x128xf32>
    %cst_31 = arith.constant 1.000000e+00 : f32
    %86 = vector.broadcast %cst_31 : f32 to vector<8x128xf32>
    %87 = arith.addf %86, %85 : vector<8x128xf32>
    %88 = arith.divf %86, %87 : vector<8x128xf32>
    %89 = vector.extract_strided_slice %79 {offsets = [0, 128], sizes = [8, 128], strides = [1, 1]} : vector<8x512xf32> to vector<8x128xf32>
    %90 = arith.negf %89 : vector<8x128xf32>
    %91 = math.exp %90 : vector<8x128xf32>
    %cst_32 = arith.constant 1.000000e+00 : f32
    %92 = vector.broadcast %cst_32 : f32 to vector<8x128xf32>
    %93 = arith.addf %92, %91 : vector<8x128xf32>
    %94 = arith.divf %92, %93 : vector<8x128xf32>
    %95 = vector.extract_strided_slice %79 {offsets = [0, 256], sizes = [8, 128], strides = [1, 1]} : vector<8x512xf32> to vector<8x128xf32>
    %96 = math.tanh %95 : vector<8x128xf32>
    %97 = vector.extract_strided_slice %79 {offsets = [0, 384], sizes = [8, 128], strides = [1, 1]} : vector<8x512xf32> to vector<8x128xf32>
    %98 = arith.negf %97 : vector<8x128xf32>
    %99 = math.exp %98 : vector<8x128xf32>
    %cst_33 = arith.constant 1.000000e+00 : f32
    %100 = vector.broadcast %cst_33 : f32 to vector<8x128xf32>
    %101 = arith.addf %100, %99 : vector<8x128xf32>
    %102 = arith.divf %100, %101 : vector<8x128xf32>
    %103 = arith.mulf %94, %44 : vector<8x128xf32>
    %104 = arith.mulf %88, %96 : vector<8x128xf32>
    %105 = arith.addf %103, %104 : vector<8x128xf32>
    %106 = math.tanh %105 : vector<8x128xf32>
    %107 = arith.mulf %102, %106 : vector<8x128xf32>
    %108 = vector.extract_strided_slice %82 {offsets = [0, 0], sizes = [8, 128], strides = [1, 1]} : vector<8x512xf32> to vector<8x128xf32>
    %109 = arith.negf %108 : vector<8x128xf32>
    %110 = math.exp %109 : vector<8x128xf32>
    %cst_34 = arith.constant 1.000000e+00 : f32
    %111 = vector.broadcast %cst_34 : f32 to vector<8x128xf32>
    %112 = arith.addf %111, %110 : vector<8x128xf32>
    %113 = arith.divf %111, %112 : vector<8x128xf32>
    %114 = vector.extract_strided_slice %82 {offsets = [0, 128], sizes = [8, 128], strides = [1, 1]} : vector<8x512xf32> to vector<8x128xf32>
    %115 = arith.negf %114 : vector<8x128xf32>
    %116 = math.exp %115 : vector<8x128xf32>
    %cst_35 = arith.constant 1.000000e+00 : f32
    %117 = vector.broadcast %cst_35 : f32 to vector<8x128xf32>
    %118 = arith.addf %117, %116 : vector<8x128xf32>
    %119 = arith.divf %117, %118 : vector<8x128xf32>
    %120 = vector.extract_strided_slice %82 {offsets = [0, 256], sizes = [8, 128], strides = [1, 1]} : vector<8x512xf32> to vector<8x128xf32>
    %121 = math.tanh %120 : vector<8x128xf32>
    %122 = vector.extract_strided_slice %82 {offsets = [0, 384], sizes = [8, 128], strides = [1, 1]} : vector<8x512xf32> to vector<8x128xf32>
    %123 = arith.negf %122 : vector<8x128xf32>
    %124 = math.exp %123 : vector<8x128xf32>
    %cst_36 = arith.constant 1.000000e+00 : f32
    %125 = vector.broadcast %cst_36 : f32 to vector<8x128xf32>
    %126 = arith.addf %125, %124 : vector<8x128xf32>
    %127 = arith.divf %125, %126 : vector<8x128xf32>
    %128 = arith.mulf %119, %69 : vector<8x128xf32>
    %129 = arith.mulf %113, %121 : vector<8x128xf32>
    %130 = arith.addf %128, %129 : vector<8x128xf32>
    %131 = math.tanh %130 : vector<8x128xf32>
    %132 = arith.mulf %127, %131 : vector<8x128xf32>
    %133 = tpu.concatenate %107, %132 in 1 : vector<8x128xf32>, vector<8x128xf32> -> vector<8x256xf32>
    %c8_37 = arith.constant 8 : index
    %c0_38 = arith.constant 0 : index
    %134 = vector.load %arg10[%c8_37, %c0_38] : memref<64x256xf32, #tpu.memory_space<vmem>>, vector<8x256xf32>
    tpu.vector_store %arg10[%c8_37, %c0_38], %133 {strides = array<i32>} : memref<64x256xf32, #tpu.memory_space<vmem>>, vector<8x256xf32>,
    %135 = arith.truncf %133 : vector<8x256xf32> to vector<8x256xbf16>
    %c0_39 = arith.constant 0 : index
    %c0_40 = arith.constant 0 : index
    %136 = vector.load %arg4[%c0_39, %c0_40] : memref<256x1024xbf16, #tpu.memory_space<vmem>>, vector<256x1024xbf16>
    %cst_41 = arith.constant dense<0.000000e+00> : vector<8x1024xf32>
    %137 = tpu.matmul %135, %136, %cst_41 {dimension_numbers = #tpu.dot_dimension_numbers<[1], [0], [0], [1], [0, 0, 1, 1], [], []>} : vector<8x256xbf16>, vector<256x1024xbf16>, vector<8x1024xf32> -> vector<8x1024xf32>
    %138 = vector.extract_strided_slice %137 {offsets = [0, 0], sizes = [8, 512], strides = [1, 1]} : vector<8x1024xf32> to vector<8x512xf32>
    %c16 = arith.constant 16 : index
    %c0_42 = arith.constant 0 : index
    %139 = vector.load %arg8[%c16, %c0_42] : memref<64x512xf32, #tpu.memory_space<vmem>>, vector<8x512xf32>
    %140 = arith.addf %138, %139 : vector<8x512xf32>
    %141 = vector.extract_strided_slice %137 {offsets = [0, 512], sizes = [8, 512], strides = [1, 1]} : vector<8x1024xf32> to vector<8x512xf32>
    %c40 = arith.constant 40 : index
    %c0_43 = arith.constant 0 : index
    %142 = vector.load %arg9[%c40, %c0_43] : memref<64x512xf32, #tpu.memory_space<vmem>>, vector<8x512xf32>
    %143 = arith.addf %141, %142 : vector<8x512xf32>
    %144 = vector.extract_strided_slice %140 {offsets = [0, 0], sizes = [8, 128], strides = [1, 1]} : vector<8x512xf32> to vector<8x128xf32>
    %145 = arith.negf %144 : vector<8x128xf32>
    %146 = math.exp %145 : vector<8x128xf32>
    %cst_44 = arith.constant 1.000000e+00 : f32
    %147 = vector.broadcast %cst_44 : f32 to vector<8x128xf32>
    %148 = arith.addf %147, %146 : vector<8x128xf32>
    %149 = arith.divf %147, %148 : vector<8x128xf32>
    %150 = vector.extract_strided_slice %140 {offsets = [0, 128], sizes = [8, 128], strides = [1, 1]} : vector<8x512xf32> to vector<8x128xf32>
    %151 = arith.negf %150 : vector<8x128xf32>
    %152 = math.exp %151 : vector<8x128xf32>
    %cst_45 = arith.constant 1.000000e+00 : f32
    %153 = vector.broadcast %cst_45 : f32 to vector<8x128xf32>
    %154 = arith.addf %153, %152 : vector<8x128xf32>
    %155 = arith.divf %153, %154 : vector<8x128xf32>
    %156 = vector.extract_strided_slice %140 {offsets = [0, 256], sizes = [8, 128], strides = [1, 1]} : vector<8x512xf32> to vector<8x128xf32>
    %157 = math.tanh %156 : vector<8x128xf32>
    %158 = vector.extract_strided_slice %140 {offsets = [0, 384], sizes = [8, 128], strides = [1, 1]} : vector<8x512xf32> to vector<8x128xf32>
    %159 = arith.negf %158 : vector<8x128xf32>
    %160 = math.exp %159 : vector<8x128xf32>
    %cst_46 = arith.constant 1.000000e+00 : f32
    %161 = vector.broadcast %cst_46 : f32 to vector<8x128xf32>
    %162 = arith.addf %161, %160 : vector<8x128xf32>
    %163 = arith.divf %161, %162 : vector<8x128xf32>
    %164 = arith.mulf %155, %105 : vector<8x128xf32>
    %165 = arith.mulf %149, %157 : vector<8x128xf32>
    %166 = arith.addf %164, %165 : vector<8x128xf32>
    %167 = math.tanh %166 : vector<8x128xf32>
    %168 = arith.mulf %163, %167 : vector<8x128xf32>
    %169 = vector.extract_strided_slice %143 {offsets = [0, 0], sizes = [8, 128], strides = [1, 1]} : vector<8x512xf32> to vector<8x128xf32>
    %170 = arith.negf %169 : vector<8x128xf32>
    %171 = math.exp %170 : vector<8x128xf32>
    %cst_47 = arith.constant 1.000000e+00 : f32
    %172 = vector.broadcast %cst_47 : f32 to vector<8x128xf32>
    %173 = arith.addf %172, %171 : vector<8x128xf32>
    %174 = arith.divf %172, %173 : vector<8x128xf32>
    %175 = vector.extract_strided_slice %143 {offsets = [0, 128], sizes = [8, 128], strides = [1, 1]} : vector<8x512xf32> to vector<8x128xf32>
    %176 = arith.negf %175 : vector<8x128xf32>
    %177 = math.exp %176 : vector<8x128xf32>
    %cst_48 = arith.constant 1.000000e+00 : f32
    %178 = vector.broadcast %cst_48 : f32 to vector<8x128xf32>
    %179 = arith.addf %178, %177 : vector<8x128xf32>
    %180 = arith.divf %178, %179 : vector<8x128xf32>
    %181 = vector.extract_strided_slice %143 {offsets = [0, 256], sizes = [8, 128], strides = [1, 1]} : vector<8x512xf32> to vector<8x128xf32>
    %182 = math.tanh %181 : vector<8x128xf32>
    %183 = vector.extract_strided_slice %143 {offsets = [0, 384], sizes = [8, 128], strides = [1, 1]} : vector<8x512xf32> to vector<8x128xf32>
    %184 = arith.negf %183 : vector<8x128xf32>
    %185 = math.exp %184 : vector<8x128xf32>
    %cst_49 = arith.constant 1.000000e+00 : f32
    %186 = vector.broadcast %cst_49 : f32 to vector<8x128xf32>
    %187 = arith.addf %186, %185 : vector<8x128xf32>
    %188 = arith.divf %186, %187 : vector<8x128xf32>
    %189 = arith.mulf %180, %130 : vector<8x128xf32>
    %190 = arith.mulf %174, %182 : vector<8x128xf32>
    %191 = arith.addf %189, %190 : vector<8x128xf32>
    %192 = math.tanh %191 : vector<8x128xf32>
    %193 = arith.mulf %188, %192 : vector<8x128xf32>
    %194 = tpu.concatenate %168, %193 in 1 : vector<8x128xf32>, vector<8x128xf32> -> vector<8x256xf32>
    %c16_50 = arith.constant 16 : index
    %c0_51 = arith.constant 0 : index
    %195 = vector.load %arg10[%c16_50, %c0_51] : memref<64x256xf32, #tpu.memory_space<vmem>>, vector<8x256xf32>
    tpu.vector_store %arg10[%c16_50, %c0_51], %194 {strides = array<i32>} : memref<64x256xf32, #tpu.memory_space<vmem>>, vector<8x256xf32>,
    %196 = arith.truncf %194 : vector<8x256xf32> to vector<8x256xbf16>
    %c0_52 = arith.constant 0 : index
    %c0_53 = arith.constant 0 : index
    %197 = vector.load %arg4[%c0_52, %c0_53] : memref<256x1024xbf16, #tpu.memory_space<vmem>>, vector<256x1024xbf16>
    %cst_54 = arith.constant dense<0.000000e+00> : vector<8x1024xf32>
    %198 = tpu.matmul %196, %197, %cst_54 {dimension_numbers = #tpu.dot_dimension_numbers<[1], [0], [0], [1], [0, 0, 1, 1], [], []>} : vector<8x256xbf16>, vector<256x1024xbf16>, vector<8x1024xf32> -> vector<8x1024xf32>
    %199 = vector.extract_strided_slice %198 {offsets = [0, 0], sizes = [8, 512], strides = [1, 1]} : vector<8x1024xf32> to vector<8x512xf32>
    %c24 = arith.constant 24 : index
    %c0_55 = arith.constant 0 : index
    %200 = vector.load %arg8[%c24, %c0_55] : memref<64x512xf32, #tpu.memory_space<vmem>>, vector<8x512xf32>
    %201 = arith.addf %199, %200 : vector<8x512xf32>
    %202 = vector.extract_strided_slice %198 {offsets = [0, 512], sizes = [8, 512], strides = [1, 1]} : vector<8x1024xf32> to vector<8x512xf32>
    %c32 = arith.constant 32 : index
    %c0_56 = arith.constant 0 : index
    %203 = vector.load %arg9[%c32, %c0_56] : memref<64x512xf32, #tpu.memory_space<vmem>>, vector<8x512xf32>
    %204 = arith.addf %202, %203 : vector<8x512xf32>
    %205 = vector.extract_strided_slice %201 {offsets = [0, 0], sizes = [8, 128], strides = [1, 1]} : vector<8x512xf32> to vector<8x128xf32>
    %206 = arith.negf %205 : vector<8x128xf32>
    %207 = math.exp %206 : vector<8x128xf32>
    %cst_57 = arith.constant 1.000000e+00 : f32
    %208 = vector.broadcast %cst_57 : f32 to vector<8x128xf32>
    %209 = arith.addf %208, %207 : vector<8x128xf32>
    %210 = arith.divf %208, %209 : vector<8x128xf32>
    %211 = vector.extract_strided_slice %201 {offsets = [0, 128], sizes = [8, 128], strides = [1, 1]} : vector<8x512xf32> to vector<8x128xf32>
    %212 = arith.negf %211 : vector<8x128xf32>
    %213 = math.exp %212 : vector<8x128xf32>
    %cst_58 = arith.constant 1.000000e+00 : f32
    %214 = vector.broadcast %cst_58 : f32 to vector<8x128xf32>
    %215 = arith.addf %214, %213 : vector<8x128xf32>
    %216 = arith.divf %214, %215 : vector<8x128xf32>
    %217 = vector.extract_strided_slice %201 {offsets = [0, 256], sizes = [8, 128], strides = [1, 1]} : vector<8x512xf32> to vector<8x128xf32>
    %218 = math.tanh %217 : vector<8x128xf32>
    %219 = vector.extract_strided_slice %201 {offsets = [0, 384], sizes = [8, 128], strides = [1, 1]} : vector<8x512xf32> to vector<8x128xf32>
    %220 = arith.negf %219 : vector<8x128xf32>
    %221 = math.exp %220 : vector<8x128xf32>
    %cst_59 = arith.constant 1.000000e+00 : f32
    %222 = vector.broadcast %cst_59 : f32 to vector<8x128xf32>
    %223 = arith.addf %222, %221 : vector<8x128xf32>
    %224 = arith.divf %222, %223 : vector<8x128xf32>
    %225 = arith.mulf %216, %166 : vector<8x128xf32>
    %226 = arith.mulf %210, %218 : vector<8x128xf32>
    %227 = arith.addf %225, %226 : vector<8x128xf32>
    %228 = math.tanh %227 : vector<8x128xf32>
    %229 = arith.mulf %224, %228 : vector<8x128xf32>
    %230 = vector.extract_strided_slice %204 {offsets = [0, 0], sizes = [8, 128], strides = [1, 1]} : vector<8x512xf32> to vector<8x128xf32>
    %231 = arith.negf %230 : vector<8x128xf32>
    %232 = math.exp %231 : vector<8x128xf32>
    %cst_60 = arith.constant 1.000000e+00 : f32
    %233 = vector.broadcast %cst_60 : f32 to vector<8x128xf32>
    %234 = arith.addf %233, %232 : vector<8x128xf32>
    %235 = arith.divf %233, %234 : vector<8x128xf32>
    %236 = vector.extract_strided_slice %204 {offsets = [0, 128], sizes = [8, 128], strides = [1, 1]} : vector<8x512xf32> to vector<8x128xf32>
    %237 = arith.negf %236 : vector<8x128xf32>
    %238 = math.exp %237 : vector<8x128xf32>
    %cst_61 = arith.constant 1.000000e+00 : f32
    %239 = vector.broadcast %cst_61 : f32 to vector<8x128xf32>
    %240 = arith.addf %239, %238 : vector<8x128xf32>
    %241 = arith.divf %239, %240 : vector<8x128xf32>
    %242 = vector.extract_strided_slice %204 {offsets = [0, 256], sizes = [8, 128], strides = [1, 1]} : vector<8x512xf32> to vector<8x128xf32>
    %243 = math.tanh %242 : vector<8x128xf32>
    %244 = vector.extract_strided_slice %204 {offsets = [0, 384], sizes = [8, 128], strides = [1, 1]} : vector<8x512xf32> to vector<8x128xf32>
    %245 = arith.negf %244 : vector<8x128xf32>
    %246 = math.exp %245 : vector<8x128xf32>
    %cst_62 = arith.constant 1.000000e+00 : f32
    %247 = vector.broadcast %cst_62 : f32 to vector<8x128xf32>
    %248 = arith.addf %247, %246 : vector<8x128xf32>
    %249 = arith.divf %247, %248 : vector<8x128xf32>
    %250 = arith.mulf %241, %191 : vector<8x128xf32>
    %251 = arith.mulf %235, %243 : vector<8x128xf32>
    %252 = arith.addf %250, %251 : vector<8x128xf32>
    %253 = math.tanh %252 : vector<8x128xf32>
    %254 = arith.mulf %249, %253 : vector<8x128xf32>
    %255 = tpu.concatenate %229, %254 in 1 : vector<8x128xf32>, vector<8x128xf32> -> vector<8x256xf32>
    %c24_63 = arith.constant 24 : index
    %c0_64 = arith.constant 0 : index
    %256 = vector.load %arg10[%c24_63, %c0_64] : memref<64x256xf32, #tpu.memory_space<vmem>>, vector<8x256xf32>
    tpu.vector_store %arg10[%c24_63, %c0_64], %255 {strides = array<i32>} : memref<64x256xf32, #tpu.memory_space<vmem>>, vector<8x256xf32>,
    %257 = arith.truncf %255 : vector<8x256xf32> to vector<8x256xbf16>
    %c0_65 = arith.constant 0 : index
    %c0_66 = arith.constant 0 : index
    %258 = vector.load %arg4[%c0_65, %c0_66] : memref<256x1024xbf16, #tpu.memory_space<vmem>>, vector<256x1024xbf16>
    %cst_67 = arith.constant dense<0.000000e+00> : vector<8x1024xf32>
    %259 = tpu.matmul %257, %258, %cst_67 {dimension_numbers = #tpu.dot_dimension_numbers<[1], [0], [0], [1], [0, 0, 1, 1], [], []>} : vector<8x256xbf16>, vector<256x1024xbf16>, vector<8x1024xf32> -> vector<8x1024xf32>
    %260 = vector.extract_strided_slice %259 {offsets = [0, 0], sizes = [8, 512], strides = [1, 1]} : vector<8x1024xf32> to vector<8x512xf32>
    %c32_68 = arith.constant 32 : index
    %c0_69 = arith.constant 0 : index
    %261 = vector.load %arg8[%c32_68, %c0_69] : memref<64x512xf32, #tpu.memory_space<vmem>>, vector<8x512xf32>
    %262 = arith.addf %260, %261 : vector<8x512xf32>
    %263 = vector.extract_strided_slice %259 {offsets = [0, 512], sizes = [8, 512], strides = [1, 1]} : vector<8x1024xf32> to vector<8x512xf32>
    %c24_70 = arith.constant 24 : index
    %c0_71 = arith.constant 0 : index
    %264 = vector.load %arg9[%c24_70, %c0_71] : memref<64x512xf32, #tpu.memory_space<vmem>>, vector<8x512xf32>
    %265 = arith.addf %263, %264 : vector<8x512xf32>
    %266 = vector.extract_strided_slice %262 {offsets = [0, 0], sizes = [8, 128], strides = [1, 1]} : vector<8x512xf32> to vector<8x128xf32>
    %267 = arith.negf %266 : vector<8x128xf32>
    %268 = math.exp %267 : vector<8x128xf32>
    %cst_72 = arith.constant 1.000000e+00 : f32
    %269 = vector.broadcast %cst_72 : f32 to vector<8x128xf32>
    %270 = arith.addf %269, %268 : vector<8x128xf32>
    %271 = arith.divf %269, %270 : vector<8x128xf32>
    %272 = vector.extract_strided_slice %262 {offsets = [0, 128], sizes = [8, 128], strides = [1, 1]} : vector<8x512xf32> to vector<8x128xf32>
    %273 = arith.negf %272 : vector<8x128xf32>
    %274 = math.exp %273 : vector<8x128xf32>
    %cst_73 = arith.constant 1.000000e+00 : f32
    %275 = vector.broadcast %cst_73 : f32 to vector<8x128xf32>
    %276 = arith.addf %275, %274 : vector<8x128xf32>
    %277 = arith.divf %275, %276 : vector<8x128xf32>
    %278 = vector.extract_strided_slice %262 {offsets = [0, 256], sizes = [8, 128], strides = [1, 1]} : vector<8x512xf32> to vector<8x128xf32>
    %279 = math.tanh %278 : vector<8x128xf32>
    %280 = vector.extract_strided_slice %262 {offsets = [0, 384], sizes = [8, 128], strides = [1, 1]} : vector<8x512xf32> to vector<8x128xf32>
    %281 = arith.negf %280 : vector<8x128xf32>
    %282 = math.exp %281 : vector<8x128xf32>
    %cst_74 = arith.constant 1.000000e+00 : f32
    %283 = vector.broadcast %cst_74 : f32 to vector<8x128xf32>
    %284 = arith.addf %283, %282 : vector<8x128xf32>
    %285 = arith.divf %283, %284 : vector<8x128xf32>
    %286 = arith.mulf %277, %227 : vector<8x128xf32>
    %287 = arith.mulf %271, %279 : vector<8x128xf32>
    %288 = arith.addf %286, %287 : vector<8x128xf32>
    %289 = math.tanh %288 : vector<8x128xf32>
    %290 = arith.mulf %285, %289 : vector<8x128xf32>
    %291 = vector.extract_strided_slice %265 {offsets = [0, 0], sizes = [8, 128], strides = [1, 1]} : vector<8x512xf32> to vector<8x128xf32>
    %292 = arith.negf %291 : vector<8x128xf32>
    %293 = math.exp %292 : vector<8x128xf32>
    %cst_75 = arith.constant 1.000000e+00 : f32
    %294 = vector.broadcast %cst_75 : f32 to vector<8x128xf32>
    %295 = arith.addf %294, %293 : vector<8x128xf32>
    %296 = arith.divf %294, %295 : vector<8x128xf32>
    %297 = vector.extract_strided_slice %265 {offsets = [0, 128], sizes = [8, 128], strides = [1, 1]} : vector<8x512xf32> to vector<8x128xf32>
    %298 = arith.negf %297 : vector<8x128xf32>
    %299 = math.exp %298 : vector<8x128xf32>
    %cst_76 = arith.constant 1.000000e+00 : f32
    %300 = vector.broadcast %cst_76 : f32 to vector<8x128xf32>
    %301 = arith.addf %300, %299 : vector<8x128xf32>
    %302 = arith.divf %300, %301 : vector<8x128xf32>
    %303 = vector.extract_strided_slice %265 {offsets = [0, 256], sizes = [8, 128], strides = [1, 1]} : vector<8x512xf32> to vector<8x128xf32>
    %304 = math.tanh %303 : vector<8x128xf32>
    %305 = vector.extract_strided_slice %265 {offsets = [0, 384], sizes = [8, 128], strides = [1, 1]} : vector<8x512xf32> to vector<8x128xf32>
    %306 = arith.negf %305 : vector<8x128xf32>
    %307 = math.exp %306 : vector<8x128xf32>
    %cst_77 = arith.constant 1.000000e+00 : f32
    %308 = vector.broadcast %cst_77 : f32 to vector<8x128xf32>
    %309 = arith.addf %308, %307 : vector<8x128xf32>
    %310 = arith.divf %308, %309 : vector<8x128xf32>
    %311 = arith.mulf %302, %252 : vector<8x128xf32>
    %312 = arith.mulf %296, %304 : vector<8x128xf32>
    %313 = arith.addf %311, %312 : vector<8x128xf32>
    %314 = math.tanh %313 : vector<8x128xf32>
    %315 = arith.mulf %310, %314 : vector<8x128xf32>
    %316 = tpu.concatenate %290, %315 in 1 : vector<8x128xf32>, vector<8x128xf32> -> vector<8x256xf32>
    %c32_78 = arith.constant 32 : index
    %c0_79 = arith.constant 0 : index
    %317 = vector.load %arg10[%c32_78, %c0_79] : memref<64x256xf32, #tpu.memory_space<vmem>>, vector<8x256xf32>
    tpu.vector_store %arg10[%c32_78, %c0_79], %316 {strides = array<i32>} : memref<64x256xf32, #tpu.memory_space<vmem>>, vector<8x256xf32>,
    %318 = arith.truncf %316 : vector<8x256xf32> to vector<8x256xbf16>
    %c0_80 = arith.constant 0 : index
    %c0_81 = arith.constant 0 : index
    %319 = vector.load %arg4[%c0_80, %c0_81] : memref<256x1024xbf16, #tpu.memory_space<vmem>>, vector<256x1024xbf16>
    %cst_82 = arith.constant dense<0.000000e+00> : vector<8x1024xf32>
    %320 = tpu.matmul %318, %319, %cst_82 {dimension_numbers = #tpu.dot_dimension_numbers<[1], [0], [0], [1], [0, 0, 1, 1], [], []>} : vector<8x256xbf16>, vector<256x1024xbf16>, vector<8x1024xf32> -> vector<8x1024xf32>
    %321 = vector.extract_strided_slice %320 {offsets = [0, 0], sizes = [8, 512], strides = [1, 1]} : vector<8x1024xf32> to vector<8x512xf32>
    %c40_83 = arith.constant 40 : index
    %c0_84 = arith.constant 0 : index
    %322 = vector.load %arg8[%c40_83, %c0_84] : memref<64x512xf32, #tpu.memory_space<vmem>>, vector<8x512xf32>
    %323 = arith.addf %321, %322 : vector<8x512xf32>
    %324 = vector.extract_strided_slice %320 {offsets = [0, 512], sizes = [8, 512], strides = [1, 1]} : vector<8x1024xf32> to vector<8x512xf32>
    %c16_85 = arith.constant 16 : index
    %c0_86 = arith.constant 0 : index
    %325 = vector.load %arg9[%c16_85, %c0_86] : memref<64x512xf32, #tpu.memory_space<vmem>>, vector<8x512xf32>
    %326 = arith.addf %324, %325 : vector<8x512xf32>
    %327 = vector.extract_strided_slice %323 {offsets = [0, 0], sizes = [8, 128], strides = [1, 1]} : vector<8x512xf32> to vector<8x128xf32>
    %328 = arith.negf %327 : vector<8x128xf32>
    %329 = math.exp %328 : vector<8x128xf32>
    %cst_87 = arith.constant 1.000000e+00 : f32
    %330 = vector.broadcast %cst_87 : f32 to vector<8x128xf32>
    %331 = arith.addf %330, %329 : vector<8x128xf32>
    %332 = arith.divf %330, %331 : vector<8x128xf32>
    %333 = vector.extract_strided_slice %323 {offsets = [0, 128], sizes = [8, 128], strides = [1, 1]} : vector<8x512xf32> to vector<8x128xf32>
    %334 = arith.negf %333 : vector<8x128xf32>
    %335 = math.exp %334 : vector<8x128xf32>
    %cst_88 = arith.constant 1.000000e+00 : f32
    %336 = vector.broadcast %cst_88 : f32 to vector<8x128xf32>
    %337 = arith.addf %336, %335 : vector<8x128xf32>
    %338 = arith.divf %336, %337 : vector<8x128xf32>
    %339 = vector.extract_strided_slice %323 {offsets = [0, 256], sizes = [8, 128], strides = [1, 1]} : vector<8x512xf32> to vector<8x128xf32>
    %340 = math.tanh %339 : vector<8x128xf32>
    %341 = vector.extract_strided_slice %323 {offsets = [0, 384], sizes = [8, 128], strides = [1, 1]} : vector<8x512xf32> to vector<8x128xf32>
    %342 = arith.negf %341 : vector<8x128xf32>
    %343 = math.exp %342 : vector<8x128xf32>
    %cst_89 = arith.constant 1.000000e+00 : f32
    %344 = vector.broadcast %cst_89 : f32 to vector<8x128xf32>
    %345 = arith.addf %344, %343 : vector<8x128xf32>
    %346 = arith.divf %344, %345 : vector<8x128xf32>
    %347 = arith.mulf %338, %288 : vector<8x128xf32>
    %348 = arith.mulf %332, %340 : vector<8x128xf32>
    %349 = arith.addf %347, %348 : vector<8x128xf32>
    %350 = math.tanh %349 : vector<8x128xf32>
    %351 = arith.mulf %346, %350 : vector<8x128xf32>
    %352 = vector.extract_strided_slice %326 {offsets = [0, 0], sizes = [8, 128], strides = [1, 1]} : vector<8x512xf32> to vector<8x128xf32>
    %353 = arith.negf %352 : vector<8x128xf32>
    %354 = math.exp %353 : vector<8x128xf32>
    %cst_90 = arith.constant 1.000000e+00 : f32
    %355 = vector.broadcast %cst_90 : f32 to vector<8x128xf32>
    %356 = arith.addf %355, %354 : vector<8x128xf32>
    %357 = arith.divf %355, %356 : vector<8x128xf32>
    %358 = vector.extract_strided_slice %326 {offsets = [0, 128], sizes = [8, 128], strides = [1, 1]} : vector<8x512xf32> to vector<8x128xf32>
    %359 = arith.negf %358 : vector<8x128xf32>
    %360 = math.exp %359 : vector<8x128xf32>
    %cst_91 = arith.constant 1.000000e+00 : f32
    %361 = vector.broadcast %cst_91 : f32 to vector<8x128xf32>
    %362 = arith.addf %361, %360 : vector<8x128xf32>
    %363 = arith.divf %361, %362 : vector<8x128xf32>
    %364 = vector.extract_strided_slice %326 {offsets = [0, 256], sizes = [8, 128], strides = [1, 1]} : vector<8x512xf32> to vector<8x128xf32>
    %365 = math.tanh %364 : vector<8x128xf32>
    %366 = vector.extract_strided_slice %326 {offsets = [0, 384], sizes = [8, 128], strides = [1, 1]} : vector<8x512xf32> to vector<8x128xf32>
    %367 = arith.negf %366 : vector<8x128xf32>
    %368 = math.exp %367 : vector<8x128xf32>
    %cst_92 = arith.constant 1.000000e+00 : f32
    %369 = vector.broadcast %cst_92 : f32 to vector<8x128xf32>
    %370 = arith.addf %369, %368 : vector<8x128xf32>
    %371 = arith.divf %369, %370 : vector<8x128xf32>
    %372 = arith.mulf %363, %313 : vector<8x128xf32>
    %373 = arith.mulf %357, %365 : vector<8x128xf32>
    %374 = arith.addf %372, %373 : vector<8x128xf32>
    %375 = math.tanh %374 : vector<8x128xf32>
    %376 = arith.mulf %371, %375 : vector<8x128xf32>
    %377 = tpu.concatenate %351, %376 in 1 : vector<8x128xf32>, vector<8x128xf32> -> vector<8x256xf32>
    %c40_93 = arith.constant 40 : index
    %c0_94 = arith.constant 0 : index
    %378 = vector.load %arg10[%c40_93, %c0_94] : memref<64x256xf32, #tpu.memory_space<vmem>>, vector<8x256xf32>
    tpu.vector_store %arg10[%c40_93, %c0_94], %377 {strides = array<i32>} : memref<64x256xf32, #tpu.memory_space<vmem>>, vector<8x256xf32>,
    %379 = arith.truncf %377 : vector<8x256xf32> to vector<8x256xbf16>
    %c0_95 = arith.constant 0 : index
    %c0_96 = arith.constant 0 : index
    %380 = vector.load %arg4[%c0_95, %c0_96] : memref<256x1024xbf16, #tpu.memory_space<vmem>>, vector<256x1024xbf16>
    %cst_97 = arith.constant dense<0.000000e+00> : vector<8x1024xf32>
    %381 = tpu.matmul %379, %380, %cst_97 {dimension_numbers = #tpu.dot_dimension_numbers<[1], [0], [0], [1], [0, 0, 1, 1], [], []>} : vector<8x256xbf16>, vector<256x1024xbf16>, vector<8x1024xf32> -> vector<8x1024xf32>
    %382 = vector.extract_strided_slice %381 {offsets = [0, 0], sizes = [8, 512], strides = [1, 1]} : vector<8x1024xf32> to vector<8x512xf32>
    %c48_98 = arith.constant 48 : index
    %c0_99 = arith.constant 0 : index
    %383 = vector.load %arg8[%c48_98, %c0_99] : memref<64x512xf32, #tpu.memory_space<vmem>>, vector<8x512xf32>
    %384 = arith.addf %382, %383 : vector<8x512xf32>
    %385 = vector.extract_strided_slice %381 {offsets = [0, 512], sizes = [8, 512], strides = [1, 1]} : vector<8x1024xf32> to vector<8x512xf32>
    %c8_100 = arith.constant 8 : index
    %c0_101 = arith.constant 0 : index
    %386 = vector.load %arg9[%c8_100, %c0_101] : memref<64x512xf32, #tpu.memory_space<vmem>>, vector<8x512xf32>
    %387 = arith.addf %385, %386 : vector<8x512xf32>
    %388 = vector.extract_strided_slice %384 {offsets = [0, 0], sizes = [8, 128], strides = [1, 1]} : vector<8x512xf32> to vector<8x128xf32>
    %389 = arith.negf %388 : vector<8x128xf32>
    %390 = math.exp %389 : vector<8x128xf32>
    %cst_102 = arith.constant 1.000000e+00 : f32
    %391 = vector.broadcast %cst_102 : f32 to vector<8x128xf32>
    %392 = arith.addf %391, %390 : vector<8x128xf32>
    %393 = arith.divf %391, %392 : vector<8x128xf32>
    %394 = vector.extract_strided_slice %384 {offsets = [0, 128], sizes = [8, 128], strides = [1, 1]} : vector<8x512xf32> to vector<8x128xf32>
    %395 = arith.negf %394 : vector<8x128xf32>
    %396 = math.exp %395 : vector<8x128xf32>
    %cst_103 = arith.constant 1.000000e+00 : f32
    %397 = vector.broadcast %cst_103 : f32 to vector<8x128xf32>
    %398 = arith.addf %397, %396 : vector<8x128xf32>
    %399 = arith.divf %397, %398 : vector<8x128xf32>
    %400 = vector.extract_strided_slice %384 {offsets = [0, 256], sizes = [8, 128], strides = [1, 1]} : vector<8x512xf32> to vector<8x128xf32>
    %401 = math.tanh %400 : vector<8x128xf32>
    %402 = vector.extract_strided_slice %384 {offsets = [0, 384], sizes = [8, 128], strides = [1, 1]} : vector<8x512xf32> to vector<8x128xf32>
    %403 = arith.negf %402 : vector<8x128xf32>
    %404 = math.exp %403 : vector<8x128xf32>
    %cst_104 = arith.constant 1.000000e+00 : f32
    %405 = vector.broadcast %cst_104 : f32 to vector<8x128xf32>
    %406 = arith.addf %405, %404 : vector<8x128xf32>
    %407 = arith.divf %405, %406 : vector<8x128xf32>
    %408 = arith.mulf %399, %349 : vector<8x128xf32>
    %409 = arith.mulf %393, %401 : vector<8x128xf32>
    %410 = arith.addf %408, %409 : vector<8x128xf32>
    %411 = math.tanh %410 : vector<8x128xf32>
    %412 = arith.mulf %407, %411 : vector<8x128xf32>
    %413 = vector.extract_strided_slice %387 {offsets = [0, 0], sizes = [8, 128], strides = [1, 1]} : vector<8x512xf32> to vector<8x128xf32>
    %414 = arith.negf %413 : vector<8x128xf32>
    %415 = math.exp %414 : vector<8x128xf32>
    %cst_105 = arith.constant 1.000000e+00 : f32
    %416 = vector.broadcast %cst_105 : f32 to vector<8x128xf32>
    %417 = arith.addf %416, %415 : vector<8x128xf32>
    %418 = arith.divf %416, %417 : vector<8x128xf32>
    %419 = vector.extract_strided_slice %387 {offsets = [0, 128], sizes = [8, 128], strides = [1, 1]} : vector<8x512xf32> to vector<8x128xf32>
    %420 = arith.negf %419 : vector<8x128xf32>
    %421 = math.exp %420 : vector<8x128xf32>
    %cst_106 = arith.constant 1.000000e+00 : f32
    %422 = vector.broadcast %cst_106 : f32 to vector<8x128xf32>
    %423 = arith.addf %422, %421 : vector<8x128xf32>
    %424 = arith.divf %422, %423 : vector<8x128xf32>
    %425 = vector.extract_strided_slice %387 {offsets = [0, 256], sizes = [8, 128], strides = [1, 1]} : vector<8x512xf32> to vector<8x128xf32>
    %426 = math.tanh %425 : vector<8x128xf32>
    %427 = vector.extract_strided_slice %387 {offsets = [0, 384], sizes = [8, 128], strides = [1, 1]} : vector<8x512xf32> to vector<8x128xf32>
    %428 = arith.negf %427 : vector<8x128xf32>
    %429 = math.exp %428 : vector<8x128xf32>
    %cst_107 = arith.constant 1.000000e+00 : f32
    %430 = vector.broadcast %cst_107 : f32 to vector<8x128xf32>
    %431 = arith.addf %430, %429 : vector<8x128xf32>
    %432 = arith.divf %430, %431 : vector<8x128xf32>
    %433 = arith.mulf %424, %374 : vector<8x128xf32>
    %434 = arith.mulf %418, %426 : vector<8x128xf32>
    %435 = arith.addf %433, %434 : vector<8x128xf32>
    %436 = math.tanh %435 : vector<8x128xf32>
    %437 = arith.mulf %432, %436 : vector<8x128xf32>
    %438 = tpu.concatenate %412, %437 in 1 : vector<8x128xf32>, vector<8x128xf32> -> vector<8x256xf32>
    %c48_108 = arith.constant 48 : index
    %c0_109 = arith.constant 0 : index
    %439 = vector.load %arg10[%c48_108, %c0_109] : memref<64x256xf32, #tpu.memory_space<vmem>>, vector<8x256xf32>
    tpu.vector_store %arg10[%c48_108, %c0_109], %438 {strides = array<i32>} : memref<64x256xf32, #tpu.memory_space<vmem>>, vector<8x256xf32>,
    %440 = arith.truncf %438 : vector<8x256xf32> to vector<8x256xbf16>
    %c0_110 = arith.constant 0 : index
    %c0_111 = arith.constant 0 : index
    %441 = vector.load %arg4[%c0_110, %c0_111] : memref<256x1024xbf16, #tpu.memory_space<vmem>>, vector<256x1024xbf16>
    %cst_112 = arith.constant dense<0.000000e+00> : vector<8x1024xf32>
    %442 = tpu.matmul %440, %441, %cst_112 {dimension_numbers = #tpu.dot_dimension_numbers<[1], [0], [0], [1], [0, 0, 1, 1], [], []>} : vector<8x256xbf16>, vector<256x1024xbf16>, vector<8x1024xf32> -> vector<8x1024xf32>
    %443 = vector.extract_strided_slice %442 {offsets = [0, 0], sizes = [8, 512], strides = [1, 1]} : vector<8x1024xf32> to vector<8x512xf32>
    %c56_113 = arith.constant 56 : index
    %c0_114 = arith.constant 0 : index
    %444 = vector.load %arg8[%c56_113, %c0_114] : memref<64x512xf32, #tpu.memory_space<vmem>>, vector<8x512xf32>
    %445 = arith.addf %443, %444 : vector<8x512xf32>
    %446 = vector.extract_strided_slice %442 {offsets = [0, 512], sizes = [8, 512], strides = [1, 1]} : vector<8x1024xf32> to vector<8x512xf32>
    %c0_115 = arith.constant 0 : index
    %c0_116 = arith.constant 0 : index
    %447 = vector.load %arg9[%c0_115, %c0_116] : memref<64x512xf32, #tpu.memory_space<vmem>>, vector<8x512xf32>
    %448 = arith.addf %446, %447 : vector<8x512xf32>
    %449 = vector.extract_strided_slice %445 {offsets = [0, 0], sizes = [8, 128], strides = [1, 1]} : vector<8x512xf32> to vector<8x128xf32>
    %450 = arith.negf %449 : vector<8x128xf32>
    %451 = math.exp %450 : vector<8x128xf32>
    %cst_117 = arith.constant 1.000000e+00 : f32
    %452 = vector.broadcast %cst_117 : f32 to vector<8x128xf32>
    %453 = arith.addf %452, %451 : vector<8x128xf32>
    %454 = arith.divf %452, %453 : vector<8x128xf32>
    %455 = vector.extract_strided_slice %445 {offsets = [0, 128], sizes = [8, 128], strides = [1, 1]} : vector<8x512xf32> to vector<8x128xf32>
    %456 = arith.negf %455 : vector<8x128xf32>
    %457 = math.exp %456 : vector<8x128xf32>
    %cst_118 = arith.constant 1.000000e+00 : f32
    %458 = vector.broadcast %cst_118 : f32 to vector<8x128xf32>
    %459 = arith.addf %458, %457 : vector<8x128xf32>
    %460 = arith.divf %458, %459 : vector<8x128xf32>
    %461 = vector.extract_strided_slice %445 {offsets = [0, 256], sizes = [8, 128], strides = [1, 1]} : vector<8x512xf32> to vector<8x128xf32>
    %462 = math.tanh %461 : vector<8x128xf32>
    %463 = vector.extract_strided_slice %445 {offsets = [0, 384], sizes = [8, 128], strides = [1, 1]} : vector<8x512xf32> to vector<8x128xf32>
    %464 = arith.negf %463 : vector<8x128xf32>
    %465 = math.exp %464 : vector<8x128xf32>
    %cst_119 = arith.constant 1.000000e+00 : f32
    %466 = vector.broadcast %cst_119 : f32 to vector<8x128xf32>
    %467 = arith.addf %466, %465 : vector<8x128xf32>
    %468 = arith.divf %466, %467 : vector<8x128xf32>
    %469 = arith.mulf %460, %410 : vector<8x128xf32>
    %470 = arith.mulf %454, %462 : vector<8x128xf32>
    %471 = arith.addf %469, %470 : vector<8x128xf32>
    %472 = math.tanh %471 : vector<8x128xf32>
    %473 = arith.mulf %468, %472 : vector<8x128xf32>
    %474 = vector.extract_strided_slice %448 {offsets = [0, 0], sizes = [8, 128], strides = [1, 1]} : vector<8x512xf32> to vector<8x128xf32>
    %475 = arith.negf %474 : vector<8x128xf32>
    %476 = math.exp %475 : vector<8x128xf32>
    %cst_120 = arith.constant 1.000000e+00 : f32
    %477 = vector.broadcast %cst_120 : f32 to vector<8x128xf32>
    %478 = arith.addf %477, %476 : vector<8x128xf32>
    %479 = arith.divf %477, %478 : vector<8x128xf32>
    %480 = vector.extract_strided_slice %448 {offsets = [0, 128], sizes = [8, 128], strides = [1, 1]} : vector<8x512xf32> to vector<8x128xf32>
    %481 = arith.negf %480 : vector<8x128xf32>
    %482 = math.exp %481 : vector<8x128xf32>
    %cst_121 = arith.constant 1.000000e+00 : f32
    %483 = vector.broadcast %cst_121 : f32 to vector<8x128xf32>
    %484 = arith.addf %483, %482 : vector<8x128xf32>
    %485 = arith.divf %483, %484 : vector<8x128xf32>
    %486 = vector.extract_strided_slice %448 {offsets = [0, 256], sizes = [8, 128], strides = [1, 1]} : vector<8x512xf32> to vector<8x128xf32>
    %487 = math.tanh %486 : vector<8x128xf32>
    %488 = vector.extract_strided_slice %448 {offsets = [0, 384], sizes = [8, 128], strides = [1, 1]} : vector<8x512xf32> to vector<8x128xf32>
    %489 = arith.negf %488 : vector<8x128xf32>
    %490 = math.exp %489 : vector<8x128xf32>
    %cst_122 = arith.constant 1.000000e+00 : f32
    %491 = vector.broadcast %cst_122 : f32 to vector<8x128xf32>
    %492 = arith.addf %491, %490 : vector<8x128xf32>
    %493 = arith.divf %491, %492 : vector<8x128xf32>
    %494 = arith.mulf %485, %435 : vector<8x128xf32>
    %495 = arith.mulf %479, %487 : vector<8x128xf32>
    %496 = arith.addf %494, %495 : vector<8x128xf32>
    %497 = math.tanh %496 : vector<8x128xf32>
    %498 = arith.mulf %493, %497 : vector<8x128xf32>
    %499 = tpu.concatenate %473, %498 in 1 : vector<8x128xf32>, vector<8x128xf32> -> vector<8x256xf32>
    %c56_123 = arith.constant 56 : index
    %c0_124 = arith.constant 0 : index
    %500 = vector.load %arg10[%c56_123, %c0_124] : memref<64x256xf32, #tpu.memory_space<vmem>>, vector<8x256xf32>
    tpu.vector_store %arg10[%c56_123, %c0_124], %499 {strides = array<i32>} : memref<64x256xf32, #tpu.memory_space<vmem>>, vector<8x256xf32>,
    %c0_125 = arith.constant 0 : index
    %c0_126 = arith.constant 0 : index
    %501 = vector.load %arg10[%c0_125, %c0_126] : memref<64x256xf32, #tpu.memory_space<vmem>>, vector<64x256xf32>
    %502 = arith.truncf %501 : vector<64x256xf32> to vector<64x256xbf16>
    %c0_127 = arith.constant 0 : index
    %c0_128 = arith.constant 0 : index
    %503 = vector.load %arg5[%c0_127, %c0_128] : memref<256x256xbf16, #tpu.memory_space<vmem>>, vector<256x256xbf16>
    %cst_129 = arith.constant dense<0.000000e+00> : vector<64x256xf32>
    %504 = tpu.matmul %502, %503, %cst_129 {dimension_numbers = #tpu.dot_dimension_numbers<[1], [0], [0], [1], [0, 0, 1, 1], [], []>} : vector<64x256xbf16>, vector<256x256xbf16>, vector<64x256xf32> -> vector<64x256xf32>
    %c0_130 = arith.constant 0 : index
    %c0_131 = arith.constant 0 : index
    %505 = vector.load %arg6[%c0_130, %c0_131] : memref<1x256xf32, #tpu.memory_space<vmem>>, vector<1x256xf32>
    %506 = vector.broadcast %505 : vector<1x256xf32> to vector<64x256xf32>
    %507 = arith.addf %504, %506 : vector<64x256xf32>
    %508 = vector.extract_strided_slice %507 {offsets = [0, 0], sizes = [64, 128], strides = [1, 1]} : vector<64x256xf32> to vector<64x128xf32>
    %cst_132 = arith.constant dense<0xFF800000> : vector<64xf32>
    %509 = vector.multi_reduction <maximumf>, %508, %cst_132 [1] : vector<64x128xf32> to vector<64xf32>
    %510 = vector.shape_cast %509 : vector<64xf32> to vector<64x1xf32>
    %511 = vector.broadcast %510 : vector<64x1xf32> to vector<64x128xf32>
    %512 = arith.subf %508, %511 : vector<64x128xf32>
    %513 = math.exp %512 : vector<64x128xf32>
    %514 = vector.broadcast %510 : vector<64x1xf32> to vector<64x128xf32>
    %515 = arith.subf %508, %514 : vector<64x128xf32>
    %cst_133 = arith.constant dense<0.000000e+00> : vector<64xf32>
    %516 = vector.multi_reduction <add>, %513, %cst_133 [1] : vector<64x128xf32> to vector<64xf32>
    %517 = vector.shape_cast %516 : vector<64xf32> to vector<64x1xf32>
    %518 = math.log %517 : vector<64x1xf32>
    %519 = vector.broadcast %518 : vector<64x1xf32> to vector<64x128xf32>
    %520 = arith.subf %515, %519 : vector<64x128xf32>
    %521 = vector.extract_strided_slice %507 {offsets = [0, 128], sizes = [64, 128], strides = [1, 1]} : vector<64x256xf32> to vector<64x128xf32>
    %cst_134 = arith.constant dense<0xFF800000> : vector<64xf32>
    %522 = vector.multi_reduction <maximumf>, %521, %cst_134 [1] : vector<64x128xf32> to vector<64xf32>
    %523 = vector.shape_cast %522 : vector<64xf32> to vector<64x1xf32>
    %524 = vector.broadcast %523 : vector<64x1xf32> to vector<64x128xf32>
    %525 = arith.subf %521, %524 : vector<64x128xf32>
    %526 = math.exp %525 : vector<64x128xf32>
    %527 = vector.broadcast %523 : vector<64x1xf32> to vector<64x128xf32>
    %528 = arith.subf %521, %527 : vector<64x128xf32>
    %cst_135 = arith.constant dense<0.000000e+00> : vector<64xf32>
    %529 = vector.multi_reduction <add>, %526, %cst_135 [1] : vector<64x128xf32> to vector<64xf32>
    %530 = vector.shape_cast %529 : vector<64xf32> to vector<64x1xf32>
    %531 = math.log %530 : vector<64x1xf32>
    %532 = vector.broadcast %531 : vector<64x1xf32> to vector<64x128xf32>
    %533 = arith.subf %528, %532 : vector<64x128xf32>
    %534 = arith.addf %520, %533 : vector<64x128xf32>
    %c0_136 = arith.constant 0 : index
    %c0_137 = arith.constant 0 : index
    %c0_138 = arith.constant 0 : index
    %535 = vector.load %arg7[%c0_136, %c0_137, %c0_138] : memref<1x64x128xf32, #tpu.memory_space<vmem>>, vector<1x64x128xf32>
    %536 = vector.shape_cast %535 : vector<1x64x128xf32> to vector<64x128xf32>
    %537 = vector.shape_cast %534 : vector<64x128xf32> to vector<1x64x128xf32>
    tpu.vector_store %arg7[%c0_136, %c0_137, %c0_138], %537 {strides = array<i32>} : memref<1x64x128xf32, #tpu.memory_space<vmem>>, vector<1x64x128xf32>,
    return
  }
  func.func @transform_0(%arg0: i32) -> (i32, i32, i32) {
    %c0_i32 = arith.constant 0 : i32
    %c0_i32_0 = arith.constant 0 : i32
    %c0_i32_1 = arith.constant 0 : i32
    return %arg0, %c0_i32, %c0_i32_0 : i32, i32, i32
  }
  func.func @transform_1(%arg0: i32) -> (i32, i32) {
    %c0_i32 = arith.constant 0 : i32
    %c0_i32_0 = arith.constant 0 : i32
    %c0_i32_1 = arith.constant 0 : i32
    return %c0_i32, %c0_i32_0 : i32, i32
  }
  func.func @transform_2(%arg0: i32) -> (i32, i32) {
    %c0_i32 = arith.constant 0 : i32
    %c0_i32_0 = arith.constant 0 : i32
    %c0_i32_1 = arith.constant 0 : i32
    return %c0_i32, %c0_i32_0 : i32, i32
  }
  func.func @transform_3(%arg0: i32) -> (i32, i32) {
    %c0_i32 = arith.constant 0 : i32
    %c0_i32_0 = arith.constant 0 : i32
    %c0_i32_1 = arith.constant 0 : i32
    return %c0_i32, %c0_i32_0 : i32, i32
  }
  func.func @transform_4(%arg0: i32) -> (i32, i32) {
    %c0_i32 = arith.constant 0 : i32
    %c0_i32_0 = arith.constant 0 : i32
    %c0_i32_1 = arith.constant 0 : i32
    return %c0_i32, %c0_i32_0 : i32, i32
  }
  func.func @transform_5(%arg0: i32) -> (i32, i32) {
    %c0_i32 = arith.constant 0 : i32
    %c0_i32_0 = arith.constant 0 : i32
    %c0_i32_1 = arith.constant 0 : i32
    return %c0_i32, %c0_i32_0 : i32, i32
  }
  func.func @transform_6(%arg0: i32) -> (i32, i32, i32) {
    %c0_i32 = arith.constant 0 : i32
    %c0_i32_0 = arith.constant 0 : i32
    %c0_i32_1 = arith.constant 0 : i32
    return %arg0, %c0_i32, %c0_i32_0 : i32, i32, i32
  }
}

</mosaic_0001>

<llo_original>
// kernel: tpu_custom_call.1
$region0: #{tpu_custom_call.1}
  #allocation0 [shape = 'u32[]', space=smem, size = 0x4, offset = 0x4, fixed_abs, tag = 'smem constant byte address 0x4 - core index']
  #allocation1 [shape = 'u32[144,128]{1,0:T(1,128)}', space=vmem, size = 0x12000, scoped, tag = 'internal scratch']
  #allocation2 [shape = 'f32[64,512]{1,0:T(8,128)}', space=vmem, size = 0x20000, scoped, tag = 'scratch operand']
  #allocation3 [shape = 'f32[64,512]{1,0:T(8,128)}', space=vmem, size = 0x20000, scoped, tag = 'scratch operand']
  #allocation4 [shape = 'f32[64,256]{1,0:T(8,128)}', space=vmem, size = 0x10000, scoped, tag = 'scratch operand']
  %s0 = inlined_call_operand.vmem [shape: bf16[1,64,16], index: 0, kind: input, shape index: {}]
  %s1 = inlined_call_operand.hbm [shape: bf16[16,1024], index: 1, kind: input, shape index: {}]
  %s2 = inlined_call_operand.vmem [shape: f32[1,1024], index: 2, kind: input, shape index: {}]
  %s3 = inlined_call_operand.hbm [shape: bf16[256,1024], index: 3, kind: input, shape index: {}]
  %s4 = inlined_call_operand.hbm [shape: bf16[256,256], index: 4, kind: input, shape index: {}]
  %s5 = inlined_call_operand.vmem [shape: f32[1,256], index: 5, kind: input, shape index: {}]
  %s6 = inlined_call_operand.hbm [shape: f32[1,64,128], index: 6, kind: output, shape index: {}]
  %s7 = sld [smem:[#allocation0]]
  $region46: #{tpu_custom_call.1} parent=0
    _
  %s9 = ssub.s32 1, %s7
  %s10 = scalar_select 0, %s9, %s7
  $region1: #{tpu_custom_call.1} parent=0
    #allocation5 [shape = 'u8[32768]{0}', space=vmem, size = 0x8000, scoped, tag = 'input window, operand 1, single buffered']
    #allocation6 [shape = 's32[1]{0}', space=sflag, size = 0x4, scoped, tag = 'scoped memory for tpu_custom_call.1']
    #allocation7 [shape = 's32[1]{0}', space=sflag, size = 0x4, scoped, tag = 'scoped memory for tpu_custom_call.1']
    #allocation8 [shape = 'u8[524288]{0}', space=vmem, size = 0x80000, scoped, tag = 'input window, operand 3, single buffered']
    #allocation9 [shape = 's32[1]{0}', space=sflag, size = 0x4, scoped, tag = 'scoped memory for tpu_custom_call.1']
    #allocation10 [shape = 'u8[131072]{0}', space=vmem, size = 0x20000, scoped, tag = 'input window, operand 4, single buffered']
    #allocation11 [shape = 'u8[32768]{0}', space=vmem, size = 0x8000, scoped, tag = 'output window, operand 0, single buffered']
    %11 = vsyncpa [#allocation6], 0
    %12 = vsyncpa [#allocation9], 0
    %13 = vsyncpa [#allocation7], 0
    // Predicated region
    $region2: #{tpu_custom_call.1} parent=1 // pred_check
      _
    $region3: #{tpu_custom_call.1} parent=1 // pred_check_branch
      %15 = sbr.rel (0) target = $region5
    $region4: #{tpu_custom_call.1} parent=1 // pred_region
      _
    $region5: #{tpu_custom_call.1} parent=1 // pred_fallthru
      _
    // Predicated region
    $region6: #{tpu_custom_call.1} parent=1 // pred_check
      _
    $region7: #{tpu_custom_call.1} parent=1 // pred_check_branch
      %17 = sbr.rel (0) target = $region9
    $region8: #{tpu_custom_call.1} parent=1 // pred_region
      %s19 = ssub.s32 1024, 1024
      %20 = vsyncadd [#allocation6], %s19
      %s21 = sshll.u32 [#allocation5], 4
      %s22 = int_to_ptr.vmem [resolvable:$true] %s21
      %27 = dma.hbm_to_vmem [thread:$0]  %s1, 1024, %s22, [#allocation6], 512, 512, 32
    $region9: #{tpu_custom_call.1} parent=1 // pred_fallthru
      _
    // Predicated region
    $region10: #{tpu_custom_call.1} parent=1 // pred_check
      _
    $region11: #{tpu_custom_call.1} parent=1 // pred_check_branch
      %29 = sbr.rel (0) target = $region13
    $region12: #{tpu_custom_call.1} parent=1 // pred_region
      _
    $region13: #{tpu_custom_call.1} parent=1 // pred_fallthru
      _
    // Predicated region
    $region14: #{tpu_custom_call.1} parent=1 // pred_check
      _
    $region15: #{tpu_custom_call.1} parent=1 // pred_check_branch
      %31 = sbr.rel (0) target = $region17
    $region16: #{tpu_custom_call.1} parent=1 // pred_region
      %s33 = ssub.s32 16384, 16384
      %34 = vsyncadd [#allocation9], %s33
      %s35 = sshll.u32 [#allocation8], 4
      %s36 = int_to_ptr.vmem [resolvable:$true] %s35
      %41 = dma.hbm_to_vmem [thread:$0]  %s3, 16384, %s36, [#allocation9], 512, 512, 32
    $region17: #{tpu_custom_call.1} parent=1 // pred_fallthru
      _
    // Predicated region
    $region18: #{tpu_custom_call.1} parent=1 // pred_check
      _
    $region19: #{tpu_custom_call.1} parent=1 // pred_check_branch
      %43 = sbr.rel (0) target = $region21
    $region20: #{tpu_custom_call.1} parent=1 // pred_region
      %s45 = ssub.s32 4096, 4096
      %46 = vsyncadd [#allocation9], %s45
      %s47 = sshll.u32 [#allocation10], 4
      %s48 = int_to_ptr.vmem [resolvable:$true] %s47
      %53 = dma.hbm_to_vmem [thread:$0]  %s4, 4096, %s48, [#allocation9], 128, 128, 8
    $region21: #{tpu_custom_call.1} parent=1 // pred_fallthru
      _
    // Predicated region
    $region22: #{tpu_custom_call.1} parent=1 // pred_check
      _
    $region23: #{tpu_custom_call.1} parent=1 // pred_check_branch
      %55 = sbr.rel (0) target = $region25
    $region24: #{tpu_custom_call.1} parent=1 // pred_region
      _
    $region25: #{tpu_custom_call.1} parent=1 // pred_fallthru
      _
    // Predicated region
    $region26: #{tpu_custom_call.1} parent=1 // pred_check
      _
    $region27: #{tpu_custom_call.1} parent=1 // pred_check_branch
      %57 = sbr.rel (0) target = $region29
    $region28: #{tpu_custom_call.1} parent=1 // pred_region
      %58 = dma.done [#allocation6], 1024
    $region29: #{tpu_custom_call.1} parent=1 // pred_fallthru
      _
    // Predicated region
    $region30: #{tpu_custom_call.1} parent=1 // pred_check
      _
    $region31: #{tpu_custom_call.1} parent=1 // pred_check_branch
      %60 = sbr.rel (0) target = $region33
    $region32: #{tpu_custom_call.1} parent=1 // pred_region
      %61 = dma.done [#allocation9], 16384
    $region33: #{tpu_custom_call.1} parent=1 // pred_fallthru
      _
    // Predicated region
    $region34: #{tpu_custom_call.1} parent=1 // pred_check
      _
    $region35: #{tpu_custom_call.1} parent=1 // pred_check_branch
      %63 = sbr.rel (0) target = $region37
    $region36: #{tpu_custom_call.1} parent=1 // pred_region
      %64 = dma.done [#allocation9], 4096
    $region37: #{tpu_custom_call.1} parent=1 // pred_fallthru
      _
    %v66 = vld [vmem:[%s0] sm:$0xf]
    %v67 = vld [vmem:[%s0 + $0x4] sm:$0xf]
    %v68 = vld [vmem:[%s0 + $0x8] sm:$0xf]
    %v69 = vld [vmem:[%s0 + $0xc] sm:$0xf]
    %v70 = vld [vmem:[%s0 + $0x10] sm:$0xf]
    %v71 = vld [vmem:[%s0 + $0x14] sm:$0xf]
    %v72 = vld [vmem:[%s0 + $0x18] sm:$0xf]
    %v73 = vld [vmem:[%s0 + $0x1c] sm:$0xf]
    %v74 = vld [vmem:[#allocation5] sm:$0xff]
    %v75 = vld [vmem:[#allocation5 + $0x8] sm:$0xff]
    %v76 = vld [vmem:[#allocation5 + $0x10] sm:$0xff]
    %v77 = vld [vmem:[#allocation5 + $0x18] sm:$0xff]
    %v78 = vld [vmem:[#allocation5 + $0x20] sm:$0xff]
    %v79 = vld [vmem:[#allocation5 + $0x28] sm:$0xff]
    %v80 = vld [vmem:[#allocation5 + $0x30] sm:$0xff]
    %v81 = vld [vmem:[#allocation5 + $0x38] sm:$0xff]
    %v82 = vld [vmem:[%s2] sm:$0xff]
    %v84 = vlaneseq
    %v85 = vshrl.u32 %v84, 7
    %v86 = vsub.s32 0, %v85
    %v87 = vrot.slane %v82, %v86
    %v88 = vlaneseq
    %v89 = vshrl.u32 %v88, 7
    %v90 = vsub.s32 1, %v89
    %v91 = vrot.slane %v82, %v90
    %v92 = vlaneseq
    %v93 = vshrl.u32 %v92, 7
    %v94 = vsub.s32 2, %v93
    %v95 = vrot.slane %v82, %v94
    %v96 = vlaneseq
    %v97 = vshrl.u32 %v96, 7
    %v98 = vsub.s32 3, %v97
    %v99 = vrot.slane %v82, %v98
    %v100 = vlaneseq
    %v101 = vshrl.u32 %v100, 7
    %v102 = vsub.s32 4, %v101
    %v103 = vrot.slane %v82, %v102
    %v104 = vlaneseq
    %v105 = vshrl.u32 %v104, 7
    %v106 = vsub.s32 5, %v105
    %v107 = vrot.slane %v82, %v106
    %v108 = vlaneseq
    %v109 = vshrl.u32 %v108, 7
    %v110 = vsub.s32 6, %v109
    %v111 = vrot.slane %v82, %v110
    %v112 = vlaneseq
    %v113 = vshrl.u32 %v112, 7
    %v114 = vsub.s32 7, %v113
    %v115 = vrot.slane %v82, %v114
    %v132 = vunpack.c.l.b16 %v66
    %v133 = vunpack.c.l.b16 %v67
    %v134 = vunpack.c.l.b16 %v68
    %v135 = vunpack.c.l.b16 %v69
    %v136 = vunpack.c.l.b16 %v70
    %v137 = vunpack.c.l.b16 %v71
    %v138 = vunpack.c.l.b16 %v72
    %v139 = vunpack.c.l.b16 %v73
    %v140 = vpack.c.b16 %v133, %v132
    %v141 = vpack.c.b16 %v135, %v134
    %v142 = vpack.c.b16 %v137, %v136
    %v143 = vpack.c.b16 %v139, %v138
    %v152 = vunpack.c.l.b16 %v74
    %v153 = vunpack.c.h.b16 %v74
    %v154 = vunpack.c.l.b16 %v75
    %v155 = vunpack.c.h.b16 %v75
    %v156 = vunpack.c.l.b16 %v76
    %v157 = vunpack.c.h.b16 %v76
    %v158 = vunpack.c.l.b16 %v77
    %v159 = vunpack.c.h.b16 %v77
    %v160 = vunpack.c.l.b16 %v78
    %v161 = vunpack.c.h.b16 %v78
    %v162 = vunpack.c.l.b16 %v79
    %v163 = vunpack.c.h.b16 %v79
    %v164 = vunpack.c.l.b16 %v80
    %v165 = vunpack.c.h.b16 %v80
    %v166 = vunpack.c.l.b16 %v81
    %v167 = vunpack.c.h.b16 %v81
    %v168 = vpack.c.b16 %v160, %v152
    %v169 = vpack.c.b16 %v161, %v153
    %v170 = vpack.c.b16 %v162, %v154
    %v171 = vpack.c.b16 %v163, %v155
    %v172 = vpack.c.b16 %v164, %v156
    %v173 = vpack.c.b16 %v165, %v157
    %v174 = vpack.c.b16 %v166, %v158
    %v175 = vpack.c.b16 %v167, %v159
    %vm184 = vcmask 130048
    %v186 = vsel %vm184, %v140, 0
    %v189 = vsel %vm184, %v141, 0
    %v192 = vsel %vm184, %v142, 0
    %v195 = vsel %vm184, %v143, 0
    %197 = vmatprep.subr.bf16.mxu0 %v169
    %198 = vmatpush1.bf16.msra.mxu0 %v168
    %199 = vmatprep.subr.bf16.mxu0 0
    %200 = vmatpush1.bf16.msra.mxu0 0
    %201 = vmatprep.subr.bf16.mxu0 0
    %202 = vmatpush1.bf16.msra.mxu0 0
    %203 = vmatprep.subr.bf16.mxu0 0
    %204 = vmatpush1.bf16.msra.mxu0 0
    %205 = vmatprep.subr.bf16.mxu0 0
    %206 = vmatpush1.bf16.msra.mxu0 0
    %207 = vmatprep.subr.bf16.mxu0 0
    %208 = vmatpush1.bf16.msra.mxu0 0
    %209 = vmatprep.subr.bf16.mxu0 0
    %210 = vmatpush1.bf16.msra.mxu0 0
    %211 = vmatprep.subr.bf16.mxu0 0
    %212 = vmatpush1.bf16.msra.mxu0 0
    %213 = vmatprep.subr.bf16.mxu0 0
    %214 = vmatpush1.bf16.msra.mxu0 0
    %215 = vmatprep.subr.bf16.mxu0 0
    %216 = vmatpush1.bf16.msra.mxu0 0
    %217 = vmatprep.subr.bf16.mxu0 0
    %218 = vmatpush1.bf16.msra.mxu0 0
    %219 = vmatprep.subr.bf16.mxu0 0
    %220 = vmatpush1.bf16.msra.mxu0 0
    %221 = vmatprep.subr.bf16.mxu0 0
    %222 = vmatpush1.bf16.msra.mxu0 0
    %223 = vmatprep.subr.bf16.mxu0 0
    %224 = vmatpush1.bf16.msra.mxu0 0
    %225 = vmatprep.subr.bf16.mxu0 0
    %226 = vmatpush1.bf16.msra.mxu0 0
    %227 = vmatprep.subr.bf16.mxu0 0
    %228 = vmatpush1.bf16.msra.mxu0 0
    %229 = vmatprep.mubr.bf16.mxu0 0
    %230 = vmatmul.mubr.bf16.gmra.mrb[0].mxu0 %v186
    %v231 = vpop.f32.mrb[0].mxu0
    %v232 = vadd.f32 %v87, %v231
    %v233 = vpop.f32.mrb[0].mxu0
    %v234 = vadd.f32 %v91, %v233
    %v235 = vpop.f32.mrb[0].mxu0
    %v236 = vadd.f32 %v87, %v235
    %v237 = vpop.f32.mrb[0].mxu0
    %v238 = vadd.f32 %v91, %v237
    %239 = vmatprep.mubr.bf16.mxu0 0
    %240 = vmatmul.mubr.bf16.gmra.mrb[0].mxu0 %v189
    %v241 = vpop.f32.mrb[0].mxu0
    %v242 = vadd.f32 %v87, %v241
    %v243 = vpop.f32.mrb[0].mxu0
    %v244 = vadd.f32 %v91, %v243
    %v245 = vpop.f32.mrb[0].mxu0
    %v246 = vadd.f32 %v87, %v245
    %v247 = vpop.f32.mrb[0].mxu0
    %v248 = vadd.f32 %v91, %v247
    %249 = vmatprep.mubr.bf16.mxu0 0
    %250 = vmatmul.mubr.bf16.gmra.mrb[0].mxu0 %v192
    %v251 = vpop.f32.mrb[0].mxu0
    %v252 = vadd.f32 %v87, %v251
    %v253 = vpop.f32.mrb[0].mxu0
    %v254 = vadd.f32 %v91, %v253
    %v255 = vpop.f32.mrb[0].mxu0
    %v256 = vadd.f32 %v87, %v255
    %v257 = vpop.f32.mrb[0].mxu0
    %v258 = vadd.f32 %v91, %v257
    %259 = vmatprep.mubr.bf16.mxu0 0
    %260 = vmatmul.mubr.bf16.gmra.mrb[0].mxu0 %v195
    %v261 = vpop.f32.mrb[0].mxu0
    %v262 = vadd.f32 %v87, %v261
    %v263 = vpop.f32.mrb[0].mxu0
    %v264 = vadd.f32 %v91, %v263
    %v265 = vpop.f32.mrb[0].mxu0
    %v266 = vadd.f32 %v87, %v265
    %v267 = vpop.f32.mrb[0].mxu0
    %v268 = vadd.f32 %v91, %v267
    %269 = vdwg.mxu0
    %270 = vmatprep.subr.bf16.mxu0 %v171
    %271 = vmatpush1.bf16.msra.mxu0 %v170
    %272 = vmatprep.subr.bf16.mxu0 0
    %273 = vmatpush1.bf16.msra.mxu0 0
    %274 = vmatprep.subr.bf16.mxu0 0
    %275 = vmatpush1.bf16.msra.mxu0 0
    %276 = vmatprep.subr.bf16.mxu0 0
    %277 = vmatpush1.bf16.msra.mxu0 0
    %278 = vmatprep.subr.bf16.mxu0 0
    %279 = vmatpush1.bf16.msra.mxu0 0
    %280 = vmatprep.subr.bf16.mxu0 0
    %281 = vmatpush1.bf16.msra.mxu0 0
    %282 = vmatprep.subr.bf16.mxu0 0
    %283 = vmatpush1.bf16.msra.mxu0 0
    %284 = vmatprep.subr.bf16.mxu0 0
    %285 = vmatpush1.bf16.msra.mxu0 0
    %286 = vmatprep.subr.bf16.mxu0 0
    %287 = vmatpush1.bf16.msra.mxu0 0
    %288 = vmatprep.subr.bf16.mxu0 0
    %289 = vmatpush1.bf16.msra.mxu0 0
    %290 = vmatprep.subr.bf16.mxu0 0
    %291 = vmatpush1.bf16.msra.mxu0 0
    %292 = vmatprep.subr.bf16.mxu0 0
    %293 = vmatpush1.bf16.msra.mxu0 0
    %294 = vmatprep.subr.bf16.mxu0 0
    %295 = vmatpush1.bf16.msra.mxu0 0
    %296 = vmatprep.subr.bf16.mxu0 0
    %297 = vmatpush1.bf16.msra.mxu0 0
    %298 = vmatprep.subr.bf16.mxu0 0
    %299 = vmatpush1.bf16.msra.mxu0 0
    %300 = vmatprep.subr.bf16.mxu0 0
    %301 = vmatpush1.bf16.msra.mxu0 0
    %302 = vmatprep.mubr.bf16.mxu0 0
    %303 = vmatmul.mubr.bf16.gmra.mrb[0].mxu0 %v186
    %v304 = vpop.f32.mrb[0].mxu0
    %v305 = vadd.f32 %v95, %v304
    %v306 = vpop.f32.mrb[0].mxu0
    %v307 = vadd.f32 %v99, %v306
    %v308 = vpop.f32.mrb[0].mxu0
    %v309 = vadd.f32 %v95, %v308
    %v310 = vpop.f32.mrb[0].mxu0
    %v311 = vadd.f32 %v99, %v310
    %312 = vmatprep.mubr.bf16.mxu0 0
    %313 = vmatmul.mubr.bf16.gmra.mrb[0].mxu0 %v189
    %v314 = vpop.f32.mrb[0].mxu0
    %v315 = vadd.f32 %v95, %v314
    %v316 = vpop.f32.mrb[0].mxu0
    %v317 = vadd.f32 %v99, %v316
    %v318 = vpop.f32.mrb[0].mxu0
    %v319 = vadd.f32 %v95, %v318
    %v320 = vpop.f32.mrb[0].mxu0
    %v321 = vadd.f32 %v99, %v320
    %322 = vmatprep.mubr.bf16.mxu0 0
    %323 = vmatmul.mubr.bf16.gmra.mrb[0].mxu0 %v192
    %v324 = vpop.f32.mrb[0].mxu0
    %v325 = vadd.f32 %v95, %v324
    %v326 = vpop.f32.mrb[0].mxu0
    %v327 = vadd.f32 %v99, %v326
    %v328 = vpop.f32.mrb[0].mxu0
    %v329 = vadd.f32 %v95, %v328
    %v330 = vpop.f32.mrb[0].mxu0
    %v331 = vadd.f32 %v99, %v330
    %332 = vmatprep.mubr.bf16.mxu0 0
    %333 = vmatmul.mubr.bf16.gmra.mrb[0].mxu0 %v195
    %v334 = vpop.f32.mrb[0].mxu0
    %v335 = vadd.f32 %v95, %v334
    %v336 = vpop.f32.mrb[0].mxu0
    %v337 = vadd.f32 %v99, %v336
    %v338 = vpop.f32.mrb[0].mxu0
    %v339 = vadd.f32 %v95, %v338
    %v340 = vpop.f32.mrb[0].mxu0
    %v341 = vadd.f32 %v99, %v340
    %342 = vdwg.mxu0
    %343 = vmatprep.subr.bf16.mxu0 %v173
    %344 = vmatpush1.bf16.msra.mxu0 %v172
    %345 = vmatprep.subr.bf16.mxu0 0
    %346 = vmatpush1.bf16.msra.mxu0 0
    %347 = vmatprep.subr.bf16.mxu0 0
    %348 = vmatpush1.bf16.msra.mxu0 0
    %349 = vmatprep.subr.bf16.mxu0 0
    %350 = vmatpush1.bf16.msra.mxu0 0
    %351 = vmatprep.subr.bf16.mxu0 0
    %352 = vmatpush1.bf16.msra.mxu0 0
    %353 = vmatprep.subr.bf16.mxu0 0
    %354 = vmatpush1.bf16.msra.mxu0 0
    %355 = vmatprep.subr.bf16.mxu0 0
    %356 = vmatpush1.bf16.msra.mxu0 0
    %357 = vmatprep.subr.bf16.mxu0 0
    %358 = vmatpush1.bf16.msra.mxu0 0
    %359 = vmatprep.subr.bf16.mxu0 0
    %360 = vmatpush1.bf16.msra.mxu0 0
    %361 = vmatprep.subr.bf16.mxu0 0
    %362 = vmatpush1.bf16.msra.mxu0 0
    %363 = vmatprep.subr.bf16.mxu0 0
    %364 = vmatpush1.bf16.msra.mxu0 0
    %365 = vmatprep.subr.bf16.mxu0 0
    %366 = vmatpush1.bf16.msra.mxu0 0
    %367 = vmatprep.subr.bf16.mxu0 0
    %368 = vmatpush1.bf16.msra.mxu0 0
    %369 = vmatprep.subr.bf16.mxu0 0
    %370 = vmatpush1.bf16.msra.mxu0 0
    %371 = vmatprep.subr.bf16.mxu0 0
    %372 = vmatpush1.bf16.msra.mxu0 0
    %373 = vmatprep.subr.bf16.mxu0 0
    %374 = vmatpush1.bf16.msra.mxu0 0
    %375 = vmatprep.mubr.bf16.mxu0 0
    %376 = vmatmul.mubr.bf16.gmra.mrb[0].mxu0 %v186
    %v377 = vpop.f32.mrb[0].mxu0
    %v378 = vadd.f32 %v103, %v377
    %v379 = vpop.f32.mrb[0].mxu0
    %v380 = vadd.f32 %v107, %v379
    %v381 = vpop.f32.mrb[0].mxu0
    %v382 = vadd.f32 %v103, %v381
    %v383 = vpop.f32.mrb[0].mxu0
    %v384 = vadd.f32 %v107, %v383
    %385 = vmatprep.mubr.bf16.mxu0 0
    %386 = vmatmul.mubr.bf16.gmra.mrb[0].mxu0 %v189
    %v387 = vpop.f32.mrb[0].mxu0
    %v388 = vadd.f32 %v103, %v387
    %v389 = vpop.f32.mrb[0].mxu0
    %v390 = vadd.f32 %v107, %v389
    %v391 = vpop.f32.mrb[0].mxu0
    %v392 = vadd.f32 %v103, %v391
    %v393 = vpop.f32.mrb[0].mxu0
    %v394 = vadd.f32 %v107, %v393
    %395 = vmatprep.mubr.bf16.mxu0 0
    %396 = vmatmul.mubr.bf16.gmra.mrb[0].mxu0 %v192
    %v397 = vpop.f32.mrb[0].mxu0
    %v398 = vadd.f32 %v103, %v397
    %v399 = vpop.f32.mrb[0].mxu0
    %v400 = vadd.f32 %v107, %v399
    %v401 = vpop.f32.mrb[0].mxu0
    %v402 = vadd.f32 %v103, %v401
    %v403 = vpop.f32.mrb[0].mxu0
    %v404 = vadd.f32 %v107, %v403
    %405 = vmatprep.mubr.bf16.mxu0 0
    %406 = vmatmul.mubr.bf16.gmra.mrb[0].mxu0 %v195
    %v407 = vpop.f32.mrb[0].mxu0
    %v408 = vadd.f32 %v103, %v407
    %v409 = vpop.f32.mrb[0].mxu0
    %v410 = vadd.f32 %v107, %v409
    %v411 = vpop.f32.mrb[0].mxu0
    %v412 = vadd.f32 %v103, %v411
    %v413 = vpop.f32.mrb[0].mxu0
    %v414 = vadd.f32 %v107, %v413
    %415 = vdwg.mxu0
    %416 = vmatprep.subr.bf16.mxu0 %v175
    %417 = vmatpush1.bf16.msra.mxu0 %v174
    %418 = vmatprep.subr.bf16.mxu0 0
    %419 = vmatpush1.bf16.msra.mxu0 0
    %420 = vmatprep.subr.bf16.mxu0 0
    %421 = vmatpush1.bf16.msra.mxu0 0
    %422 = vmatprep.subr.bf16.mxu0 0
    %423 = vmatpush1.bf16.msra.mxu0 0
    %424 = vmatprep.subr.bf16.mxu0 0
    %425 = vmatpush1.bf16.msra.mxu0 0
    %426 = vmatprep.subr.bf16.mxu0 0
    %427 = vmatpush1.bf16.msra.mxu0 0
    %428 = vmatprep.subr.bf16.mxu0 0
    %429 = vmatpush1.bf16.msra.mxu0 0
    %430 = vmatprep.subr.bf16.mxu0 0
    %431 = vmatpush1.bf16.msra.mxu0 0
    %432 = vmatprep.subr.bf16.mxu0 0
    %433 = vmatpush1.bf16.msra.mxu0 0
    %434 = vmatprep.subr.bf16.mxu0 0
    %435 = vmatpush1.bf16.msra.mxu0 0
    %436 = vmatprep.subr.bf16.mxu0 0
    %437 = vmatpush1.bf16.msra.mxu0 0
    %438 = vmatprep.subr.bf16.mxu0 0
    %439 = vmatpush1.bf16.msra.mxu0 0
    %440 = vmatprep.subr.bf16.mxu0 0
    %441 = vmatpush1.bf16.msra.mxu0 0
    %442 = vmatprep.subr.bf16.mxu0 0
    %443 = vmatpush1.bf16.msra.mxu0 0
    %444 = vmatprep.subr.bf16.mxu0 0
    %445 = vmatpush1.bf16.msra.mxu0 0
    %446 = vmatprep.subr.bf16.mxu0 0
    %447 = vmatpush1.bf16.msra.mxu0 0
    %448 = vmatprep.mubr.bf16.mxu0 0
    %449 = vmatmul.mubr.bf16.gmra.mrb[0].mxu0 %v186
    %v450 = vpop.f32.mrb[0].mxu0
    %v451 = vadd.f32 %v111, %v450
    %v452 = vpop.f32.mrb[0].mxu0
    %v453 = vadd.f32 %v115, %v452
    %v454 = vpop.f32.mrb[0].mxu0
    %v455 = vadd.f32 %v111, %v454
    %v456 = vpop.f32.mrb[0].mxu0
    %v457 = vadd.f32 %v115, %v456
    %458 = vmatprep.mubr.bf16.mxu0 0
    %459 = vmatmul.mubr.bf16.gmra.mrb[0].mxu0 %v189
    %v460 = vpop.f32.mrb[0].mxu0
    %v461 = vadd.f32 %v111, %v460
    %v462 = vpop.f32.mrb[0].mxu0
    %v463 = vadd.f32 %v115, %v462
    %v464 = vpop.f32.mrb[0].mxu0
    %v465 = vadd.f32 %v111, %v464
    %v466 = vpop.f32.mrb[0].mxu0
    %v467 = vadd.f32 %v115, %v466
    %468 = vmatprep.mubr.bf16.mxu0 0
    %469 = vmatmul.mubr.bf16.gmra.mrb[0].mxu0 %v192
    %v470 = vpop.f32.mrb[0].mxu0
    %v471 = vadd.f32 %v111, %v470
    %v472 = vpop.f32.mrb[0].mxu0
    %v473 = vadd.f32 %v115, %v472
    %v474 = vpop.f32.mrb[0].mxu0
    %v475 = vadd.f32 %v111, %v474
    %v476 = vpop.f32.mrb[0].mxu0
    %v477 = vadd.f32 %v115, %v476
    %478 = vmatprep.mubr.bf16.mxu0 0
    %479 = vmatmul.mubr.bf16.gmra.mrb[0].mxu0 %v195
    %v480 = vpop.f32.mrb[0].mxu0
    %v481 = vadd.f32 %v111, %v480
    %v482 = vpop.f32.mrb[0].mxu0
    %v483 = vadd.f32 %v115, %v482
    %v484 = vpop.f32.mrb[0].mxu0
    %v485 = vadd.f32 %v111, %v484
    %v486 = vpop.f32.mrb[0].mxu0
    %v487 = vadd.f32 %v115, %v486
    %488 = vdwg.mxu0
    %489 = vst [vmem:[#allocation2] sm:$0xff] %v232
    %490 = vst [vmem:[#allocation2 + $0x8] sm:$0xff] %v234
    %491 = vst [vmem:[#allocation2 + $0x10] sm:$0xff] %v305
    %492 = vst [vmem:[#allocation2 + $0x18] sm:$0xff] %v307
    %493 = vst [vmem:[#allocation2 + $0x20] sm:$0xff] %v236
    %494 = vst [vmem:[#allocation2 + $0x28] sm:$0xff] %v238
    %495 = vst [vmem:[#allocation2 + $0x30] sm:$0xff] %v309
    %496 = vst [vmem:[#allocation2 + $0x38] sm:$0xff] %v311
    %497 = vst [vmem:[#allocation2 + $0x40] sm:$0xff] %v242
    %498 = vst [vmem:[#allocation2 + $0x48] sm:$0xff] %v244
    %499 = vst [vmem:[#allocation2 + $0x50] sm:$0xff] %v315
    %500 = vst [vmem:[#allocation2 + $0x58] sm:$0xff] %v317
    %501 = vst [vmem:[#allocation2 + $0x60] sm:$0xff] %v246
    %502 = vst [vmem:[#allocation2 + $0x68] sm:$0xff] %v248
    %503 = vst [vmem:[#allocation2 + $0x70] sm:$0xff] %v319
    %504 = vst [vmem:[#allocation2 + $0x78] sm:$0xff] %v321
    %505 = vst [vmem:[#allocation2 + $0x80] sm:$0xff] %v252
    %506 = vst [vmem:[#allocation2 + $0x88] sm:$0xff] %v254
    %507 = vst [vmem:[#allocation2 + $0x90] sm:$0xff] %v325
    %508 = vst [vmem:[#allocation2 + $0x98] sm:$0xff] %v327
    %509 = vst [vmem:[#allocation2 + $0xa0] sm:$0xff] %v256
    %510 = vst [vmem:[#allocation2 + $0xa8] sm:$0xff] %v258
    %511 = vst [vmem:[#allocation2 + $0xb0] sm:$0xff] %v329
    %512 = vst [vmem:[#allocation2 + $0xb8] sm:$0xff] %v331
    %513 = vst [vmem:[#allocation2 + $0xc0] sm:$0xff] %v262
    %514 = vst [vmem:[#allocation2 + $0xc8] sm:$0xff] %v264
    %515 = vst [vmem:[#allocation2 + $0xd0] sm:$0xff] %v335
    %516 = vst [vmem:[#allocation2 + $0xd8] sm:$0xff] %v337
    %517 = vst [vmem:[#allocation2 + $0xe0] sm:$0xff] %v266
    %518 = vst [vmem:[#allocation2 + $0xe8] sm:$0xff] %v268
    %519 = vst [vmem:[#allocation2 + $0xf0] sm:$0xff] %v339
    %520 = vst [vmem:[#allocation2 + $0xf8] sm:$0xff] %v341
    %521 = vst [vmem:[#allocation3] sm:$0xff] %v378
    %522 = vst [vmem:[#allocation3 + $0x8] sm:$0xff] %v380
    %523 = vst [vmem:[#allocation3 + $0x10] sm:$0xff] %v451
    %524 = vst [vmem:[#allocation3 + $0x18] sm:$0xff] %v453
    %525 = vst [vmem:[#allocation3 + $0x20] sm:$0xff] %v382
    %526 = vst [vmem:[#allocation3 + $0x28] sm:$0xff] %v384
    %527 = vst [vmem:[#allocation3 + $0x30] sm:$0xff] %v455
    %528 = vst [vmem:[#allocation3 + $0x38] sm:$0xff] %v457
    %529 = vst [vmem:[#allocation3 + $0x40] sm:$0xff] %v388
    %530 = vst [vmem:[#allocation3 + $0x48] sm:$0xff] %v390
    %531 = vst [vmem:[#allocation3 + $0x50] sm:$0xff] %v461
    %532 = vst [vmem:[#allocation3 + $0x58] sm:$0xff] %v463
    %533 = vst [vmem:[#allocation3 + $0x60] sm:$0xff] %v392
    %534 = vst [vmem:[#allocation3 + $0x68] sm:$0xff] %v394
    %535 = vst [vmem:[#allocation3 + $0x70] sm:$0xff] %v465
    %536 = vst [vmem:[#allocation3 + $0x78] sm:$0xff] %v467
    %537 = vst [vmem:[#allocation3 + $0x80] sm:$0xff] %v398
    %538 = vst [vmem:[#allocation3 + $0x88] sm:$0xff] %v400
    %539 = vst [vmem:[#allocation3 + $0x90] sm:$0xff] %v471
    %540 = vst [vmem:[#allocation3 + $0x98] sm:$0xff] %v473
    %541 = vst [vmem:[#allocation3 + $0xa0] sm:$0xff] %v402
    %542 = vst [vmem:[#allocation3 + $0xa8] sm:$0xff] %v404
    %543 = vst [vmem:[#allocation3 + $0xb0] sm:$0xff] %v475
    %544 = vst [vmem:[#allocation3 + $0xb8] sm:$0xff] %v477
    %545 = vst [vmem:[#allocation3 + $0xc0] sm:$0xff] %v408
    %546 = vst [vmem:[#allocation3 + $0xc8] sm:$0xff] %v410
    %547 = vst [vmem:[#allocation3 + $0xd0] sm:$0xff] %v481
    %548 = vst [vmem:[#allocation3 + $0xd8] sm:$0xff] %v483
    %549 = vst [vmem:[#allocation3 + $0xe0] sm:$0xff] %v412
    %550 = vst [vmem:[#allocation3 + $0xe8] sm:$0xff] %v414
    %551 = vst [vmem:[#allocation3 + $0xf0] sm:$0xff] %v485
    %552 = vst [vmem:[#allocation3 + $0xf8] sm:$0xff] %v487
    %v553 = vld [vmem:[#allocation8] sm:$0xff]
    %v554 = vld [vmem:[#allocation8 + $0x8] sm:$0xff]
    %v555 = vld [vmem:[#allocation8 + $0x10] sm:$0xff]
    %v556 = vld [vmem:[#allocation8 + $0x18] sm:$0xff]
    %v557 = vld [vmem:[#allocation8 + $0x20] sm:$0xff]
    %v558 = vld [vmem:[#allocation8 + $0x28] sm:$0xff]
    %v559 = vld [vmem:[#allocation8 + $0x30] sm:$0xff]
    %v560 = vld [vmem:[#allocation8 + $0x38] sm:$0xff]
    %v561 = vld [vmem:[#allocation8 + $0x40] sm:$0xff]
    %v562 = vld [vmem:[#allocation8 + $0x48] sm:$0xff]
    %v563 = vld [vmem:[#allocation8 + $0x50] sm:$0xff]
    %v564 = vld [vmem:[#allocation8 + $0x58] sm:$0xff]
    %v565 = vld [vmem:[#allocation8 + $0x60] sm:$0xff]
    %v566 = vld [vmem:[#allocation8 + $0x68] sm:$0xff]
    %v567 = vld [vmem:[#allocation8 + $0x70] sm:$0xff]
    %v568 = vld [vmem:[#allocation8 + $0x78] sm:$0xff]
    %v569 = vld [vmem:[#allocation8 + $0x80] sm:$0xff]
    %v570 = vld [vmem:[#allocation8 + $0x88] sm:$0xff]
    %v571 = vld [vmem:[#allocation8 + $0x90] sm:$0xff]
    %v572 = vld [vmem:[#allocation8 + $0x98] sm:$0xff]
    %v573 = vld [vmem:[#allocation8 + $0xa0] sm:$0xff]
    %v574 = vld [vmem:[#allocation8 + $0xa8] sm:$0xff]
    %v575 = vld [vmem:[#allocation8 + $0xb0] sm:$0xff]
    %v576 = vld [vmem:[#allocation8 + $0xb8] sm:$0xff]
    %v577 = vld [vmem:[#allocation8 + $0xc0] sm:$0xff]
    %v578 = vld [vmem:[#allocation8 + $0xc8] sm:$0xff]
    %v579 = vld [vmem:[#allocation8 + $0xd0] sm:$0xff]
    %v580 = vld [vmem:[#allocation8 + $0xd8] sm:$0xff]
    %v581 = vld [vmem:[#allocation8 + $0xe0] sm:$0xff]
    %v582 = vld [vmem:[#allocation8 + $0xe8] sm:$0xff]
    %v583 = vld [vmem:[#allocation8 + $0xf0] sm:$0xff]
    %v584 = vld [vmem:[#allocation8 + $0xf8] sm:$0xff]
    %v585 = vld [vmem:[#allocation8 + $0x100] sm:$0xff]
    %v586 = vld [vmem:[#allocation8 + $0x108] sm:$0xff]
    %v587 = vld [vmem:[#allocation8 + $0x110] sm:$0xff]
    %v588 = vld [vmem:[#allocation8 + $0x118] sm:$0xff]
    %v589 = vld [vmem:[#allocation8 + $0x120] sm:$0xff]
    %v590 = vld [vmem:[#allocation8 + $0x128] sm:$0xff]
    %v591 = vld [vmem:[#allocation8 + $0x130] sm:$0xff]
    %v592 = vld [vmem:[#allocation8 + $0x138] sm:$0xff]
    %v593 = vld [vmem:[#allocation8 + $0x140] sm:$0xff]
    %v594 = vld [vmem:[#allocation8 + $0x148] sm:$0xff]
    %v595 = vld [vmem:[#allocation8 + $0x150] sm:$0xff]
    %v596 = vld [vmem:[#allocation8 + $0x158] sm:$0xff]
    %v597 = vld [vmem:[#allocation8 + $0x160] sm:$0xff]
    %v598 = vld [vmem:[#allocation8 + $0x168] sm:$0xff]
    %v599 = vld [vmem:[#allocation8 + $0x170] sm:$0xff]
    %v600 = vld [vmem:[#allocation8 + $0x178] sm:$0xff]
    %v601 = vld [vmem:[#allocation8 + $0x180] sm:$0xff]
    %v602 = vld [vmem:[#allocation8 + $0x188] sm:$0xff]
    %v603 = vld [vmem:[#allocation8 + $0x190] sm:$0xff]
    %v604 = vld [vmem:[#allocation8 + $0x198] sm:$0xff]
    %v605 = vld [vmem:[#allocation8 + $0x1a0] sm:$0xff]
    %v606 = vld [vmem:[#allocation8 + $0x1a8] sm:$0xff]
    %v607 = vld [vmem:[#allocation8 + $0x1b0] sm:$0xff]
    %v608 = vld [vmem:[#allocation8 + $0x1b8] sm:$0xff]
    %v609 = vld [vmem:[#allocation8 + $0x1c0] sm:$0xff]
    %v610 = vld [vmem:[#allocation8 + $0x1c8] sm:$0xff]
    %v611 = vld [vmem:[#allocation8 + $0x1d0] sm:$0xff]
    %v612 = vld [vmem:[#allocation8 + $0x1d8] sm:$0xff]
    %v613 = vld [vmem:[#allocation8 + $0x1e0] sm:$0xff]
    %v614 = vld [vmem:[#allocation8 + $0x1e8] sm:$0xff]
    %v615 = vld [vmem:[#allocation8 + $0x1f0] sm:$0xff]
    %v616 = vld [vmem:[#allocation8 + $0x1f8] sm:$0xff]
    %v617 = vld [vmem:[#allocation8 + $0x200] sm:$0xff]
    %v618 = vld [vmem:[#allocation8 + $0x208] sm:$0xff]
    %v619 = vld [vmem:[#allocation8 + $0x210] sm:$0xff]
    %v620 = vld [vmem:[#allocation8 + $0x218] sm:$0xff]
    %v621 = vld [vmem:[#allocation8 + $0x220] sm:$0xff]
    %v622 = vld [vmem:[#allocation8 + $0x228] sm:$0xff]
    %v623 = vld [vmem:[#allocation8 + $0x230] sm:$0xff]
    %v624 = vld [vmem:[#allocation8 + $0x238] sm:$0xff]
    %v625 = vld [vmem:[#allocation8 + $0x240] sm:$0xff]
    %v626 = vld [vmem:[#allocation8 + $0x248] sm:$0xff]
    %v627 = vld [vmem:[#allocation8 + $0x250] sm:$0xff]
    %v628 = vld [vmem:[#allocation8 + $0x258] sm:$0xff]
    %v629 = vld [vmem:[#allocation8 + $0x260] sm:$0xff]
    %v630 = vld [vmem:[#allocation8 + $0x268] sm:$0xff]
    %v631 = vld [vmem:[#allocation8 + $0x270] sm:$0xff]
    %v632 = vld [vmem:[#allocation8 + $0x278] sm:$0xff]
    %v633 = vld [vmem:[#allocation8 + $0x280] sm:$0xff]
    %v634 = vld [vmem:[#allocation8 + $0x288] sm:$0xff]
    %v635 = vld [vmem:[#allocation8 + $0x290] sm:$0xff]
    %v636 = vld [vmem:[#allocation8 + $0x298] sm:$0xff]
    %v637 = vld [vmem:[#allocation8 + $0x2a0] sm:$0xff]
    %v638 = vld [vmem:[#allocation8 + $0x2a8] sm:$0xff]
    %v639 = vld [vmem:[#allocation8 + $0x2b0] sm:$0xff]
    %v640 = vld [vmem:[#allocation8 + $0x2b8] sm:$0xff]
    %v641 = vld [vmem:[#allocation8 + $0x2c0] sm:$0xff]
    %v642 = vld [vmem:[#allocation8 + $0x2c8] sm:$0xff]
    %v643 = vld [vmem:[#allocation8 + $0x2d0] sm:$0xff]
    %v644 = vld [vmem:[#allocation8 + $0x2d8] sm:$0xff]
    %v645 = vld [vmem:[#allocation8 + $0x2e0] sm:$0xff]
    %v646 = vld [vmem:[#allocation8 + $0x2e8] sm:$0xff]
    %v647 = vld [vmem:[#allocation8 + $0x2f0] sm:$0xff]
    %v648 = vld [vmem:[#allocation8 + $0x2f8] sm:$0xff]
    %v649 = vld [vmem:[#allocation8 + $0x300] sm:$0xff]
    %v650 = vld [vmem:[#allocation8 + $0x308] sm:$0xff]
    %v651 = vld [vmem:[#allocation8 + $0x310] sm:$0xff]
    %v652 = vld [vmem:[#allocation8 + $0x318] sm:$0xff]
    %v653 = vld [vmem:[#allocation8 + $0x320] sm:$0xff]
    %v654 = vld [vmem:[#allocation8 + $0x328] sm:$0xff]
    %v655 = vld [vmem:[#allocation8 + $0x330] sm:$0xff]
    %v656 = vld [vmem:[#allocation8 + $0x338] sm:$0xff]
    %v657 = vld [vmem:[#allocation8 + $0x340] sm:$0xff]
    %v658 = vld [vmem:[#allocation8 + $0x348] sm:$0xff]
    %v659 = vld [vmem:[#allocation8 + $0x350] sm:$0xff]
    %v660 = vld [vmem:[#allocation8 + $0x358] sm:$0xff]
    %v661 = vld [vmem:[#allocation8 + $0x360] sm:$0xff]
    %v662 = vld [vmem:[#allocation8 + $0x368] sm:$0xff]
    %v663 = vld [vmem:[#allocation8 + $0x370] sm:$0xff]
    %v664 = vld [vmem:[#allocation8 + $0x378] sm:$0xff]
    %v665 = vld [vmem:[#allocation8 + $0x380] sm:$0xff]
    %v666 = vld [vmem:[#allocation8 + $0x388] sm:$0xff]
    %v667 = vld [vmem:[#allocation8 + $0x390] sm:$0xff]
    %v668 = vld [vmem:[#allocation8 + $0x398] sm:$0xff]
    %v669 = vld [vmem:[#allocation8 + $0x3a0] sm:$0xff]
    %v670 = vld [vmem:[#allocation8 + $0x3a8] sm:$0xff]
    %v671 = vld [vmem:[#allocation8 + $0x3b0] sm:$0xff]
    %v672 = vld [vmem:[#allocation8 + $0x3b8] sm:$0xff]
    %v673 = vld [vmem:[#allocation8 + $0x3c0] sm:$0xff]
    %v674 = vld [vmem:[#allocation8 + $0x3c8] sm:$0xff]
    %v675 = vld [vmem:[#allocation8 + $0x3d0] sm:$0xff]
    %v676 = vld [vmem:[#allocation8 + $0x3d8] sm:$0xff]
    %v677 = vld [vmem:[#allocation8 + $0x3e0] sm:$0xff]
    %v678 = vld [vmem:[#allocation8 + $0x3e8] sm:$0xff]
    %v679 = vld [vmem:[#allocation8 + $0x3f0] sm:$0xff]
    %v680 = vld [vmem:[#allocation8 + $0x3f8] sm:$0xff]
    %v809 = vunpack.c.l.b16 %v553
    %v810 = vunpack.c.h.b16 %v553
    %v811 = vunpack.c.l.b16 %v554
    %v812 = vunpack.c.h.b16 %v554
    %v813 = vunpack.c.l.b16 %v555
    %v814 = vunpack.c.h.b16 %v555
    %v815 = vunpack.c.l.b16 %v556
    %v816 = vunpack.c.h.b16 %v556
    %v817 = vunpack.c.l.b16 %v557
    %v818 = vunpack.c.h.b16 %v557
    %v819 = vunpack.c.l.b16 %v558
    %v820 = vunpack.c.h.b16 %v558
    %v821 = vunpack.c.l.b16 %v559
    %v822 = vunpack.c.h.b16 %v559
    %v823 = vunpack.c.l.b16 %v560
    %v824 = vunpack.c.h.b16 %v560
    %v825 = vunpack.c.l.b16 %v561
    %v826 = vunpack.c.h.b16 %v561
    %v827 = vunpack.c.l.b16 %v562
    %v828 = vunpack.c.h.b16 %v562
    %v829 = vunpack.c.l.b16 %v563
    %v830 = vunpack.c.h.b16 %v563
    %v831 = vunpack.c.l.b16 %v564
    %v832 = vunpack.c.h.b16 %v564
    %v833 = vunpack.c.l.b16 %v565
    %v834 = vunpack.c.h.b16 %v565
    %v835 = vunpack.c.l.b16 %v566
    %v836 = vunpack.c.h.b16 %v566
    %v837 = vunpack.c.l.b16 %v567
    %v838 = vunpack.c.h.b16 %v567
    %v839 = vunpack.c.l.b16 %v568
    %v840 = vunpack.c.h.b16 %v568
    %v841 = vunpack.c.l.b16 %v569
    %v842 = vunpack.c.h.b16 %v569
    %v843 = vunpack.c.l.b16 %v570
    %v844 = vunpack.c.h.b16 %v570
    %v845 = vunpack.c.l.b16 %v571
    %v846 = vunpack.c.h.b16 %v571
    %v847 = vunpack.c.l.b16 %v572
    %v848 = vunpack.c.h.b16 %v572
    %v849 = vunpack.c.l.b16 %v573
    %v850 = vunpack.c.h.b16 %v573
    %v851 = vunpack.c.l.b16 %v574
    %v852 = vunpack.c.h.b16 %v574
    %v853 = vunpack.c.l.b16 %v575
    %v854 = vunpack.c.h.b16 %v575
    %v855 = vunpack.c.l.b16 %v576
    %v856 = vunpack.c.h.b16 %v576
    %v857 = vunpack.c.l.b16 %v577
    %v858 = vunpack.c.h.b16 %v577
    %v859 = vunpack.c.l.b16 %v578
    %v860 = vunpack.c.h.b16 %v578
    %v861 = vunpack.c.l.b16 %v579
    %v862 = vunpack.c.h.b16 %v579
    %v863 = vunpack.c.l.b16 %v580
    %v864 = vunpack.c.h.b16 %v580
    %v865 = vunpack.c.l.b16 %v581
    %v866 = vunpack.c.h.b16 %v581
    %v867 = vunpack.c.l.b16 %v582
    %v868 = vunpack.c.h.b16 %v582
    %v869 = vunpack.c.l.b16 %v583
    %v870 = vunpack.c.h.b16 %v583
    %v871 = vunpack.c.l.b16 %v584
    %v872 = vunpack.c.h.b16 %v584
    %v873 = vunpack.c.l.b16 %v585
    %v874 = vunpack.c.h.b16 %v585
    %v875 = vunpack.c.l.b16 %v586
    %v876 = vunpack.c.h.b16 %v586
    %v877 = vunpack.c.l.b16 %v587
    %v878 = vunpack.c.h.b16 %v587
    %v879 = vunpack.c.l.b16 %v588
    %v880 = vunpack.c.h.b16 %v588
    %v881 = vunpack.c.l.b16 %v589
    %v882 = vunpack.c.h.b16 %v589
    %v883 = vunpack.c.l.b16 %v590
    %v884 = vunpack.c.h.b16 %v590
    %v885 = vunpack.c.l.b16 %v591
    %v886 = vunpack.c.h.b16 %v591
    %v887 = vunpack.c.l.b16 %v592
    %v888 = vunpack.c.h.b16 %v592
    %v889 = vunpack.c.l.b16 %v593
    %v890 = vunpack.c.h.b16 %v593
    %v891 = vunpack.c.l.b16 %v594
    %v892 = vunpack.c.h.b16 %v594
    %v893 = vunpack.c.l.b16 %v595
    %v894 = vunpack.c.h.b16 %v595
    %v895 = vunpack.c.l.b16 %v596
    %v896 = vunpack.c.h.b16 %v596
    %v897 = vunpack.c.l.b16 %v597
    %v898 = vunpack.c.h.b16 %v597
    %v899 = vunpack.c.l.b16 %v598
    %v900 = vunpack.c.h.b16 %v598
    %v901 = vunpack.c.l.b16 %v599
    %v902 = vunpack.c.h.b16 %v599
    %v903 = vunpack.c.l.b16 %v600
    %v904 = vunpack.c.h.b16 %v600
    %v905 = vunpack.c.l.b16 %v601
    %v906 = vunpack.c.h.b16 %v601
    %v907 = vunpack.c.l.b16 %v602
    %v908 = vunpack.c.h.b16 %v602
    %v909 = vunpack.c.l.b16 %v603
    %v910 = vunpack.c.h.b16 %v603
    %v911 = vunpack.c.l.b16 %v604
    %v912 = vunpack.c.h.b16 %v604
    %v913 = vunpack.c.l.b16 %v605
    %v914 = vunpack.c.h.b16 %v605
    %v915 = vunpack.c.l.b16 %v606
    %v916 = vunpack.c.h.b16 %v606
    %v917 = vunpack.c.l.b16 %v607
    %v918 = vunpack.c.h.b16 %v607
    %v919 = vunpack.c.l.b16 %v608
    %v920 = vunpack.c.h.b16 %v608
    %v921 = vunpack.c.l.b16 %v609
    %v922 = vunpack.c.h.b16 %v609
    %v923 = vunpack.c.l.b16 %v610
    %v924 = vunpack.c.h.b16 %v610
    %v925 = vunpack.c.l.b16 %v611
    %v926 = vunpack.c.h.b16 %v611
    %v927 = vunpack.c.l.b16 %v612
    %v928 = vunpack.c.h.b16 %v612
    %v929 = vunpack.c.l.b16 %v613
    %v930 = vunpack.c.h.b16 %v613
    %v931 = vunpack.c.l.b16 %v614
    %v932 = vunpack.c.h.b16 %v614
    %v933 = vunpack.c.l.b16 %v615
    %v934 = vunpack.c.h.b16 %v615
    %v935 = vunpack.c.l.b16 %v616
    %v936 = vunpack.c.h.b16 %v616
    %v937 = vunpack.c.l.b16 %v617
    %v938 = vunpack.c.h.b16 %v617
    %v939 = vunpack.c.l.b16 %v618
    %v940 = vunpack.c.h.b16 %v618
    %v941 = vunpack.c.l.b16 %v619
    %v942 = vunpack.c.h.b16 %v619
    %v943 = vunpack.c.l.b16 %v620
    %v944 = vunpack.c.h.b16 %v620
    %v945 = vunpack.c.l.b16 %v621
    %v946 = vunpack.c.h.b16 %v621
    %v947 = vunpack.c.l.b16 %v622
    %v948 = vunpack.c.h.b16 %v622
    %v949 = vunpack.c.l.b16 %v623
    %v950 = vunpack.c.h.b16 %v623
    %v951 = vunpack.c.l.b16 %v624
    %v952 = vunpack.c.h.b16 %v624
    %v953 = vunpack.c.l.b16 %v625
    %v954 = vunpack.c.h.b16 %v625
    %v955 = vunpack.c.l.b16 %v626
    %v956 = vunpack.c.h.b16 %v626
    %v957 = vunpack.c.l.b16 %v627
    %v958 = vunpack.c.h.b16 %v627
    %v959 = vunpack.c.l.b16 %v628
    %v960 = vunpack.c.h.b16 %v628
    %v961 = vunpack.c.l.b16 %v629
    %v962 = vunpack.c.h.b16 %v629
    %v963 = vunpack.c.l.b16 %v630
    %v964 = vunpack.c.h.b16 %v630
    %v965 = vunpack.c.l.b16 %v631
    %v966 = vunpack.c.h.b16 %v631
    %v967 = vunpack.c.l.b16 %v632
    %v968 = vunpack.c.h.b16 %v632
    %v969 = vunpack.c.l.b16 %v633
    %v970 = vunpack.c.h.b16 %v633
    %v971 = vunpack.c.l.b16 %v634
    %v972 = vunpack.c.h.b16 %v634
    %v973 = vunpack.c.l.b16 %v635
    %v974 = vunpack.c.h.b16 %v635
    %v975 = vunpack.c.l.b16 %v636
    %v976 = vunpack.c.h.b16 %v636
    %v977 = vunpack.c.l.b16 %v637
    %v978 = vunpack.c.h.b16 %v637
    %v979 = vunpack.c.l.b16 %v638
    %v980 = vunpack.c.h.b16 %v638
    %v981 = vunpack.c.l.b16 %v639
    %v982 = vunpack.c.h.b16 %v639
    %v983 = vunpack.c.l.b16 %v640
    %v984 = vunpack.c.h.b16 %v640
    %v985 = vunpack.c.l.b16 %v641
    %v986 = vunpack.c.h.b16 %v641
    %v987 = vunpack.c.l.b16 %v642
    %v988 = vunpack.c.h.b16 %v642
    %v989 = vunpack.c.l.b16 %v643
    %v990 = vunpack.c.h.b16 %v643
    %v991 = vunpack.c.l.b16 %v644
    %v992 = vunpack.c.h.b16 %v644
    %v993 = vunpack.c.l.b16 %v645
    %v994 = vunpack.c.h.b16 %v645
    %v995 = vunpack.c.l.b16 %v646
    %v996 = vunpack.c.h.b16 %v646
    %v997 = vunpack.c.l.b16 %v647
    %v998 = vunpack.c.h.b16 %v647
    %v999 = vunpack.c.l.b16 %v648
    %v1000 = vunpack.c.h.b16 %v648
    %v1001 = vunpack.c.l.b16 %v649
    %v1002 = vunpack.c.h.b16 %v649
    %v1003 = vunpack.c.l.b16 %v650
    %v1004 = vunpack.c.h.b16 %v650
    %v1005 = vunpack.c.l.b16 %v651
    %v1006 = vunpack.c.h.b16 %v651
    %v1007 = vunpack.c.l.b16 %v652
    %v1008 = vunpack.c.h.b16 %v652
    %v1009 = vunpack.c.l.b16 %v653
    %v1010 = vunpack.c.h.b16 %v653
    %v1011 = vunpack.c.l.b16 %v654
    %v1012 = vunpack.c.h.b16 %v654
    %v1013 = vunpack.c.l.b16 %v655
    %v1014 = vunpack.c.h.b16 %v655
    %v1015 = vunpack.c.l.b16 %v656
    %v1016 = vunpack.c.h.b16 %v656
    %v1017 = vunpack.c.l.b16 %v657
    %v1018 = vunpack.c.h.b16 %v657
    %v1019 = vunpack.c.l.b16 %v658
    %v1020 = vunpack.c.h.b16 %v658
    %v1021 = vunpack.c.l.b16 %v659
    %v1022 = vunpack.c.h.b16 %v659
    %v1023 = vunpack.c.l.b16 %v660
    %v1024 = vunpack.c.h.b16 %v660
    %v1025 = vunpack.c.l.b16 %v661
    %v1026 = vunpack.c.h.b16 %v661
    %v1027 = vunpack.c.l.b16 %v662
    %v1028 = vunpack.c.h.b16 %v662
    %v1029 = vunpack.c.l.b16 %v663
    %v1030 = vunpack.c.h.b16 %v663
    %v1031 = vunpack.c.l.b16 %v664
    %v1032 = vunpack.c.h.b16 %v664
    %v1033 = vunpack.c.l.b16 %v665
    %v1034 = vunpack.c.h.b16 %v665
    %v1035 = vunpack.c.l.b16 %v666
    %v1036 = vunpack.c.h.b16 %v666
    %v1037 = vunpack.c.l.b16 %v667
    %v1038 = vunpack.c.h.b16 %v667
    %v1039 = vunpack.c.l.b16 %v668
    %v1040 = vunpack.c.h.b16 %v668
    %v1041 = vunpack.c.l.b16 %v669
    %v1042 = vunpack.c.h.b16 %v669
    %v1043 = vunpack.c.l.b16 %v670
    %v1044 = vunpack.c.h.b16 %v670
    %v1045 = vunpack.c.l.b16 %v671
    %v1046 = vunpack.c.h.b16 %v671
    %v1047 = vunpack.c.l.b16 %v672
    %v1048 = vunpack.c.h.b16 %v672
    %v1049 = vunpack.c.l.b16 %v673
    %v1050 = vunpack.c.h.b16 %v673
    %v1051 = vunpack.c.l.b16 %v674
    %v1052 = vunpack.c.h.b16 %v674
    %v1053 = vunpack.c.l.b16 %v675
    %v1054 = vunpack.c.h.b16 %v675
    %v1055 = vunpack.c.l.b16 %v676
    %v1056 = vunpack.c.h.b16 %v676
    %v1057 = vunpack.c.l.b16 %v677
    %v1058 = vunpack.c.h.b16 %v677
    %v1059 = vunpack.c.l.b16 %v678
    %v1060 = vunpack.c.h.b16 %v678
    %v1061 = vunpack.c.l.b16 %v679
    %v1062 = vunpack.c.h.b16 %v679
    %v1063 = vunpack.c.l.b16 %v680
    %v1064 = vunpack.c.h.b16 %v680
    %v1065 = vpack.c.b16 %v817, %v809
    %v1066 = vpack.c.b16 %v818, %v810
    %v1067 = vpack.c.b16 %v819, %v811
    %v1068 = vpack.c.b16 %v820, %v812
    %v1069 = vpack.c.b16 %v821, %v813
    %v1070 = vpack.c.b16 %v822, %v814
    %v1071 = vpack.c.b16 %v823, %v815
    %v1072 = vpack.c.b16 %v824, %v816
    %v1073 = vpack.c.b16 %v833, %v825
    %v1074 = vpack.c.b16 %v834, %v826
    %v1075 = vpack.c.b16 %v835, %v827
    %v1076 = vpack.c.b16 %v836, %v828
    %v1077 = vpack.c.b16 %v837, %v829
    %v1078 = vpack.c.b16 %v838, %v830
    %v1079 = vpack.c.b16 %v839, %v831
    %v1080 = vpack.c.b16 %v840, %v832
    %v1081 = vpack.c.b16 %v849, %v841
    %v1082 = vpack.c.b16 %v850, %v842
    %v1083 = vpack.c.b16 %v851, %v843
    %v1084 = vpack.c.b16 %v852, %v844
    %v1085 = vpack.c.b16 %v853, %v845
    %v1086 = vpack.c.b16 %v854, %v846
    %v1087 = vpack.c.b16 %v855, %v847
    %v1088 = vpack.c.b16 %v856, %v848
    %v1089 = vpack.c.b16 %v865, %v857
    %v1090 = vpack.c.b16 %v866, %v858
    %v1091 = vpack.c.b16 %v867, %v859
    %v1092 = vpack.c.b16 %v868, %v860
    %v1093 = vpack.c.b16 %v869, %v861
    %v1094 = vpack.c.b16 %v870, %v862
    %v1095 = vpack.c.b16 %v871, %v863
    %v1096 = vpack.c.b16 %v872, %v864
    %v1097 = vpack.c.b16 %v881, %v873
    %v1098 = vpack.c.b16 %v882, %v874
    %v1099 = vpack.c.b16 %v883, %v875
    %v1100 = vpack.c.b16 %v884, %v876
    %v1101 = vpack.c.b16 %v885, %v877
    %v1102 = vpack.c.b16 %v886, %v878
    %v1103 = vpack.c.b16 %v887, %v879
    %v1104 = vpack.c.b16 %v888, %v880
    %v1105 = vpack.c.b16 %v897, %v889
    %v1106 = vpack.c.b16 %v898, %v890
    %v1107 = vpack.c.b16 %v899, %v891
    %v1108 = vpack.c.b16 %v900, %v892
    %v1109 = vpack.c.b16 %v901, %v893
    %v1110 = vpack.c.b16 %v902, %v894
    %v1111 = vpack.c.b16 %v903, %v895
    %v1112 = vpack.c.b16 %v904, %v896
    %v1113 = vpack.c.b16 %v913, %v905
    %v1114 = vpack.c.b16 %v914, %v906
    %v1115 = vpack.c.b16 %v915, %v907
    %v1116 = vpack.c.b16 %v916, %v908
    %v1117 = vpack.c.b16 %v917, %v909
    %v1118 = vpack.c.b16 %v918, %v910
    %v1119 = vpack.c.b16 %v919, %v911
    %v1120 = vpack.c.b16 %v920, %v912
    %v1121 = vpack.c.b16 %v929, %v921
    %v1122 = vpack.c.b16 %v930, %v922
    %v1123 = vpack.c.b16 %v931, %v923
    %v1124 = vpack.c.b16 %v932, %v924
    %v1125 = vpack.c.b16 %v933, %v925
    %v1126 = vpack.c.b16 %v934, %v926
    %v1127 = vpack.c.b16 %v935, %v927
    %v1128 = vpack.c.b16 %v936, %v928
    %v1129 = vpack.c.b16 %v945, %v937
    %v1130 = vpack.c.b16 %v946, %v938
    %v1131 = vpack.c.b16 %v947, %v939
    %v1132 = vpack.c.b16 %v948, %v940
    %v1133 = vpack.c.b16 %v949, %v941
    %v1134 = vpack.c.b16 %v950, %v942
    %v1135 = vpack.c.b16 %v951, %v943
    %v1136 = vpack.c.b16 %v952, %v944
    %v1137 = vpack.c.b16 %v961, %v953
    %v1138 = vpack.c.b16 %v962, %v954
    %v1139 = vpack.c.b16 %v963, %v955
    %v1140 = vpack.c.b16 %v964, %v956
    %v1141 = vpack.c.b16 %v965, %v957
    %v1142 = vpack.c.b16 %v966, %v958
    %v1143 = vpack.c.b16 %v967, %v959
    %v1144 = vpack.c.b16 %v968, %v960
    %v1145 = vpack.c.b16 %v977, %v969
    %v1146 = vpack.c.b16 %v978, %v970
    %v1147 = vpack.c.b16 %v979, %v971
    %v1148 = vpack.c.b16 %v980, %v972
    %v1149 = vpack.c.b16 %v981, %v973
    %v1150 = vpack.c.b16 %v982, %v974
    %v1151 = vpack.c.b16 %v983, %v975
    %v1152 = vpack.c.b16 %v984, %v976
    %v1153 = vpack.c.b16 %v993, %v985
    %v1154 = vpack.c.b16 %v994, %v986
    %v1155 = vpack.c.b16 %v995, %v987
    %v1156 = vpack.c.b16 %v996, %v988
    %v1157 = vpack.c.b16 %v997, %v989
    %v1158 = vpack.c.b16 %v998, %v990
    %v1159 = vpack.c.b16 %v999, %v991
    %v1160 = vpack.c.b16 %v1000, %v992
    %v1161 = vpack.c.b16 %v1009, %v1001
    %v1162 = vpack.c.b16 %v1010, %v1002
    %v1163 = vpack.c.b16 %v1011, %v1003
    %v1164 = vpack.c.b16 %v1012, %v1004
    %v1165 = vpack.c.b16 %v1013, %v1005
    %v1166 = vpack.c.b16 %v1014, %v1006
    %v1167 = vpack.c.b16 %v1015, %v1007
    %v1168 = vpack.c.b16 %v1016, %v1008
    %v1169 = vpack.c.b16 %v1025, %v1017
    %v1170 = vpack.c.b16 %v1026, %v1018
    %v1171 = vpack.c.b16 %v1027, %v1019
    %v1172 = vpack.c.b16 %v1028, %v1020
    %v1173 = vpack.c.b16 %v1029, %v1021
    %v1174 = vpack.c.b16 %v1030, %v1022
    %v1175 = vpack.c.b16 %v1031, %v1023
    %v1176 = vpack.c.b16 %v1032, %v1024
    %v1177 = vpack.c.b16 %v1041, %v1033
    %v1178 = vpack.c.b16 %v1042, %v1034
    %v1179 = vpack.c.b16 %v1043, %v1035
    %v1180 = vpack.c.b16 %v1044, %v1036
    %v1181 = vpack.c.b16 %v1045, %v1037
    %v1182 = vpack.c.b16 %v1046, %v1038
    %v1183 = vpack.c.b16 %v1047, %v1039
    %v1184 = vpack.c.b16 %v1048, %v1040
    %v1185 = vpack.c.b16 %v1057, %v1049
    %v1186 = vpack.c.b16 %v1058, %v1050
    %v1187 = vpack.c.b16 %v1059, %v1051
    %v1188 = vpack.c.b16 %v1060, %v1052
    %v1189 = vpack.c.b16 %v1061, %v1053
    %v1190 = vpack.c.b16 %v1062, %v1054
    %v1191 = vpack.c.b16 %v1063, %v1055
    %v1192 = vpack.c.b16 %v1064, %v1056
    %1321 = vmatprep.subr.bf16.mxu0 %v1066
    %1322 = vmatpush1.bf16.msra.mxu0 %v1065
    %1323 = vmatprep.subr.bf16.mxu0 %v1074
    %1324 = vmatpush1.bf16.msra.mxu0 %v1073
    %1325 = vmatprep.subr.bf16.mxu0 %v1082
    %1326 = vmatpush1.bf16.msra.mxu0 %v1081
    %1327 = vmatprep.subr.bf16.mxu0 %v1090
    %1328 = vmatpush1.bf16.msra.mxu0 %v1089
    %1329 = vmatprep.subr.bf16.mxu0 %v1098
    %1330 = vmatpush1.bf16.msra.mxu0 %v1097
    %1331 = vmatprep.subr.bf16.mxu0 %v1106
    %1332 = vmatpush1.bf16.msra.mxu0 %v1105
    %1333 = vmatprep.subr.bf16.mxu0 %v1114
    %1334 = vmatpush1.bf16.msra.mxu0 %v1113
    %1335 = vmatprep.subr.bf16.mxu0 %v1122
    %1336 = vmatpush1.bf16.msra.mxu0 %v1121
    %1337 = vmatprep.subr.bf16.mxu0 %v1130
    %1338 = vmatpush1.bf16.msra.mxu0 %v1129
    %1339 = vmatprep.subr.bf16.mxu0 %v1138
    %1340 = vmatpush1.bf16.msra.mxu0 %v1137
    %1341 = vmatprep.subr.bf16.mxu0 %v1146
    %1342 = vmatpush1.bf16.msra.mxu0 %v1145
    %1343 = vmatprep.subr.bf16.mxu0 %v1154
    %1344 = vmatpush1.bf16.msra.mxu0 %v1153
    %1345 = vmatprep.subr.bf16.mxu0 %v1162
    %1346 = vmatpush1.bf16.msra.mxu0 %v1161
    %1347 = vmatprep.subr.bf16.mxu0 %v1170
    %1348 = vmatpush1.bf16.msra.mxu0 %v1169
    %1349 = vmatprep.subr.bf16.mxu0 %v1178
    %1350 = vmatpush1.bf16.msra.mxu0 %v1177
    %1351 = vmatprep.subr.bf16.mxu0 %v1186
    %1352 = vmatpush1.bf16.msra.mxu0 %v1185
    %1353 = vmatprep.mubr.bf16.mxu0 0
    %1354 = vmatmul.mubr.bf16.gmra.mrb[0].mxu0 0
    %v1355 = vpop.f32.mrb[0].mxu0
    %v1356 = vadd.f32 0.0, %v1355
    %v1357 = vpop.f32.mrb[0].mxu0
    %v1358 = vadd.f32 0.0, %v1357
    %v1359 = vpop.f32.mrb[0].mxu0
    %v1360 = vpop.f32.mrb[0].mxu0
    %1361 = vdwg.mxu0
    %1362 = vmatprep.subr.bf16.mxu0 %v1068
    %1363 = vmatpush1.bf16.msra.mxu0 %v1067
    %1364 = vmatprep.subr.bf16.mxu0 %v1076
    %1365 = vmatpush1.bf16.msra.mxu0 %v1075
    %1366 = vmatprep.subr.bf16.mxu0 %v1084
    %1367 = vmatpush1.bf16.msra.mxu0 %v1083
    %1368 = vmatprep.subr.bf16.mxu0 %v1092
    %1369 = vmatpush1.bf16.msra.mxu0 %v1091
    %1370 = vmatprep.subr.bf16.mxu0 %v1100
    %1371 = vmatpush1.bf16.msra.mxu0 %v1099
    %1372 = vmatprep.subr.bf16.mxu0 %v1108
    %1373 = vmatpush1.bf16.msra.mxu0 %v1107
    %1374 = vmatprep.subr.bf16.mxu0 %v1116
    %1375 = vmatpush1.bf16.msra.mxu0 %v1115
    %1376 = vmatprep.subr.bf16.mxu0 %v1124
    %1377 = vmatpush1.bf16.msra.mxu0 %v1123
    %1378 = vmatprep.subr.bf16.mxu0 %v1132
    %1379 = vmatpush1.bf16.msra.mxu0 %v1131
    %1380 = vmatprep.subr.bf16.mxu0 %v1140
    %1381 = vmatpush1.bf16.msra.mxu0 %v1139
    %1382 = vmatprep.subr.bf16.mxu0 %v1148
    %1383 = vmatpush1.bf16.msra.mxu0 %v1147
    %1384 = vmatprep.subr.bf16.mxu0 %v1156
    %1385 = vmatpush1.bf16.msra.mxu0 %v1155
    %1386 = vmatprep.subr.bf16.mxu0 %v1164
    %1387 = vmatpush1.bf16.msra.mxu0 %v1163
    %1388 = vmatprep.subr.bf16.mxu0 %v1172
    %1389 = vmatpush1.bf16.msra.mxu0 %v1171
    %1390 = vmatprep.subr.bf16.mxu0 %v1180
    %1391 = vmatpush1.bf16.msra.mxu0 %v1179
    %1392 = vmatprep.subr.bf16.mxu0 %v1188
    %1393 = vmatpush1.bf16.msra.mxu0 %v1187
    %1394 = vmatprep.mubr.bf16.mxu0 0
    %1395 = vmatmul.mubr.bf16.gmra.mrb[0].mxu0 0
    %v1396 = vpop.f32.mrb[0].mxu0
    %v1397 = vadd.f32 0.0, %v1396
    %v1398 = vpop.f32.mrb[0].mxu0
    %v1399 = vadd.f32 0.0, %v1398
    %v1400 = vpop.f32.mrb[0].mxu0
    %v1401 = vpop.f32.mrb[0].mxu0
    %1402 = vdwg.mxu0
    %1403 = vmatprep.subr.bf16.mxu0 %v1070
    %1404 = vmatpush1.bf16.msra.mxu0 %v1069
    %1405 = vmatprep.subr.bf16.mxu0 %v1078
    %1406 = vmatpush1.bf16.msra.mxu0 %v1077
    %1407 = vmatprep.subr.bf16.mxu0 %v1086
    %1408 = vmatpush1.bf16.msra.mxu0 %v1085
    %1409 = vmatprep.subr.bf16.mxu0 %v1094
    %1410 = vmatpush1.bf16.msra.mxu0 %v1093
    %1411 = vmatprep.subr.bf16.mxu0 %v1102
    %1412 = vmatpush1.bf16.msra.mxu0 %v1101
    %1413 = vmatprep.subr.bf16.mxu0 %v1110
    %1414 = vmatpush1.bf16.msra.mxu0 %v1109
    %1415 = vmatprep.subr.bf16.mxu0 %v1118
    %1416 = vmatpush1.bf16.msra.mxu0 %v1117
    %1417 = vmatprep.subr.bf16.mxu0 %v1126
    %1418 = vmatpush1.bf16.msra.mxu0 %v1125
    %1419 = vmatprep.subr.bf16.mxu0 %v1134
    %1420 = vmatpush1.bf16.msra.mxu0 %v1133
    %1421 = vmatprep.subr.bf16.mxu0 %v1142
    %1422 = vmatpush1.bf16.msra.mxu0 %v1141
    %1423 = vmatprep.subr.bf16.mxu0 %v1150
    %1424 = vmatpush1.bf16.msra.mxu0 %v1149
    %1425 = vmatprep.subr.bf16.mxu0 %v1158
    %1426 = vmatpush1.bf16.msra.mxu0 %v1157
    %1427 = vmatprep.subr.bf16.mxu0 %v1166
    %1428 = vmatpush1.bf16.msra.mxu0 %v1165
    %1429 = vmatprep.subr.bf16.mxu0 %v1174
    %1430 = vmatpush1.bf16.msra.mxu0 %v1173
    %1431 = vmatprep.subr.bf16.mxu0 %v1182
    %1432 = vmatpush1.bf16.msra.mxu0 %v1181
    %1433 = vmatprep.subr.bf16.mxu0 %v1190
    %1434 = vmatpush1.bf16.msra.mxu0 %v1189
    %1435 = vmatprep.mubr.bf16.mxu0 0
    %1436 = vmatmul.mubr.bf16.gmra.mrb[0].mxu0 0
    %v1437 = vpop.f32.mrb[0].mxu0
    %v1438 = vadd.f32 0.0, %v1437
    %v1439 = vpop.f32.mrb[0].mxu0
    %v1440 = vadd.f32 0.0, %v1439
    %v1441 = vpop.f32.mrb[0].mxu0
    %v1442 = vpop.f32.mrb[0].mxu0
    %1443 = vdwg.mxu0
    %1444 = vmatprep.subr.bf16.mxu0 %v1072
    %1445 = vmatpush1.bf16.msra.mxu0 %v1071
    %1446 = vmatprep.subr.bf16.mxu0 %v1080
    %1447 = vmatpush1.bf16.msra.mxu0 %v1079
    %1448 = vmatprep.subr.bf16.mxu0 %v1088
    %1449 = vmatpush1.bf16.msra.mxu0 %v1087
    %1450 = vmatprep.subr.bf16.mxu0 %v1096
    %1451 = vmatpush1.bf16.msra.mxu0 %v1095
    %1452 = vmatprep.subr.bf16.mxu0 %v1104
    %1453 = vmatpush1.bf16.msra.mxu0 %v1103
    %1454 = vmatprep.subr.bf16.mxu0 %v1112
    %1455 = vmatpush1.bf16.msra.mxu0 %v1111
    %1456 = vmatprep.subr.bf16.mxu0 %v1120
    %1457 = vmatpush1.bf16.msra.mxu0 %v1119
    %1458 = vmatprep.subr.bf16.mxu0 %v1128
    %1459 = vmatpush1.bf16.msra.mxu0 %v1127
    %1460 = vmatprep.subr.bf16.mxu0 %v1136
    %1461 = vmatpush1.bf16.msra.mxu0 %v1135
    %1462 = vmatprep.subr.bf16.mxu0 %v1144
    %1463 = vmatpush1.bf16.msra.mxu0 %v1143
    %1464 = vmatprep.subr.bf16.mxu0 %v1152
    %1465 = vmatpush1.bf16.msra.mxu0 %v1151
    %1466 = vmatprep.subr.bf16.mxu0 %v1160
    %1467 = vmatpush1.bf16.msra.mxu0 %v1159
    %1468 = vmatprep.subr.bf16.mxu0 %v1168
    %1469 = vmatpush1.bf16.msra.mxu0 %v1167
    %1470 = vmatprep.subr.bf16.mxu0 %v1176
    %1471 = vmatpush1.bf16.msra.mxu0 %v1175
    %1472 = vmatprep.subr.bf16.mxu0 %v1184
    %1473 = vmatpush1.bf16.msra.mxu0 %v1183
    %1474 = vmatprep.subr.bf16.mxu0 %v1192
    %1475 = vmatpush1.bf16.msra.mxu0 %v1191
    %1476 = vmatprep.mubr.bf16.mxu0 0
    %1477 = vmatmul.mubr.bf16.gmra.mrb[0].mxu0 0
    %v1478 = vpop.f32.mrb[0].mxu0
    %v1479 = vadd.f32 0.0, %v1478
    %v1480 = vpop.f32.mrb[0].mxu0
    %v1481 = vadd.f32 0.0, %v1480
    %v1482 = vpop.f32.mrb[0].mxu0
    %v1483 = vpop.f32.mrb[0].mxu0
    %1484 = vdwg.mxu0
    %v1485 = vld [vmem:[#allocation2] sm:$0xff]
    %v1486 = vld [vmem:[#allocation2 + $0x8] sm:$0xff]
    %v1487 = vld [vmem:[#allocation2 + $0x10] sm:$0xff]
    %v1488 = vld [vmem:[#allocation2 + $0x18] sm:$0xff]
    %v1489 = vadd.f32 %v1356, %v1485
    %v1490 = vadd.f32 %v1358, %v1486
    %v1491 = vadd.f32 %v1397, %v1487
    %v1492 = vadd.f32 %v1399, %v1488
    %v1493 = vld [vmem:[#allocation3 + $0xe0] sm:$0xff]
    %v1494 = vld [vmem:[#allocation3 + $0xe8] sm:$0xff]
    %v1495 = vld [vmem:[#allocation3 + $0xf0] sm:$0xff]
    %v1496 = vld [vmem:[#allocation3 + $0xf8] sm:$0xff]
    %v1497 = vadd.f32 %v1438, %v1493
    %v1498 = vadd.f32 %v1440, %v1494
    %v1499 = vadd.f32 %v1479, %v1495
    %v1500 = vadd.f32 %v1481, %v1496
    %v1501 = vxor.u32 %v1489, 2147483648
    %v1502 = vmul.f32 %v1501, 1.442695
    %v1503 = vpow.pop %v1502
    %v1504 = vadd.f32 %v1503, 1.0
    %v1505 = vrcp.pop %v1504
    %v1506 = vmul.f32 1.0, %v1505
    %v1507 = vxor.u32 %v1490, 2147483648
    %v1508 = vmul.f32 %v1507, 1.442695
    %v1509 = vpow.pop %v1508
    %v1510 = vadd.f32 %v1509, 1.0
    %v1511 = vrcp.pop %v1510
    %v1512 = vmul.f32 1.0, %v1511
    %v1513 = vtanh.pop %v1491
    %v1514 = vxor.u32 %v1492, 2147483648
    %v1515 = vmul.f32 %v1514, 1.442695
    %v1516 = vpow.pop %v1515
    %v1517 = vadd.f32 %v1516, 1.0
    %v1518 = vrcp.pop %v1517
    %v1519 = vmul.f32 1.0, %v1518
    %v1520 = vmul.f32 %v1512, 0.0
    %v1521 = vmul.f32 %v1506, %v1513
    %v1522 = vadd.f32 %v1520, %v1521
    %v1523 = vtanh.pop %v1522
    %v1524 = vmul.f32 %v1519, %v1523
    %v1525 = vxor.u32 %v1497, 2147483648
    %v1526 = vmul.f32 %v1525, 1.442695
    %v1527 = vpow.pop %v1526
    %v1528 = vadd.f32 %v1527, 1.0
    %v1529 = vrcp.pop %v1528
    %v1530 = vmul.f32 1.0, %v1529
    %v1531 = vxor.u32 %v1498, 2147483648
    %v1532 = vmul.f32 %v1531, 1.442695
    %v1533 = vpow.pop %v1532
    %v1534 = vadd.f32 %v1533, 1.0
    %v1535 = vrcp.pop %v1534
    %v1536 = vmul.f32 1.0, %v1535
    %v1537 = vtanh.pop %v1499
    %v1538 = vxor.u32 %v1500, 2147483648
    %v1539 = vmul.f32 %v1538, 1.442695
    %v1540 = vpow.pop %v1539
    %v1541 = vadd.f32 %v1540, 1.0
    %v1542 = vrcp.pop %v1541
    %v1543 = vmul.f32 1.0, %v1542
    %v1544 = vmul.f32 %v1536, 0.0
    %v1545 = vmul.f32 %v1530, %v1537
    %v1546 = vadd.f32 %v1544, %v1545
    %v1547 = vtanh.pop %v1546
    %v1548 = vmul.f32 %v1543, %v1547
    %1549 = vst [vmem:[#allocation4] sm:$0xff] %v1524
    %1550 = vst [vmem:[#allocation4 + $0x8] sm:$0xff] %v1548
    %v1551 = vpack.c.bf16 %v1524, %v1524
    %v1552 = vpack.c.bf16 %v1548, %v1548
    %v1553 = vld [vmem:[#allocation8] sm:$0xff]
    %v1554 = vld [vmem:[#allocation8 + $0x8] sm:$0xff]
    %v1555 = vld [vmem:[#allocation8 + $0x10] sm:$0xff]
    %v1556 = vld [vmem:[#allocation8 + $0x18] sm:$0xff]
    %v1557 = vld [vmem:[#allocation8 + $0x20] sm:$0xff]
    %v1558 = vld [vmem:[#allocation8 + $0x28] sm:$0xff]
    %v1559 = vld [vmem:[#allocation8 + $0x30] sm:$0xff]
    %v1560 = vld [vmem:[#allocation8 + $0x38] sm:$0xff]
    %v1561 = vld [vmem:[#allocation8 + $0x40] sm:$0xff]
    %v1562 = vld [vmem:[#allocation8 + $0x48] sm:$0xff]
    %v1563 = vld [vmem:[#allocation8 + $0x50] sm:$0xff]
    %v1564 = vld [vmem:[#allocation8 + $0x58] sm:$0xff]
    %v1565 = vld [vmem:[#allocation8 + $0x60] sm:$0xff]
    %v1566 = vld [vmem:[#allocation8 + $0x68] sm:$0xff]
    %v1567 = vld [vmem:[#allocation8 + $0x70] sm:$0xff]
    %v1568 = vld [vmem:[#allocation8 + $0x78] sm:$0xff]
    %v1569 = vld [vmem:[#allocation8 + $0x80] sm:$0xff]
    %v1570 = vld [vmem:[#allocation8 + $0x88] sm:$0xff]
    %v1571 = vld [vmem:[#allocation8 + $0x90] sm:$0xff]
    %v1572 = vld [vmem:[#allocation8 + $0x98] sm:$0xff]
    %v1573 = vld [vmem:[#allocation8 + $0xa0] sm:$0xff]
    %v1574 = vld [vmem:[#allocation8 + $0xa8] sm:$0xff]
    %v1575 = vld [vmem:[#allocation8 + $0xb0] sm:$0xff]
    %v1576 = vld [vmem:[#allocation8 + $0xb8] sm:$0xff]
    %v1577 = vld [vmem:[#allocation8 + $0xc0] sm:$0xff]
    %v1578 = vld [vmem:[#allocation8 + $0xc8] sm:$0xff]
    %v1579 = vld [vmem:[#allocation8 + $0xd0] sm:$0xff]
    %v1580 = vld [vmem:[#allocation8 + $0xd8] sm:$0xff]
    %v1581 = vld [vmem:[#allocation8 + $0xe0] sm:$0xff]
    %v1582 = vld [vmem:[#allocation8 + $0xe8] sm:$0xff]
    %v1583 = vld [vmem:[#allocation8 + $0xf0] sm:$0xff]
    %v1584 = vld [vmem:[#allocation8 + $0xf8] sm:$0xff]
    %v1585 = vld [vmem:[#allocation8 + $0x100] sm:$0xff]
    %v1586 = vld [vmem:[#allocation8 + $0x108] sm:$0xff]
    %v1587 = vld [vmem:[#allocation8 + $0x110] sm:$0xff]
    %v1588 = vld [vmem:[#allocation8 + $0x118] sm:$0xff]
    %v1589 = vld [vmem:[#allocation8 + $0x120] sm:$0xff]
    %v1590 = vld [vmem:[#allocation8 + $0x128] sm:$0xff]
    %v1591 = vld [vmem:[#allocation8 + $0x130] sm:$0xff]
    %v1592 = vld [vmem:[#allocation8 + $0x138] sm:$0xff]
    %v1593 = vld [vmem:[#allocation8 + $0x140] sm:$0xff]
    %v1594 = vld [vmem:[#allocation8 + $0x148] sm:$0xff]
    %v1595 = vld [vmem:[#allocation8 + $0x150] sm:$0xff]
    %v1596 = vld [vmem:[#allocation8 + $0x158] sm:$0xff]
    %v1597 = vld [vmem:[#allocation8 + $0x160] sm:$0xff]
    %v1598 = vld [vmem:[#allocation8 + $0x168] sm:$0xff]
    %v1599 = vld [vmem:[#allocation8 + $0x170] sm:$0xff]
    %v1600 = vld [vmem:[#allocation8 + $0x178] sm:$0xff]
    %v1601 = vld [vmem:[#allocation8 + $0x180] sm:$0xff]
    %v1602 = vld [vmem:[#allocation8 + $0x188] sm:$0xff]
    %v1603 = vld [vmem:[#allocation8 + $0x190] sm:$0xff]
    %v1604 = vld [vmem:[#allocation8 + $0x198] sm:$0xff]
    %v1605 = vld [vmem:[#allocation8 + $0x1a0] sm:$0xff]
    %v1606 = vld [vmem:[#allocation8 + $0x1a8] sm:$0xff]
    %v1607 = vld [vmem:[#allocation8 + $0x1b0] sm:$0xff]
    %v1608 = vld [vmem:[#allocation8 + $0x1b8] sm:$0xff]
    %v1609 = vld [vmem:[#allocation8 + $0x1c0] sm:$0xff]
    %v1610 = vld [vmem:[#allocation8 + $0x1c8] sm:$0xff]
    %v1611 = vld [vmem:[#allocation8 + $0x1d0] sm:$0xff]
    %v1612 = vld [vmem:[#allocation8 + $0x1d8] sm:$0xff]
    %v1613 = vld [vmem:[#allocation8 + $0x1e0] sm:$0xff]
    %v1614 = vld [vmem:[#allocation8 + $0x1e8] sm:$0xff]
    %v1615 = vld [vmem:[#allocation8 + $0x1f0] sm:$0xff]
    %v1616 = vld [vmem:[#allocation8 + $0x1f8] sm:$0xff]
    %v1617 = vld [vmem:[#allocation8 + $0x200] sm:$0xff]
    %v1618 = vld [vmem:[#allocation8 + $0x208] sm:$0xff]
    %v1619 = vld [vmem:[#allocation8 + $0x210] sm:$0xff]
    %v1620 = vld [vmem:[#allocation8 + $0x218] sm:$0xff]
    %v1621 = vld [vmem:[#allocation8 + $0x220] sm:$0xff]
    %v1622 = vld [vmem:[#allocation8 + $0x228] sm:$0xff]
    %v1623 = vld [vmem:[#allocation8 + $0x230] sm:$0xff]
    %v1624 = vld [vmem:[#allocation8 + $0x238] sm:$0xff]
    %v1625 = vld [vmem:[#allocation8 + $0x240] sm:$0xff]
    %v1626 = vld [vmem:[#allocation8 + $0x248] sm:$0xff]
    %v1627 = vld [vmem:[#allocation8 + $0x250] sm:$0xff]
    %v1628 = vld [vmem:[#allocation8 + $0x258] sm:$0xff]
    %v1629 = vld [vmem:[#allocation8 + $0x260] sm:$0xff]
    %v1630 = vld [vmem:[#allocation8 + $0x268] sm:$0xff]
    %v1631 = vld [vmem:[#allocation8 + $0x270] sm:$0xff]
    %v1632 = vld [vmem:[#allocation8 + $0x278] sm:$0xff]
    %v1633 = vld [vmem:[#allocation8 + $0x280] sm:$0xff]
    %v1634 = vld [vmem:[#allocation8 + $0x288] sm:$0xff]
    %v1635 = vld [vmem:[#allocation8 + $0x290] sm:$0xff]
    %v1636 = vld [vmem:[#allocation8 + $0x298] sm:$0xff]
    %v1637 = vld [vmem:[#allocation8 + $0x2a0] sm:$0xff]
    %v1638 = vld [vmem:[#allocation8 + $0x2a8] sm:$0xff]
    %v1639 = vld [vmem:[#allocation8 + $0x2b0] sm:$0xff]
    %v1640 = vld [vmem:[#allocation8 + $0x2b8] sm:$0xff]
    %v1641 = vld [vmem:[#allocation8 + $0x2c0] sm:$0xff]
    %v1642 = vld [vmem:[#allocation8 + $0x2c8] sm:$0xff]
    %v1643 = vld [vmem:[#allocation8 + $0x2d0] sm:$0xff]
    %v1644 = vld [vmem:[#allocation8 + $0x2d8] sm:$0xff]
    %v1645 = vld [vmem:[#allocation8 + $0x2e0] sm:$0xff]
    %v1646 = vld [vmem:[#allocation8 + $0x2e8] sm:$0xff]
    %v1647 = vld [vmem:[#allocation8 + $0x2f0] sm:$0xff]
    %v1648 = vld [vmem:[#allocation8 + $0x2f8] sm:$0xff]
    %v1649 = vld [vmem:[#allocation8 + $0x300] sm:$0xff]
    %v1650 = vld [vmem:[#allocation8 + $0x308] sm:$0xff]
    %v1651 = vld [vmem:[#allocation8 + $0x310] sm:$0xff]
    %v1652 = vld [vmem:[#allocation8 + $0x318] sm:$0xff]
    %v1653 = vld [vmem:[#allocation8 + $0x320] sm:$0xff]
    %v1654 = vld [vmem:[#allocation8 + $0x328] sm:$0xff]
    %v1655 = vld [vmem:[#allocation8 + $0x330] sm:$0xff]
    %v1656 = vld [vmem:[#allocation8 + $0x338] sm:$0xff]
    %v1657 = vld [vmem:[#allocation8 + $0x340] sm:$0xff]
    %v1658 = vld [vmem:[#allocation8 + $0x348] sm:$0xff]
    %v1659 = vld [vmem:[#allocation8 + $0x350] sm:$0xff]
    %v1660 = vld [vmem:[#allocation8 + $0x358] sm:$0xff]
    %v1661 = vld [vmem:[#allocation8 + $0x360] sm:$0xff]
    %v1662 = vld [vmem:[#allocation8 + $0x368] sm:$0xff]
    %v1663 = vld [vmem:[#allocation8 + $0x370] sm:$0xff]
    %v1664 = vld [vmem:[#allocation8 + $0x378] sm:$0xff]
    %v1665 = vld [vmem:[#allocation8 + $0x380] sm:$0xff]
    %v1666 = vld [vmem:[#allocation8 + $0x388] sm:$0xff]
    %v1667 = vld [vmem:[#allocation8 + $0x390] sm:$0xff]
    %v1668 = vld [vmem:[#allocation8 + $0x398] sm:$0xff]
    %v1669 = vld [vmem:[#allocation8 + $0x3a0] sm:$0xff]
    %v1670 = vld [vmem:[#allocation8 + $0x3a8] sm:$0xff]
    %v1671 = vld [vmem:[#allocation8 + $0x3b0] sm:$0xff]
    %v1672 = vld [vmem:[#allocation8 + $0x3b8] sm:$0xff]
    %v1673 = vld [vmem:[#allocation8 + $0x3c0] sm:$0xff]
    %v1674 = vld [vmem:[#allocation8 + $0x3c8] sm:$0xff]
    %v1675 = vld [vmem:[#allocation8 + $0x3d0] sm:$0xff]
    %v1676 = vld [vmem:[#allocation8 + $0x3d8] sm:$0xff]
    %v1677 = vld [vmem:[#allocation8 + $0x3e0] sm:$0xff]
    %v1678 = vld [vmem:[#allocation8 + $0x3e8] sm:$0xff]
    %v1679 = vld [vmem:[#allocation8 + $0x3f0] sm:$0xff]
    %v1680 = vld [vmem:[#allocation8 + $0x3f8] sm:$0xff]
    %v1809 = vunpack.c.l.b16 %v1553
    %v1810 = vunpack.c.h.b16 %v1553
    %v1811 = vunpack.c.l.b16 %v1554
    %v1812 = vunpack.c.h.b16 %v1554
    %v1813 = vunpack.c.l.b16 %v1555
    %v1814 = vunpack.c.h.b16 %v1555
    %v1815 = vunpack.c.l.b16 %v1556
    %v1816 = vunpack.c.h.b16 %v1556
    %v1817 = vunpack.c.l.b16 %v1557
    %v1818 = vunpack.c.h.b16 %v1557
    %v1819 = vunpack.c.l.b16 %v1558
    %v1820 = vunpack.c.h.b16 %v1558
    %v1821 = vunpack.c.l.b16 %v1559
    %v1822 = vunpack.c.h.b16 %v1559
    %v1823 = vunpack.c.l.b16 %v1560
    %v1824 = vunpack.c.h.b16 %v1560
    %v1825 = vunpack.c.l.b16 %v1561
    %v1826 = vunpack.c.h.b16 %v1561
    %v1827 = vunpack.c.l.b16 %v1562
    %v1828 = vunpack.c.h.b16 %v1562
    %v1829 = vunpack.c.l.b16 %v1563
    %v1830 = vunpack.c.h.b16 %v1563
    %v1831 = vunpack.c.l.b16 %v1564
    %v1832 = vunpack.c.h.b16 %v1564
    %v1833 = vunpack.c.l.b16 %v1565
    %v1834 = vunpack.c.h.b16 %v1565
    %v1835 = vunpack.c.l.b16 %v1566
    %v1836 = vunpack.c.h.b16 %v1566
    %v1837 = vunpack.c.l.b16 %v1567
    %v1838 = vunpack.c.h.b16 %v1567
    %v1839 = vunpack.c.l.b16 %v1568
    %v1840 = vunpack.c.h.b16 %v1568
    %v1841 = vunpack.c.l.b16 %v1569
    %v1842 = vunpack.c.h.b16 %v1569
    %v1843 = vunpack.c.l.b16 %v1570
    %v1844 = vunpack.c.h.b16 %v1570
    %v1845 = vunpack.c.l.b16 %v1571
    %v1846 = vunpack.c.h.b16 %v1571
    %v1847 = vunpack.c.l.b16 %v1572
    %v1848 = vunpack.c.h.b16 %v1572
    %v1849 = vunpack.c.l.b16 %v1573
    %v1850 = vunpack.c.h.b16 %v1573
    %v1851 = vunpack.c.l.b16 %v1574
    %v1852 = vunpack.c.h.b16 %v1574
    %v1853 = vunpack.c.l.b16 %v1575
    %v1854 = vunpack.c.h.b16 %v1575
    %v1855 = vunpack.c.l.b16 %v1576
    %v1856 = vunpack.c.h.b16 %v1576
    %v1857 = vunpack.c.l.b16 %v1577
    %v1858 = vunpack.c.h.b16 %v1577
    %v1859 = vunpack.c.l.b16 %v1578
    %v1860 = vunpack.c.h.b16 %v1578
    %v1861 = vunpack.c.l.b16 %v1579
    %v1862 = vunpack.c.h.b16 %v1579
    %v1863 = vunpack.c.l.b16 %v1580
    %v1864 = vunpack.c.h.b16 %v1580
    %v1865 = vunpack.c.l.b16 %v1581
    %v1866 = vunpack.c.h.b16 %v1581
    %v1867 = vunpack.c.l.b16 %v1582
    %v1868 = vunpack.c.h.b16 %v1582
    %v1869 = vunpack.c.l.b16 %v1583
    %v1870 = vunpack.c.h.b16 %v1583
    %v1871 = vunpack.c.l.b16 %v1584
    %v1872 = vunpack.c.h.b16 %v1584
    %v1873 = vunpack.c.l.b16 %v1585
    %v1874 = vunpack.c.h.b16 %v1585
    %v1875 = vunpack.c.l.b16 %v1586
    %v1876 = vunpack.c.h.b16 %v1586
    %v1877 = vunpack.c.l.b16 %v1587
    %v1878 = vunpack.c.h.b16 %v1587
    %v1879 = vunpack.c.l.b16 %v1588
    %v1880 = vunpack.c.h.b16 %v1588
    %v1881 = vunpack.c.l.b16 %v1589
    %v1882 = vunpack.c.h.b16 %v1589
    %v1883 = vunpack.c.l.b16 %v1590
    %v1884 = vunpack.c.h.b16 %v1590
    %v1885 = vunpack.c.l.b16 %v1591
    %v1886 = vunpack.c.h.b16 %v1591
    %v1887 = vunpack.c.l.b16 %v1592
    %v1888 = vunpack.c.h.b16 %v1592
    %v1889 = vunpack.c.l.b16 %v1593
    %v1890 = vunpack.c.h.b16 %v1593
    %v1891 = vunpack.c.l.b16 %v1594
    %v1892 = vunpack.c.h.b16 %v1594
    %v1893 = vunpack.c.l.b16 %v1595
    %v1894 = vunpack.c.h.b16 %v1595
    %v1895 = vunpack.c.l.b16 %v1596
    %v1896 = vunpack.c.h.b16 %v1596
    %v1897 = vunpack.c.l.b16 %v1597
    %v1898 = vunpack.c.h.b16 %v1597
    %v1899 = vunpack.c.l.b16 %v1598
    %v1900 = vunpack.c.h.b16 %v1598
    %v1901 = vunpack.c.l.b16 %v1599
    %v1902 = vunpack.c.h.b16 %v1599
    %v1903 = vunpack.c.l.b16 %v1600
    %v1904 = vunpack.c.h.b16 %v1600
    %v1905 = vunpack.c.l.b16 %v1601
    %v1906 = vunpack.c.h.b16 %v1601
    %v1907 = vunpack.c.l.b16 %v1602
    %v1908 = vunpack.c.h.b16 %v1602
    %v1909 = vunpack.c.l.b16 %v1603
    %v1910 = vunpack.c.h.b16 %v1603
    %v1911 = vunpack.c.l.b16 %v1604
    %v1912 = vunpack.c.h.b16 %v1604
    %v1913 = vunpack.c.l.b16 %v1605
    %v1914 = vunpack.c.h.b16 %v1605
    %v1915 = vunpack.c.l.b16 %v1606
    %v1916 = vunpack.c.h.b16 %v1606
    %v1917 = vunpack.c.l.b16 %v1607
    %v1918 = vunpack.c.h.b16 %v1607
    %v1919 = vunpack.c.l.b16 %v1608
    %v1920 = vunpack.c.h.b16 %v1608
    %v1921 = vunpack.c.l.b16 %v1609
    %v1922 = vunpack.c.h.b16 %v1609
    %v1923 = vunpack.c.l.b16 %v1610
    %v1924 = vunpack.c.h.b16 %v1610
    %v1925 = vunpack.c.l.b16 %v1611
    %v1926 = vunpack.c.h.b16 %v1611
    %v1927 = vunpack.c.l.b16 %v1612
    %v1928 = vunpack.c.h.b16 %v1612
    %v1929 = vunpack.c.l.b16 %v1613
    %v1930 = vunpack.c.h.b16 %v1613
    %v1931 = vunpack.c.l.b16 %v1614
    %v1932 = vunpack.c.h.b16 %v1614
    %v1933 = vunpack.c.l.b16 %v1615
    %v1934 = vunpack.c.h.b16 %v1615
    %v1935 = vunpack.c.l.b16 %v1616
    %v1936 = vunpack.c.h.b16 %v1616
    %v1937 = vunpack.c.l.b16 %v1617
    %v1938 = vunpack.c.h.b16 %v1617
    %v1939 = vunpack.c.l.b16 %v1618
    %v1940 = vunpack.c.h.b16 %v1618
    %v1941 = vunpack.c.l.b16 %v1619
    %v1942 = vunpack.c.h.b16 %v1619
    %v1943 = vunpack.c.l.b16 %v1620
    %v1944 = vunpack.c.h.b16 %v1620
    %v1945 = vunpack.c.l.b16 %v1621
    %v1946 = vunpack.c.h.b16 %v1621
    %v1947 = vunpack.c.l.b16 %v1622
    %v1948 = vunpack.c.h.b16 %v1622
    %v1949 = vunpack.c.l.b16 %v1623
    %v1950 = vunpack.c.h.b16 %v1623
    %v1951 = vunpack.c.l.b16 %v1624
    %v1952 = vunpack.c.h.b16 %v1624
    %v1953 = vunpack.c.l.b16 %v1625
    %v1954 = vunpack.c.h.b16 %v1625
    %v1955 = vunpack.c.l.b16 %v1626
    %v1956 = vunpack.c.h.b16 %v1626
    %v1957 = vunpack.c.l.b16 %v1627
    %v1958 = vunpack.c.h.b16 %v1627
    %v1959 = vunpack.c.l.b16 %v1628
    %v1960 = vunpack.c.h.b16 %v1628
    %v1961 = vunpack.c.l.b16 %v1629
    %v1962 = vunpack.c.h.b16 %v1629
    %v1963 = vunpack.c.l.b16 %v1630
    %v1964 = vunpack.c.h.b16 %v1630
    %v1965 = vunpack.c.l.b16 %v1631
    %v1966 = vunpack.c.h.b16 %v1631
    %v1967 = vunpack.c.l.b16 %v1632
    %v1968 = vunpack.c.h.b16 %v1632
    %v1969 = vunpack.c.l.b16 %v1633
    %v1970 = vunpack.c.h.b16 %v1633
    %v1971 = vunpack.c.l.b16 %v1634
    %v1972 = vunpack.c.h.b16 %v1634
    %v1973 = vunpack.c.l.b16 %v1635
    %v1974 = vunpack.c.h.b16 %v1635
    %v1975 = vunpack.c.l.b16 %v1636
    %v1976 = vunpack.c.h.b16 %v1636
    %v1977 = vunpack.c.l.b16 %v1637
    %v1978 = vunpack.c.h.b16 %v1637
    %v1979 = vunpack.c.l.b16 %v1638
    %v1980 = vunpack.c.h.b16 %v1638
    %v1981 = vunpack.c.l.b16 %v1639
    %v1982 = vunpack.c.h.b16 %v1639
    %v1983 = vunpack.c.l.b16 %v1640
    %v1984 = vunpack.c.h.b16 %v1640
    %v1985 = vunpack.c.l.b16 %v1641
    %v1986 = vunpack.c.h.b16 %v1641
    %v1987 = vunpack.c.l.b16 %v1642
    %v1988 = vunpack.c.h.b16 %v1642
    %v1989 = vunpack.c.l.b16 %v1643
    %v1990 = vunpack.c.h.b16 %v1643
    %v1991 = vunpack.c.l.b16 %v1644
    %v1992 = vunpack.c.h.b16 %v1644
    %v1993 = vunpack.c.l.b16 %v1645
    %v1994 = vunpack.c.h.b16 %v1645
    %v1995 = vunpack.c.l.b16 %v1646
    %v1996 = vunpack.c.h.b16 %v1646
    %v1997 = vunpack.c.l.b16 %v1647
    %v1998 = vunpack.c.h.b16 %v1647
    %v1999 = vunpack.c.l.b16 %v1648
    %v2000 = vunpack.c.h.b16 %v1648
    %v2001 = vunpack.c.l.b16 %v1649
    %v2002 = vunpack.c.h.b16 %v1649
    %v2003 = vunpack.c.l.b16 %v1650
    %v2004 = vunpack.c.h.b16 %v1650
    %v2005 = vunpack.c.l.b16 %v1651
    %v2006 = vunpack.c.h.b16 %v1651
    %v2007 = vunpack.c.l.b16 %v1652
    %v2008 = vunpack.c.h.b16 %v1652
    %v2009 = vunpack.c.l.b16 %v1653
    %v2010 = vunpack.c.h.b16 %v1653
    %v2011 = vunpack.c.l.b16 %v1654
    %v2012 = vunpack.c.h.b16 %v1654
    %v2013 = vunpack.c.l.b16 %v1655
    %v2014 = vunpack.c.h.b16 %v1655
    %v2015 = vunpack.c.l.b16 %v1656
    %v2016 = vunpack.c.h.b16 %v1656
    %v2017 = vunpack.c.l.b16 %v1657
    %v2018 = vunpack.c.h.b16 %v1657
    %v2019 = vunpack.c.l.b16 %v1658
    %v2020 = vunpack.c.h.b16 %v1658
    %v2021 = vunpack.c.l.b16 %v1659
    %v2022 = vunpack.c.h.b16 %v1659
    %v2023 = vunpack.c.l.b16 %v1660
    %v2024 = vunpack.c.h.b16 %v1660
    %v2025 = vunpack.c.l.b16 %v1661
    %v2026 = vunpack.c.h.b16 %v1661
    %v2027 = vunpack.c.l.b16 %v1662
    %v2028 = vunpack.c.h.b16 %v1662
    %v2029 = vunpack.c.l.b16 %v1663
    %v2030 = vunpack.c.h.b16 %v1663
    %v2031 = vunpack.c.l.b16 %v1664
    %v2032 = vunpack.c.h.b16 %v1664
    %v2033 = vunpack.c.l.b16 %v1665
    %v2034 = vunpack.c.h.b16 %v1665
    %v2035 = vunpack.c.l.b16 %v1666
    %v2036 = vunpack.c.h.b16 %v1666
    %v2037 = vunpack.c.l.b16 %v1667
    %v2038 = vunpack.c.h.b16 %v1667
    %v2039 = vunpack.c.l.b16 %v1668
    %v2040 = vunpack.c.h.b16 %v1668
    %v2041 = vunpack.c.l.b16 %v1669
    %v2042 = vunpack.c.h.b16 %v1669
    %v2043 = vunpack.c.l.b16 %v1670
    %v2044 = vunpack.c.h.b16 %v1670
    %v2045 = vunpack.c.l.b16 %v1671
    %v2046 = vunpack.c.h.b16 %v1671
    %v2047 = vunpack.c.l.b16 %v1672
    %v2048 = vunpack.c.h.b16 %v1672
    %v2049 = vunpack.c.l.b16 %v1673
    %v2050 = vunpack.c.h.b16 %v1673
    %v2051 = vunpack.c.l.b16 %v1674
    %v2052 = vunpack.c.h.b16 %v1674
    %v2053 = vunpack.c.l.b16 %v1675
    %v2054 = vunpack.c.h.b16 %v1675
    %v2055 = vunpack.c.l.b16 %v1676
    %v2056 = vunpack.c.h.b16 %v1676
    %v2057 = vunpack.c.l.b16 %v1677
    %v2058 = vunpack.c.h.b16 %v1677
    %v2059 = vunpack.c.l.b16 %v1678
    %v2060 = vunpack.c.h.b16 %v1678
    %v2061 = vunpack.c.l.b16 %v1679
    %v2062 = vunpack.c.h.b16 %v1679
    %v2063 = vunpack.c.l.b16 %v1680
    %v2064 = vunpack.c.h.b16 %v1680
    %v2065 = vpack.c.b16 %v1817, %v1809
    %v2066 = vpack.c.b16 %v1818, %v1810
    %v2067 = vpack.c.b16 %v1819, %v1811
    %v2068 = vpack.c.b16 %v1820, %v1812
    %v2069 = vpack.c.b16 %v1821, %v1813
    %v2070 = vpack.c.b16 %v1822, %v1814
    %v2071 = vpack.c.b16 %v1823, %v1815
    %v2072 = vpack.c.b16 %v1824, %v1816
    %v2073 = vpack.c.b16 %v1833, %v1825
    %v2074 = vpack.c.b16 %v1834, %v1826
    %v2075 = vpack.c.b16 %v1835, %v1827
    %v2076 = vpack.c.b16 %v1836, %v1828
    %v2077 = vpack.c.b16 %v1837, %v1829
    %v2078 = vpack.c.b16 %v1838, %v1830
    %v2079 = vpack.c.b16 %v1839, %v1831
    %v2080 = vpack.c.b16 %v1840, %v1832
    %v2081 = vpack.c.b16 %v1849, %v1841
    %v2082 = vpack.c.b16 %v1850, %v1842
    %v2083 = vpack.c.b16 %v1851, %v1843
    %v2084 = vpack.c.b16 %v1852, %v1844
    %v2085 = vpack.c.b16 %v1853, %v1845
    %v2086 = vpack.c.b16 %v1854, %v1846
    %v2087 = vpack.c.b16 %v1855, %v1847
    %v2088 = vpack.c.b16 %v1856, %v1848
    %v2089 = vpack.c.b16 %v1865, %v1857
    %v2090 = vpack.c.b16 %v1866, %v1858
    %v2091 = vpack.c.b16 %v1867, %v1859
    %v2092 = vpack.c.b16 %v1868, %v1860
    %v2093 = vpack.c.b16 %v1869, %v1861
    %v2094 = vpack.c.b16 %v1870, %v1862
    %v2095 = vpack.c.b16 %v1871, %v1863
    %v2096 = vpack.c.b16 %v1872, %v1864
    %v2097 = vpack.c.b16 %v1881, %v1873
    %v2098 = vpack.c.b16 %v1882, %v1874
    %v2099 = vpack.c.b16 %v1883, %v1875
    %v2100 = vpack.c.b16 %v1884, %v1876
    %v2101 = vpack.c.b16 %v1885, %v1877
    %v2102 = vpack.c.b16 %v1886, %v1878
    %v2103 = vpack.c.b16 %v1887, %v1879
    %v2104 = vpack.c.b16 %v1888, %v1880
    %v2105 = vpack.c.b16 %v1897, %v1889
    %v2106 = vpack.c.b16 %v1898, %v1890
    %v2107 = vpack.c.b16 %v1899, %v1891
    %v2108 = vpack.c.b16 %v1900, %v1892
    %v2109 = vpack.c.b16 %v1901, %v1893
    %v2110 = vpack.c.b16 %v1902, %v1894
    %v2111 = vpack.c.b16 %v1903, %v1895
    %v2112 = vpack.c.b16 %v1904, %v1896
    %v2113 = vpack.c.b16 %v1913, %v1905
    %v2114 = vpack.c.b16 %v1914, %v1906
    %v2115 = vpack.c.b16 %v1915, %v1907
    %v2116 = vpack.c.b16 %v1916, %v1908
    %v2117 = vpack.c.b16 %v1917, %v1909
    %v2118 = vpack.c.b16 %v1918, %v1910
    %v2119 = vpack.c.b16 %v1919, %v1911
    %v2120 = vpack.c.b16 %v1920, %v1912
    %v2121 = vpack.c.b16 %v1929, %v1921
    %v2122 = vpack.c.b16 %v1930, %v1922
    %v2123 = vpack.c.b16 %v1931, %v1923
    %v2124 = vpack.c.b16 %v1932, %v1924
    %v2125 = vpack.c.b16 %v1933, %v1925
    %v2126 = vpack.c.b16 %v1934, %v1926
    %v2127 = vpack.c.b16 %v1935, %v1927
    %v2128 = vpack.c.b16 %v1936, %v1928
    %v2129 = vpack.c.b16 %v1945, %v1937
    %v2130 = vpack.c.b16 %v1946, %v1938
    %v2131 = vpack.c.b16 %v1947, %v1939
    %v2132 = vpack.c.b16 %v1948, %v1940
    %v2133 = vpack.c.b16 %v1949, %v1941
    %v2134 = vpack.c.b16 %v1950, %v1942
    %v2135 = vpack.c.b16 %v1951, %v1943
    %v2136 = vpack.c.b16 %v1952, %v1944
    %v2137 = vpack.c.b16 %v1961, %v1953
    %v2138 = vpack.c.b16 %v1962, %v1954
    %v2139 = vpack.c.b16 %v1963, %v1955
    %v2140 = vpack.c.b16 %v1964, %v1956
    %v2141 = vpack.c.b16 %v1965, %v1957
    %v2142 = vpack.c.b16 %v1966, %v1958
    %v2143 = vpack.c.b16 %v1967, %v1959
    %v2144 = vpack.c.b16 %v1968, %v1960
    %v2145 = vpack.c.b16 %v1977, %v1969
    %v2146 = vpack.c.b16 %v1978, %v1970
    %v2147 = vpack.c.b16 %v1979, %v1971
    %v2148 = vpack.c.b16 %v1980, %v1972
    %v2149 = vpack.c.b16 %v1981, %v1973
    %v2150 = vpack.c.b16 %v1982, %v1974
    %v2151 = vpack.c.b16 %v1983, %v1975
    %v2152 = vpack.c.b16 %v1984, %v1976
    %v2153 = vpack.c.b16 %v1993, %v1985
    %v2154 = vpack.c.b16 %v1994, %v1986
    %v2155 = vpack.c.b16 %v1995, %v1987
    %v2156 = vpack.c.b16 %v1996, %v1988
    %v2157 = vpack.c.b16 %v1997, %v1989
    %v2158 = vpack.c.b16 %v1998, %v1990
    %v2159 = vpack.c.b16 %v1999, %v1991
    %v2160 = vpack.c.b16 %v2000, %v1992
    %v2161 = vpack.c.b16 %v2009, %v2001
    %v2162 = vpack.c.b16 %v2010, %v2002
    %v2163 = vpack.c.b16 %v2011, %v2003
    %v2164 = vpack.c.b16 %v2012, %v2004
    %v2165 = vpack.c.b16 %v2013, %v2005
    %v2166 = vpack.c.b16 %v2014, %v2006
    %v2167 = vpack.c.b16 %v2015, %v2007
    %v2168 = vpack.c.b16 %v2016, %v2008
    %v2169 = vpack.c.b16 %v2025, %v2017
    %v2170 = vpack.c.b16 %v2026, %v2018
    %v2171 = vpack.c.b16 %v2027, %v2019
    %v2172 = vpack.c.b16 %v2028, %v2020
    %v2173 = vpack.c.b16 %v2029, %v2021
    %v2174 = vpack.c.b16 %v2030, %v2022
    %v2175 = vpack.c.b16 %v2031, %v2023
    %v2176 = vpack.c.b16 %v2032, %v2024
    %v2177 = vpack.c.b16 %v2041, %v2033
    %v2178 = vpack.c.b16 %v2042, %v2034
    %v2179 = vpack.c.b16 %v2043, %v2035
    %v2180 = vpack.c.b16 %v2044, %v2036
    %v2181 = vpack.c.b16 %v2045, %v2037
    %v2182 = vpack.c.b16 %v2046, %v2038
    %v2183 = vpack.c.b16 %v2047, %v2039
    %v2184 = vpack.c.b16 %v2048, %v2040
    %v2185 = vpack.c.b16 %v2057, %v2049
    %v2186 = vpack.c.b16 %v2058, %v2050
    %v2187 = vpack.c.b16 %v2059, %v2051
    %v2188 = vpack.c.b16 %v2060, %v2052
    %v2189 = vpack.c.b16 %v2061, %v2053
    %v2190 = vpack.c.b16 %v2062, %v2054
    %v2191 = vpack.c.b16 %v2063, %v2055
    %v2192 = vpack.c.b16 %v2064, %v2056
    %2321 = vmatprep.subr.bf16.mxu0 %v2066
    %2322 = vmatpush1.bf16.msra.mxu0 %v2065
    %2323 = vmatprep.subr.bf16.mxu0 %v2074
    %2324 = vmatpush1.bf16.msra.mxu0 %v2073
    %2325 = vmatprep.subr.bf16.mxu0 %v2082
    %2326 = vmatpush1.bf16.msra.mxu0 %v2081
    %2327 = vmatprep.subr.bf16.mxu0 %v2090
    %2328 = vmatpush1.bf16.msra.mxu0 %v2089
    %2329 = vmatprep.subr.bf16.mxu0 %v2098
    %2330 = vmatpush1.bf16.msra.mxu0 %v2097
    %2331 = vmatprep.subr.bf16.mxu0 %v2106
    %2332 = vmatpush1.bf16.msra.mxu0 %v2105
    %2333 = vmatprep.subr.bf16.mxu0 %v2114
    %2334 = vmatpush1.bf16.msra.mxu0 %v2113
    %2335 = vmatprep.subr.bf16.mxu0 %v2122
    %2336 = vmatpush1.bf16.msra.mxu0 %v2121
    %2337 = vmatprep.subr.bf16.mxu0 %v2130
    %2338 = vmatpush1.bf16.msra.mxu0 %v2129
    %2339 = vmatprep.subr.bf16.mxu0 %v2138
    %2340 = vmatpush1.bf16.msra.mxu0 %v2137
    %2341 = vmatprep.subr.bf16.mxu0 %v2146
    %2342 = vmatpush1.bf16.msra.mxu0 %v2145
    %2343 = vmatprep.subr.bf16.mxu0 %v2154
    %2344 = vmatpush1.bf16.msra.mxu0 %v2153
    %2345 = vmatprep.subr.bf16.mxu0 %v2162
    %2346 = vmatpush1.bf16.msra.mxu0 %v2161
    %2347 = vmatprep.subr.bf16.mxu0 %v2170
    %2348 = vmatpush1.bf16.msra.mxu0 %v2169
    %2349 = vmatprep.subr.bf16.mxu0 %v2178
    %2350 = vmatpush1.bf16.msra.mxu0 %v2177
    %2351 = vmatprep.subr.bf16.mxu0 %v2186
    %2352 = vmatpush1.bf16.msra.mxu0 %v2185
    %2353 = vmatprep.mubr.bf16.mxu0 %v1552
    %2354 = vmatmul.mubr.bf16.gmra.mrb[0].mxu0 %v1551
    %v2355 = vpop.f32.mrb[0].mxu0
    %v2356 = vadd.f32 0.0, %v2355
    %v2357 = vpop.f32.mrb[0].mxu0
    %v2358 = vadd.f32 0.0, %v2357
    %v2359 = vpop.f32.mrb[0].mxu0
    %v2360 = vpop.f32.mrb[0].mxu0
    %2361 = vdwg.mxu0
    %2362 = vmatprep.subr.bf16.mxu0 %v2068
    %2363 = vmatpush1.bf16.msra.mxu0 %v2067
    %2364 = vmatprep.subr.bf16.mxu0 %v2076
    %2365 = vmatpush1.bf16.msra.mxu0 %v2075
    %2366 = vmatprep.subr.bf16.mxu0 %v2084
    %2367 = vmatpush1.bf16.msra.mxu0 %v2083
    %2368 = vmatprep.subr.bf16.mxu0 %v2092
    %2369 = vmatpush1.bf16.msra.mxu0 %v2091
    %2370 = vmatprep.subr.bf16.mxu0 %v2100
    %2371 = vmatpush1.bf16.msra.mxu0 %v2099
    %2372 = vmatprep.subr.bf16.mxu0 %v2108
    %2373 = vmatpush1.bf16.msra.mxu0 %v2107
    %2374 = vmatprep.subr.bf16.mxu0 %v2116
    %2375 = vmatpush1.bf16.msra.mxu0 %v2115
    %2376 = vmatprep.subr.bf16.mxu0 %v2124
    %2377 = vmatpush1.bf16.msra.mxu0 %v2123
    %2378 = vmatprep.subr.bf16.mxu0 %v2132
    %2379 = vmatpush1.bf16.msra.mxu0 %v2131
    %2380 = vmatprep.subr.bf16.mxu0 %v2140
    %2381 = vmatpush1.bf16.msra.mxu0 %v2139
    %2382 = vmatprep.subr.bf16.mxu0 %v2148
    %2383 = vmatpush1.bf16.msra.mxu0 %v2147
    %2384 = vmatprep.subr.bf16.mxu0 %v2156
    %2385 = vmatpush1.bf16.msra.mxu0 %v2155
    %2386 = vmatprep.subr.bf16.mxu0 %v2164
    %2387 = vmatpush1.bf16.msra.mxu0 %v2163
    %2388 = vmatprep.subr.bf16.mxu0 %v2172
    %2389 = vmatpush1.bf16.msra.mxu0 %v2171
    %2390 = vmatprep.subr.bf16.mxu0 %v2180
    %2391 = vmatpush1.bf16.msra.mxu0 %v2179
    %2392 = vmatprep.subr.bf16.mxu0 %v2188
    %2393 = vmatpush1.bf16.msra.mxu0 %v2187
    %2394 = vmatprep.mubr.bf16.mxu0 %v1552
    %2395 = vmatmul.mubr.bf16.gmra.mrb[0].mxu0 %v1551
    %v2396 = vpop.f32.mrb[0].mxu0
    %v2397 = vadd.f32 0.0, %v2396
    %v2398 = vpop.f32.mrb[0].mxu0
    %v2399 = vadd.f32 0.0, %v2398
    %v2400 = vpop.f32.mrb[0].mxu0
    %v2401 = vpop.f32.mrb[0].mxu0
    %2402 = vdwg.mxu0
    %2403 = vmatprep.subr.bf16.mxu0 %v2070
    %2404 = vmatpush1.bf16.msra.mxu0 %v2069
    %2405 = vmatprep.subr.bf16.mxu0 %v2078
    %2406 = vmatpush1.bf16.msra.mxu0 %v2077
    %2407 = vmatprep.subr.bf16.mxu0 %v2086
    %2408 = vmatpush1.bf16.msra.mxu0 %v2085
    %2409 = vmatprep.subr.bf16.mxu0 %v2094
    %2410 = vmatpush1.bf16.msra.mxu0 %v2093
    %2411 = vmatprep.subr.bf16.mxu0 %v2102
    %2412 = vmatpush1.bf16.msra.mxu0 %v2101
    %2413 = vmatprep.subr.bf16.mxu0 %v2110
    %2414 = vmatpush1.bf16.msra.mxu0 %v2109
    %2415 = vmatprep.subr.bf16.mxu0 %v2118
    %2416 = vmatpush1.bf16.msra.mxu0 %v2117
    %2417 = vmatprep.subr.bf16.mxu0 %v2126
    %2418 = vmatpush1.bf16.msra.mxu0 %v2125
    %2419 = vmatprep.subr.bf16.mxu0 %v2134
    %2420 = vmatpush1.bf16.msra.mxu0 %v2133
    %2421 = vmatprep.subr.bf16.mxu0 %v2142
    %2422 = vmatpush1.bf16.msra.mxu0 %v2141
    %2423 = vmatprep.subr.bf16.mxu0 %v2150
    %2424 = vmatpush1.bf16.msra.mxu0 %v2149
    %2425 = vmatprep.subr.bf16.mxu0 %v2158
    %2426 = vmatpush1.bf16.msra.mxu0 %v2157
    %2427 = vmatprep.subr.bf16.mxu0 %v2166
    %2428 = vmatpush1.bf16.msra.mxu0 %v2165
    %2429 = vmatprep.subr.bf16.mxu0 %v2174
    %2430 = vmatpush1.bf16.msra.mxu0 %v2173
    %2431 = vmatprep.subr.bf16.mxu0 %v2182
    %2432 = vmatpush1.bf16.msra.mxu0 %v2181
    %2433 = vmatprep.subr.bf16.mxu0 %v2190
    %2434 = vmatpush1.bf16.msra.mxu0 %v2189
    %2435 = vmatprep.mubr.bf16.mxu0 %v1552
    %2436 = vmatmul.mubr.bf16.gmra.mrb[0].mxu0 %v1551
    %v2437 = vpop.f32.mrb[0].mxu0
    %v2438 = vadd.f32 0.0, %v2437
    %v2439 = vpop.f32.mrb[0].mxu0
    %v2440 = vadd.f32 0.0, %v2439
    %v2441 = vpop.f32.mrb[0].mxu0
    %v2442 = vpop.f32.mrb[0].mxu0
    %2443 = vdwg.mxu0
    %2444 = vmatprep.subr.bf16.mxu0 %v2072
    %2445 = vmatpush1.bf16.msra.mxu0 %v2071
    %2446 = vmatprep.subr.bf16.mxu0 %v2080
    %2447 = vmatpush1.bf16.msra.mxu0 %v2079
    %2448 = vmatprep.subr.bf16.mxu0 %v2088
    %2449 = vmatpush1.bf16.msra.mxu0 %v2087
    %2450 = vmatprep.subr.bf16.mxu0 %v2096
    %2451 = vmatpush1.bf16.msra.mxu0 %v2095
    %2452 = vmatprep.subr.bf16.mxu0 %v2104
    %2453 = vmatpush1.bf16.msra.mxu0 %v2103
    %2454 = vmatprep.subr.bf16.mxu0 %v2112
    %2455 = vmatpush1.bf16.msra.mxu0 %v2111
    %2456 = vmatprep.subr.bf16.mxu0 %v2120
    %2457 = vmatpush1.bf16.msra.mxu0 %v2119
    %2458 = vmatprep.subr.bf16.mxu0 %v2128
    %2459 = vmatpush1.bf16.msra.mxu0 %v2127
    %2460 = vmatprep.subr.bf16.mxu0 %v2136
    %2461 = vmatpush1.bf16.msra.mxu0 %v2135
    %2462 = vmatprep.subr.bf16.mxu0 %v2144
    %2463 = vmatpush1.bf16.msra.mxu0 %v2143
    %2464 = vmatprep.subr.bf16.mxu0 %v2152
    %2465 = vmatpush1.bf16.msra.mxu0 %v2151
    %2466 = vmatprep.subr.bf16.mxu0 %v2160
    %2467 = vmatpush1.bf16.msra.mxu0 %v2159
    %2468 = vmatprep.subr.bf16.mxu0 %v2168
    %2469 = vmatpush1.bf16.msra.mxu0 %v2167
    %2470 = vmatprep.subr.bf16.mxu0 %v2176
    %2471 = vmatpush1.bf16.msra.mxu0 %v2175
    %2472 = vmatprep.subr.bf16.mxu0 %v2184
    %2473 = vmatpush1.bf16.msra.mxu0 %v2183
    %2474 = vmatprep.subr.bf16.mxu0 %v2192
    %2475 = vmatpush1.bf16.msra.mxu0 %v2191
    %2476 = vmatprep.mubr.bf16.mxu0 %v1552
    %2477 = vmatmul.mubr.bf16.gmra.mrb[0].mxu0 %v1551
    %v2478 = vpop.f32.mrb[0].mxu0
    %v2479 = vadd.f32 0.0, %v2478
    %v2480 = vpop.f32.mrb[0].mxu0
    %v2481 = vadd.f32 0.0, %v2480
    %v2482 = vpop.f32.mrb[0].mxu0
    %v2483 = vpop.f32.mrb[0].mxu0
    %2484 = vdwg.mxu0
    %v2485 = vld [vmem:[#allocation2 + $0x20] sm:$0xff]
    %v2486 = vld [vmem:[#allocation2 + $0x28] sm:$0xff]
    %v2487 = vld [vmem:[#allocation2 + $0x30] sm:$0xff]
    %v2488 = vld [vmem:[#allocation2 + $0x38] sm:$0xff]
    %v2489 = vadd.f32 %v2356, %v2485
    %v2490 = vadd.f32 %v2358, %v2486
    %v2491 = vadd.f32 %v2397, %v2487
    %v2492 = vadd.f32 %v2399, %v2488
    %v2493 = vld [vmem:[#allocation3 + $0xc0] sm:$0xff]
    %v2494 = vld [vmem:[#allocation3 + $0xc8] sm:$0xff]
    %v2495 = vld [vmem:[#allocation3 + $0xd0] sm:$0xff]
    %v2496 = vld [vmem:[#allocation3 + $0xd8] sm:$0xff]
    %v2497 = vadd.f32 %v2438, %v2493
    %v2498 = vadd.f32 %v2440, %v2494
    %v2499 = vadd.f32 %v2479, %v2495
    %v2500 = vadd.f32 %v2481, %v2496
    %v2501 = vxor.u32 %v2489, 2147483648
    %v2502 = vmul.f32 %v2501, 1.442695
    %v2503 = vpow.pop %v2502
    %v2504 = vadd.f32 %v2503, 1.0
    %v2505 = vrcp.pop %v2504
    %v2506 = vmul.f32 1.0, %v2505
    %v2507 = vxor.u32 %v2490, 2147483648
    %v2508 = vmul.f32 %v2507, 1.442695
    %v2509 = vpow.pop %v2508
    %v2510 = vadd.f32 %v2509, 1.0
    %v2511 = vrcp.pop %v2510
    %v2512 = vmul.f32 1.0, %v2511
    %v2513 = vtanh.pop %v2491
    %v2514 = vxor.u32 %v2492, 2147483648
    %v2515 = vmul.f32 %v2514, 1.442695
    %v2516 = vpow.pop %v2515
    %v2517 = vadd.f32 %v2516, 1.0
    %v2518 = vrcp.pop %v2517
    %v2519 = vmul.f32 1.0, %v2518
    %v2520 = vmul.f32 %v2512, %v1522
    %v2521 = vmul.f32 %v2506, %v2513
    %v2522 = vadd.f32 %v2520, %v2521
    %v2523 = vtanh.pop %v2522
    %v2524 = vmul.f32 %v2519, %v2523
    %v2525 = vxor.u32 %v2497, 2147483648
    %v2526 = vmul.f32 %v2525, 1.442695
    %v2527 = vpow.pop %v2526
    %v2528 = vadd.f32 %v2527, 1.0
    %v2529 = vrcp.pop %v2528
    %v2530 = vmul.f32 1.0, %v2529
    %v2531 = vxor.u32 %v2498, 2147483648
    %v2532 = vmul.f32 %v2531, 1.442695
    %v2533 = vpow.pop %v2532
    %v2534 = vadd.f32 %v2533, 1.0
    %v2535 = vrcp.pop %v2534
    %v2536 = vmul.f32 1.0, %v2535
    %v2537 = vtanh.pop %v2499
    %v2538 = vxor.u32 %v2500, 2147483648
    %v2539 = vmul.f32 %v2538, 1.442695
    %v2540 = vpow.pop %v2539
    %v2541 = vadd.f32 %v2540, 1.0
    %v2542 = vrcp.pop %v2541
    %v2543 = vmul.f32 1.0, %v2542
    %v2544 = vmul.f32 %v2536, %v1546
    %v2545 = vmul.f32 %v2530, %v2537
    %v2546 = vadd.f32 %v2544, %v2545
    %v2547 = vtanh.pop %v2546
    %v2548 = vmul.f32 %v2543, %v2547
    %2549 = vst [vmem:[#allocation4 + $0x10] sm:$0xff] %v2524
    %2550 = vst [vmem:[#allocation4 + $0x18] sm:$0xff] %v2548
    %v2551 = vpack.c.bf16 %v2524, %v2524
    %v2552 = vpack.c.bf16 %v2548, %v2548
    %v2553 = vld [vmem:[#allocation8] sm:$0xff]
    %v2554 = vld [vmem:[#allocation8 + $0x8] sm:$0xff]
    %v2555 = vld [vmem:[#allocation8 + $0x10] sm:$0xff]
    %v2556 = vld [vmem:[#allocation8 + $0x18] sm:$0xff]
    %v2557 = vld [vmem:[#allocation8 + $0x20] sm:$0xff]
    %v2558 = vld [vmem:[#allocation8 + $0x28] sm:$0xff]
    %v2559 = vld [vmem:[#allocation8 + $0x30] sm:$0xff]
    %v2560 = vld [vmem:[#allocation8 + $0x38] sm:$0xff]
    %v2561 = vld [vmem:[#allocation8 + $0x40] sm:$0xff]
    %v2562 = vld [vmem:[#allocation8 + $0x48] sm:$0xff]
    %v2563 = vld [vmem:[#allocation8 + $0x50] sm:$0xff]
    %v2564 = vld [vmem:[#allocation8 + $0x58] sm:$0xff]
    %v2565 = vld [vmem:[#allocation8 + $0x60] sm:$0xff]
    %v2566 = vld [vmem:[#allocation8 + $0x68] sm:$0xff]
    %v2567 = vld [vmem:[#allocation8 + $0x70] sm:$0xff]
    %v2568 = vld [vmem:[#allocation8 + $0x78] sm:$0xff]
    %v2569 = vld [vmem:[#allocation8 + $0x80] sm:$0xff]
    %v2570 = vld [vmem:[#allocation8 + $0x88] sm:$0xff]
    %v2571 = vld [vmem:[#allocation8 + $0x90] sm:$0xff]
    %v2572 = vld [vmem:[#allocation8 + $0x98] sm:$0xff]
    %v2573 = vld [vmem:[#allocation8 + $0xa0] sm:$0xff]
    %v2574 = vld [vmem:[#allocation8 + $0xa8] sm:$0xff]
    %v2575 = vld [vmem:[#allocation8 + $0xb0] sm:$0xff]
    %v2576 = vld [vmem:[#allocation8 + $0xb8] sm:$0xff]
    %v2577 = vld [vmem:[#allocation8 + $0xc0] sm:$0xff]
    %v2578 = vld [vmem:[#allocation8 + $0xc8] sm:$0xff]
    %v2579 = vld [vmem:[#allocation8 + $0xd0] sm:$0xff]
    %v2580 = vld [vmem:[#allocation8 + $0xd8] sm:$0xff]
    %v2581 = vld [vmem:[#allocation8 + $0xe0] sm:$0xff]
    %v2582 = vld [vmem:[#allocation8 + $0xe8] sm:$0xff]
    %v2583 = vld [vmem:[#allocation8 + $0xf0] sm:$0xff]
    %v2584 = vld [vmem:[#allocation8 + $0xf8] sm:$0xff]
    %v2585 = vld [vmem:[#allocation8 + $0x100] sm:$0xff]
    %v2586 = vld [vmem:[#allocation8 + $0x108] sm:$0xff]
    %v2587 = vld [vmem:[#allocation8 + $0x110] sm:$0xff]
    %v2588 = vld [vmem:[#allocation8 + $0x118] sm:$0xff]
    %v2589 = vld [vmem:[#allocation8 + $0x120] sm:$0xff]
    %v2590 = vld [vmem:[#allocation8 + $0x128] sm:$0xff]
    %v2591 = vld [vmem:[#allocation8 + $0x130] sm:$0xff]
    %v2592 = vld [vmem:[#allocation8 + $0x138] sm:$0xff]
    %v2593 = vld [vmem:[#allocation8 + $0x140] sm:$0xff]
    %v2594 = vld [vmem:[#allocation8 + $0x148] sm:$0xff]
    %v2595 = vld [vmem:[#allocation8 + $0x150] sm:$0xff]
    %v2596 = vld [vmem:[#allocation8 + $0x158] sm:$0xff]
    %v2597 = vld [vmem:[#allocation8 + $0x160] sm:$0xff]
    %v2598 = vld [vmem:[#allocation8 + $0x168] sm:$0xff]
    %v2599 = vld [vmem:[#allocation8 + $0x170] sm:$0xff]
    %v2600 = vld [vmem:[#allocation8 + $0x178] sm:$0xff]
    %v2601 = vld [vmem:[#allocation8 + $0x180] sm:$0xff]
    %v2602 = vld [vmem:[#allocation8 + $0x188] sm:$0xff]
    %v2603 = vld [vmem:[#allocation8 + $0x190] sm:$0xff]
    %v2604 = vld [vmem:[#allocation8 + $0x198] sm:$0xff]
    %v2605 = vld [vmem:[#allocation8 + $0x1a0] sm:$0xff]
    %v2606 = vld [vmem:[#allocation8 + $0x1a8] sm:$0xff]
    %v2607 = vld [vmem:[#allocation8 + $0x1b0] sm:$0xff]
    %v2608 = vld [vmem:[#allocation8 + $0x1b8] sm:$0xff]
    %v2609 = vld [vmem:[#allocation8 + $0x1c0] sm:$0xff]
    %v2610 = vld [vmem:[#allocation8 + $0x1c8] sm:$0xff]
    %v2611 = vld [vmem:[#allocation8 + $0x1d0] sm:$0xff]
    %v2612 = vld [vmem:[#allocation8 + $0x1d8] sm:$0xff]
    %v2613 = vld [vmem:[#allocation8 + $0x1e0] sm:$0xff]
    %v2614 = vld [vmem:[#allocation8 + $0x1e8] sm:$0xff]
    %v2615 = vld [vmem:[#allocation8 + $0x1f0] sm:$0xff]
    %v2616 = vld [vmem:[#allocation8 + $0x1f8] sm:$0xff]
    %v2617 = vld [vmem:[#allocation8 + $0x200] sm:$0xff]
    %v2618 = vld [vmem:[#allocation8 + $0x208] sm:$0xff]
    %v2619 = vld [vmem:[#allocation8 + $0x210] sm:$0xff]
    %v2620 = vld [vmem:[#allocation8 + $0x218] sm:$0xff]
    %v2621 = vld [vmem:[#allocation8 + $0x220] sm:$0xff]
    %v2622 = vld [vmem:[#allocation8 + $0x228] sm:$0xff]
    %v2623 = vld [vmem:[#allocation8 + $0x230] sm:$0xff]
    %v2624 = vld [vmem:[#allocation8 + $0x238] sm:$0xff]
    %v2625 = vld [vmem:[#allocation8 + $0x240] sm:$0xff]
    %v2626 = vld [vmem:[#allocation8 + $0x248] sm:$0xff]
    %v2627 = vld [vmem:[#allocation8 + $0x250] sm:$0xff]
    %v2628 = vld [vmem:[#allocation8 + $0x258] sm:$0xff]
    %v2629 = vld [vmem:[#allocation8 + $0x260] sm:$0xff]
    %v2630 = vld [vmem:[#allocation8 + $0x268] sm:$0xff]
    %v2631 = vld [vmem:[#allocation8 + $0x270] sm:$0xff]
    %v2632 = vld [vmem:[#allocation8 + $0x278] sm:$0xff]
    %v2633 = vld [vmem:[#allocation8 + $0x280] sm:$0xff]
    %v2634 = vld [vmem:[#allocation8 + $0x288] sm:$0xff]
    %v2635 = vld [vmem:[#allocation8 + $0x290] sm:$0xff]
    %v2636 = vld [vmem:[#allocation8 + $0x298] sm:$0xff]
    %v2637 = vld [vmem:[#allocation8 + $0x2a0] sm:$0xff]
    %v2638 = vld [vmem:[#allocation8 + $0x2a8] sm:$0xff]
    %v2639 = vld [vmem:[#allocation8 + $0x2b0] sm:$0xff]
    %v2640 = vld [vmem:[#allocation8 + $0x2b8] sm:$0xff]
    %v2641 = vld [vmem:[#allocation8 + $0x2c0] sm:$0xff]
    %v2642 = vld [vmem:[#allocation8 + $0x2c8] sm:$0xff]
    %v2643 = vld [vmem:[#allocation8 + $0x2d0] sm:$0xff]
    %v2644 = vld [vmem:[#allocation8 + $0x2d8] sm:$0xff]
    %v2645 = vld [vmem:[#allocation8 + $0x2e0] sm:$0xff]
    %v2646 = vld [vmem:[#allocation8 + $0x2e8] sm:$0xff]
    %v2647 = vld [vmem:[#allocation8 + $0x2f0] sm:$0xff]
    %v2648 = vld [vmem:[#allocation8 + $0x2f8] sm:$0xff]
    %v2649 = vld [vmem:[#allocation8 + $0x300] sm:$0xff]
    %v2650 = vld [vmem:[#allocation8 + $0x308] sm:$0xff]
    %v2651 = vld [vmem:[#allocation8 + $0x310] sm:$0xff]
    %v2652 = vld [vmem:[#allocation8 + $0x318] sm:$0xff]
    %v2653 = vld [vmem:[#allocation8 + $0x320] sm:$0xff]
    %v2654 = vld [vmem:[#allocation8 + $0x328] sm:$0xff]
    %v2655 = vld [vmem:[#allocation8 + $0x330] sm:$0xff]
    %v2656 = vld [vmem:[#allocation8 + $0x338] sm:$0xff]
    %v2657 = vld [vmem:[#allocation8 + $0x340] sm:$0xff]
    %v2658 = vld [vmem:[#allocation8 + $0x348] sm:$0xff]
    %v2659 = vld [vmem:[#allocation8 + $0x350] sm:$0xff]
    %v2660 = vld [vmem:[#allocation8 + $0x358] sm:$0xff]
    %v2661 = vld [vmem:[#allocation8 + $0x360] sm:$0xff]
    %v2662 = vld [vmem:[#allocation8 + $0x368] sm:$0xff]
    %v2663 = vld [vmem:[#allocation8 + $0x370] sm:$0xff]
    %v2664 = vld [vmem:[#allocation8 + $0x378] sm:$0xff]
    %v2665 = vld [vmem:[#allocation8 + $0x380] sm:$0xff]
    %v2666 = vld [vmem:[#allocation8 + $0x388] sm:$0xff]
    %v2667 = vld [vmem:[#allocation8 + $0x390] sm:$0xff]
    %v2668 = vld [vmem:[#allocation8 + $0x398] sm:$0xff]
    %v2669 = vld [vmem:[#allocation8 + $0x3a0] sm:$0xff]
    %v2670 = vld [vmem:[#allocation8 + $0x3a8] sm:$0xff]
    %v2671 = vld [vmem:[#allocation8 + $0x3b0] sm:$0xff]
    %v2672 = vld [vmem:[#allocation8 + $0x3b8] sm:$0xff]
    %v2673 = vld [vmem:[#allocation8 + $0x3c0] sm:$0xff]
    %v2674 = vld [vmem:[#allocation8 + $0x3c8] sm:$0xff]
    %v2675 = vld [vmem:[#allocation8 + $0x3d0] sm:$0xff]
    %v2676 = vld [vmem:[#allocation8 + $0x3d8] sm:$0xff]
    %v2677 = vld [vmem:[#allocation8 + $0x3e0] sm:$0xff]
    %v2678 = vld [vmem:[#allocation8 + $0x3e8] sm:$0xff]
    %v2679 = vld [vmem:[#allocation8 + $0x3f0] sm:$0xff]
    %v2680 = vld [vmem:[#allocation8 + $0x3f8] sm:$0xff]
    %v2809 = vunpack.c.l.b16 %v2553
    %v2810 = vunpack.c.h.b16 %v2553
    %v2811 = vunpack.c.l.b16 %v2554
    %v2812 = vunpack.c.h.b16 %v2554
    %v2813 = vunpack.c.l.b16 %v2555
    %v2814 = vunpack.c.h.b16 %v2555
    %v2815 = vunpack.c.l.b16 %v2556
    %v2816 = vunpack.c.h.b16 %v2556
    %v2817 = vunpack.c.l.b16 %v2557
    %v2818 = vunpack.c.h.b16 %v2557
    %v2819 = vunpack.c.l.b16 %v2558
    %v2820 = vunpack.c.h.b16 %v2558
    %v2821 = vunpack.c.l.b16 %v2559
    %v2822 = vunpack.c.h.b16 %v2559
    %v2823 = vunpack.c.l.b16 %v2560
    %v2824 = vunpack.c.h.b16 %v2560
    %v2825 = vunpack.c.l.b16 %v2561
    %v2826 = vunpack.c.h.b16 %v2561
    %v2827 = vunpack.c.l.b16 %v2562
    %v2828 = vunpack.c.h.b16 %v2562
    %v2829 = vunpack.c.l.b16 %v2563
    %v2830 = vunpack.c.h.b16 %v2563
    %v2831 = vunpack.c.l.b16 %v2564
    %v2832 = vunpack.c.h.b16 %v2564
    %v2833 = vunpack.c.l.b16 %v2565
    %v2834 = vunpack.c.h.b16 %v2565
    %v2835 = vunpack.c.l.b16 %v2566
    %v2836 = vunpack.c.h.b16 %v2566
    %v2837 = vunpack.c.l.b16 %v2567
    %v2838 = vunpack.c.h.b16 %v2567
    %v2839 = vunpack.c.l.b16 %v2568
    %v2840 = vunpack.c.h.b16 %v2568
    %v2841 = vunpack.c.l.b16 %v2569
    %v2842 = vunpack.c.h.b16 %v2569
    %v2843 = vunpack.c.l.b16 %v2570
    %v2844 = vunpack.c.h.b16 %v2570
    %v2845 = vunpack.c.l.b16 %v2571
    %v2846 = vunpack.c.h.b16 %v2571
    %v2847 = vunpack.c.l.b16 %v2572
    %v2848 = vunpack.c.h.b16 %v2572
    %v2849 = vunpack.c.l.b16 %v2573
    %v2850 = vunpack.c.h.b16 %v2573
    %v2851 = vunpack.c.l.b16 %v2574
    %v2852 = vunpack.c.h.b16 %v2574
    %v2853 = vunpack.c.l.b16 %v2575
    %v2854 = vunpack.c.h.b16 %v2575
    %v2855 = vunpack.c.l.b16 %v2576
    %v2856 = vunpack.c.h.b16 %v2576
    %v2857 = vunpack.c.l.b16 %v2577
    %v2858 = vunpack.c.h.b16 %v2577
    %v2859 = vunpack.c.l.b16 %v2578
    %v2860 = vunpack.c.h.b16 %v2578
    %v2861 = vunpack.c.l.b16 %v2579
    %v2862 = vunpack.c.h.b16 %v2579
    %v2863 = vunpack.c.l.b16 %v2580
    %v2864 = vunpack.c.h.b16 %v2580
    %v2865 = vunpack.c.l.b16 %v2581
    %v2866 = vunpack.c.h.b16 %v2581
    %v2867 = vunpack.c.l.b16 %v2582
    %v2868 = vunpack.c.h.b16 %v2582
    %v2869 = vunpack.c.l.b16 %v2583
    %v2870 = vunpack.c.h.b16 %v2583
    %v2871 = vunpack.c.l.b16 %v2584
    %v2872 = vunpack.c.h.b16 %v2584
    %v2873 = vunpack.c.l.b16 %v2585
    %v2874 = vunpack.c.h.b16 %v2585
    %v2875 = vunpack.c.l.b16 %v2586
    %v2876 = vunpack.c.h.b16 %v2586
    %v2877 = vunpack.c.l.b16 %v2587
    %v2878 = vunpack.c.h.b16 %v2587
    %v2879 = vunpack.c.l.b16 %v2588
    %v2880 = vunpack.c.h.b16 %v2588
    %v2881 = vunpack.c.l.b16 %v2589
    %v2882 = vunpack.c.h.b16 %v2589
    %v2883 = vunpack.c.l.b16 %v2590
    %v2884 = vunpack.c.h.b16 %v2590
    %v2885 = vunpack.c.l.b16 %v2591
    %v2886 = vunpack.c.h.b16 %v2591
    %v2887 = vunpack.c.l.b16 %v2592
    %v2888 = vunpack.c.h.b16 %v2592
    %v2889 = vunpack.c.l.b16 %v2593
    %v2890 = vunpack.c.h.b16 %v2593
    %v2891 = vunpack.c.l.b16 %v2594
    %v2892 = vunpack.c.h.b16 %v2594
    %v2893 = vunpack.c.l.b16 %v2595
    %v2894 = vunpack.c.h.b16 %v2595
    %v2895 = vunpack.c.l.b16 %v2596
    %v2896 = vunpack.c.h.b16 %v2596
    %v2897 = vunpack.c.l.b16 %v2597
    %v2898 = vunpack.c.h.b16 %v2597
    %v2899 = vunpack.c.l.b16 %v2598
    %v2900 = vunpack.c.h.b16 %v2598
    %v2901 = vunpack.c.l.b16 %v2599
    %v2902 = vunpack.c.h.b16 %v2599
    %v2903 = vunpack.c.l.b16 %v2600
    %v2904 = vunpack.c.h.b16 %v2600
    %v2905 = vunpack.c.l.b16 %v2601
    %v2906 = vunpack.c.h.b16 %v2601
    %v2907 = vunpack.c.l.b16 %v2602
    %v2908 = vunpack.c.h.b16 %v2602
    %v2909 = vunpack.c.l.b16 %v2603
    %v2910 = vunpack.c.h.b16 %v2603
    %v2911 = vunpack.c.l.b16 %v2604
    %v2912 = vunpack.c.h.b16 %v2604
    %v2913 = vunpack.c.l.b16 %v2605
    %v2914 = vunpack.c.h.b16 %v2605
    %v2915 = vunpack.c.l.b16 %v2606
    %v2916 = vunpack.c.h.b16 %v2606
    %v2917 = vunpack.c.l.b16 %v2607
    %v2918 = vunpack.c.h.b16 %v2607
    %v2919 = vunpack.c.l.b16 %v2608
    %v2920 = vunpack.c.h.b16 %v2608
    %v2921 = vunpack.c.l.b16 %v2609
    %v2922 = vunpack.c.h.b16 %v2609
    %v2923 = vunpack.c.l.b16 %v2610
    %v2924 = vunpack.c.h.b16 %v2610
    %v2925 = vunpack.c.l.b16 %v2611
    %v2926 = vunpack.c.h.b16 %v2611
    %v2927 = vunpack.c.l.b16 %v2612
    %v2928 = vunpack.c.h.b16 %v2612
    %v2929 = vunpack.c.l.b16 %v2613
    %v2930 = vunpack.c.h.b16 %v2613
    %v2931 = vunpack.c.l.b16 %v2614
    %v2932 = vunpack.c.h.b16 %v2614
    %v2933 = vunpack.c.l.b16 %v2615
    %v2934 = vunpack.c.h.b16 %v2615
    %v2935 = vunpack.c.l.b16 %v2616
    %v2936 = vunpack.c.h.b16 %v2616
    %v2937 = vunpack.c.l.b16 %v2617
    %v2938 = vunpack.c.h.b16 %v2617
    %v2939 = vunpack.c.l.b16 %v2618
    %v2940 = vunpack.c.h.b16 %v2618
    %v2941 = vunpack.c.l.b16 %v2619
    %v2942 = vunpack.c.h.b16 %v2619
    %v2943 = vunpack.c.l.b16 %v2620
    %v2944 = vunpack.c.h.b16 %v2620
    %v2945 = vunpack.c.l.b16 %v2621
    %v2946 = vunpack.c.h.b16 %v2621
    %v2947 = vunpack.c.l.b16 %v2622
    %v2948 = vunpack.c.h.b16 %v2622
    %v2949 = vunpack.c.l.b16 %v2623
    %v2950 = vunpack.c.h.b16 %v2623
    %v2951 = vunpack.c.l.b16 %v2624
    %v2952 = vunpack.c.h.b16 %v2624
    %v2953 = vunpack.c.l.b16 %v2625
    %v2954 = vunpack.c.h.b16 %v2625
    %v2955 = vunpack.c.l.b16 %v2626
    %v2956 = vunpack.c.h.b16 %v2626
    %v2957 = vunpack.c.l.b16 %v2627
    %v2958 = vunpack.c.h.b16 %v2627
    %v2959 = vunpack.c.l.b16 %v2628
    %v2960 = vunpack.c.h.b16 %v2628
    %v2961 = vunpack.c.l.b16 %v2629
    %v2962 = vunpack.c.h.b16 %v2629
    %v2963 = vunpack.c.l.b16 %v2630
    %v2964 = vunpack.c.h.b16 %v2630
    %v2965 = vunpack.c.l.b16 %v2631
    %v2966 = vunpack.c.h.b16 %v2631
    %v2967 = vunpack.c.l.b16 %v2632
    %v2968 = vunpack.c.h.b16 %v2632
    %v2969 = vunpack.c.l.b16 %v2633
    %v2970 = vunpack.c.h.b16 %v2633
    %v2971 = vunpack.c.l.b16 %v2634
    %v2972 = vunpack.c.h.b16 %v2634
    %v2973 = vunpack.c.l.b16 %v2635
    %v2974 = vunpack.c.h.b16 %v2635
    %v2975 = vunpack.c.l.b16 %v2636
    %v2976 = vunpack.c.h.b16 %v2636
    %v2977 = vunpack.c.l.b16 %v2637
    %v2978 = vunpack.c.h.b16 %v2637
    %v2979 = vunpack.c.l.b16 %v2638
    %v2980 = vunpack.c.h.b16 %v2638
    %v2981 = vunpack.c.l.b16 %v2639
    %v2982 = vunpack.c.h.b16 %v2639
    %v2983 = vunpack.c.l.b16 %v2640
    %v2984 = vunpack.c.h.b16 %v2640
    %v2985 = vunpack.c.l.b16 %v2641
    %v2986 = vunpack.c.h.b16 %v2641
    %v2987 = vunpack.c.l.b16 %v2642
    %v2988 = vunpack.c.h.b16 %v2642
    %v2989 = vunpack.c.l.b16 %v2643
    %v2990 = vunpack.c.h.b16 %v2643
    %v2991 = vunpack.c.l.b16 %v2644
    %v2992 = vunpack.c.h.b16 %v2644
    %v2993 = vunpack.c.l.b16 %v2645
    %v2994 = vunpack.c.h.b16 %v2645
    %v2995 = vunpack.c.l.b16 %v2646
    %v2996 = vunpack.c.h.b16 %v2646
    %v2997 = vunpack.c.l.b16 %v2647
    %v2998 = vunpack.c.h.b16 %v2647
    %v2999 = vunpack.c.l.b16 %v2648
    %v3000 = vunpack.c.h.b16 %v2648
    %v3001 = vunpack.c.l.b16 %v2649
    %v3002 = vunpack.c.h.b16 %v2649
    %v3003 = vunpack.c.l.b16 %v2650
    %v3004 = vunpack.c.h.b16 %v2650
    %v3005 = vunpack.c.l.b16 %v2651
    %v3006 = vunpack.c.h.b16 %v2651
    %v3007 = vunpack.c.l.b16 %v2652
    %v3008 = vunpack.c.h.b16 %v2652
    %v3009 = vunpack.c.l.b16 %v2653
    %v3010 = vunpack.c.h.b16 %v2653
    %v3011 = vunpack.c.l.b16 %v2654
    %v3012 = vunpack.c.h.b16 %v2654
    %v3013 = vunpack.c.l.b16 %v2655
    %v3014 = vunpack.c.h.b16 %v2655
    %v3015 = vunpack.c.l.b16 %v2656
    %v3016 = vunpack.c.h.b16 %v2656
    %v3017 = vunpack.c.l.b16 %v2657
    %v3018 = vunpack.c.h.b16 %v2657
    %v3019 = vunpack.c.l.b16 %v2658
    %v3020 = vunpack.c.h.b16 %v2658
    %v3021 = vunpack.c.l.b16 %v2659
    %v3022 = vunpack.c.h.b16 %v2659
    %v3023 = vunpack.c.l.b16 %v2660
    %v3024 = vunpack.c.h.b16 %v2660
    %v3025 = vunpack.c.l.b16 %v2661
    %v3026 = vunpack.c.h.b16 %v2661
    %v3027 = vunpack.c.l.b16 %v2662
    %v3028 = vunpack.c.h.b16 %v2662
    %v3029 = vunpack.c.l.b16 %v2663
    %v3030 = vunpack.c.h.b16 %v2663
    %v3031 = vunpack.c.l.b16 %v2664
    %v3032 = vunpack.c.h.b16 %v2664
    %v3033 = vunpack.c.l.b16 %v2665
    %v3034 = vunpack.c.h.b16 %v2665
    %v3035 = vunpack.c.l.b16 %v2666
    %v3036 = vunpack.c.h.b16 %v2666
    %v3037 = vunpack.c.l.b16 %v2667
    %v3038 = vunpack.c.h.b16 %v2667
    %v3039 = vunpack.c.l.b16 %v2668
    %v3040 = vunpack.c.h.b16 %v2668
    %v3041 = vunpack.c.l.b16 %v2669
    %v3042 = vunpack.c.h.b16 %v2669
    %v3043 = vunpack.c.l.b16 %v2670
    %v3044 = vunpack.c.h.b16 %v2670
    %v3045 = vunpack.c.l.b16 %v2671
    %v3046 = vunpack.c.h.b16 %v2671
    %v3047 = vunpack.c.l.b16 %v2672
    %v3048 = vunpack.c.h.b16 %v2672
    %v3049 = vunpack.c.l.b16 %v2673
    %v3050 = vunpack.c.h.b16 %v2673
    %v3051 = vunpack.c.l.b16 %v2674
    %v3052 = vunpack.c.h.b16 %v2674
    %v3053 = vunpack.c.l.b16 %v2675
    %v3054 = vunpack.c.h.b16 %v2675
    %v3055 = vunpack.c.l.b16 %v2676
    %v3056 = vunpack.c.h.b16 %v2676
    %v3057 = vunpack.c.l.b16 %v2677
    %v3058 = vunpack.c.h.b16 %v2677
    %v3059 = vunpack.c.l.b16 %v2678
    %v3060 = vunpack.c.h.b16 %v2678
    %v3061 = vunpack.c.l.b16 %v2679
    %v3062 = vunpack.c.h.b16 %v2679
    %v3063 = vunpack.c.l.b16 %v2680
    %v3064 = vunpack.c.h.b16 %v2680
    %v3065 = vpack.c.b16 %v2817, %v2809
    %v3066 = vpack.c.b16 %v2818, %v2810
    %v3067 = vpack.c.b16 %v2819, %v2811
    %v3068 = vpack.c.b16 %v2820, %v2812
    %v3069 = vpack.c.b16 %v2821, %v2813
    %v3070 = vpack.c.b16 %v2822, %v2814
    %v3071 = vpack.c.b16 %v2823, %v2815
    %v3072 = vpack.c.b16 %v2824, %v2816
    %v3073 = vpack.c.b16 %v2833, %v2825
    %v3074 = vpack.c.b16 %v2834, %v2826
    %v3075 = vpack.c.b16 %v2835, %v2827
    %v3076 = vpack.c.b16 %v2836, %v2828
    %v3077 = vpack.c.b16 %v2837, %v2829
    %v3078 = vpack.c.b16 %v2838, %v2830
    %v3079 = vpack.c.b16 %v2839, %v2831
    %v3080 = vpack.c.b16 %v2840, %v2832
    %v3081 = vpack.c.b16 %v2849, %v2841
    %v3082 = vpack.c.b16 %v2850, %v2842
    %v3083 = vpack.c.b16 %v2851, %v2843
    %v3084 = vpack.c.b16 %v2852, %v2844
    %v3085 = vpack.c.b16 %v2853, %v2845
    %v3086 = vpack.c.b16 %v2854, %v2846
    %v3087 = vpack.c.b16 %v2855, %v2847
    %v3088 = vpack.c.b16 %v2856, %v2848
    %v3089 = vpack.c.b16 %v2865, %v2857
    %v3090 = vpack.c.b16 %v2866, %v2858
    %v3091 = vpack.c.b16 %v2867, %v2859
    %v3092 = vpack.c.b16 %v2868, %v2860
    %v3093 = vpack.c.b16 %v2869, %v2861
    %v3094 = vpack.c.b16 %v2870, %v2862
    %v3095 = vpack.c.b16 %v2871, %v2863
    %v3096 = vpack.c.b16 %v2872, %v2864
    %v3097 = vpack.c.b16 %v2881, %v2873
    %v3098 = vpack.c.b16 %v2882, %v2874
    %v3099 = vpack.c.b16 %v2883, %v2875
    %v3100 = vpack.c.b16 %v2884, %v2876
    %v3101 = vpack.c.b16 %v2885, %v2877
    %v3102 = vpack.c.b16 %v2886, %v2878
    %v3103 = vpack.c.b16 %v2887, %v2879
    %v3104 = vpack.c.b16 %v2888, %v2880
    %v3105 = vpack.c.b16 %v2897, %v2889
    %v3106 = vpack.c.b16 %v2898, %v2890
    %v3107 = vpack.c.b16 %v2899, %v2891
    %v3108 = vpack.c.b16 %v2900, %v2892
    %v3109 = vpack.c.b16 %v2901, %v2893
    %v3110 = vpack.c.b16 %v2902, %v2894
    %v3111 = vpack.c.b16 %v2903, %v2895
    %v3112 = vpack.c.b16 %v2904, %v2896
    %v3113 = vpack.c.b16 %v2913, %v2905
    %v3114 = vpack.c.b16 %v2914, %v2906
    %v3115 = vpack.c.b16 %v2915, %v2907
    %v3116 = vpack.c.b16 %v2916, %v2908
    %v3117 = vpack.c.b16 %v2917, %v2909
    %v3118 = vpack.c.b16 %v2918, %v2910
    %v3119 = vpack.c.b16 %v2919, %v2911
    %v3120 = vpack.c.b16 %v2920, %v2912
    %v3121 = vpack.c.b16 %v2929, %v2921
    %v3122 = vpack.c.b16 %v2930, %v2922
    %v3123 = vpack.c.b16 %v2931, %v2923
    %v3124 = vpack.c.b16 %v2932, %v2924
    %v3125 = vpack.c.b16 %v2933, %v2925
    %v3126 = vpack.c.b16 %v2934, %v2926
    %v3127 = vpack.c.b16 %v2935, %v2927
    %v3128 = vpack.c.b16 %v2936, %v2928
    %v3129 = vpack.c.b16 %v2945, %v2937
    %v3130 = vpack.c.b16 %v2946, %v2938
    %v3131 = vpack.c.b16 %v2947, %v2939
    %v3132 = vpack.c.b16 %v2948, %v2940
    %v3133 = vpack.c.b16 %v2949, %v2941
    %v3134 = vpack.c.b16 %v2950, %v2942
    %v3135 = vpack.c.b16 %v2951, %v2943
    %v3136 = vpack.c.b16 %v2952, %v2944
    %v3137 = vpack.c.b16 %v2961, %v2953
    %v3138 = vpack.c.b16 %v2962, %v2954
    %v3139 = vpack.c.b16 %v2963, %v2955
    %v3140 = vpack.c.b16 %v2964, %v2956
    %v3141 = vpack.c.b16 %v2965, %v2957
    %v3142 = vpack.c.b16 %v2966, %v2958
    %v3143 = vpack.c.b16 %v2967, %v2959
    %v3144 = vpack.c.b16 %v2968, %v2960
    %v3145 = vpack.c.b16 %v2977, %v2969
    %v3146 = vpack.c.b16 %v2978, %v2970
    %v3147 = vpack.c.b16 %v2979, %v2971
    %v3148 = vpack.c.b16 %v2980, %v2972
    %v3149 = vpack.c.b16 %v2981, %v2973
    %v3150 = vpack.c.b16 %v2982, %v2974
    %v3151 = vpack.c.b16 %v2983, %v2975
    %v3152 = vpack.c.b16 %v2984, %v2976
    %v3153 = vpack.c.b16 %v2993, %v2985
    %v3154 = vpack.c.b16 %v2994, %v2986
    %v3155 = vpack.c.b16 %v2995, %v2987
    %v3156 = vpack.c.b16 %v2996, %v2988
    %v3157 = vpack.c.b16 %v2997, %v2989
    %v3158 = vpack.c.b16 %v2998, %v2990
    %v3159 = vpack.c.b16 %v2999, %v2991
    %v3160 = vpack.c.b16 %v3000, %v2992
    %v3161 = vpack.c.b16 %v3009, %v3001
    %v3162 = vpack.c.b16 %v3010, %v3002
    %v3163 = vpack.c.b16 %v3011, %v3003
    %v3164 = vpack.c.b16 %v3012, %v3004
    %v3165 = vpack.c.b16 %v3013, %v3005
    %v3166 = vpack.c.b16 %v3014, %v3006
    %v3167 = vpack.c.b16 %v3015, %v3007
    %v3168 = vpack.c.b16 %v3016, %v3008
    %v3169 = vpack.c.b16 %v3025, %v3017
    %v3170 = vpack.c.b16 %v3026, %v3018
    %v3171 = vpack.c.b16 %v3027, %v3019
    %v3172 = vpack.c.b16 %v3028, %v3020
    %v3173 = vpack.c.b16 %v3029, %v3021
    %v3174 = vpack.c.b16 %v3030, %v3022
    %v3175 = vpack.c.b16 %v3031, %v3023
    %v3176 = vpack.c.b16 %v3032, %v3024
    %v3177 = vpack.c.b16 %v3041, %v3033
    %v3178 = vpack.c.b16 %v3042, %v3034
    %v3179 = vpack.c.b16 %v3043, %v3035
    %v3180 = vpack.c.b16 %v3044, %v3036
    %v3181 = vpack.c.b16 %v3045, %v3037
    %v3182 = vpack.c.b16 %v3046, %v3038
    %v3183 = vpack.c.b16 %v3047, %v3039
    %v3184 = vpack.c.b16 %v3048, %v3040
    %v3185 = vpack.c.b16 %v3057, %v3049
    %v3186 = vpack.c.b16 %v3058, %v3050
    %v3187 = vpack.c.b16 %v3059, %v3051
    %v3188 = vpack.c.b16 %v3060, %v3052
    %v3189 = vpack.c.b16 %v3061, %v3053
    %v3190 = vpack.c.b16 %v3062, %v3054
    %v3191 = vpack.c.b16 %v3063, %v3055
    %v3192 = vpack.c.b16 %v3064, %v3056
    %3321 = vmatprep.subr.bf16.mxu0 %v3066
    %3322 = vmatpush1.bf16.msra.mxu0 %v3065
    %3323 = vmatprep.subr.bf16.mxu0 %v3074
    %3324 = vmatpush1.bf16.msra.mxu0 %v3073
    %3325 = vmatprep.subr.bf16.mxu0 %v3082
    %3326 = vmatpush1.bf16.msra.mxu0 %v3081
    %3327 = vmatprep.subr.bf16.mxu0 %v3090
    %3328 = vmatpush1.bf16.msra.mxu0 %v3089
    %3329 = vmatprep.subr.bf16.mxu0 %v3098
    %3330 = vmatpush1.bf16.msra.mxu0 %v3097
    %3331 = vmatprep.subr.bf16.mxu0 %v3106
    %3332 = vmatpush1.bf16.msra.mxu0 %v3105
    %3333 = vmatprep.subr.bf16.mxu0 %v3114
    %3334 = vmatpush1.bf16.msra.mxu0 %v3113
    %3335 = vmatprep.subr.bf16.mxu0 %v3122
    %3336 = vmatpush1.bf16.msra.mxu0 %v3121
    %3337 = vmatprep.subr.bf16.mxu0 %v3130
    %3338 = vmatpush1.bf16.msra.mxu0 %v3129
    %3339 = vmatprep.subr.bf16.mxu0 %v3138
    %3340 = vmatpush1.bf16.msra.mxu0 %v3137
    %3341 = vmatprep.subr.bf16.mxu0 %v3146
    %3342 = vmatpush1.bf16.msra.mxu0 %v3145
    %3343 = vmatprep.subr.bf16.mxu0 %v3154
    %3344 = vmatpush1.bf16.msra.mxu0 %v3153
    %3345 = vmatprep.subr.bf16.mxu0 %v3162
    %3346 = vmatpush1.bf16.msra.mxu0 %v3161
    %3347 = vmatprep.subr.bf16.mxu0 %v3170
    %3348 = vmatpush1.bf16.msra.mxu0 %v3169
    %3349 = vmatprep.subr.bf16.mxu0 %v3178
    %3350 = vmatpush1.bf16.msra.mxu0 %v3177
    %3351 = vmatprep.subr.bf16.mxu0 %v3186
    %3352 = vmatpush1.bf16.msra.mxu0 %v3185
    %3353 = vmatprep.mubr.bf16.mxu0 %v2552
    %3354 = vmatmul.mubr.bf16.gmra.mrb[0].mxu0 %v2551
    %v3355 = vpop.f32.mrb[0].mxu0
    %v3356 = vadd.f32 0.0, %v3355
    %v3357 = vpop.f32.mrb[0].mxu0
    %v3358 = vadd.f32 0.0, %v3357
    %v3359 = vpop.f32.mrb[0].mxu0
    %v3360 = vpop.f32.mrb[0].mxu0
    %3361 = vdwg.mxu0
    %3362 = vmatprep.subr.bf16.mxu0 %v3068
    %3363 = vmatpush1.bf16.msra.mxu0 %v3067
    %3364 = vmatprep.subr.bf16.mxu0 %v3076
    %3365 = vmatpush1.bf16.msra.mxu0 %v3075
    %3366 = vmatprep.subr.bf16.mxu0 %v3084
    %3367 = vmatpush1.bf16.msra.mxu0 %v3083
    %3368 = vmatprep.subr.bf16.mxu0 %v3092
    %3369 = vmatpush1.bf16.msra.mxu0 %v3091
    %3370 = vmatprep.subr.bf16.mxu0 %v3100
    %3371 = vmatpush1.bf16.msra.mxu0 %v3099
    %3372 = vmatprep.subr.bf16.mxu0 %v3108
    %3373 = vmatpush1.bf16.msra.mxu0 %v3107
    %3374 = vmatprep.subr.bf16.mxu0 %v3116
    %3375 = vmatpush1.bf16.msra.mxu0 %v3115
    %3376 = vmatprep.subr.bf16.mxu0 %v3124
    %3377 = vmatpush1.bf16.msra.mxu0 %v3123
    %3378 = vmatprep.subr.bf16.mxu0 %v3132
    %3379 = vmatpush1.bf16.msra.mxu0 %v3131
    %3380 = vmatprep.subr.bf16.mxu0 %v3140
    %3381 = vmatpush1.bf16.msra.mxu0 %v3139
    %3382 = vmatprep.subr.bf16.mxu0 %v3148
    %3383 = vmatpush1.bf16.msra.mxu0 %v3147
    %3384 = vmatprep.subr.bf16.mxu0 %v3156
    %3385 = vmatpush1.bf16.msra.mxu0 %v3155
    %3386 = vmatprep.subr.bf16.mxu0 %v3164
    %3387 = vmatpush1.bf16.msra.mxu0 %v3163
    %3388 = vmatprep.subr.bf16.mxu0 %v3172
    %3389 = vmatpush1.bf16.msra.mxu0 %v3171
    %3390 = vmatprep.subr.bf16.mxu0 %v3180
    %3391 = vmatpush1.bf16.msra.mxu0 %v3179
    %3392 = vmatprep.subr.bf16.mxu0 %v3188
    %3393 = vmatpush1.bf16.msra.mxu0 %v3187
    %3394 = vmatprep.mubr.bf16.mxu0 %v2552
    %3395 = vmatmul.mubr.bf16.gmra.mrb[0].mxu0 %v2551
    %v3396 = vpop.f32.mrb[0].mxu0
    %v3397 = vadd.f32 0.0, %v3396
    %v3398 = vpop.f32.mrb[0].mxu0
    %v3399 = vadd.f32 0.0, %v3398
    %v3400 = vpop.f32.mrb[0].mxu0
    %v3401 = vpop.f32.mrb[0].mxu0
    %3402 = vdwg.mxu0
    %3403 = vmatprep.subr.bf16.mxu0 %v3070
    %3404 = vmatpush1.bf16.msra.mxu0 %v3069
    %3405 = vmatprep.subr.bf16.mxu0 %v3078
    %3406 = vmatpush1.bf16.msra.mxu0 %v3077
    %3407 = vmatprep.subr.bf16.mxu0 %v3086
    %3408 = vmatpush1.bf16.msra.mxu0 %v3085
    %3409 = vmatprep.subr.bf16.mxu0 %v3094
    %3410 = vmatpush1.bf16.msra.mxu0 %v3093
    %3411 = vmatprep.subr.bf16.mxu0 %v3102
    %3412 = vmatpush1.bf16.msra.mxu0 %v3101
    %3413 = vmatprep.subr.bf16.mxu0 %v3110
    %3414 = vmatpush1.bf16.msra.mxu0 %v3109
    %3415 = vmatprep.subr.bf16.mxu0 %v3118
    %3416 = vmatpush1.bf16.msra.mxu0 %v3117
    %3417 = vmatprep.subr.bf16.mxu0 %v3126
    %3418 = vmatpush1.bf16.msra.mxu0 %v3125
    %3419 = vmatprep.subr.bf16.mxu0 %v3134
    %3420 = vmatpush1.bf16.msra.mxu0 %v3133
    %3421 = vmatprep.subr.bf16.mxu0 %v3142
    %3422 = vmatpush1.bf16.msra.mxu0 %v3141
    %3423 = vmatprep.subr.bf16.mxu0 %v3150
    %3424 = vmatpush1.bf16.msra.mxu0 %v3149
    %3425 = vmatprep.subr.bf16.mxu0 %v3158
    %3426 = vmatpush1.bf16.msra.mxu0 %v3157
    %3427 = vmatprep.subr.bf16.mxu0 %v3166
    %3428 = vmatpush1.bf16.msra.mxu0 %v3165
    %3429 = vmatprep.subr.bf16.mxu0 %v3174
    %3430 = vmatpush1.bf16.msra.mxu0 %v3173
    %3431 = vmatprep.subr.bf16.mxu0 %v3182
    %3432 = vmatpush1.bf16.msra.mxu0 %v3181
    %3433 = vmatprep.subr.bf16.mxu0 %v3190
    %3434 = vmatpush1.bf16.msra.mxu0 %v3189
    %3435 = vmatprep.mubr.bf16.mxu0 %v2552
    %3436 = vmatmul.mubr.bf16.gmra.mrb[0].mxu0 %v2551
    %v3437 = vpop.f32.mrb[0].mxu0
    %v3438 = vadd.f32 0.0, %v3437
    %v3439 = vpop.f32.mrb[0].mxu0
    %v3440 = vadd.f32 0.0, %v3439
    %v3441 = vpop.f32.mrb[0].mxu0
    %v3442 = vpop.f32.mrb[0].mxu0
    %3443 = vdwg.mxu0
    %3444 = vmatprep.subr.bf16.mxu0 %v3072
    %3445 = vmatpush1.bf16.msra.mxu0 %v3071
    %3446 = vmatprep.subr.bf16.mxu0 %v3080
    %3447 = vmatpush1.bf16.msra.mxu0 %v3079
    %3448 = vmatprep.subr.bf16.mxu0 %v3088
    %3449 = vmatpush1.bf16.msra.mxu0 %v3087
    %3450 = vmatprep.subr.bf16.mxu0 %v3096
    %3451 = vmatpush1.bf16.msra.mxu0 %v3095
    %3452 = vmatprep.subr.bf16.mxu0 %v3104
    %3453 = vmatpush1.bf16.msra.mxu0 %v3103
    %3454 = vmatprep.subr.bf16.mxu0 %v3112
    %3455 = vmatpush1.bf16.msra.mxu0 %v3111
    %3456 = vmatprep.subr.bf16.mxu0 %v3120
    %3457 = vmatpush1.bf16.msra.mxu0 %v3119
    %3458 = vmatprep.subr.bf16.mxu0 %v3128
    %3459 = vmatpush1.bf16.msra.mxu0 %v3127
    %3460 = vmatprep.subr.bf16.mxu0 %v3136
    %3461 = vmatpush1.bf16.msra.mxu0 %v3135
    %3462 = vmatprep.subr.bf16.mxu0 %v3144
    %3463 = vmatpush1.bf16.msra.mxu0 %v3143
    %3464 = vmatprep.subr.bf16.mxu0 %v3152
    %3465 = vmatpush1.bf16.msra.mxu0 %v3151
    %3466 = vmatprep.subr.bf16.mxu0 %v3160
    %3467 = vmatpush1.bf16.msra.mxu0 %v3159
    %3468 = vmatprep.subr.bf16.mxu0 %v3168
    %3469 = vmatpush1.bf16.msra.mxu0 %v3167
    %3470 = vmatprep.subr.bf16.mxu0 %v3176
    %3471 = vmatpush1.bf16.msra.mxu0 %v3175
    %3472 = vmatprep.subr.bf16.mxu0 %v3184
    %3473 = vmatpush1.bf16.msra.mxu0 %v3183
    %3474 = vmatprep.subr.bf16.mxu0 %v3192
    %3475 = vmatpush1.bf16.msra.mxu0 %v3191
    %3476 = vmatprep.mubr.bf16.mxu0 %v2552
    %3477 = vmatmul.mubr.bf16.gmra.mrb[0].mxu0 %v2551
    %v3478 = vpop.f32.mrb[0].mxu0
    %v3479 = vadd.f32 0.0, %v3478
    %v3480 = vpop.f32.mrb[0].mxu0
    %v3481 = vadd.f32 0.0, %v3480
    %v3482 = vpop.f32.mrb[0].mxu0
    %v3483 = vpop.f32.mrb[0].mxu0
    %3484 = vdwg.mxu0
    %v3485 = vld [vmem:[#allocation2 + $0x40] sm:$0xff]
    %v3486 = vld [vmem:[#allocation2 + $0x48] sm:$0xff]
    %v3487 = vld [vmem:[#allocation2 + $0x50] sm:$0xff]
    %v3488 = vld [vmem:[#allocation2 + $0x58] sm:$0xff]
    %v3489 = vadd.f32 %v3356, %v3485
    %v3490 = vadd.f32 %v3358, %v3486
    %v3491 = vadd.f32 %v3397, %v3487
    %v3492 = vadd.f32 %v3399, %v3488
    %v3493 = vld [vmem:[#allocation3 + $0xa0] sm:$0xff]
    %v3494 = vld [vmem:[#allocation3 + $0xa8] sm:$0xff]
    %v3495 = vld [vmem:[#allocation3 + $0xb0] sm:$0xff]
    %v3496 = vld [vmem:[#allocation3 + $0xb8] sm:$0xff]
    %v3497 = vadd.f32 %v3438, %v3493
    %v3498 = vadd.f32 %v3440, %v3494
    %v3499 = vadd.f32 %v3479, %v3495
    %v3500 = vadd.f32 %v3481, %v3496
    %v3501 = vxor.u32 %v3489, 2147483648
    %v3502 = vmul.f32 %v3501, 1.442695
    %v3503 = vpow.pop %v3502
    %v3504 = vadd.f32 %v3503, 1.0
    %v3505 = vrcp.pop %v3504
    %v3506 = vmul.f32 1.0, %v3505
    %v3507 = vxor.u32 %v3490, 2147483648
    %v3508 = vmul.f32 %v3507, 1.442695
    %v3509 = vpow.pop %v3508
    %v3510 = vadd.f32 %v3509, 1.0
    %v3511 = vrcp.pop %v3510
    %v3512 = vmul.f32 1.0, %v3511
    %v3513 = vtanh.pop %v3491
    %v3514 = vxor.u32 %v3492, 2147483648
    %v3515 = vmul.f32 %v3514, 1.442695
    %v3516 = vpow.pop %v3515
    %v3517 = vadd.f32 %v3516, 1.0
    %v3518 = vrcp.pop %v3517
    %v3519 = vmul.f32 1.0, %v3518
    %v3520 = vmul.f32 %v3512, %v2522
    %v3521 = vmul.f32 %v3506, %v3513
    %v3522 = vadd.f32 %v3520, %v3521
    %v3523 = vtanh.pop %v3522
    %v3524 = vmul.f32 %v3519, %v3523
    %v3525 = vxor.u32 %v3497, 2147483648
    %v3526 = vmul.f32 %v3525, 1.442695
    %v3527 = vpow.pop %v3526
    %v3528 = vadd.f32 %v3527, 1.0
    %v3529 = vrcp.pop %v3528
    %v3530 = vmul.f32 1.0, %v3529
    %v3531 = vxor.u32 %v3498, 2147483648
    %v3532 = vmul.f32 %v3531, 1.442695
    %v3533 = vpow.pop %v3532
    %v3534 = vadd.f32 %v3533, 1.0
    %v3535 = vrcp.pop %v3534
    %v3536 = vmul.f32 1.0, %v3535
    %v3537 = vtanh.pop %v3499
    %v3538 = vxor.u32 %v3500, 2147483648
    %v3539 = vmul.f32 %v3538, 1.442695
    %v3540 = vpow.pop %v3539
    %v3541 = vadd.f32 %v3540, 1.0
    %v3542 = vrcp.pop %v3541
    %v3543 = vmul.f32 1.0, %v3542
    %v3544 = vmul.f32 %v3536, %v2546
    %v3545 = vmul.f32 %v3530, %v3537
    %v3546 = vadd.f32 %v3544, %v3545
    %v3547 = vtanh.pop %v3546
    %v3548 = vmul.f32 %v3543, %v3547
    %3549 = vst [vmem:[#allocation4 + $0x20] sm:$0xff] %v3524
    %3550 = vst [vmem:[#allocation4 + $0x28] sm:$0xff] %v3548
    %v3551 = vpack.c.bf16 %v3524, %v3524
    %v3552 = vpack.c.bf16 %v3548, %v3548
    %v3553 = vld [vmem:[#allocation8] sm:$0xff]
    %v3554 = vld [vmem:[#allocation8 + $0x8] sm:$0xff]
    %v3555 = vld [vmem:[#allocation8 + $0x10] sm:$0xff]
    %v3556 = vld [vmem:[#allocation8 + $0x18] sm:$0xff]
    %v3557 = vld [vmem:[#allocation8 + $0x20] sm:$0xff]
    %v3558 = vld [vmem:[#allocation8 + $0x28] sm:$0xff]
    %v3559 = vld [vmem:[#allocation8 + $0x30] sm:$0xff]
    %v3560 = vld [vmem:[#allocation8 + $0x38] sm:$0xff]
    %v3561 = vld [vmem:[#allocation8 + $0x40] sm:$0xff]
    %v3562 = vld [vmem:[#allocation8 + $0x48] sm:$0xff]
    %v3563 = vld [vmem:[#allocation8 + $0x50] sm:$0xff]
    %v3564 = vld [vmem:[#allocation8 + $0x58] sm:$0xff]
    %v3565 = vld [vmem:[#allocation8 + $0x60] sm:$0xff]
    %v3566 = vld [vmem:[#allocation8 + $0x68] sm:$0xff]
    %v3567 = vld [vmem:[#allocation8 + $0x70] sm:$0xff]
    %v3568 = vld [vmem:[#allocation8 + $0x78] sm:$0xff]
    %v3569 = vld [vmem:[#allocation8 + $0x80] sm:$0xff]
    %v3570 = vld [vmem:[#allocation8 + $0x88] sm:$0xff]
    %v3571 = vld [vmem:[#allocation8 + $0x90] sm:$0xff]
    %v3572 = vld [vmem:[#allocation8 + $0x98] sm:$0xff]
    %v3573 = vld [vmem:[#allocation8 + $0xa0] sm:$0xff]
    %v3574 = vld [vmem:[#allocation8 + $0xa8] sm:$0xff]
    %v3575 = vld [vmem:[#allocation8 + $0xb0] sm:$0xff]
    %v3576 = vld [vmem:[#allocation8 + $0xb8] sm:$0xff]
    %v3577 = vld [vmem:[#allocation8 + $0xc0] sm:$0xff]
    %v3578 = vld [vmem:[#allocation8 + $0xc8] sm:$0xff]
    %v3579 = vld [vmem:[#allocation8 + $0xd0] sm:$0xff]
    %v3580 = vld [vmem:[#allocation8 + $0xd8] sm:$0xff]
    %v3581 = vld [vmem:[#allocation8 + $0xe0] sm:$0xff]
    %v3582 = vld [vmem:[#allocation8 + $0xe8] sm:$0xff]
    %v3583 = vld [vmem:[#allocation8 + $0xf0] sm:$0xff]
    %v3584 = vld [vmem:[#allocation8 + $0xf8] sm:$0xff]
    %v3585 = vld [vmem:[#allocation8 + $0x100] sm:$0xff]
    %v3586 = vld [vmem:[#allocation8 + $0x108] sm:$0xff]
    %v3587 = vld [vmem:[#allocation8 + $0x110] sm:$0xff]
    %v3588 = vld [vmem:[#allocation8 + $0x118] sm:$0xff]
    %v3589 = vld [vmem:[#allocation8 + $0x120] sm:$0xff]
    %v3590 = vld [vmem:[#allocation8 + $0x128] sm:$0xff]
    %v3591 = vld [vmem:[#allocation8 + $0x130] sm:$0xff]
    %v3592 = vld [vmem:[#allocation8 + $0x138] sm:$0xff]
    %v3593 = vld [vmem:[#allocation8 + $0x140] sm:$0xff]
    %v3594 = vld [vmem:[#allocation8 + $0x148] sm:$0xff]
    %v3595 = vld [vmem:[#allocation8 + $0x150] sm:$0xff]
    %v3596 = vld [vmem:[#allocation8 + $0x158] sm:$0xff]
    %v3597 = vld [vmem:[#allocation8 + $0x160] sm:$0xff]
    %v3598 = vld [vmem:[#allocation8 + $0x168] sm:$0xff]
    %v3599 = vld [vmem:[#allocation8 + $0x170] sm:$0xff]
    %v3600 = vld [vmem:[#allocation8 + $0x178] sm:$0xff]
    %v3601 = vld [vmem:[#allocation8 + $0x180] sm:$0xff]
    %v3602 = vld [vmem:[#allocation8 + $0x188] sm:$0xff]
    %v3603 = vld [vmem:[#allocation8 + $0x190] sm:$0xff]
    %v3604 = vld [vmem:[#allocation8 + $0x198] sm:$0xff]
    %v3605 = vld [vmem:[#allocation8 + $0x1a0] sm:$0xff]
    %v3606 = vld [vmem:[#allocation8 + $0x1a8] sm:$0xff]
    %v3607 = vld [vmem:[#allocation8 + $0x1b0] sm:$0xff]
    %v3608 = vld [vmem:[#allocation8 + $0x1b8] sm:$0xff]
    %v3609 = vld [vmem:[#allocation8 + $0x1c0] sm:$0xff]
    %v3610 = vld [vmem:[#allocation8 + $0x1c8] sm:$0xff]
    %v3611 = vld [vmem:[#allocation8 + $0x1d0] sm:$0xff]
    %v3612 = vld [vmem:[#allocation8 + $0x1d8] sm:$0xff]
    %v3613 = vld [vmem:[#allocation8 + $0x1e0] sm:$0xff]
    %v3614 = vld [vmem:[#allocation8 + $0x1e8] sm:$0xff]
    %v3615 = vld [vmem:[#allocation8 + $0x1f0] sm:$0xff]
    %v3616 = vld [vmem:[#allocation8 + $0x1f8] sm:$0xff]
    %v3617 = vld [vmem:[#allocation8 + $0x200] sm:$0xff]
    %v3618 = vld [vmem:[#allocation8 + $0x208] sm:$0xff]
    %v3619 = vld [vmem:[#allocation8 + $0x210] sm:$0xff]
    %v3620 = vld [vmem:[#allocation8 + $0x218] sm:$0xff]
    %v3621 = vld [vmem:[#allocation8 + $0x220] sm:$0xff]
    %v3622 = vld [vmem:[#allocation8 + $0x228] sm:$0xff]
    %v3623 = vld [vmem:[#allocation8 + $0x230] sm:$0xff]
    %v3624 = vld [vmem:[#allocation8 + $0x238] sm:$0xff]
    %v3625 = vld [vmem:[#allocation8 + $0x240] sm:$0xff]
    %v3626 = vld [vmem:[#allocation8 + $0x248] sm:$0xff]
    %v3627 = vld [vmem:[#allocation8 + $0x250] sm:$0xff]
    %v3628 = vld [vmem:[#allocation8 + $0x258] sm:$0xff]
    %v3629 = vld [vmem:[#allocation8 + $0x260] sm:$0xff]
    %v3630 = vld [vmem:[#allocation8 + $0x268] sm:$0xff]
    %v3631 = vld [vmem:[#allocation8 + $0x270] sm:$0xff]
    %v3632 = vld [vmem:[#allocation8 + $0x278] sm:$0xff]
    %v3633 = vld [vmem:[#allocation8 + $0x280] sm:$0xff]
    %v3634 = vld [vmem:[#allocation8 + $0x288] sm:$0xff]
    %v3635 = vld [vmem:[#allocation8 + $0x290] sm:$0xff]
    %v3636 = vld [vmem:[#allocation8 + $0x298] sm:$0xff]
    %v3637 = vld [vmem:[#allocation8 + $0x2a0] sm:$0xff]
    %v3638 = vld [vmem:[#allocation8 + $0x2a8] sm:$0xff]
    %v3639 = vld [vmem:[#allocation8 + $0x2b0] sm:$0xff]
    %v3640 = vld [vmem:[#allocation8 + $0x2b8] sm:$0xff]
    %v3641 = vld [vmem:[#allocation8 + $0x2c0] sm:$0xff]
    %v3642 = vld [vmem:[#allocation8 + $0x2c8] sm:$0xff]
    %v3643 = vld [vmem:[#allocation8 + $0x2d0] sm:$0xff]
    %v3644 = vld [vmem:[#allocation8 + $0x2d8] sm:$0xff]
    %v3645 = vld [vmem:[#allocation8 + $0x2e0] sm:$0xff]
    %v3646 = vld [vmem:[#allocation8 + $0x2e8] sm:$0xff]
    %v3647 = vld [vmem:[#allocation8 + $0x2f0] sm:$0xff]
    %v3648 = vld [vmem:[#allocation8 + $0x2f8] sm:$0xff]
    %v3649 = vld [vmem:[#allocation8 + $0x300] sm:$0xff]
    %v3650 = vld [vmem:[#allocation8 + $0x308] sm:$0xff]
    %v3651 = vld [vmem:[#allocation8 + $0x310] sm:$0xff]
    %v3652 = vld [vmem:[#allocation8 + $0x318] sm:$0xff]
    %v3653 = vld [vmem:[#allocation8 + $0x320] sm:$0xff]
    %v3654 = vld [vmem:[#allocation8 + $0x328] sm:$0xff]
    %v3655 = vld [vmem:[#allocation8 + $0x330] sm:$0xff]
    %v3656 = vld [vmem:[#allocation8 + $0x338] sm:$0xff]
    %v3657 = vld [vmem:[#allocation8 + $0x340] sm:$0xff]
    %v3658 = vld [vmem:[#allocation8 + $0x348] sm:$0xff]
    %v3659 = vld [vmem:[#allocation8 + $0x350] sm:$0xff]
    %v3660 = vld [vmem:[#allocation8 + $0x358] sm:$0xff]
    %v3661 = vld [vmem:[#allocation8 + $0x360] sm:$0xff]
    %v3662 = vld [vmem:[#allocation8 + $0x368] sm:$0xff]
    %v3663 = vld [vmem:[#allocation8 + $0x370] sm:$0xff]
    %v3664 = vld [vmem:[#allocation8 + $0x378] sm:$0xff]
    %v3665 = vld [vmem:[#allocation8 + $0x380] sm:$0xff]
    %v3666 = vld [vmem:[#allocation8 + $0x388] sm:$0xff]
    %v3667 = vld [vmem:[#allocation8 + $0x390] sm:$0xff]
    %v3668 = vld [vmem:[#allocation8 + $0x398] sm:$0xff]
    %v3669 = vld [vmem:[#allocation8 + $0x3a0] sm:$0xff]
    %v3670 = vld [vmem:[#allocation8 + $0x3a8] sm:$0xff]
    %v3671 = vld [vmem:[#allocation8 + $0x3b0] sm:$0xff]
    %v3672 = vld [vmem:[#allocation8 + $0x3b8] sm:$0xff]
    %v3673 = vld [vmem:[#allocation8 + $0x3c0] sm:$0xff]
    %v3674 = vld [vmem:[#allocation8 + $0x3c8] sm:$0xff]
    %v3675 = vld [vmem:[#allocation8 + $0x3d0] sm:$0xff]
    %v3676 = vld [vmem:[#allocation8 + $0x3d8] sm:$0xff]
    %v3677 = vld [vmem:[#allocation8 + $0x3e0] sm:$0xff]
    %v3678 = vld [vmem:[#allocation8 + $0x3e8] sm:$0xff]
    %v3679 = vld [vmem:[#allocation8 + $0x3f0] sm:$0xff]
    %v3680 = vld [vmem:[#allocation8 + $0x3f8] sm:$0xff]
    %v3809 = vunpack.c.l.b16 %v3553
    %v3810 = vunpack.c.h.b16 %v3553
    %v3811 = vunpack.c.l.b16 %v3554
    %v3812 = vunpack.c.h.b16 %v3554
    %v3813 = vunpack.c.l.b16 %v3555
    %v3814 = vunpack.c.h.b16 %v3555
    %v3815 = vunpack.c.l.b16 %v3556
    %v3816 = vunpack.c.h.b16 %v3556
    %v3817 = vunpack.c.l.b16 %v3557
    %v3818 = vunpack.c.h.b16 %v3557
    %v3819 = vunpack.c.l.b16 %v3558
    %v3820 = vunpack.c.h.b16 %v3558
    %v3821 = vunpack.c.l.b16 %v3559
    %v3822 = vunpack.c.h.b16 %v3559
    %v3823 = vunpack.c.l.b16 %v3560
    %v3824 = vunpack.c.h.b16 %v3560
    %v3825 = vunpack.c.l.b16 %v3561
    %v3826 = vunpack.c.h.b16 %v3561
    %v3827 = vunpack.c.l.b16 %v3562
    %v3828 = vunpack.c.h.b16 %v3562
    %v3829 = vunpack.c.l.b16 %v3563
    %v3830 = vunpack.c.h.b16 %v3563
    %v3831 = vunpack.c.l.b16 %v3564
    %v3832 = vunpack.c.h.b16 %v3564
    %v3833 = vunpack.c.l.b16 %v3565
    %v3834 = vunpack.c.h.b16 %v3565
    %v3835 = vunpack.c.l.b16 %v3566
    %v3836 = vunpack.c.h.b16 %v3566
    %v3837 = vunpack.c.l.b16 %v3567
    %v3838 = vunpack.c.h.b16 %v3567
    %v3839 = vunpack.c.l.b16 %v3568
    %v3840 = vunpack.c.h.b16 %v3568
    %v3841 = vunpack.c.l.b16 %v3569
    %v3842 = vunpack.c.h.b16 %v3569
    %v3843 = vunpack.c.l.b16 %v3570
    %v3844 = vunpack.c.h.b16 %v3570
    %v3845 = vunpack.c.l.b16 %v3571
    %v3846 = vunpack.c.h.b16 %v3571
    %v3847 = vunpack.c.l.b16 %v3572
    %v3848 = vunpack.c.h.b16 %v3572
    %v3849 = vunpack.c.l.b16 %v3573
    %v3850 = vunpack.c.h.b16 %v3573
    %v3851 = vunpack.c.l.b16 %v3574
    %v3852 = vunpack.c.h.b16 %v3574
    %v3853 = vunpack.c.l.b16 %v3575
    %v3854 = vunpack.c.h.b16 %v3575
    %v3855 = vunpack.c.l.b16 %v3576
    %v3856 = vunpack.c.h.b16 %v3576
    %v3857 = vunpack.c.l.b16 %v3577
    %v3858 = vunpack.c.h.b16 %v3577
    %v3859 = vunpack.c.l.b16 %v3578
    %v3860 = vunpack.c.h.b16 %v3578
    %v3861 = vunpack.c.l.b16 %v3579
    %v3862 = vunpack.c.h.b16 %v3579
    %v3863 = vunpack.c.l.b16 %v3580
    %v3864 = vunpack.c.h.b16 %v3580
    %v3865 = vunpack.c.l.b16 %v3581
    %v3866 = vunpack.c.h.b16 %v3581
    %v3867 = vunpack.c.l.b16 %v3582
    %v3868 = vunpack.c.h.b16 %v3582
    %v3869 = vunpack.c.l.b16 %v3583
    %v3870 = vunpack.c.h.b16 %v3583
    %v3871 = vunpack.c.l.b16 %v3584
    %v3872 = vunpack.c.h.b16 %v3584
    %v3873 = vunpack.c.l.b16 %v3585
    %v3874 = vunpack.c.h.b16 %v3585
    %v3875 = vunpack.c.l.b16 %v3586
    %v3876 = vunpack.c.h.b16 %v3586
    %v3877 = vunpack.c.l.b16 %v3587
    %v3878 = vunpack.c.h.b16 %v3587
    %v3879 = vunpack.c.l.b16 %v3588
    %v3880 = vunpack.c.h.b16 %v3588
    %v3881 = vunpack.c.l.b16 %v3589
    %v3882 = vunpack.c.h.b16 %v3589
    %v3883 = vunpack.c.l.b16 %v3590
    %v3884 = vunpack.c.h.b16 %v3590
    %v3885 = vunpack.c.l.b16 %v3591
    %v3886 = vunpack.c.h.b16 %v3591
    %v3887 = vunpack.c.l.b16 %v3592
    %v3888 = vunpack.c.h.b16 %v3592
    %v3889 = vunpack.c.l.b16 %v3593
    %v3890 = vunpack.c.h.b16 %v3593
    %v3891 = vunpack.c.l.b16 %v3594
    %v3892 = vunpack.c.h.b16 %v3594
    %v3893 = vunpack.c.l.b16 %v3595
    %v3894 = vunpack.c.h.b16 %v3595
    %v3895 = vunpack.c.l.b16 %v3596
    %v3896 = vunpack.c.h.b16 %v3596
    %v3897 = vunpack.c.l.b16 %v3597
    %v3898 = vunpack.c.h.b16 %v3597
    %v3899 = vunpack.c.l.b16 %v3598
    %v3900 = vunpack.c.h.b16 %v3598
    %v3901 = vunpack.c.l.b16 %v3599
    %v3902 = vunpack.c.h.b16 %v3599
    %v3903 = vunpack.c.l.b16 %v3600
    %v3904 = vunpack.c.h.b16 %v3600
    %v3905 = vunpack.c.l.b16 %v3601
    %v3906 = vunpack.c.h.b16 %v3601
    %v3907 = vunpack.c.l.b16 %v3602
    %v3908 = vunpack.c.h.b16 %v3602
    %v3909 = vunpack.c.l.b16 %v3603
    %v3910 = vunpack.c.h.b16 %v3603
    %v3911 = vunpack.c.l.b16 %v3604
    %v3912 = vunpack.c.h.b16 %v3604
    %v3913 = vunpack.c.l.b16 %v3605
    %v3914 = vunpack.c.h.b16 %v3605
    %v3915 = vunpack.c.l.b16 %v3606
    %v3916 = vunpack.c.h.b16 %v3606
    %v3917 = vunpack.c.l.b16 %v3607
    %v3918 = vunpack.c.h.b16 %v3607
    %v3919 = vunpack.c.l.b16 %v3608
    %v3920 = vunpack.c.h.b16 %v3608
    %v3921 = vunpack.c.l.b16 %v3609
    %v3922 = vunpack.c.h.b16 %v3609
    %v3923 = vunpack.c.l.b16 %v3610
    %v3924 = vunpack.c.h.b16 %v3610
    %v3925 = vunpack.c.l.b16 %v3611
    %v3926 = vunpack.c.h.b16 %v3611
    %v3927 = vunpack.c.l.b16 %v3612
    %v3928 = vunpack.c.h.b16 %v3612
    %v3929 = vunpack.c.l.b16 %v3613
    %v3930 = vunpack.c.h.b16 %v3613
    %v3931 = vunpack.c.l.b16 %v3614
    %v3932 = vunpack.c.h.b16 %v3614
    %v3933 = vunpack.c.l.b16 %v3615
    %v3934 = vunpack.c.h.b16 %v3615
    %v3935 = vunpack.c.l.b16 %v3616
    %v3936 = vunpack.c.h.b16 %v3616
    %v3937 = vunpack.c.l.b16 %v3617
    %v3938 = vunpack.c.h.b16 %v3617
    %v3939 = vunpack.c.l.b16 %v3618
    %v3940 = vunpack.c.h.b16 %v3618
    %v3941 = vunpack.c.l.b16 %v3619
    %v3942 = vunpack.c.h.b16 %v3619
    %v3943 = vunpack.c.l.b16 %v3620
    %v3944 = vunpack.c.h.b16 %v3620
    %v3945 = vunpack.c.l.b16 %v3621
    %v3946 = vunpack.c.h.b16 %v3621
    %v3947 = vunpack.c.l.b16 %v3622
    %v3948 = vunpack.c.h.b16 %v3622
    %v3949 = vunpack.c.l.b16 %v3623
    %v3950 = vunpack.c.h.b16 %v3623
    %v3951 = vunpack.c.l.b16 %v3624
    %v3952 = vunpack.c.h.b16 %v3624
    %v3953 = vunpack.c.l.b16 %v3625
    %v3954 = vunpack.c.h.b16 %v3625
    %v3955 = vunpack.c.l.b16 %v3626
    %v3956 = vunpack.c.h.b16 %v3626
    %v3957 = vunpack.c.l.b16 %v3627
    %v3958 = vunpack.c.h.b16 %v3627
    %v3959 = vunpack.c.l.b16 %v3628
    %v3960 = vunpack.c.h.b16 %v3628
    %v3961 = vunpack.c.l.b16 %v3629
    %v3962 = vunpack.c.h.b16 %v3629
    %v3963 = vunpack.c.l.b16 %v3630
    %v3964 = vunpack.c.h.b16 %v3630
    %v3965 = vunpack.c.l.b16 %v3631
    %v3966 = vunpack.c.h.b16 %v3631
    %v3967 = vunpack.c.l.b16 %v3632
    %v3968 = vunpack.c.h.b16 %v3632
    %v3969 = vunpack.c.l.b16 %v3633
    %v3970 = vunpack.c.h.b16 %v3633
    %v3971 = vunpack.c.l.b16 %v3634
    %v3972 = vunpack.c.h.b16 %v3634
    %v3973 = vunpack.c.l.b16 %v3635
    %v3974 = vunpack.c.h.b16 %v3635
    %v3975 = vunpack.c.l.b16 %v3636
    %v3976 = vunpack.c.h.b16 %v3636
    %v3977 = vunpack.c.l.b16 %v3637
    %v3978 = vunpack.c.h.b16 %v3637
    %v3979 = vunpack.c.l.b16 %v3638
    %v3980 = vunpack.c.h.b16 %v3638
    %v3981 = vunpack.c.l.b16 %v3639
    %v3982 = vunpack.c.h.b16 %v3639
    %v3983 = vunpack.c.l.b16 %v3640
    %v3984 = vunpack.c.h.b16 %v3640
    %v3985 = vunpack.c.l.b16 %v3641
    %v3986 = vunpack.c.h.b16 %v3641
    %v3987 = vunpack.c.l.b16 %v3642
    %v3988 = vunpack.c.h.b16 %v3642
    %v3989 = vunpack.c.l.b16 %v3643
    %v3990 = vunpack.c.h.b16 %v3643
    %v3991 = vunpack.c.l.b16 %v3644
    %v3992 = vunpack.c.h.b16 %v3644
    %v3993 = vunpack.c.l.b16 %v3645
    %v3994 = vunpack.c.h.b16 %v3645
    %v3995 = vunpack.c.l.b16 %v3646
    %v3996 = vunpack.c.h.b16 %v3646
    %v3997 = vunpack.c.l.b16 %v3647
    %v3998 = vunpack.c.h.b16 %v3647
    %v3999 = vunpack.c.l.b16 %v3648
    %v4000 = vunpack.c.h.b16 %v3648
    %v4001 = vunpack.c.l.b16 %v3649
    %v4002 = vunpack.c.h.b16 %v3649
    %v4003 = vunpack.c.l.b16 %v3650
    %v4004 = vunpack.c.h.b16 %v3650
    %v4005 = vunpack.c.l.b16 %v3651
    %v4006 = vunpack.c.h.b16 %v3651
    %v4007 = vunpack.c.l.b16 %v3652
    %v4008 = vunpack.c.h.b16 %v3652
    %v4009 = vunpack.c.l.b16 %v3653
    %v4010 = vunpack.c.h.b16 %v3653
    %v4011 = vunpack.c.l.b16 %v3654
    %v4012 = vunpack.c.h.b16 %v3654
    %v4013 = vunpack.c.l.b16 %v3655
    %v4014 = vunpack.c.h.b16 %v3655
    %v4015 = vunpack.c.l.b16 %v3656
    %v4016 = vunpack.c.h.b16 %v3656
    %v4017 = vunpack.c.l.b16 %v3657
    %v4018 = vunpack.c.h.b16 %v3657
    %v4019 = vunpack.c.l.b16 %v3658
    %v4020 = vunpack.c.h.b16 %v3658
    %v4021 = vunpack.c.l.b16 %v3659
    %v4022 = vunpack.c.h.b16 %v3659
    %v4023 = vunpack.c.l.b16 %v3660
    %v4024 = vunpack.c.h.b16 %v3660
    %v4025 = vunpack.c.l.b16 %v3661
    %v4026 = vunpack.c.h.b16 %v3661
    %v4027 = vunpack.c.l.b16 %v3662
    %v4028 = vunpack.c.h.b16 %v3662
    %v4029 = vunpack.c.l.b16 %v3663
    %v4030 = vunpack.c.h.b16 %v3663
    %v4031 = vunpack.c.l.b16 %v3664
    %v4032 = vunpack.c.h.b16 %v3664
    %v4033 = vunpack.c.l.b16 %v3665
    %v4034 = vunpack.c.h.b16 %v3665
    %v4035 = vunpack.c.l.b16 %v3666
    %v4036 = vunpack.c.h.b16 %v3666
    %v4037 = vunpack.c.l.b16 %v3667
    %v4038 = vunpack.c.h.b16 %v3667
    %v4039 = vunpack.c.l.b16 %v3668
    %v4040 = vunpack.c.h.b16 %v3668
    %v4041 = vunpack.c.l.b16 %v3669
    %v4042 = vunpack.c.h.b16 %v3669
    %v4043 = vunpack.c.l.b16 %v3670
    %v4044 = vunpack.c.h.b16 %v3670
    %v4045 = vunpack.c.l.b16 %v3671
    %v4046 = vunpack.c.h.b16 %v3671
    %v4047 = vunpack.c.l.b16 %v3672
    %v4048 = vunpack.c.h.b16 %v3672
    %v4049 = vunpack.c.l.b16 %v3673
    %v4050 = vunpack.c.h.b16 %v3673
    %v4051 = vunpack.c.l.b16 %v3674
    %v4052 = vunpack.c.h.b16 %v3674
    %v4053 = vunpack.c.l.b16 %v3675
    %v4054 = vunpack.c.h.b16 %v3675
    %v4055 = vunpack.c.l.b16 %v3676
    %v4056 = vunpack.c.h.b16 %v3676
    %v4057 = vunpack.c.l.b16 %v3677
    %v4058 = vunpack.c.h.b16 %v3677
    %v4059 = vunpack.c.l.b16 %v3678
    %v4060 = vunpack.c.h.b16 %v3678
    %v4061 = vunpack.c.l.b16 %v3679
    %v4062 = vunpack.c.h.b16 %v3679
    %v4063 = vunpack.c.l.b16 %v3680
    %v4064 = vunpack.c.h.b16 %v3680
    %v4065 = vpack.c.b16 %v3817, %v3809
    %v4066 = vpack.c.b16 %v3818, %v3810
    %v4067 = vpack.c.b16 %v3819, %v3811
    %v4068 = vpack.c.b16 %v3820, %v3812
    %v4069 = vpack.c.b16 %v3821, %v3813
    %v4070 = vpack.c.b16 %v3822, %v3814
    %v4071 = vpack.c.b16 %v3823, %v3815
    %v4072 = vpack.c.b16 %v3824, %v3816
    %v4073 = vpack.c.b16 %v3833, %v3825
    %v4074 = vpack.c.b16 %v3834, %v3826
    %v4075 = vpack.c.b16 %v3835, %v3827
    %v4076 = vpack.c.b16 %v3836, %v3828
    %v4077 = vpack.c.b16 %v3837, %v3829
    %v4078 = vpack.c.b16 %v3838, %v3830
    %v4079 = vpack.c.b16 %v3839, %v3831
    %v4080 = vpack.c.b16 %v3840, %v3832
    %v4081 = vpack.c.b16 %v3849, %v3841
    %v4082 = vpack.c.b16 %v3850, %v3842
    %v4083 = vpack.c.b16 %v3851, %v3843
    %v4084 = vpack.c.b16 %v3852, %v3844
    %v4085 = vpack.c.b16 %v3853, %v3845
    %v4086 = vpack.c.b16 %v3854, %v3846
    %v4087 = vpack.c.b16 %v3855, %v3847
    %v4088 = vpack.c.b16 %v3856, %v3848
    %v4089 = vpack.c.b16 %v3865, %v3857
    %v4090 = vpack.c.b16 %v3866, %v3858
    %v4091 = vpack.c.b16 %v3867, %v3859
    %v4092 = vpack.c.b16 %v3868, %v3860
    %v4093 = vpack.c.b16 %v3869, %v3861
    %v4094 = vpack.c.b16 %v3870, %v3862
    %v4095 = vpack.c.b16 %v3871, %v3863
    %v4096 = vpack.c.b16 %v3872, %v3864
    %v4097 = vpack.c.b16 %v3881, %v3873
    %v4098 = vpack.c.b16 %v3882, %v3874
    %v4099 = vpack.c.b16 %v3883, %v3875
    %v4100 = vpack.c.b16 %v3884, %v3876
    %v4101 = vpack.c.b16 %v3885, %v3877
    %v4102 = vpack.c.b16 %v3886, %v3878
    %v4103 = vpack.c.b16 %v3887, %v3879
    %v4104 = vpack.c.b16 %v3888, %v3880
    %v4105 = vpack.c.b16 %v3897, %v3889
    %v4106 = vpack.c.b16 %v3898, %v3890
    %v4107 = vpack.c.b16 %v3899, %v3891
    %v4108 = vpack.c.b16 %v3900, %v3892
    %v4109 = vpack.c.b16 %v3901, %v3893
    %v4110 = vpack.c.b16 %v3902, %v3894
    %v4111 = vpack.c.b16 %v3903, %v3895
    %v4112 = vpack.c.b16 %v3904, %v3896
    %v4113 = vpack.c.b16 %v3913, %v3905
    %v4114 = vpack.c.b16 %v3914, %v3906
    %v4115 = vpack.c.b16 %v3915, %v3907
    %v4116 = vpack.c.b16 %v3916, %v3908
    %v4117 = vpack.c.b16 %v3917, %v3909
    %v4118 = vpack.c.b16 %v3918, %v3910
    %v4119 = vpack.c.b16 %v3919, %v3911
    %v4120 = vpack.c.b16 %v3920, %v3912
    %v4121 = vpack.c.b16 %v3929, %v3921
    %v4122 = vpack.c.b16 %v3930, %v3922
    %v4123 = vpack.c.b16 %v3931, %v3923
    %v4124 = vpack.c.b16 %v3932, %v3924
    %v4125 = vpack.c.b16 %v3933, %v3925
    %v4126 = vpack.c.b16 %v3934, %v3926
    %v4127 = vpack.c.b16 %v3935, %v3927
    %v4128 = vpack.c.b16 %v3936, %v3928
    %v4129 = vpack.c.b16 %v3945, %v3937
    %v4130 = vpack.c.b16 %v3946, %v3938
    %v4131 = vpack.c.b16 %v3947, %v3939
    %v4132 = vpack.c.b16 %v3948, %v3940
    %v4133 = vpack.c.b16 %v3949, %v3941
    %v4134 = vpack.c.b16 %v3950, %v3942
    %v4135 = vpack.c.b16 %v3951, %v3943
    %v4136 = vpack.c.b16 %v3952, %v3944
    %v4137 = vpack.c.b16 %v3961, %v3953
    %v4138 = vpack.c.b16 %v3962, %v3954
    %v4139 = vpack.c.b16 %v3963, %v3955
    %v4140 = vpack.c.b16 %v3964, %v3956
    %v4141 = vpack.c.b16 %v3965, %v3957
    %v4142 = vpack.c.b16 %v3966, %v3958
    %v4143 = vpack.c.b16 %v3967, %v3959
    %v4144 = vpack.c.b16 %v3968, %v3960
    %v4145 = vpack.c.b16 %v3977, %v3969
    %v4146 = vpack.c.b16 %v3978, %v3970
    %v4147 = vpack.c.b16 %v3979, %v3971
    %v4148 = vpack.c.b16 %v3980, %v3972
    %v4149 = vpack.c.b16 %v3981, %v3973
    %v4150 = vpack.c.b16 %v3982, %v3974
    %v4151 = vpack.c.b16 %v3983, %v3975
    %v4152 = vpack.c.b16 %v3984, %v3976
    %v4153 = vpack.c.b16 %v3993, %v3985
    %v4154 = vpack.c.b16 %v3994, %v3986
    %v4155 = vpack.c.b16 %v3995, %v3987
    %v4156 = vpack.c.b16 %v3996, %v3988
    %v4157 = vpack.c.b16 %v3997, %v3989
    %v4158 = vpack.c.b16 %v3998, %v3990
    %v4159 = vpack.c.b16 %v3999, %v3991
    %v4160 = vpack.c.b16 %v4000, %v3992
    %v4161 = vpack.c.b16 %v4009, %v4001
    %v4162 = vpack.c.b16 %v4010, %v4002
    %v4163 = vpack.c.b16 %v4011, %v4003
    %v4164 = vpack.c.b16 %v4012, %v4004
    %v4165 = vpack.c.b16 %v4013, %v4005
    %v4166 = vpack.c.b16 %v4014, %v4006
    %v4167 = vpack.c.b16 %v4015, %v4007
    %v4168 = vpack.c.b16 %v4016, %v4008
    %v4169 = vpack.c.b16 %v4025, %v4017
    %v4170 = vpack.c.b16 %v4026, %v4018
    %v4171 = vpack.c.b16 %v4027, %v4019
    %v4172 = vpack.c.b16 %v4028, %v4020
    %v4173 = vpack.c.b16 %v4029, %v4021
    %v4174 = vpack.c.b16 %v4030, %v4022
    %v4175 = vpack.c.b16 %v4031, %v4023
    %v4176 = vpack.c.b16 %v4032, %v4024
    %v4177 = vpack.c.b16 %v4041, %v4033
    %v4178 = vpack.c.b16 %v4042, %v4034
    %v4179 = vpack.c.b16 %v4043, %v4035
    %v4180 = vpack.c.b16 %v4044, %v4036
    %v4181 = vpack.c.b16 %v4045, %v4037
    %v4182 = vpack.c.b16 %v4046, %v4038
    %v4183 = vpack.c.b16 %v4047, %v4039
    %v4184 = vpack.c.b16 %v4048, %v4040
    %v4185 = vpack.c.b16 %v4057, %v4049
    %v4186 = vpack.c.b16 %v4058, %v4050
    %v4187 = vpack.c.b16 %v4059, %v4051
    %v4188 = vpack.c.b16 %v4060, %v4052
    %v4189 = vpack.c.b16 %v4061, %v4053
    %v4190 = vpack.c.b16 %v4062, %v4054
    %v4191 = vpack.c.b16 %v4063, %v4055
    %v4192 = vpack.c.b16 %v4064, %v4056
    %4321 = vmatprep.subr.bf16.mxu0 %v4066
    %4322 = vmatpush1.bf16.msra.mxu0 %v4065
    %4323 = vmatprep.subr.bf16.mxu0 %v4074
    %4324 = vmatpush1.bf16.msra.mxu0 %v4073
    %4325 = vmatprep.subr.bf16.mxu0 %v4082
    %4326 = vmatpush1.bf16.msra.mxu0 %v4081
    %4327 = vmatprep.subr.bf16.mxu0 %v4090
    %4328 = vmatpush1.bf16.msra.mxu0 %v4089
    %4329 = vmatprep.subr.bf16.mxu0 %v4098
    %4330 = vmatpush1.bf16.msra.mxu0 %v4097
    %4331 = vmatprep.subr.bf16.mxu0 %v4106
    %4332 = vmatpush1.bf16.msra.mxu0 %v4105
    %4333 = vmatprep.subr.bf16.mxu0 %v4114
    %4334 = vmatpush1.bf16.msra.mxu0 %v4113
    %4335 = vmatprep.subr.bf16.mxu0 %v4122
    %4336 = vmatpush1.bf16.msra.mxu0 %v4121
    %4337 = vmatprep.subr.bf16.mxu0 %v4130
    %4338 = vmatpush1.bf16.msra.mxu0 %v4129
    %4339 = vmatprep.subr.bf16.mxu0 %v4138
    %4340 = vmatpush1.bf16.msra.mxu0 %v4137
    %4341 = vmatprep.subr.bf16.mxu0 %v4146
    %4342 = vmatpush1.bf16.msra.mxu0 %v4145
    %4343 = vmatprep.subr.bf16.mxu0 %v4154
    %4344 = vmatpush1.bf16.msra.mxu0 %v4153
    %4345 = vmatprep.subr.bf16.mxu0 %v4162
    %4346 = vmatpush1.bf16.msra.mxu0 %v4161
    %4347 = vmatprep.subr.bf16.mxu0 %v4170
    %4348 = vmatpush1.bf16.msra.mxu0 %v4169
    %4349 = vmatprep.subr.bf16.mxu0 %v4178
    %4350 = vmatpush1.bf16.msra.mxu0 %v4177
    %4351 = vmatprep.subr.bf16.mxu0 %v4186
    %4352 = vmatpush1.bf16.msra.mxu0 %v4185
    %4353 = vmatprep.mubr.bf16.mxu0 %v3552
    %4354 = vmatmul.mubr.bf16.gmra.mrb[0].mxu0 %v3551
    %v4355 = vpop.f32.mrb[0].mxu0
    %v4356 = vadd.f32 0.0, %v4355
    %v4357 = vpop.f32.mrb[0].mxu0
    %v4358 = vadd.f32 0.0, %v4357
    %v4359 = vpop.f32.mrb[0].mxu0
    %v4360 = vpop.f32.mrb[0].mxu0
    %4361 = vdwg.mxu0
    %4362 = vmatprep.subr.bf16.mxu0 %v4068
    %4363 = vmatpush1.bf16.msra.mxu0 %v4067
    %4364 = vmatprep.subr.bf16.mxu0 %v4076
    %4365 = vmatpush1.bf16.msra.mxu0 %v4075
    %4366 = vmatprep.subr.bf16.mxu0 %v4084
    %4367 = vmatpush1.bf16.msra.mxu0 %v4083
    %4368 = vmatprep.subr.bf16.mxu0 %v4092
    %4369 = vmatpush1.bf16.msra.mxu0 %v4091
    %4370 = vmatprep.subr.bf16.mxu0 %v4100
    %4371 = vmatpush1.bf16.msra.mxu0 %v4099
    %4372 = vmatprep.subr.bf16.mxu0 %v4108
    %4373 = vmatpush1.bf16.msra.mxu0 %v4107
    %4374 = vmatprep.subr.bf16.mxu0 %v4116
    %4375 = vmatpush1.bf16.msra.mxu0 %v4115
    %4376 = vmatprep.subr.bf16.mxu0 %v4124
    %4377 = vmatpush1.bf16.msra.mxu0 %v4123
    %4378 = vmatprep.subr.bf16.mxu0 %v4132
    %4379 = vmatpush1.bf16.msra.mxu0 %v4131
    %4380 = vmatprep.subr.bf16.mxu0 %v4140
    %4381 = vmatpush1.bf16.msra.mxu0 %v4139
    %4382 = vmatprep.subr.bf16.mxu0 %v4148
    %4383 = vmatpush1.bf16.msra.mxu0 %v4147
    %4384 = vmatprep.subr.bf16.mxu0 %v4156
    %4385 = vmatpush1.bf16.msra.mxu0 %v4155
    %4386 = vmatprep.subr.bf16.mxu0 %v4164
    %4387 = vmatpush1.bf16.msra.mxu0 %v4163
    %4388 = vmatprep.subr.bf16.mxu0 %v4172
    %4389 = vmatpush1.bf16.msra.mxu0 %v4171
    %4390 = vmatprep.subr.bf16.mxu0 %v4180
    %4391 = vmatpush1.bf16.msra.mxu0 %v4179
    %4392 = vmatprep.subr.bf16.mxu0 %v4188
    %4393 = vmatpush1.bf16.msra.mxu0 %v4187
    %4394 = vmatprep.mubr.bf16.mxu0 %v3552
    %4395 = vmatmul.mubr.bf16.gmra.mrb[0].mxu0 %v3551
    %v4396 = vpop.f32.mrb[0].mxu0
    %v4397 = vadd.f32 0.0, %v4396
    %v4398 = vpop.f32.mrb[0].mxu0
    %v4399 = vadd.f32 0.0, %v4398
    %v4400 = vpop.f32.mrb[0].mxu0
    %v4401 = vpop.f32.mrb[0].mxu0
    %4402 = vdwg.mxu0
    %4403 = vmatprep.subr.bf16.mxu0 %v4070
    %4404 = vmatpush1.bf16.msra.mxu0 %v4069
    %4405 = vmatprep.subr.bf16.mxu0 %v4078
    %4406 = vmatpush1.bf16.msra.mxu0 %v4077
    %4407 = vmatprep.subr.bf16.mxu0 %v4086
    %4408 = vmatpush1.bf16.msra.mxu0 %v4085
    %4409 = vmatprep.subr.bf16.mxu0 %v4094
    %4410 = vmatpush1.bf16.msra.mxu0 %v4093
    %4411 = vmatprep.subr.bf16.mxu0 %v4102
    %4412 = vmatpush1.bf16.msra.mxu0 %v4101
    %4413 = vmatprep.subr.bf16.mxu0 %v4110
    %4414 = vmatpush1.bf16.msra.mxu0 %v4109
    %4415 = vmatprep.subr.bf16.mxu0 %v4118
    %4416 = vmatpush1.bf16.msra.mxu0 %v4117
    %4417 = vmatprep.subr.bf16.mxu0 %v4126
    %4418 = vmatpush1.bf16.msra.mxu0 %v4125
    %4419 = vmatprep.subr.bf16.mxu0 %v4134
    %4420 = vmatpush1.bf16.msra.mxu0 %v4133
    %4421 = vmatprep.subr.bf16.mxu0 %v4142
    %4422 = vmatpush1.bf16.msra.mxu0 %v4141
    %4423 = vmatprep.subr.bf16.mxu0 %v4150
    %4424 = vmatpush1.bf16.msra.mxu0 %v4149
    %4425 = vmatprep.subr.bf16.mxu0 %v4158
    %4426 = vmatpush1.bf16.msra.mxu0 %v4157
    %4427 = vmatprep.subr.bf16.mxu0 %v4166
    %4428 = vmatpush1.bf16.msra.mxu0 %v4165
    %4429 = vmatprep.subr.bf16.mxu0 %v4174
    %4430 = vmatpush1.bf16.msra.mxu0 %v4173
    %4431 = vmatprep.subr.bf16.mxu0 %v4182
    %4432 = vmatpush1.bf16.msra.mxu0 %v4181
    %4433 = vmatprep.subr.bf16.mxu0 %v4190
    %4434 = vmatpush1.bf16.msra.mxu0 %v4189
    %4435 = vmatprep.mubr.bf16.mxu0 %v3552
    %4436 = vmatmul.mubr.bf16.gmra.mrb[0].mxu0 %v3551
    %v4437 = vpop.f32.mrb[0].mxu0
    %v4438 = vadd.f32 0.0, %v4437
    %v4439 = vpop.f32.mrb[0].mxu0
    %v4440 = vadd.f32 0.0, %v4439
    %v4441 = vpop.f32.mrb[0].mxu0
    %v4442 = vpop.f32.mrb[0].mxu0
    %4443 = vdwg.mxu0
    %4444 = vmatprep.subr.bf16.mxu0 %v4072
    %4445 = vmatpush1.bf16.msra.mxu0 %v4071
    %4446 = vmatprep.subr.bf16.mxu0 %v4080
    %4447 = vmatpush1.bf16.msra.mxu0 %v4079
    %4448 = vmatprep.subr.bf16.mxu0 %v4088
    %4449 = vmatpush1.bf16.msra.mxu0 %v4087
    %4450 = vmatprep.subr.bf16.mxu0 %v4096
    %4451 = vmatpush1.bf16.msra.mxu0 %v4095
    %4452 = vmatprep.subr.bf16.mxu0 %v4104
    %4453 = vmatpush1.bf16.msra.mxu0 %v4103
    %4454 = vmatprep.subr.bf16.mxu0 %v4112
    %4455 = vmatpush1.bf16.msra.mxu0 %v4111
    %4456 = vmatprep.subr.bf16.mxu0 %v4120
    %4457 = vmatpush1.bf16.msra.mxu0 %v4119
    %4458 = vmatprep.subr.bf16.mxu0 %v4128
    %4459 = vmatpush1.bf16.msra.mxu0 %v4127
    %4460 = vmatprep.subr.bf16.mxu0 %v4136
    %4461 = vmatpush1.bf16.msra.mxu0 %v4135
    %4462 = vmatprep.subr.bf16.mxu0 %v4144
    %4463 = vmatpush1.bf16.msra.mxu0 %v4143
    %4464 = vmatprep.subr.bf16.mxu0 %v4152
    %4465 = vmatpush1.bf16.msra.mxu0 %v4151
    %4466 = vmatprep.subr.bf16.mxu0 %v4160
    %4467 = vmatpush1.bf16.msra.mxu0 %v4159
    %4468 = vmatprep.subr.bf16.mxu0 %v4168
    %4469 = vmatpush1.bf16.msra.mxu0 %v4167
    %4470 = vmatprep.subr.bf16.mxu0 %v4176
    %4471 = vmatpush1.bf16.msra.mxu0 %v4175
    %4472 = vmatprep.subr.bf16.mxu0 %v4184
    %4473 = vmatpush1.bf16.msra.mxu0 %v4183
    %4474 = vmatprep.subr.bf16.mxu0 %v4192
    %4475 = vmatpush1.bf16.msra.mxu0 %v4191
    %4476 = vmatprep.mubr.bf16.mxu0 %v3552
    %4477 = vmatmul.mubr.bf16.gmra.mrb[0].mxu0 %v3551
    %v4478 = vpop.f32.mrb[0].mxu0
    %v4479 = vadd.f32 0.0, %v4478
    %v4480 = vpop.f32.mrb[0].mxu0
    %v4481 = vadd.f32 0.0, %v4480
    %v4482 = vpop.f32.mrb[0].mxu0
    %v4483 = vpop.f32.mrb[0].mxu0
    %4484 = vdwg.mxu0
    %v4485 = vld [vmem:[#allocation2 + $0x60] sm:$0xff]
    %v4486 = vld [vmem:[#allocation2 + $0x68] sm:$0xff]
    %v4487 = vld [vmem:[#allocation2 + $0x70] sm:$0xff]
    %v4488 = vld [vmem:[#allocation2 + $0x78] sm:$0xff]
    %v4489 = vadd.f32 %v4356, %v4485
    %v4490 = vadd.f32 %v4358, %v4486
    %v4491 = vadd.f32 %v4397, %v4487
    %v4492 = vadd.f32 %v4399, %v4488
    %v4493 = vld [vmem:[#allocation3 + $0x80] sm:$0xff]
    %v4494 = vld [vmem:[#allocation3 + $0x88] sm:$0xff]
    %v4495 = vld [vmem:[#allocation3 + $0x90] sm:$0xff]
    %v4496 = vld [vmem:[#allocation3 + $0x98] sm:$0xff]
    %v4497 = vadd.f32 %v4438, %v4493
    %v4498 = vadd.f32 %v4440, %v4494
    %v4499 = vadd.f32 %v4479, %v4495
    %v4500 = vadd.f32 %v4481, %v4496
    %v4501 = vxor.u32 %v4489, 2147483648
    %v4502 = vmul.f32 %v4501, 1.442695
    %v4503 = vpow.pop %v4502
    %v4504 = vadd.f32 %v4503, 1.0
    %v4505 = vrcp.pop %v4504
    %v4506 = vmul.f32 1.0, %v4505
    %v4507 = vxor.u32 %v4490, 2147483648
    %v4508 = vmul.f32 %v4507, 1.442695
    %v4509 = vpow.pop %v4508
    %v4510 = vadd.f32 %v4509, 1.0
    %v4511 = vrcp.pop %v4510
    %v4512 = vmul.f32 1.0, %v4511
    %v4513 = vtanh.pop %v4491
    %v4514 = vxor.u32 %v4492, 2147483648
    %v4515 = vmul.f32 %v4514, 1.442695
    %v4516 = vpow.pop %v4515
    %v4517 = vadd.f32 %v4516, 1.0
    %v4518 = vrcp.pop %v4517
    %v4519 = vmul.f32 1.0, %v4518
    %v4520 = vmul.f32 %v4512, %v3522
    %v4521 = vmul.f32 %v4506, %v4513
    %v4522 = vadd.f32 %v4520, %v4521
    %v4523 = vtanh.pop %v4522
    %v4524 = vmul.f32 %v4519, %v4523
    %v4525 = vxor.u32 %v4497, 2147483648
    %v4526 = vmul.f32 %v4525, 1.442695
    %v4527 = vpow.pop %v4526
    %v4528 = vadd.f32 %v4527, 1.0
    %v4529 = vrcp.pop %v4528
    %v4530 = vmul.f32 1.0, %v4529
    %v4531 = vxor.u32 %v4498, 2147483648
    %v4532 = vmul.f32 %v4531, 1.442695
    %v4533 = vpow.pop %v4532
    %v4534 = vadd.f32 %v4533, 1.0
    %v4535 = vrcp.pop %v4534
    %v4536 = vmul.f32 1.0, %v4535
    %v4537 = vtanh.pop %v4499
    %v4538 = vxor.u32 %v4500, 2147483648
    %v4539 = vmul.f32 %v4538, 1.442695
    %v4540 = vpow.pop %v4539
    %v4541 = vadd.f32 %v4540, 1.0
    %v4542 = vrcp.pop %v4541
    %v4543 = vmul.f32 1.0, %v4542
    %v4544 = vmul.f32 %v4536, %v3546
    %v4545 = vmul.f32 %v4530, %v4537
    %v4546 = vadd.f32 %v4544, %v4545
    %v4547 = vtanh.pop %v4546
    %v4548 = vmul.f32 %v4543, %v4547
    %4549 = vst [vmem:[#allocation4 + $0x30] sm:$0xff] %v4524
    %4550 = vst [vmem:[#allocation4 + $0x38] sm:$0xff] %v4548
    %v4551 = vpack.c.bf16 %v4524, %v4524
    %v4552 = vpack.c.bf16 %v4548, %v4548
    %v4553 = vld [vmem:[#allocation8] sm:$0xff]
    %v4554 = vld [vmem:[#allocation8 + $0x8] sm:$0xff]
    %v4555 = vld [vmem:[#allocation8 + $0x10] sm:$0xff]
    %v4556 = vld [vmem:[#allocation8 + $0x18] sm:$0xff]
    %v4557 = vld [vmem:[#allocation8 + $0x20] sm:$0xff]
    %v4558 = vld [vmem:[#allocation8 + $0x28] sm:$0xff]
    %v4559 = vld [vmem:[#allocation8 + $0x30] sm:$0xff]
    %v4560 = vld [vmem:[#allocation8 + $0x38] sm:$0xff]
    %v4561 = vld [vmem:[#allocation8 + $0x40] sm:$0xff]
    %v4562 = vld [vmem:[#allocation8 + $0x48] sm:$0xff]
    %v4563 = vld [vmem:[#allocation8 + $0x50] sm:$0xff]
    %v4564 = vld [vmem:[#allocation8 + $0x58] sm:$0xff]
    %v4565 = vld [vmem:[#allocation8 + $0x60] sm:$0xff]
    %v4566 = vld [vmem:[#allocation8 + $0x68] sm:$0xff]
    %v4567 = vld [vmem:[#allocation8 + $0x70] sm:$0xff]
    %v4568 = vld [vmem:[#allocation8 + $0x78] sm:$0xff]
    %v4569 = vld [vmem:[#allocation8 + $0x80] sm:$0xff]
    %v4570 = vld [vmem:[#allocation8 + $0x88] sm:$0xff]
    %v4571 = vld [vmem:[#allocation8 + $0x90] sm:$0xff]
    %v4572 = vld [vmem:[#allocation8 + $0x98] sm:$0xff]
    %v4573 = vld [vmem:[#allocation8 + $0xa0] sm:$0xff]
    %v4574 = vld [vmem:[#allocation8 + $0xa8] sm:$0xff]
    %v4575 = vld [vmem:[#allocation8 + $0xb0] sm:$0xff]
    %v4576 = vld [vmem:[#allocation8 + $0xb8] sm:$0xff]
    %v4577 = vld [vmem:[#allocation8 + $0xc0] sm:$0xff]
    %v4578 = vld [vmem:[#allocation8 + $0xc8] sm:$0xff]
    %v4579 = vld [vmem:[#allocation8 + $0xd0] sm:$0xff]
    %v4580 = vld [vmem:[#allocation8 + $0xd8] sm:$0xff]
    %v4581 = vld [vmem:[#allocation8 + $0xe0] sm:$0xff]
    %v4582 = vld [vmem:[#allocation8 + $0xe8] sm:$0xff]
    %v4583 = vld [vmem:[#allocation8 + $0xf0] sm:$0xff]
    %v4584 = vld [vmem:[#allocation8 + $0xf8] sm:$0xff]
    %v4585 = vld [vmem:[#allocation8 + $0x100] sm:$0xff]
    %v4586 = vld [vmem:[#allocation8 + $0x108] sm:$0xff]
    %v4587 = vld [vmem:[#allocation8 + $0x110] sm:$0xff]
    %v4588 = vld [vmem:[#allocation8 + $0x118] sm:$0xff]
    %v4589 = vld [vmem:[#allocation8 + $0x120] sm:$0xff]
    %v4590 = vld [vmem:[#allocation8 + $0x128] sm:$0xff]
    %v4591 = vld [vmem:[#allocation8 + $0x130] sm:$0xff]
    %v4592 = vld [vmem:[#allocation8 + $0x138] sm:$0xff]
    %v4593 = vld [vmem:[#allocation8 + $0x140] sm:$0xff]
    %v4594 = vld [vmem:[#allocation8 + $0x148] sm:$0xff]
    %v4595 = vld [vmem:[#allocation8 + $0x150] sm:$0xff]
    %v4596 = vld [vmem:[#allocation8 + $0x158] sm:$0xff]
    %v4597 = vld [vmem:[#allocation8 + $0x160] sm:$0xff]
    %v4598 = vld [vmem:[#allocation8 + $0x168] sm:$0xff]
    %v4599 = vld [vmem:[#allocation8 + $0x170] sm:$0xff]
    %v4600 = vld [vmem:[#allocation8 + $0x178] sm:$0xff]
    %v4601 = vld [vmem:[#allocation8 + $0x180] sm:$0xff]
    %v4602 = vld [vmem:[#allocation8 + $0x188] sm:$0xff]
    %v4603 = vld [vmem:[#allocation8 + $0x190] sm:$0xff]
    %v4604 = vld [vmem:[#allocation8 + $0x198] sm:$0xff]
    %v4605 = vld [vmem:[#allocation8 + $0x1a0] sm:$0xff]
    %v4606 = vld [vmem:[#allocation8 + $0x1a8] sm:$0xff]
    %v4607 = vld [vmem:[#allocation8 + $0x1b0] sm:$0xff]
    %v4608 = vld [vmem:[#allocation8 + $0x1b8] sm:$0xff]
    %v4609 = vld [vmem:[#allocation8 + $0x1c0] sm:$0xff]
    %v4610 = vld [vmem:[#allocation8 + $0x1c8] sm:$0xff]
    %v4611 = vld [vmem:[#allocation8 + $0x1d0] sm:$0xff]
    %v4612 = vld [vmem:[#allocation8 + $0x1d8] sm:$0xff]
    %v4613 = vld [vmem:[#allocation8 + $0x1e0] sm:$0xff]
    %v4614 = vld [vmem:[#allocation8 + $0x1e8] sm:$0xff]
    %v4615 = vld [vmem:[#allocation8 + $0x1f0] sm:$0xff]
    %v4616 = vld [vmem:[#allocation8 + $0x1f8] sm:$0xff]
    %v4617 = vld [vmem:[#allocation8 + $0x200] sm:$0xff]
    %v4618 = vld [vmem:[#allocation8 + $0x208] sm:$0xff]
    %v4619 = vld [vmem:[#allocation8 + $0x210] sm:$0xff]
    %v4620 = vld [vmem:[#allocation8 + $0x218] sm:$0xff]
    %v4621 = vld [vmem:[#allocation8 + $0x220] sm:$0xff]
    %v4622 = vld [vmem:[#allocation8 + $0x228] sm:$0xff]
    %v4623 = vld [vmem:[#allocation8 + $0x230] sm:$0xff]
    %v4624 = vld [vmem:[#allocation8 + $0x238] sm:$0xff]
    %v4625 = vld [vmem:[#allocation8 + $0x240] sm:$0xff]
    %v4626 = vld [vmem:[#allocation8 + $0x248] sm:$0xff]
    %v4627 = vld [vmem:[#allocation8 + $0x250] sm:$0xff]
    %v4628 = vld [vmem:[#allocation8 + $0x258] sm:$0xff]
    %v4629 = vld [vmem:[#allocation8 + $0x260] sm:$0xff]
    %v4630 = vld [vmem:[#allocation8 + $0x268] sm:$0xff]
    %v4631 = vld [vmem:[#allocation8 + $0x270] sm:$0xff]
    %v4632 = vld [vmem:[#allocation8 + $0x278] sm:$0xff]
    %v4633 = vld [vmem:[#allocation8 + $0x280] sm:$0xff]
    %v4634 = vld [vmem:[#allocation8 + $0x288] sm:$0xff]
    %v4635 = vld [vmem:[#allocation8 + $0x290] sm:$0xff]
    %v4636 = vld [vmem:[#allocation8 + $0x298] sm:$0xff]
    %v4637 = vld [vmem:[#allocation8 + $0x2a0] sm:$0xff]
    %v4638 = vld [vmem:[#allocation8 + $0x2a8] sm:$0xff]
    %v4639 = vld [vmem:[#allocation8 + $0x2b0] sm:$0xff]
    %v4640 = vld [vmem:[#allocation8 + $0x2b8] sm:$0xff]
    %v4641 = vld [vmem:[#allocation8 + $0x2c0] sm:$0xff]
    %v4642 = vld [vmem:[#allocation8 + $0x2c8] sm:$0xff]
    %v4643 = vld [vmem:[#allocation8 + $0x2d0] sm:$0xff]
    %v4644 = vld [vmem:[#allocation8 + $0x2d8] sm:$0xff]
    %v4645 = vld [vmem:[#allocation8 + $0x2e0] sm:$0xff]
    %v4646 = vld [vmem:[#allocation8 + $0x2e8] sm:$0xff]
    %v4647 = vld [vmem:[#allocation8 + $0x2f0] sm:$0xff]
    %v4648 = vld [vmem:[#allocation8 + $0x2f8] sm:$0xff]
    %v4649 = vld [vmem:[#allocation8 + $0x300] sm:$0xff]
    %v4650 = vld [vmem:[#allocation8 + $0x308] sm:$0xff]
    %v4651 = vld [vmem:[#allocation8 + $0x310] sm:$0xff]
    %v4652 = vld [vmem:[#allocation8 + $0x318] sm:$0xff]
    %v4653 = vld [vmem:[#allocation8 + $0x320] sm:$0xff]
    %v4654 = vld [vmem:[#allocation8 + $0x328] sm:$0xff]
    %v4655 = vld [vmem:[#allocation8 + $0x330] sm:$0xff]
    %v4656 = vld [vmem:[#allocation8 + $0x338] sm:$0xff]
    %v4657 = vld [vmem:[#allocation8 + $0x340] sm:$0xff]
    %v4658 = vld [vmem:[#allocation8 + $0x348] sm:$0xff]
    %v4659 = vld [vmem:[#allocation8 + $0x350] sm:$0xff]
    %v4660 = vld [vmem:[#allocation8 + $0x358] sm:$0xff]
    %v4661 = vld [vmem:[#allocation8 + $0x360] sm:$0xff]
    %v4662 = vld [vmem:[#allocation8 + $0x368] sm:$0xff]
    %v4663 = vld [vmem:[#allocation8 + $0x370] sm:$0xff]
    %v4664 = vld [vmem:[#allocation8 + $0x378] sm:$0xff]
    %v4665 = vld [vmem:[#allocation8 + $0x380] sm:$0xff]
    %v4666 = vld [vmem:[#allocation8 + $0x388] sm:$0xff]
    %v4667 = vld [vmem:[#allocation8 + $0x390] sm:$0xff]
    %v4668 = vld [vmem:[#allocation8 + $0x398] sm:$0xff]
    %v4669 = vld [vmem:[#allocation8 + $0x3a0] sm:$0xff]
    %v4670 = vld [vmem:[#allocation8 + $0x3a8] sm:$0xff]
    %v4671 = vld [vmem:[#allocation8 + $0x3b0] sm:$0xff]
    %v4672 = vld [vmem:[#allocation8 + $0x3b8] sm:$0xff]
    %v4673 = vld [vmem:[#allocation8 + $0x3c0] sm:$0xff]
    %v4674 = vld [vmem:[#allocation8 + $0x3c8] sm:$0xff]
    %v4675 = vld [vmem:[#allocation8 + $0x3d0] sm:$0xff]
    %v4676 = vld [vmem:[#allocation8 + $0x3d8] sm:$0xff]
    %v4677 = vld [vmem:[#allocation8 + $0x3e0] sm:$0xff]
    %v4678 = vld [vmem:[#allocation8 + $0x3e8] sm:$0xff]
    %v4679 = vld [vmem:[#allocation8 + $0x3f0] sm:$0xff]
    %v4680 = vld [vmem:[#allocation8 + $0x3f8] sm:$0xff]
    %v4809 = vunpack.c.l.b16 %v4553
    %v4810 = vunpack.c.h.b16 %v4553
    %v4811 = vunpack.c.l.b16 %v4554
    %v4812 = vunpack.c.h.b16 %v4554
    %v4813 = vunpack.c.l.b16 %v4555
    %v4814 = vunpack.c.h.b16 %v4555
    %v4815 = vunpack.c.l.b16 %v4556
    %v4816 = vunpack.c.h.b16 %v4556
    %v4817 = vunpack.c.l.b16 %v4557
    %v4818 = vunpack.c.h.b16 %v4557
    %v4819 = vunpack.c.l.b16 %v4558
    %v4820 = vunpack.c.h.b16 %v4558
    %v4821 = vunpack.c.l.b16 %v4559
    %v4822 = vunpack.c.h.b16 %v4559
    %v4823 = vunpack.c.l.b16 %v4560
    %v4824 = vunpack.c.h.b16 %v4560
    %v4825 = vunpack.c.l.b16 %v4561
    %v4826 = vunpack.c.h.b16 %v4561
    %v4827 = vunpack.c.l.b16 %v4562
    %v4828 = vunpack.c.h.b16 %v4562
    %v4829 = vunpack.c.l.b16 %v4563
    %v4830 = vunpack.c.h.b16 %v4563
    %v4831 = vunpack.c.l.b16 %v4564
    %v4832 = vunpack.c.h.b16 %v4564
    %v4833 = vunpack.c.l.b16 %v4565
    %v4834 = vunpack.c.h.b16 %v4565
    %v4835 = vunpack.c.l.b16 %v4566
    %v4836 = vunpack.c.h.b16 %v4566
    %v4837 = vunpack.c.l.b16 %v4567
    %v4838 = vunpack.c.h.b16 %v4567
    %v4839 = vunpack.c.l.b16 %v4568
    %v4840 = vunpack.c.h.b16 %v4568
    %v4841 = vunpack.c.l.b16 %v4569
    %v4842 = vunpack.c.h.b16 %v4569
    %v4843 = vunpack.c.l.b16 %v4570
    %v4844 = vunpack.c.h.b16 %v4570
    %v4845 = vunpack.c.l.b16 %v4571
    %v4846 = vunpack.c.h.b16 %v4571
    %v4847 = vunpack.c.l.b16 %v4572
    %v4848 = vunpack.c.h.b16 %v4572
    %v4849 = vunpack.c.l.b16 %v4573
    %v4850 = vunpack.c.h.b16 %v4573
    %v4851 = vunpack.c.l.b16 %v4574
    %v4852 = vunpack.c.h.b16 %v4574
    %v4853 = vunpack.c.l.b16 %v4575
    %v4854 = vunpack.c.h.b16 %v4575
    %v4855 = vunpack.c.l.b16 %v4576
    %v4856 = vunpack.c.h.b16 %v4576
    %v4857 = vunpack.c.l.b16 %v4577
    %v4858 = vunpack.c.h.b16 %v4577
    %v4859 = vunpack.c.l.b16 %v4578
    %v4860 = vunpack.c.h.b16 %v4578
    %v4861 = vunpack.c.l.b16 %v4579
    %v4862 = vunpack.c.h.b16 %v4579
    %v4863 = vunpack.c.l.b16 %v4580
    %v4864 = vunpack.c.h.b16 %v4580
    %v4865 = vunpack.c.l.b16 %v4581
    %v4866 = vunpack.c.h.b16 %v4581
    %v4867 = vunpack.c.l.b16 %v4582
    %v4868 = vunpack.c.h.b16 %v4582
    %v4869 = vunpack.c.l.b16 %v4583
    %v4870 = vunpack.c.h.b16 %v4583
    %v4871 = vunpack.c.l.b16 %v4584
    %v4872 = vunpack.c.h.b16 %v4584
    %v4873 = vunpack.c.l.b16 %v4585
    %v4874 = vunpack.c.h.b16 %v4585
    %v4875 = vunpack.c.l.b16 %v4586
    %v4876 = vunpack.c.h.b16 %v4586
    %v4877 = vunpack.c.l.b16 %v4587
    %v4878 = vunpack.c.h.b16 %v4587
    %v4879 = vunpack.c.l.b16 %v4588
    %v4880 = vunpack.c.h.b16 %v4588
    %v4881 = vunpack.c.l.b16 %v4589
    %v4882 = vunpack.c.h.b16 %v4589
    %v4883 = vunpack.c.l.b16 %v4590
    %v4884 = vunpack.c.h.b16 %v4590
    %v4885 = vunpack.c.l.b16 %v4591
    %v4886 = vunpack.c.h.b16 %v4591
    %v4887 = vunpack.c.l.b16 %v4592
    %v4888 = vunpack.c.h.b16 %v4592
    %v4889 = vunpack.c.l.b16 %v4593
    %v4890 = vunpack.c.h.b16 %v4593
    %v4891 = vunpack.c.l.b16 %v4594
    %v4892 = vunpack.c.h.b16 %v4594
    %v4893 = vunpack.c.l.b16 %v4595
    %v4894 = vunpack.c.h.b16 %v4595
    %v4895 = vunpack.c.l.b16 %v4596
    %v4896 = vunpack.c.h.b16 %v4596
    %v4897 = vunpack.c.l.b16 %v4597
    %v4898 = vunpack.c.h.b16 %v4597
    %v4899 = vunpack.c.l.b16 %v4598
    %v4900 = vunpack.c.h.b16 %v4598
    %v4901 = vunpack.c.l.b16 %v4599
    %v4902 = vunpack.c.h.b16 %v4599
    %v4903 = vunpack.c.l.b16 %v4600
    %v4904 = vunpack.c.h.b16 %v4600
    %v4905 = vunpack.c.l.b16 %v4601
    %v4906 = vunpack.c.h.b16 %v4601
    %v4907 = vunpack.c.l.b16 %v4602
    %v4908 = vunpack.c.h.b16 %v4602
    %v4909 = vunpack.c.l.b16 %v4603
    %v4910 = vunpack.c.h.b16 %v4603
    %v4911 = vunpack.c.l.b16 %v4604
    %v4912 = vunpack.c.h.b16 %v4604
    %v4913 = vunpack.c.l.b16 %v4605
    %v4914 = vunpack.c.h.b16 %v4605
    %v4915 = vunpack.c.l.b16 %v4606
    %v4916 = vunpack.c.h.b16 %v4606
    %v4917 = vunpack.c.l.b16 %v4607
    %v4918 = vunpack.c.h.b16 %v4607
    %v4919 = vunpack.c.l.b16 %v4608
    %v4920 = vunpack.c.h.b16 %v4608
    %v4921 = vunpack.c.l.b16 %v4609
    %v4922 = vunpack.c.h.b16 %v4609
    %v4923 = vunpack.c.l.b16 %v4610
    %v4924 = vunpack.c.h.b16 %v4610
    %v4925 = vunpack.c.l.b16 %v4611
    %v4926 = vunpack.c.h.b16 %v4611
    %v4927 = vunpack.c.l.b16 %v4612
    %v4928 = vunpack.c.h.b16 %v4612
    %v4929 = vunpack.c.l.b16 %v4613
    %v4930 = vunpack.c.h.b16 %v4613
    %v4931 = vunpack.c.l.b16 %v4614
    %v4932 = vunpack.c.h.b16 %v4614
    %v4933 = vunpack.c.l.b16 %v4615
    %v4934 = vunpack.c.h.b16 %v4615
    %v4935 = vunpack.c.l.b16 %v4616
    %v4936 = vunpack.c.h.b16 %v4616
    %v4937 = vunpack.c.l.b16 %v4617
    %v4938 = vunpack.c.h.b16 %v4617
    %v4939 = vunpack.c.l.b16 %v4618
    %v4940 = vunpack.c.h.b16 %v4618
    %v4941 = vunpack.c.l.b16 %v4619
    %v4942 = vunpack.c.h.b16 %v4619
    %v4943 = vunpack.c.l.b16 %v4620
    %v4944 = vunpack.c.h.b16 %v4620
    %v4945 = vunpack.c.l.b16 %v4621
    %v4946 = vunpack.c.h.b16 %v4621
    %v4947 = vunpack.c.l.b16 %v4622
    %v4948 = vunpack.c.h.b16 %v4622
    %v4949 = vunpack.c.l.b16 %v4623
    %v4950 = vunpack.c.h.b16 %v4623
    %v4951 = vunpack.c.l.b16 %v4624
    %v4952 = vunpack.c.h.b16 %v4624
    %v4953 = vunpack.c.l.b16 %v4625
    %v4954 = vunpack.c.h.b16 %v4625
    %v4955 = vunpack.c.l.b16 %v4626
    %v4956 = vunpack.c.h.b16 %v4626
    %v4957 = vunpack.c.l.b16 %v4627
    %v4958 = vunpack.c.h.b16 %v4627
    %v4959 = vunpack.c.l.b16 %v4628
    %v4960 = vunpack.c.h.b16 %v4628
    %v4961 = vunpack.c.l.b16 %v4629
    %v4962 = vunpack.c.h.b16 %v4629
    %v4963 = vunpack.c.l.b16 %v4630
    %v4964 = vunpack.c.h.b16 %v4630
    %v4965 = vunpack.c.l.b16 %v4631
    %v4966 = vunpack.c.h.b16 %v4631
    %v4967 = vunpack.c.l.b16 %v4632
    %v4968 = vunpack.c.h.b16 %v4632
    %v4969 = vunpack.c.l.b16 %v4633
    %v4970 = vunpack.c.h.b16 %v4633
    %v4971 = vunpack.c.l.b16 %v4634
    %v4972 = vunpack.c.h.b16 %v4634
    %v4973 = vunpack.c.l.b16 %v4635
    %v4974 = vunpack.c.h.b16 %v4635
    %v4975 = vunpack.c.l.b16 %v4636
    %v4976 = vunpack.c.h.b16 %v4636
    %v4977 = vunpack.c.l.b16 %v4637
    %v4978 = vunpack.c.h.b16 %v4637
    %v4979 = vunpack.c.l.b16 %v4638
    %v4980 = vunpack.c.h.b16 %v4638
    %v4981 = vunpack.c.l.b16 %v4639
    %v4982 = vunpack.c.h.b16 %v4639
    %v4983 = vunpack.c.l.b16 %v4640
    %v4984 = vunpack.c.h.b16 %v4640
    %v4985 = vunpack.c.l.b16 %v4641
    %v4986 = vunpack.c.h.b16 %v4641
    %v4987 = vunpack.c.l.b16 %v4642
    %v4988 = vunpack.c.h.b16 %v4642
    %v4989 = vunpack.c.l.b16 %v4643
    %v4990 = vunpack.c.h.b16 %v4643
    %v4991 = vunpack.c.l.b16 %v4644
    %v4992 = vunpack.c.h.b16 %v4644
    %v4993 = vunpack.c.l.b16 %v4645
    %v4994 = vunpack.c.h.b16 %v4645
    %v4995 = vunpack.c.l.b16 %v4646
    %v4996 = vunpack.c.h.b16 %v4646
    %v4997 = vunpack.c.l.b16 %v4647
    %v4998 = vunpack.c.h.b16 %v4647
    %v4999 = vunpack.c.l.b16 %v4648
    %v5000 = vunpack.c.h.b16 %v4648
    %v5001 = vunpack.c.l.b16 %v4649
    %v5002 = vunpack.c.h.b16 %v4649
    %v5003 = vunpack.c.l.b16 %v4650
    %v5004 = vunpack.c.h.b16 %v4650
    %v5005 = vunpack.c.l.b16 %v4651
    %v5006 = vunpack.c.h.b16 %v4651
    %v5007 = vunpack.c.l.b16 %v4652
    %v5008 = vunpack.c.h.b16 %v4652
    %v5009 = vunpack.c.l.b16 %v4653
    %v5010 = vunpack.c.h.b16 %v4653
    %v5011 = vunpack.c.l.b16 %v4654
    %v5012 = vunpack.c.h.b16 %v4654
    %v5013 = vunpack.c.l.b16 %v4655
    %v5014 = vunpack.c.h.b16 %v4655
    %v5015 = vunpack.c.l.b16 %v4656
    %v5016 = vunpack.c.h.b16 %v4656
    %v5017 = vunpack.c.l.b16 %v4657
    %v5018 = vunpack.c.h.b16 %v4657
    %v5019 = vunpack.c.l.b16 %v4658
    %v5020 = vunpack.c.h.b16 %v4658
    %v5021 = vunpack.c.l.b16 %v4659
    %v5022 = vunpack.c.h.b16 %v4659
    %v5023 = vunpack.c.l.b16 %v4660
    %v5024 = vunpack.c.h.b16 %v4660
    %v5025 = vunpack.c.l.b16 %v4661
    %v5026 = vunpack.c.h.b16 %v4661
    %v5027 = vunpack.c.l.b16 %v4662
    %v5028 = vunpack.c.h.b16 %v4662
    %v5029 = vunpack.c.l.b16 %v4663
    %v5030 = vunpack.c.h.b16 %v4663
    %v5031 = vunpack.c.l.b16 %v4664
    %v5032 = vunpack.c.h.b16 %v4664
    %v5033 = vunpack.c.l.b16 %v4665
    %v5034 = vunpack.c.h.b16 %v4665
    %v5035 = vunpack.c.l.b16 %v4666
    %v5036 = vunpack.c.h.b16 %v4666
    %v5037 = vunpack.c.l.b16 %v4667
    %v5038 = vunpack.c.h.b16 %v4667
    %v5039 = vunpack.c.l.b16 %v4668
    %v5040 = vunpack.c.h.b16 %v4668
    %v5041 = vunpack.c.l.b16 %v4669
    %v5042 = vunpack.c.h.b16 %v4669
    %v5043 = vunpack.c.l.b16 %v4670
    %v5044 = vunpack.c.h.b16 %v4670
    %v5045 = vunpack.c.l.b16 %v4671
    %v5046 = vunpack.c.h.b16 %v4671
    %v5047 = vunpack.c.l.b16 %v4672
    %v5048 = vunpack.c.h.b16 %v4672
    %v5049 = vunpack.c.l.b16 %v4673
    %v5050 = vunpack.c.h.b16 %v4673
    %v5051 = vunpack.c.l.b16 %v4674
    %v5052 = vunpack.c.h.b16 %v4674
    %v5053 = vunpack.c.l.b16 %v4675
    %v5054 = vunpack.c.h.b16 %v4675
    %v5055 = vunpack.c.l.b16 %v4676
    %v5056 = vunpack.c.h.b16 %v4676
    %v5057 = vunpack.c.l.b16 %v4677
    %v5058 = vunpack.c.h.b16 %v4677
    %v5059 = vunpack.c.l.b16 %v4678
    %v5060 = vunpack.c.h.b16 %v4678
    %v5061 = vunpack.c.l.b16 %v4679
    %v5062 = vunpack.c.h.b16 %v4679
    %v5063 = vunpack.c.l.b16 %v4680
    %v5064 = vunpack.c.h.b16 %v4680
    %v5065 = vpack.c.b16 %v4817, %v4809
    %v5066 = vpack.c.b16 %v4818, %v4810
    %v5067 = vpack.c.b16 %v4819, %v4811
    %v5068 = vpack.c.b16 %v4820, %v4812
    %v5069 = vpack.c.b16 %v4821, %v4813
    %v5070 = vpack.c.b16 %v4822, %v4814
    %v5071 = vpack.c.b16 %v4823, %v4815
    %v5072 = vpack.c.b16 %v4824, %v4816
    %v5073 = vpack.c.b16 %v4833, %v4825
    %v5074 = vpack.c.b16 %v4834, %v4826
    %v5075 = vpack.c.b16 %v4835, %v4827
    %v5076 = vpack.c.b16 %v4836, %v4828
    %v5077 = vpack.c.b16 %v4837, %v4829
    %v5078 = vpack.c.b16 %v4838, %v4830
    %v5079 = vpack.c.b16 %v4839, %v4831
    %v5080 = vpack.c.b16 %v4840, %v4832
    %v5081 = vpack.c.b16 %v4849, %v4841
    %v5082 = vpack.c.b16 %v4850, %v4842
    %v5083 = vpack.c.b16 %v4851, %v4843
    %v5084 = vpack.c.b16 %v4852, %v4844
    %v5085 = vpack.c.b16 %v4853, %v4845
    %v5086 = vpack.c.b16 %v4854, %v4846
    %v5087 = vpack.c.b16 %v4855, %v4847
    %v5088 = vpack.c.b16 %v4856, %v4848
    %v5089 = vpack.c.b16 %v4865, %v4857
    %v5090 = vpack.c.b16 %v4866, %v4858
    %v5091 = vpack.c.b16 %v4867, %v4859
    %v5092 = vpack.c.b16 %v4868, %v4860
    %v5093 = vpack.c.b16 %v4869, %v4861
    %v5094 = vpack.c.b16 %v4870, %v4862
    %v5095 = vpack.c.b16 %v4871, %v4863
    %v5096 = vpack.c.b16 %v4872, %v4864
    %v5097 = vpack.c.b16 %v4881, %v4873
    %v5098 = vpack.c.b16 %v4882, %v4874
    %v5099 = vpack.c.b16 %v4883, %v4875
    %v5100 = vpack.c.b16 %v4884, %v4876
    %v5101 = vpack.c.b16 %v4885, %v4877
    %v5102 = vpack.c.b16 %v4886, %v4878
    %v5103 = vpack.c.b16 %v4887, %v4879
    %v5104 = vpack.c.b16 %v4888, %v4880
    %v5105 = vpack.c.b16 %v4897, %v4889
    %v5106 = vpack.c.b16 %v4898, %v4890
    %v5107 = vpack.c.b16 %v4899, %v4891
    %v5108 = vpack.c.b16 %v4900, %v4892
    %v5109 = vpack.c.b16 %v4901, %v4893
    %v5110 = vpack.c.b16 %v4902, %v4894
    %v5111 = vpack.c.b16 %v4903, %v4895
    %v5112 = vpack.c.b16 %v4904, %v4896
    %v5113 = vpack.c.b16 %v4913, %v4905
    %v5114 = vpack.c.b16 %v4914, %v4906
    %v5115 = vpack.c.b16 %v4915, %v4907
    %v5116 = vpack.c.b16 %v4916, %v4908
    %v5117 = vpack.c.b16 %v4917, %v4909
    %v5118 = vpack.c.b16 %v4918, %v4910
    %v5119 = vpack.c.b16 %v4919, %v4911
    %v5120 = vpack.c.b16 %v4920, %v4912
    %v5121 = vpack.c.b16 %v4929, %v4921
    %v5122 = vpack.c.b16 %v4930, %v4922
    %v5123 = vpack.c.b16 %v4931, %v4923
    %v5124 = vpack.c.b16 %v4932, %v4924
    %v5125 = vpack.c.b16 %v4933, %v4925
    %v5126 = vpack.c.b16 %v4934, %v4926
    %v5127 = vpack.c.b16 %v4935, %v4927
    %v5128 = vpack.c.b16 %v4936, %v4928
    %v5129 = vpack.c.b16 %v4945, %v4937
    %v5130 = vpack.c.b16 %v4946, %v4938
    %v5131 = vpack.c.b16 %v4947, %v4939
    %v5132 = vpack.c.b16 %v4948, %v4940
    %v5133 = vpack.c.b16 %v4949, %v4941
    %v5134 = vpack.c.b16 %v4950, %v4942
    %v5135 = vpack.c.b16 %v4951, %v4943
    %v5136 = vpack.c.b16 %v4952, %v4944
    %v5137 = vpack.c.b16 %v4961, %v4953
    %v5138 = vpack.c.b16 %v4962, %v4954
    %v5139 = vpack.c.b16 %v4963, %v4955
    %v5140 = vpack.c.b16 %v4964, %v4956
    %v5141 = vpack.c.b16 %v4965, %v4957
    %v5142 = vpack.c.b16 %v4966, %v4958
    %v5143 = vpack.c.b16 %v4967, %v4959
    %v5144 = vpack.c.b16 %v4968, %v4960
    %v5145 = vpack.c.b16 %v4977, %v4969
    %v5146 = vpack.c.b16 %v4978, %v4970
    %v5147 = vpack.c.b16 %v4979, %v4971
    %v5148 = vpack.c.b16 %v4980, %v4972
    %v5149 = vpack.c.b16 %v4981, %v4973
    %v5150 = vpack.c.b16 %v4982, %v4974
    %v5151 = vpack.c.b16 %v4983, %v4975
    %v5152 = vpack.c.b16 %v4984, %v4976
    %v5153 = vpack.c.b16 %v4993, %v4985
    %v5154 = vpack.c.b16 %v4994, %v4986
    %v5155 = vpack.c.b16 %v4995, %v4987
    %v5156 = vpack.c.b16 %v4996, %v4988
    %v5157 = vpack.c.b16 %v4997, %v4989
    %v5158 = vpack.c.b16 %v4998, %v4990
    %v5159 = vpack.c.b16 %v4999, %v4991
    %v5160 = vpack.c.b16 %v5000, %v4992
    %v5161 = vpack.c.b16 %v5009, %v5001
    %v5162 = vpack.c.b16 %v5010, %v5002
    %v5163 = vpack.c.b16 %v5011, %v5003
    %v5164 = vpack.c.b16 %v5012, %v5004
    %v5165 = vpack.c.b16 %v5013, %v5005
    %v5166 = vpack.c.b16 %v5014, %v5006
    %v5167 = vpack.c.b16 %v5015, %v5007
    %v5168 = vpack.c.b16 %v5016, %v5008
    %v5169 = vpack.c.b16 %v5025, %v5017
    %v5170 = vpack.c.b16 %v5026, %v5018
    %v5171 = vpack.c.b16 %v5027, %v5019
    %v5172 = vpack.c.b16 %v5028, %v5020
    %v5173 = vpack.c.b16 %v5029, %v5021
    %v5174 = vpack.c.b16 %v5030, %v5022
    %v5175 = vpack.c.b16 %v5031, %v5023
    %v5176 = vpack.c.b16 %v5032, %v5024
    %v5177 = vpack.c.b16 %v5041, %v5033
    %v5178 = vpack.c.b16 %v5042, %v5034
    %v5179 = vpack.c.b16 %v5043, %v5035
    %v5180 = vpack.c.b16 %v5044, %v5036
    %v5181 = vpack.c.b16 %v5045, %v5037
    %v5182 = vpack.c.b16 %v5046, %v5038
    %v5183 = vpack.c.b16 %v5047, %v5039
    %v5184 = vpack.c.b16 %v5048, %v5040
    %v5185 = vpack.c.b16 %v5057, %v5049
    %v5186 = vpack.c.b16 %v5058, %v5050
    %v5187 = vpack.c.b16 %v5059, %v5051
    %v5188 = vpack.c.b16 %v5060, %v5052
    %v5189 = vpack.c.b16 %v5061, %v5053
    %v5190 = vpack.c.b16 %v5062, %v5054
    %v5191 = vpack.c.b16 %v5063, %v5055
    %v5192 = vpack.c.b16 %v5064, %v5056
    %5321 = vmatprep.subr.bf16.mxu0 %v5066
    %5322 = vmatpush1.bf16.msra.mxu0 %v5065
    %5323 = vmatprep.subr.bf16.mxu0 %v5074
    %5324 = vmatpush1.bf16.msra.mxu0 %v5073
    %5325 = vmatprep.subr.bf16.mxu0 %v5082
    %5326 = vmatpush1.bf16.msra.mxu0 %v5081
    %5327 = vmatprep.subr.bf16.mxu0 %v5090
    %5328 = vmatpush1.bf16.msra.mxu0 %v5089
    %5329 = vmatprep.subr.bf16.mxu0 %v5098
    %5330 = vmatpush1.bf16.msra.mxu0 %v5097
    %5331 = vmatprep.subr.bf16.mxu0 %v5106
    %5332 = vmatpush1.bf16.msra.mxu0 %v5105
    %5333 = vmatprep.subr.bf16.mxu0 %v5114
    %5334 = vmatpush1.bf16.msra.mxu0 %v5113
    %5335 = vmatprep.subr.bf16.mxu0 %v5122
    %5336 = vmatpush1.bf16.msra.mxu0 %v5121
    %5337 = vmatprep.subr.bf16.mxu0 %v5130
    %5338 = vmatpush1.bf16.msra.mxu0 %v5129
    %5339 = vmatprep.subr.bf16.mxu0 %v5138
    %5340 = vmatpush1.bf16.msra.mxu0 %v5137
    %5341 = vmatprep.subr.bf16.mxu0 %v5146
    %5342 = vmatpush1.bf16.msra.mxu0 %v5145
    %5343 = vmatprep.subr.bf16.mxu0 %v5154
    %5344 = vmatpush1.bf16.msra.mxu0 %v5153
    %5345 = vmatprep.subr.bf16.mxu0 %v5162
    %5346 = vmatpush1.bf16.msra.mxu0 %v5161
    %5347 = vmatprep.subr.bf16.mxu0 %v5170
    %5348 = vmatpush1.bf16.msra.mxu0 %v5169
    %5349 = vmatprep.subr.bf16.mxu0 %v5178
    %5350 = vmatpush1.bf16.msra.mxu0 %v5177
    %5351 = vmatprep.subr.bf16.mxu0 %v5186
    %5352 = vmatpush1.bf16.msra.mxu0 %v5185
    %5353 = vmatprep.mubr.bf16.mxu0 %v4552
    %5354 = vmatmul.mubr.bf16.gmra.mrb[0].mxu0 %v4551
    %v5355 = vpop.f32.mrb[0].mxu0
    %v5356 = vadd.f32 0.0, %v5355
    %v5357 = vpop.f32.mrb[0].mxu0
    %v5358 = vadd.f32 0.0, %v5357
    %v5359 = vpop.f32.mrb[0].mxu0
    %v5360 = vpop.f32.mrb[0].mxu0
    %5361 = vdwg.mxu0
    %5362 = vmatprep.subr.bf16.mxu0 %v5068
    %5363 = vmatpush1.bf16.msra.mxu0 %v5067
    %5364 = vmatprep.subr.bf16.mxu0 %v5076
    %5365 = vmatpush1.bf16.msra.mxu0 %v5075
    %5366 = vmatprep.subr.bf16.mxu0 %v5084
    %5367 = vmatpush1.bf16.msra.mxu0 %v5083
    %5368 = vmatprep.subr.bf16.mxu0 %v5092
    %5369 = vmatpush1.bf16.msra.mxu0 %v5091
    %5370 = vmatprep.subr.bf16.mxu0 %v5100
    %5371 = vmatpush1.bf16.msra.mxu0 %v5099
    %5372 = vmatprep.subr.bf16.mxu0 %v5108
    %5373 = vmatpush1.bf16.msra.mxu0 %v5107
    %5374 = vmatprep.subr.bf16.mxu0 %v5116
    %5375 = vmatpush1.bf16.msra.mxu0 %v5115
    %5376 = vmatprep.subr.bf16.mxu0 %v5124
    %5377 = vmatpush1.bf16.msra.mxu0 %v5123
    %5378 = vmatprep.subr.bf16.mxu0 %v5132
    %5379 = vmatpush1.bf16.msra.mxu0 %v5131
    %5380 = vmatprep.subr.bf16.mxu0 %v5140
    %5381 = vmatpush1.bf16.msra.mxu0 %v5139
    %5382 = vmatprep.subr.bf16.mxu0 %v5148
    %5383 = vmatpush1.bf16.msra.mxu0 %v5147
    %5384 = vmatprep.subr.bf16.mxu0 %v5156
    %5385 = vmatpush1.bf16.msra.mxu0 %v5155
    %5386 = vmatprep.subr.bf16.mxu0 %v5164
    %5387 = vmatpush1.bf16.msra.mxu0 %v5163
    %5388 = vmatprep.subr.bf16.mxu0 %v5172
    %5389 = vmatpush1.bf16.msra.mxu0 %v5171
    %5390 = vmatprep.subr.bf16.mxu0 %v5180
    %5391 = vmatpush1.bf16.msra.mxu0 %v5179
    %5392 = vmatprep.subr.bf16.mxu0 %v5188
    %5393 = vmatpush1.bf16.msra.mxu0 %v5187
    %5394 = vmatprep.mubr.bf16.mxu0 %v4552
    %5395 = vmatmul.mubr.bf16.gmra.mrb[0].mxu0 %v4551
    %v5396 = vpop.f32.mrb[0].mxu0
    %v5397 = vadd.f32 0.0, %v5396
    %v5398 = vpop.f32.mrb[0].mxu0
    %v5399 = vadd.f32 0.0, %v5398
    %v5400 = vpop.f32.mrb[0].mxu0
    %v5401 = vpop.f32.mrb[0].mxu0
    %5402 = vdwg.mxu0
    %5403 = vmatprep.subr.bf16.mxu0 %v5070
    %5404 = vmatpush1.bf16.msra.mxu0 %v5069
    %5405 = vmatprep.subr.bf16.mxu0 %v5078
    %5406 = vmatpush1.bf16.msra.mxu0 %v5077
    %5407 = vmatprep.subr.bf16.mxu0 %v5086
    %5408 = vmatpush1.bf16.msra.mxu0 %v5085
    %5409 = vmatprep.subr.bf16.mxu0 %v5094
    %5410 = vmatpush1.bf16.msra.mxu0 %v5093
    %5411 = vmatprep.subr.bf16.mxu0 %v5102
    %5412 = vmatpush1.bf16.msra.mxu0 %v5101
    %5413 = vmatprep.subr.bf16.mxu0 %v5110
    %5414 = vmatpush1.bf16.msra.mxu0 %v5109
    %5415 = vmatprep.subr.bf16.mxu0 %v5118
    %5416 = vmatpush1.bf16.msra.mxu0 %v5117
    %5417 = vmatprep.subr.bf16.mxu0 %v5126
    %5418 = vmatpush1.bf16.msra.mxu0 %v5125
    %5419 = vmatprep.subr.bf16.mxu0 %v5134
    %5420 = vmatpush1.bf16.msra.mxu0 %v5133
    %5421 = vmatprep.subr.bf16.mxu0 %v5142
    %5422 = vmatpush1.bf16.msra.mxu0 %v5141
    %5423 = vmatprep.subr.bf16.mxu0 %v5150
    %5424 = vmatpush1.bf16.msra.mxu0 %v5149
    %5425 = vmatprep.subr.bf16.mxu0 %v5158
    %5426 = vmatpush1.bf16.msra.mxu0 %v5157
    %5427 = vmatprep.subr.bf16.mxu0 %v5166
    %5428 = vmatpush1.bf16.msra.mxu0 %v5165
    %5429 = vmatprep.subr.bf16.mxu0 %v5174
    %5430 = vmatpush1.bf16.msra.mxu0 %v5173
    %5431 = vmatprep.subr.bf16.mxu0 %v5182
    %5432 = vmatpush1.bf16.msra.mxu0 %v5181
    %5433 = vmatprep.subr.bf16.mxu0 %v5190
    %5434 = vmatpush1.bf16.msra.mxu0 %v5189
    %5435 = vmatprep.mubr.bf16.mxu0 %v4552
    %5436 = vmatmul.mubr.bf16.gmra.mrb[0].mxu0 %v4551
    %v5437 = vpop.f32.mrb[0].mxu0
    %v5438 = vadd.f32 0.0, %v5437
    %v5439 = vpop.f32.mrb[0].mxu0
    %v5440 = vadd.f32 0.0, %v5439
    %v5441 = vpop.f32.mrb[0].mxu0
    %v5442 = vpop.f32.mrb[0].mxu0
    %5443 = vdwg.mxu0
    %5444 = vmatprep.subr.bf16.mxu0 %v5072
    %5445 = vmatpush1.bf16.msra.mxu0 %v5071
    %5446 = vmatprep.subr.bf16.mxu0 %v5080
    %5447 = vmatpush1.bf16.msra.mxu0 %v5079
    %5448 = vmatprep.subr.bf16.mxu0 %v5088
    %5449 = vmatpush1.bf16.msra.mxu0 %v5087
    %5450 = vmatprep.subr.bf16.mxu0 %v5096
    %5451 = vmatpush1.bf16.msra.mxu0 %v5095
    %5452 = vmatprep.subr.bf16.mxu0 %v5104
    %5453 = vmatpush1.bf16.msra.mxu0 %v5103
    %5454 = vmatprep.subr.bf16.mxu0 %v5112
    %5455 = vmatpush1.bf16.msra.mxu0 %v5111
    %5456 = vmatprep.subr.bf16.mxu0 %v5120
    %5457 = vmatpush1.bf16.msra.mxu0 %v5119
    %5458 = vmatprep.subr.bf16.mxu0 %v5128
    %5459 = vmatpush1.bf16.msra.mxu0 %v5127
    %5460 = vmatprep.subr.bf16.mxu0 %v5136
    %5461 = vmatpush1.bf16.msra.mxu0 %v5135
    %5462 = vmatprep.subr.bf16.mxu0 %v5144
    %5463 = vmatpush1.bf16.msra.mxu0 %v5143
    %5464 = vmatprep.subr.bf16.mxu0 %v5152
    %5465 = vmatpush1.bf16.msra.mxu0 %v5151
    %5466 = vmatprep.subr.bf16.mxu0 %v5160
    %5467 = vmatpush1.bf16.msra.mxu0 %v5159
    %5468 = vmatprep.subr.bf16.mxu0 %v5168
    %5469 = vmatpush1.bf16.msra.mxu0 %v5167
    %5470 = vmatprep.subr.bf16.mxu0 %v5176
    %5471 = vmatpush1.bf16.msra.mxu0 %v5175
    %5472 = vmatprep.subr.bf16.mxu0 %v5184
    %5473 = vmatpush1.bf16.msra.mxu0 %v5183
    %5474 = vmatprep.subr.bf16.mxu0 %v5192
    %5475 = vmatpush1.bf16.msra.mxu0 %v5191
    %5476 = vmatprep.mubr.bf16.mxu0 %v4552
    %5477 = vmatmul.mubr.bf16.gmra.mrb[0].mxu0 %v4551
    %v5478 = vpop.f32.mrb[0].mxu0
    %v5479 = vadd.f32 0.0, %v5478
    %v5480 = vpop.f32.mrb[0].mxu0
    %v5481 = vadd.f32 0.0, %v5480
    %v5482 = vpop.f32.mrb[0].mxu0
    %v5483 = vpop.f32.mrb[0].mxu0
    %5484 = vdwg.mxu0
    %v5485 = vld [vmem:[#allocation2 + $0x80] sm:$0xff]
    %v5486 = vld [vmem:[#allocation2 + $0x88] sm:$0xff]
    %v5487 = vld [vmem:[#allocation2 + $0x90] sm:$0xff]
    %v5488 = vld [vmem:[#allocation2 + $0x98] sm:$0xff]
    %v5489 = vadd.f32 %v5356, %v5485
    %v5490 = vadd.f32 %v5358, %v5486
    %v5491 = vadd.f32 %v5397, %v5487
    %v5492 = vadd.f32 %v5399, %v5488
    %v5493 = vld [vmem:[#allocation3 + $0x60] sm:$0xff]
    %v5494 = vld [vmem:[#allocation3 + $0x68] sm:$0xff]
    %v5495 = vld [vmem:[#allocation3 + $0x70] sm:$0xff]
    %v5496 = vld [vmem:[#allocation3 + $0x78] sm:$0xff]
    %v5497 = vadd.f32 %v5438, %v5493
    %v5498 = vadd.f32 %v5440, %v5494
    %v5499 = vadd.f32 %v5479, %v5495
    %v5500 = vadd.f32 %v5481, %v5496
    %v5501 = vxor.u32 %v5489, 2147483648
    %v5502 = vmul.f32 %v5501, 1.442695
    %v5503 = vpow.pop %v5502
    %v5504 = vadd.f32 %v5503, 1.0
    %v5505 = vrcp.pop %v5504
    %v5506 = vmul.f32 1.0, %v5505
    %v5507 = vxor.u32 %v5490, 2147483648
    %v5508 = vmul.f32 %v5507, 1.442695
    %v5509 = vpow.pop %v5508
    %v5510 = vadd.f32 %v5509, 1.0
    %v5511 = vrcp.pop %v5510
    %v5512 = vmul.f32 1.0, %v5511
    %v5513 = vtanh.pop %v5491
    %v5514 = vxor.u32 %v5492, 2147483648
    %v5515 = vmul.f32 %v5514, 1.442695
    %v5516 = vpow.pop %v5515
    %v5517 = vadd.f32 %v5516, 1.0
    %v5518 = vrcp.pop %v5517
    %v5519 = vmul.f32 1.0, %v5518
    %v5520 = vmul.f32 %v5512, %v4522
    %v5521 = vmul.f32 %v5506, %v5513
    %v5522 = vadd.f32 %v5520, %v5521
    %v5523 = vtanh.pop %v5522
    %v5524 = vmul.f32 %v5519, %v5523
    %v5525 = vxor.u32 %v5497, 2147483648
    %v5526 = vmul.f32 %v5525, 1.442695
    %v5527 = vpow.pop %v5526
    %v5528 = vadd.f32 %v5527, 1.0
    %v5529 = vrcp.pop %v5528
    %v5530 = vmul.f32 1.0, %v5529
    %v5531 = vxor.u32 %v5498, 2147483648
    %v5532 = vmul.f32 %v5531, 1.442695
    %v5533 = vpow.pop %v5532
    %v5534 = vadd.f32 %v5533, 1.0
    %v5535 = vrcp.pop %v5534
    %v5536 = vmul.f32 1.0, %v5535
    %v5537 = vtanh.pop %v5499
    %v5538 = vxor.u32 %v5500, 2147483648
    %v5539 = vmul.f32 %v5538, 1.442695
    %v5540 = vpow.pop %v5539
    %v5541 = vadd.f32 %v5540, 1.0
    %v5542 = vrcp.pop %v5541
    %v5543 = vmul.f32 1.0, %v5542
    %v5544 = vmul.f32 %v5536, %v4546
    %v5545 = vmul.f32 %v5530, %v5537
    %v5546 = vadd.f32 %v5544, %v5545
    %v5547 = vtanh.pop %v5546
    %v5548 = vmul.f32 %v5543, %v5547
    %5549 = vst [vmem:[#allocation4 + $0x40] sm:$0xff] %v5524
    %5550 = vst [vmem:[#allocation4 + $0x48] sm:$0xff] %v5548
    %v5551 = vpack.c.bf16 %v5524, %v5524
    %v5552 = vpack.c.bf16 %v5548, %v5548
    %v5553 = vld [vmem:[#allocation8] sm:$0xff]
    %v5554 = vld [vmem:[#allocation8 + $0x8] sm:$0xff]
    %v5555 = vld [vmem:[#allocation8 + $0x10] sm:$0xff]
    %v5556 = vld [vmem:[#allocation8 + $0x18] sm:$0xff]
    %v5557 = vld [vmem:[#allocation8 + $0x20] sm:$0xff]
    %v5558 = vld [vmem:[#allocation8 + $0x28] sm:$0xff]
    %v5559 = vld [vmem:[#allocation8 + $0x30] sm:$0xff]
    %v5560 = vld [vmem:[#allocation8 + $0x38] sm:$0xff]
    %v5561 = vld [vmem:[#allocation8 + $0x40] sm:$0xff]
    %v5562 = vld [vmem:[#allocation8 + $0x48] sm:$0xff]
    %v5563 = vld [vmem:[#allocation8 + $0x50] sm:$0xff]
    %v5564 = vld [vmem:[#allocation8 + $0x58] sm:$0xff]
    %v5565 = vld [vmem:[#allocation8 + $0x60] sm:$0xff]
    %v5566 = vld [vmem:[#allocation8 + $0x68] sm:$0xff]
    %v5567 = vld [vmem:[#allocation8 + $0x70] sm:$0xff]
    %v5568 = vld [vmem:[#allocation8 + $0x78] sm:$0xff]
    %v5569 = vld [vmem:[#allocation8 + $0x80] sm:$0xff]
    %v5570 = vld [vmem:[#allocation8 + $0x88] sm:$0xff]
    %v5571 = vld [vmem:[#allocation8 + $0x90] sm:$0xff]
    %v5572 = vld [vmem:[#allocation8 + $0x98] sm:$0xff]
    %v5573 = vld [vmem:[#allocation8 + $0xa0] sm:$0xff]
    %v5574 = vld [vmem:[#allocation8 + $0xa8] sm:$0xff]
    %v5575 = vld [vmem:[#allocation8 + $0xb0] sm:$0xff]
    %v5576 = vld [vmem:[#allocation8 + $0xb8] sm:$0xff]
    %v5577 = vld [vmem:[#allocation8 + $0xc0] sm:$0xff]
    %v5578 = vld [vmem:[#allocation8 + $0xc8] sm:$0xff]
    %v5579 = vld [vmem:[#allocation8 + $0xd0] sm:$0xff]
    %v5580 = vld [vmem:[#allocation8 + $0xd8] sm:$0xff]
    %v5581 = vld [vmem:[#allocation8 + $0xe0] sm:$0xff]
    %v5582 = vld [vmem:[#allocation8 + $0xe8] sm:$0xff]
    %v5583 = vld [vmem:[#allocation8 + $0xf0] sm:$0xff]
    %v5584 = vld [vmem:[#allocation8 + $0xf8] sm:$0xff]
    %v5585 = vld [vmem:[#allocation8 + $0x100] sm:$0xff]
    %v5586 = vld [vmem:[#allocation8 + $0x108] sm:$0xff]
    %v5587 = vld [vmem:[#allocation8 + $0x110] sm:$0xff]
    %v5588 = vld [vmem:[#allocation8 + $0x118] sm:$0xff]
    %v5589 = vld [vmem:[#allocation8 + $0x120] sm:$0xff]
    %v5590 = vld [vmem:[#allocation8 + $0x128] sm:$0xff]
    %v5591 = vld [vmem:[#allocation8 + $0x130] sm:$0xff]
    %v5592 = vld [vmem:[#allocation8 + $0x138] sm:$0xff]
    %v5593 = vld [vmem:[#allocation8 + $0x140] sm:$0xff]
    %v5594 = vld [vmem:[#allocation8 + $0x148] sm:$0xff]
    %v5595 = vld [vmem:[#allocation8 + $0x150] sm:$0xff]
    %v5596 = vld [vmem:[#allocation8 + $0x158] sm:$0xff]
    %v5597 = vld [vmem:[#allocation8 + $0x160] sm:$0xff]
    %v5598 = vld [vmem:[#allocation8 + $0x168] sm:$0xff]
    %v5599 = vld [vmem:[#allocation8 + $0x170] sm:$0xff]
    %v5600 = vld [vmem:[#allocation8 + $0x178] sm:$0xff]
    %v5601 = vld [vmem:[#allocation8 + $0x180] sm:$0xff]
    %v5602 = vld [vmem:[#allocation8 + $0x188] sm:$0xff]
    %v5603 = vld [vmem:[#allocation8 + $0x190] sm:$0xff]
    %v5604 = vld [vmem:[#allocation8 + $0x198] sm:$0xff]
    %v5605 = vld [vmem:[#allocation8 + $0x1a0] sm:$0xff]
    %v5606 = vld [vmem:[#allocation8 + $0x1a8] sm:$0xff]
    %v5607 = vld [vmem:[#allocation8 + $0x1b0] sm:$0xff]
    %v5608 = vld [vmem:[#allocation8 + $0x1b8] sm:$0xff]
    %v5609 = vld [vmem:[#allocation8 + $0x1c0] sm:$0xff]
    %v5610 = vld [vmem:[#allocation8 + $0x1c8] sm:$0xff]
    %v5611 = vld [vmem:[#allocation8 + $0x1d0] sm:$0xff]
    %v5612 = vld [vmem:[#allocation8 + $0x1d8] sm:$0xff]
    %v5613 = vld [vmem:[#allocation8 + $0x1e0] sm:$0xff]
    %v5614 = vld [vmem:[#allocation8 + $0x1e8] sm:$0xff]
    %v5615 = vld [vmem:[#allocation8 + $0x1f0] sm:$0xff]
    %v5616 = vld [vmem:[#allocation8 + $0x1f8] sm:$0xff]
    %v5617 = vld [vmem:[#allocation8 + $0x200] sm:$0xff]
    %v5618 = vld [vmem:[#allocation8 + $0x208] sm:$0xff]
    %v5619 = vld [vmem:[#allocation8 + $0x210] sm:$0xff]
    %v5620 = vld [vmem:[#allocation8 + $0x218] sm:$0xff]
    %v5621 = vld [vmem:[#allocation8 + $0x220] sm:$0xff]
    %v5622 = vld [vmem:[#allocation8 + $0x228] sm:$0xff]
    %v5623 = vld [vmem:[#allocation8 + $0x230] sm:$0xff]
    %v5624 = vld [vmem:[#allocation8 + $0x238] sm:$0xff]
    %v5625 = vld [vmem:[#allocation8 + $0x240] sm:$0xff]
    %v5626 = vld [vmem:[#allocation8 + $0x248] sm:$0xff]
    %v5627 = vld [vmem:[#allocation8 + $0x250] sm:$0xff]
    %v5628 = vld [vmem:[#allocation8 + $0x258] sm:$0xff]
    %v5629 = vld [vmem:[#allocation8 + $0x260] sm:$0xff]
    %v5630 = vld [vmem:[#allocation8 + $0x268] sm:$0xff]
    %v5631 = vld [vmem:[#allocation8 + $0x270] sm:$0xff]
    %v5632 = vld [vmem:[#allocation8 + $0x278] sm:$0xff]
    %v5633 = vld [vmem:[#allocation8 + $0x280] sm:$0xff]
    %v5634 = vld [vmem:[#allocation8 + $0x288] sm:$0xff]
    %v5635 = vld [vmem:[#allocation8 + $0x290] sm:$0xff]
    %v5636 = vld [vmem:[#allocation8 + $0x298] sm:$0xff]
    %v5637 = vld [vmem:[#allocation8 + $0x2a0] sm:$0xff]
    %v5638 = vld [vmem:[#allocation8 + $0x2a8] sm:$0xff]
    %v5639 = vld [vmem:[#allocation8 + $0x2b0] sm:$0xff]
    %v5640 = vld [vmem:[#allocation8 + $0x2b8] sm:$0xff]
    %v5641 = vld [vmem:[#allocation8 + $0x2c0] sm:$0xff]
    %v5642 = vld [vmem:[#allocation8 + $0x2c8] sm:$0xff]
    %v5643 = vld [vmem:[#allocation8 + $0x2d0] sm:$0xff]
    %v5644 = vld [vmem:[#allocation8 + $0x2d8] sm:$0xff]
    %v5645 = vld [vmem:[#allocation8 + $0x2e0] sm:$0xff]
    %v5646 = vld [vmem:[#allocation8 + $0x2e8] sm:$0xff]
    %v5647 = vld [vmem:[#allocation8 + $0x2f0] sm:$0xff]
    %v5648 = vld [vmem:[#allocation8 + $0x2f8] sm:$0xff]
    %v5649 = vld [vmem:[#allocation8 + $0x300] sm:$0xff]
    %v5650 = vld [vmem:[#allocation8 + $0x308] sm:$0xff]
    %v5651 = vld [vmem:[#allocation8 + $0x310] sm:$0xff]
    %v5652 = vld [vmem:[#allocation8 + $0x318] sm:$0xff]
    %v5653 = vld [vmem:[#allocation8 + $0x320] sm:$0xff]
    %v5654 = vld [vmem:[#allocation8 + $0x328] sm:$0xff]
    %v5655 = vld [vmem:[#allocation8 + $0x330] sm:$0xff]
    %v5656 = vld [vmem:[#allocation8 + $0x338] sm:$0xff]
    %v5657 = vld [vmem:[#allocation8 + $0x340] sm:$0xff]
    %v5658 = vld [vmem:[#allocation8 + $0x348] sm:$0xff]
    %v5659 = vld [vmem:[#allocation8 + $0x350] sm:$0xff]
    %v5660 = vld [vmem:[#allocation8 + $0x358] sm:$0xff]
    %v5661 = vld [vmem:[#allocation8 + $0x360] sm:$0xff]
    %v5662 = vld [vmem:[#allocation8 + $0x368] sm:$0xff]
    %v5663 = vld [vmem:[#allocation8 + $0x370] sm:$0xff]
    %v5664 = vld [vmem:[#allocation8 + $0x378] sm:$0xff]
    %v5665 = vld [vmem:[#allocation8 + $0x380] sm:$0xff]
    %v5666 = vld [vmem:[#allocation8 + $0x388] sm:$0xff]
    %v5667 = vld [vmem:[#allocation8 + $0x390] sm:$0xff]
    %v5668 = vld [vmem:[#allocation8 + $0x398] sm:$0xff]
    %v5669 = vld [vmem:[#allocation8 + $0x3a0] sm:$0xff]
    %v5670 = vld [vmem:[#allocation8 + $0x3a8] sm:$0xff]
    %v5671 = vld [vmem:[#allocation8 + $0x3b0] sm:$0xff]
    %v5672 = vld [vmem:[#allocation8 + $0x3b8] sm:$0xff]
    %v5673 = vld [vmem:[#allocation8 + $0x3c0] sm:$0xff]
    %v5674 = vld [vmem:[#allocation8 + $0x3c8] sm:$0xff]
    %v5675 = vld [vmem:[#allocation8 + $0x3d0] sm:$0xff]
    %v5676 = vld [vmem:[#allocation8 + $0x3d8] sm:$0xff]
    %v5677 = vld [vmem:[#allocation8 + $0x3e0] sm:$0xff]
    %v5678 = vld [vmem:[#allocation8 + $0x3e8] sm:$0xff]
    %v5679 = vld [vmem:[#allocation8 + $0x3f0] sm:$0xff]
    %v5680 = vld [vmem:[#allocation8 + $0x3f8] sm:$0xff]
    %v5809 = vunpack.c.l.b16 %v5553
    %v5810 = vunpack.c.h.b16 %v5553
    %v5811 = vunpack.c.l.b16 %v5554
    %v5812 = vunpack.c.h.b16 %v5554
    %v5813 = vunpack.c.l.b16 %v5555
    %v5814 = vunpack.c.h.b16 %v5555
    %v5815 = vunpack.c.l.b16 %v5556
    %v5816 = vunpack.c.h.b16 %v5556
    %v5817 = vunpack.c.l.b16 %v5557
    %v5818 = vunpack.c.h.b16 %v5557
    %v5819 = vunpack.c.l.b16 %v5558
    %v5820 = vunpack.c.h.b16 %v5558
    %v5821 = vunpack.c.l.b16 %v5559
    %v5822 = vunpack.c.h.b16 %v5559
    %v5823 = vunpack.c.l.b16 %v5560
    %v5824 = vunpack.c.h.b16 %v5560
    %v5825 = vunpack.c.l.b16 %v5561
    %v5826 = vunpack.c.h.b16 %v5561
    %v5827 = vunpack.c.l.b16 %v5562
    %v5828 = vunpack.c.h.b16 %v5562
    %v5829 = vunpack.c.l.b16 %v5563
    %v5830 = vunpack.c.h.b16 %v5563
    %v5831 = vunpack.c.l.b16 %v5564
    %v5832 = vunpack.c.h.b16 %v5564
    %v5833 = vunpack.c.l.b16 %v5565
    %v5834 = vunpack.c.h.b16 %v5565
    %v5835 = vunpack.c.l.b16 %v5566
    %v5836 = vunpack.c.h.b16 %v5566
    %v5837 = vunpack.c.l.b16 %v5567
    %v5838 = vunpack.c.h.b16 %v5567
    %v5839 = vunpack.c.l.b16 %v5568
    %v5840 = vunpack.c.h.b16 %v5568
    %v5841 = vunpack.c.l.b16 %v5569
    %v5842 = vunpack.c.h.b16 %v5569
    %v5843 = vunpack.c.l.b16 %v5570
    %v5844 = vunpack.c.h.b16 %v5570
    %v5845 = vunpack.c.l.b16 %v5571
    %v5846 = vunpack.c.h.b16 %v5571
    %v5847 = vunpack.c.l.b16 %v5572
    %v5848 = vunpack.c.h.b16 %v5572
    %v5849 = vunpack.c.l.b16 %v5573
    %v5850 = vunpack.c.h.b16 %v5573
    %v5851 = vunpack.c.l.b16 %v5574
    %v5852 = vunpack.c.h.b16 %v5574
    %v5853 = vunpack.c.l.b16 %v5575
    %v5854 = vunpack.c.h.b16 %v5575
    %v5855 = vunpack.c.l.b16 %v5576
    %v5856 = vunpack.c.h.b16 %v5576
    %v5857 = vunpack.c.l.b16 %v5577
    %v5858 = vunpack.c.h.b16 %v5577
    %v5859 = vunpack.c.l.b16 %v5578
    %v5860 = vunpack.c.h.b16 %v5578
    %v5861 = vunpack.c.l.b16 %v5579
    %v5862 = vunpack.c.h.b16 %v5579
    %v5863 = vunpack.c.l.b16 %v5580
    %v5864 = vunpack.c.h.b16 %v5580
    %v5865 = vunpack.c.l.b16 %v5581
    %v5866 = vunpack.c.h.b16 %v5581
    %v5867 = vunpack.c.l.b16 %v5582
    %v5868 = vunpack.c.h.b16 %v5582
    %v5869 = vunpack.c.l.b16 %v5583
    %v5870 = vunpack.c.h.b16 %v5583
    %v5871 = vunpack.c.l.b16 %v5584
    %v5872 = vunpack.c.h.b16 %v5584
    %v5873 = vunpack.c.l.b16 %v5585
    %v5874 = vunpack.c.h.b16 %v5585
    %v5875 = vunpack.c.l.b16 %v5586
    %v5876 = vunpack.c.h.b16 %v5586
    %v5877 = vunpack.c.l.b16 %v5587
    %v5878 = vunpack.c.h.b16 %v5587
    %v5879 = vunpack.c.l.b16 %v5588
    %v5880 = vunpack.c.h.b16 %v5588
    %v5881 = vunpack.c.l.b16 %v5589
    %v5882 = vunpack.c.h.b16 %v5589
    %v5883 = vunpack.c.l.b16 %v5590
    %v5884 = vunpack.c.h.b16 %v5590
    %v5885 = vunpack.c.l.b16 %v5591
    %v5886 = vunpack.c.h.b16 %v5591
    %v5887 = vunpack.c.l.b16 %v5592
    %v5888 = vunpack.c.h.b16 %v5592
    %v5889 = vunpack.c.l.b16 %v5593
    %v5890 = vunpack.c.h.b16 %v5593
    %v5891 = vunpack.c.l.b16 %v5594
    %v5892 = vunpack.c.h.b16 %v5594
    %v5893 = vunpack.c.l.b16 %v5595
    %v5894 = vunpack.c.h.b16 %v5595
    %v5895 = vunpack.c.l.b16 %v5596
    %v5896 = vunpack.c.h.b16 %v5596
    %v5897 = vunpack.c.l.b16 %v5597
    %v5898 = vunpack.c.h.b16 %v5597
    %v5899 = vunpack.c.l.b16 %v5598
    %v5900 = vunpack.c.h.b16 %v5598
    %v5901 = vunpack.c.l.b16 %v5599
    %v5902 = vunpack.c.h.b16 %v5599
    %v5903 = vunpack.c.l.b16 %v5600
    %v5904 = vunpack.c.h.b16 %v5600
    %v5905 = vunpack.c.l.b16 %v5601
    %v5906 = vunpack.c.h.b16 %v5601
    %v5907 = vunpack.c.l.b16 %v5602
    %v5908 = vunpack.c.h.b16 %v5602
    %v5909 = vunpack.c.l.b16 %v5603
    %v5910 = vunpack.c.h.b16 %v5603
    %v5911 = vunpack.c.l.b16 %v5604
    %v5912 = vunpack.c.h.b16 %v5604
    %v5913 = vunpack.c.l.b16 %v5605
    %v5914 = vunpack.c.h.b16 %v5605
    %v5915 = vunpack.c.l.b16 %v5606
    %v5916 = vunpack.c.h.b16 %v5606
    %v5917 = vunpack.c.l.b16 %v5607
    %v5918 = vunpack.c.h.b16 %v5607
    %v5919 = vunpack.c.l.b16 %v5608
    %v5920 = vunpack.c.h.b16 %v5608
    %v5921 = vunpack.c.l.b16 %v5609
    %v5922 = vunpack.c.h.b16 %v5609
    %v5923 = vunpack.c.l.b16 %v5610
    %v5924 = vunpack.c.h.b16 %v5610
    %v5925 = vunpack.c.l.b16 %v5611
    %v5926 = vunpack.c.h.b16 %v5611
    %v5927 = vunpack.c.l.b16 %v5612
    %v5928 = vunpack.c.h.b16 %v5612
    %v5929 = vunpack.c.l.b16 %v5613
    %v5930 = vunpack.c.h.b16 %v5613
    %v5931 = vunpack.c.l.b16 %v5614
    %v5932 = vunpack.c.h.b16 %v5614
    %v5933 = vunpack.c.l.b16 %v5615
    %v5934 = vunpack.c.h.b16 %v5615
    %v5935 = vunpack.c.l.b16 %v5616
    %v5936 = vunpack.c.h.b16 %v5616
    %v5937 = vunpack.c.l.b16 %v5617
    %v5938 = vunpack.c.h.b16 %v5617
    %v5939 = vunpack.c.l.b16 %v5618
    %v5940 = vunpack.c.h.b16 %v5618
    %v5941 = vunpack.c.l.b16 %v5619
    %v5942 = vunpack.c.h.b16 %v5619
    %v5943 = vunpack.c.l.b16 %v5620
    %v5944 = vunpack.c.h.b16 %v5620
    %v5945 = vunpack.c.l.b16 %v5621
    %v5946 = vunpack.c.h.b16 %v5621
    %v5947 = vunpack.c.l.b16 %v5622
    %v5948 = vunpack.c.h.b16 %v5622
    %v5949 = vunpack.c.l.b16 %v5623
    %v5950 = vunpack.c.h.b16 %v5623
    %v5951 = vunpack.c.l.b16 %v5624
    %v5952 = vunpack.c.h.b16 %v5624
    %v5953 = vunpack.c.l.b16 %v5625
    %v5954 = vunpack.c.h.b16 %v5625
    %v5955 = vunpack.c.l.b16 %v5626
    %v5956 = vunpack.c.h.b16 %v5626
    %v5957 = vunpack.c.l.b16 %v5627
    %v5958 = vunpack.c.h.b16 %v5627
    %v5959 = vunpack.c.l.b16 %v5628
    %v5960 = vunpack.c.h.b16 %v5628
    %v5961 = vunpack.c.l.b16 %v5629
    %v5962 = vunpack.c.h.b16 %v5629
    %v5963 = vunpack.c.l.b16 %v5630
    %v5964 = vunpack.c.h.b16 %v5630
    %v5965 = vunpack.c.l.b16 %v5631
    %v5966 = vunpack.c.h.b16 %v5631
    %v5967 = vunpack.c.l.b16 %v5632
    %v5968 = vunpack.c.h.b16 %v5632
    %v5969 = vunpack.c.l.b16 %v5633
    %v5970 = vunpack.c.h.b16 %v5633
    %v5971 = vunpack.c.l.b16 %v5634
    %v5972 = vunpack.c.h.b16 %v5634
    %v5973 = vunpack.c.l.b16 %v5635
    %v5974 = vunpack.c.h.b16 %v5635
    %v5975 = vunpack.c.l.b16 %v5636
    %v5976 = vunpack.c.h.b16 %v5636
    %v5977 = vunpack.c.l.b16 %v5637
    %v5978 = vunpack.c.h.b16 %v5637
    %v5979 = vunpack.c.l.b16 %v5638
    %v5980 = vunpack.c.h.b16 %v5638
    %v5981 = vunpack.c.l.b16 %v5639
    %v5982 = vunpack.c.h.b16 %v5639
    %v5983 = vunpack.c.l.b16 %v5640
    %v5984 = vunpack.c.h.b16 %v5640
    %v5985 = vunpack.c.l.b16 %v5641
    %v5986 = vunpack.c.h.b16 %v5641
    %v5987 = vunpack.c.l.b16 %v5642
    %v5988 = vunpack.c.h.b16 %v5642
    %v5989 = vunpack.c.l.b16 %v5643
    %v5990 = vunpack.c.h.b16 %v5643
    %v5991 = vunpack.c.l.b16 %v5644
    %v5992 = vunpack.c.h.b16 %v5644
    %v5993 = vunpack.c.l.b16 %v5645
    %v5994 = vunpack.c.h.b16 %v5645
    %v5995 = vunpack.c.l.b16 %v5646
    %v5996 = vunpack.c.h.b16 %v5646
    %v5997 = vunpack.c.l.b16 %v5647
    %v5998 = vunpack.c.h.b16 %v5647
    %v5999 = vunpack.c.l.b16 %v5648
    %v6000 = vunpack.c.h.b16 %v5648
    %v6001 = vunpack.c.l.b16 %v5649
    %v6002 = vunpack.c.h.b16 %v5649
    %v6003 = vunpack.c.l.b16 %v5650
    %v6004 = vunpack.c.h.b16 %v5650
    %v6005 = vunpack.c.l.b16 %v5651
    %v6006 = vunpack.c.h.b16 %v5651
    %v6007 = vunpack.c.l.b16 %v5652
    %v6008 = vunpack.c.h.b16 %v5652
    %v6009 = vunpack.c.l.b16 %v5653
    %v6010 = vunpack.c.h.b16 %v5653
    %v6011 = vunpack.c.l.b16 %v5654
    %v6012 = vunpack.c.h.b16 %v5654
    %v6013 = vunpack.c.l.b16 %v5655
    %v6014 = vunpack.c.h.b16 %v5655
    %v6015 = vunpack.c.l.b16 %v5656
    %v6016 = vunpack.c.h.b16 %v5656
    %v6017 = vunpack.c.l.b16 %v5657
    %v6018 = vunpack.c.h.b16 %v5657
    %v6019 = vunpack.c.l.b16 %v5658
    %v6020 = vunpack.c.h.b16 %v5658
    %v6021 = vunpack.c.l.b16 %v5659
    %v6022 = vunpack.c.h.b16 %v5659
    %v6023 = vunpack.c.l.b16 %v5660
    %v6024 = vunpack.c.h.b16 %v5660
    %v6025 = vunpack.c.l.b16 %v5661
    %v6026 = vunpack.c.h.b16 %v5661
    %v6027 = vunpack.c.l.b16 %v5662
    %v6028 = vunpack.c.h.b16 %v5662
    %v6029 = vunpack.c.l.b16 %v5663
    %v6030 = vunpack.c.h.b16 %v5663
    %v6031 = vunpack.c.l.b16 %v5664
    %v6032 = vunpack.c.h.b16 %v5664
    %v6033 = vunpack.c.l.b16 %v5665
    %v6034 = vunpack.c.h.b16 %v5665
    %v6035 = vunpack.c.l.b16 %v5666
    %v6036 = vunpack.c.h.b16 %v5666
    %v6037 = vunpack.c.l.b16 %v5667
    %v6038 = vunpack.c.h.b16 %v5667
    %v6039 = vunpack.c.l.b16 %v5668
    %v6040 = vunpack.c.h.b16 %v5668
    %v6041 = vunpack.c.l.b16 %v5669
    %v6042 = vunpack.c.h.b16 %v5669
    %v6043 = vunpack.c.l.b16 %v5670
    %v6044 = vunpack.c.h.b16 %v5670
    %v6045 = vunpack.c.l.b16 %v5671
    %v6046 = vunpack.c.h.b16 %v5671
    %v6047 = vunpack.c.l.b16 %v5672
    %v6048 = vunpack.c.h.b16 %v5672
    %v6049 = vunpack.c.l.b16 %v5673
    %v6050 = vunpack.c.h.b16 %v5673
    %v6051 = vunpack.c.l.b16 %v5674
    %v6052 = vunpack.c.h.b16 %v5674
    %v6053 = vunpack.c.l.b16 %v5675
    %v6054 = vunpack.c.h.b16 %v5675
    %v6055 = vunpack.c.l.b16 %v5676
    %v6056 = vunpack.c.h.b16 %v5676
    %v6057 = vunpack.c.l.b16 %v5677
    %v6058 = vunpack.c.h.b16 %v5677
    %v6059 = vunpack.c.l.b16 %v5678
    %v6060 = vunpack.c.h.b16 %v5678
    %v6061 = vunpack.c.l.b16 %v5679
    %v6062 = vunpack.c.h.b16 %v5679
    %v6063 = vunpack.c.l.b16 %v5680
    %v6064 = vunpack.c.h.b16 %v5680
    %v6065 = vpack.c.b16 %v5817, %v5809
    %v6066 = vpack.c.b16 %v5818, %v5810
    %v6067 = vpack.c.b16 %v5819, %v5811
    %v6068 = vpack.c.b16 %v5820, %v5812
    %v6069 = vpack.c.b16 %v5821, %v5813
    %v6070 = vpack.c.b16 %v5822, %v5814
    %v6071 = vpack.c.b16 %v5823, %v5815
    %v6072 = vpack.c.b16 %v5824, %v5816
    %v6073 = vpack.c.b16 %v5833, %v5825
    %v6074 = vpack.c.b16 %v5834, %v5826
    %v6075 = vpack.c.b16 %v5835, %v5827
    %v6076 = vpack.c.b16 %v5836, %v5828
    %v6077 = vpack.c.b16 %v5837, %v5829
    %v6078 = vpack.c.b16 %v5838, %v5830
    %v6079 = vpack.c.b16 %v5839, %v5831
    %v6080 = vpack.c.b16 %v5840, %v5832
    %v6081 = vpack.c.b16 %v5849, %v5841
    %v6082 = vpack.c.b16 %v5850, %v5842
    %v6083 = vpack.c.b16 %v5851, %v5843
    %v6084 = vpack.c.b16 %v5852, %v5844
    %v6085 = vpack.c.b16 %v5853, %v5845
    %v6086 = vpack.c.b16 %v5854, %v5846
    %v6087 = vpack.c.b16 %v5855, %v5847
    %v6088 = vpack.c.b16 %v5856, %v5848
    %v6089 = vpack.c.b16 %v5865, %v5857
    %v6090 = vpack.c.b16 %v5866, %v5858
    %v6091 = vpack.c.b16 %v5867, %v5859
    %v6092 = vpack.c.b16 %v5868, %v5860
    %v6093 = vpack.c.b16 %v5869, %v5861
    %v6094 = vpack.c.b16 %v5870, %v5862
    %v6095 = vpack.c.b16 %v5871, %v5863
    %v6096 = vpack.c.b16 %v5872, %v5864
    %v6097 = vpack.c.b16 %v5881, %v5873
    %v6098 = vpack.c.b16 %v5882, %v5874
    %v6099 = vpack.c.b16 %v5883, %v5875
    %v6100 = vpack.c.b16 %v5884, %v5876
    %v6101 = vpack.c.b16 %v5885, %v5877
    %v6102 = vpack.c.b16 %v5886, %v5878
    %v6103 = vpack.c.b16 %v5887, %v5879
    %v6104 = vpack.c.b16 %v5888, %v5880
    %v6105 = vpack.c.b16 %v5897, %v5889
    %v6106 = vpack.c.b16 %v5898, %v5890
    %v6107 = vpack.c.b16 %v5899, %v5891
    %v6108 = vpack.c.b16 %v5900, %v5892
    %v6109 = vpack.c.b16 %v5901, %v5893
    %v6110 = vpack.c.b16 %v5902, %v5894
    %v6111 = vpack.c.b16 %v5903, %v5895
    %v6112 = vpack.c.b16 %v5904, %v5896
    %v6113 = vpack.c.b16 %v5913, %v5905
    %v6114 = vpack.c.b16 %v5914, %v5906
    %v6115 = vpack.c.b16 %v5915, %v5907
    %v6116 = vpack.c.b16 %v5916, %v5908
    %v6117 = vpack.c.b16 %v5917, %v5909
    %v6118 = vpack.c.b16 %v5918, %v5910
    %v6119 = vpack.c.b16 %v5919, %v5911
    %v6120 = vpack.c.b16 %v5920, %v5912
    %v6121 = vpack.c.b16 %v5929, %v5921
    %v6122 = vpack.c.b16 %v5930, %v5922
    %v6123 = vpack.c.b16 %v5931, %v5923
    %v6124 = vpack.c.b16 %v5932, %v5924
    %v6125 = vpack.c.b16 %v5933, %v5925
    %v6126 = vpack.c.b16 %v5934, %v5926
    %v6127 = vpack.c.b16 %v5935, %v5927
    %v6128 = vpack.c.b16 %v5936, %v5928
    %v6129 = vpack.c.b16 %v5945, %v5937
    %v6130 = vpack.c.b16 %v5946, %v5938
    %v6131 = vpack.c.b16 %v5947, %v5939
    %v6132 = vpack.c.b16 %v5948, %v5940
    %v6133 = vpack.c.b16 %v5949, %v5941
    %v6134 = vpack.c.b16 %v5950, %v5942
    %v6135 = vpack.c.b16 %v5951, %v5943
    %v6136 = vpack.c.b16 %v5952, %v5944
    %v6137 = vpack.c.b16 %v5961, %v5953
    %v6138 = vpack.c.b16 %v5962, %v5954
    %v6139 = vpack.c.b16 %v5963, %v5955
    %v6140 = vpack.c.b16 %v5964, %v5956
    %v6141 = vpack.c.b16 %v5965, %v5957
    %v6142 = vpack.c.b16 %v5966, %v5958
    %v6143 = vpack.c.b16 %v5967, %v5959
    %v6144 = vpack.c.b16 %v5968, %v5960
    %v6145 = vpack.c.b16 %v5977, %v5969
    %v6146 = vpack.c.b16 %v5978, %v5970
    %v6147 = vpack.c.b16 %v5979, %v5971
    %v6148 = vpack.c.b16 %v5980, %v5972
    %v6149 = vpack.c.b16 %v5981, %v5973
    %v6150 = vpack.c.b16 %v5982, %v5974
    %v6151 = vpack.c.b16 %v5983, %v5975
    %v6152 = vpack.c.b16 %v5984, %v5976
    %v6153 = vpack.c.b16 %v5993, %v5985
    %v6154 = vpack.c.b16 %v5994, %v5986
    %v6155 = vpack.c.b16 %v5995, %v5987
    %v6156 = vpack.c.b16 %v5996, %v5988
    %v6157 = vpack.c.b16 %v5997, %v5989
    %v6158 = vpack.c.b16 %v5998, %v5990
    %v6159 = vpack.c.b16 %v5999, %v5991
    %v6160 = vpack.c.b16 %v6000, %v5992
    %v6161 = vpack.c.b16 %v6009, %v6001
    %v6162 = vpack.c.b16 %v6010, %v6002
    %v6163 = vpack.c.b16 %v6011, %v6003
    %v6164 = vpack.c.b16 %v6012, %v6004
    %v6165 = vpack.c.b16 %v6013, %v6005
    %v6166 = vpack.c.b16 %v6014, %v6006
    %v6167 = vpack.c.b16 %v6015, %v6007
    %v6168 = vpack.c.b16 %v6016, %v6008
    %v6169 = vpack.c.b16 %v6025, %v6017
    %v6170 = vpack.c.b16 %v6026, %v6018
    %v6171 = vpack.c.b16 %v6027, %v6019
    %v6172 = vpack.c.b16 %v6028, %v6020
    %v6173 = vpack.c.b16 %v6029, %v6021
    %v6174 = vpack.c.b16 %v6030, %v6022
    %v6175 = vpack.c.b16 %v6031, %v6023
    %v6176 = vpack.c.b16 %v6032, %v6024
    %v6177 = vpack.c.b16 %v6041, %v6033
    %v6178 = vpack.c.b16 %v6042, %v6034
    %v6179 = vpack.c.b16 %v6043, %v6035
    %v6180 = vpack.c.b16 %v6044, %v6036
    %v6181 = vpack.c.b16 %v6045, %v6037
    %v6182 = vpack.c.b16 %v6046, %v6038
    %v6183 = vpack.c.b16 %v6047, %v6039
    %v6184 = vpack.c.b16 %v6048, %v6040
    %v6185 = vpack.c.b16 %v6057, %v6049
    %v6186 = vpack.c.b16 %v6058, %v6050
    %v6187 = vpack.c.b16 %v6059, %v6051
    %v6188 = vpack.c.b16 %v6060, %v6052
    %v6189 = vpack.c.b16 %v6061, %v6053
    %v6190 = vpack.c.b16 %v6062, %v6054
    %v6191 = vpack.c.b16 %v6063, %v6055
    %v6192 = vpack.c.b16 %v6064, %v6056
    %6321 = vmatprep.subr.bf16.mxu0 %v6066
    %6322 = vmatpush1.bf16.msra.mxu0 %v6065
    %6323 = vmatprep.subr.bf16.mxu0 %v6074
    %6324 = vmatpush1.bf16.msra.mxu0 %v6073
    %6325 = vmatprep.subr.bf16.mxu0 %v6082
    %6326 = vmatpush1.bf16.msra.mxu0 %v6081
    %6327 = vmatprep.subr.bf16.mxu0 %v6090
    %6328 = vmatpush1.bf16.msra.mxu0 %v6089
    %6329 = vmatprep.subr.bf16.mxu0 %v6098
    %6330 = vmatpush1.bf16.msra.mxu0 %v6097
    %6331 = vmatprep.subr.bf16.mxu0 %v6106
    %6332 = vmatpush1.bf16.msra.mxu0 %v6105
    %6333 = vmatprep.subr.bf16.mxu0 %v6114
    %6334 = vmatpush1.bf16.msra.mxu0 %v6113
    %6335 = vmatprep.subr.bf16.mxu0 %v6122
    %6336 = vmatpush1.bf16.msra.mxu0 %v6121
    %6337 = vmatprep.subr.bf16.mxu0 %v6130
    %6338 = vmatpush1.bf16.msra.mxu0 %v6129
    %6339 = vmatprep.subr.bf16.mxu0 %v6138
    %6340 = vmatpush1.bf16.msra.mxu0 %v6137
    %6341 = vmatprep.subr.bf16.mxu0 %v6146
    %6342 = vmatpush1.bf16.msra.mxu0 %v6145
    %6343 = vmatprep.subr.bf16.mxu0 %v6154
    %6344 = vmatpush1.bf16.msra.mxu0 %v6153
    %6345 = vmatprep.subr.bf16.mxu0 %v6162
    %6346 = vmatpush1.bf16.msra.mxu0 %v6161
    %6347 = vmatprep.subr.bf16.mxu0 %v6170
    %6348 = vmatpush1.bf16.msra.mxu0 %v6169
    %6349 = vmatprep.subr.bf16.mxu0 %v6178
    %6350 = vmatpush1.bf16.msra.mxu0 %v6177
    %6351 = vmatprep.subr.bf16.mxu0 %v6186
    %6352 = vmatpush1.bf16.msra.mxu0 %v6185
    %6353 = vmatprep.mubr.bf16.mxu0 %v5552
    %6354 = vmatmul.mubr.bf16.gmra.mrb[0].mxu0 %v5551
    %v6355 = vpop.f32.mrb[0].mxu0
    %v6356 = vadd.f32 0.0, %v6355
    %v6357 = vpop.f32.mrb[0].mxu0
    %v6358 = vadd.f32 0.0, %v6357
    %v6359 = vpop.f32.mrb[0].mxu0
    %v6360 = vpop.f32.mrb[0].mxu0
    %6361 = vdwg.mxu0
    %6362 = vmatprep.subr.bf16.mxu0 %v6068
    %6363 = vmatpush1.bf16.msra.mxu0 %v6067
    %6364 = vmatprep.subr.bf16.mxu0 %v6076
    %6365 = vmatpush1.bf16.msra.mxu0 %v6075
    %6366 = vmatprep.subr.bf16.mxu0 %v6084
    %6367 = vmatpush1.bf16.msra.mxu0 %v6083
    %6368 = vmatprep.subr.bf16.mxu0 %v6092
    %6369 = vmatpush1.bf16.msra.mxu0 %v6091
    %6370 = vmatprep.subr.bf16.mxu0 %v6100
    %6371 = vmatpush1.bf16.msra.mxu0 %v6099
    %6372 = vmatprep.subr.bf16.mxu0 %v6108
    %6373 = vmatpush1.bf16.msra.mxu0 %v6107
    %6374 = vmatprep.subr.bf16.mxu0 %v6116
    %6375 = vmatpush1.bf16.msra.mxu0 %v6115
    %6376 = vmatprep.subr.bf16.mxu0 %v6124
    %6377 = vmatpush1.bf16.msra.mxu0 %v6123
    %6378 = vmatprep.subr.bf16.mxu0 %v6132
    %6379 = vmatpush1.bf16.msra.mxu0 %v6131
    %6380 = vmatprep.subr.bf16.mxu0 %v6140
    %6381 = vmatpush1.bf16.msra.mxu0 %v6139
    %6382 = vmatprep.subr.bf16.mxu0 %v6148
    %6383 = vmatpush1.bf16.msra.mxu0 %v6147
    %6384 = vmatprep.subr.bf16.mxu0 %v6156
    %6385 = vmatpush1.bf16.msra.mxu0 %v6155
    %6386 = vmatprep.subr.bf16.mxu0 %v6164
    %6387 = vmatpush1.bf16.msra.mxu0 %v6163
    %6388 = vmatprep.subr.bf16.mxu0 %v6172
    %6389 = vmatpush1.bf16.msra.mxu0 %v6171
    %6390 = vmatprep.subr.bf16.mxu0 %v6180
    %6391 = vmatpush1.bf16.msra.mxu0 %v6179
    %6392 = vmatprep.subr.bf16.mxu0 %v6188
    %6393 = vmatpush1.bf16.msra.mxu0 %v6187
    %6394 = vmatprep.mubr.bf16.mxu0 %v5552
    %6395 = vmatmul.mubr.bf16.gmra.mrb[0].mxu0 %v5551
    %v6396 = vpop.f32.mrb[0].mxu0
    %v6397 = vadd.f32 0.0, %v6396
    %v6398 = vpop.f32.mrb[0].mxu0
    %v6399 = vadd.f32 0.0, %v6398
    %v6400 = vpop.f32.mrb[0].mxu0
    %v6401 = vpop.f32.mrb[0].mxu0
    %6402 = vdwg.mxu0
    %6403 = vmatprep.subr.bf16.mxu0 %v6070
    %6404 = vmatpush1.bf16.msra.mxu0 %v6069
    %6405 = vmatprep.subr.bf16.mxu0 %v6078
    %6406 = vmatpush1.bf16.msra.mxu0 %v6077
    %6407 = vmatprep.subr.bf16.mxu0 %v6086
    %6408 = vmatpush1.bf16.msra.mxu0 %v6085
    %6409 = vmatprep.subr.bf16.mxu0 %v6094
    %6410 = vmatpush1.bf16.msra.mxu0 %v6093
    %6411 = vmatprep.subr.bf16.mxu0 %v6102
    %6412 = vmatpush1.bf16.msra.mxu0 %v6101
    %6413 = vmatprep.subr.bf16.mxu0 %v6110
    %6414 = vmatpush1.bf16.msra.mxu0 %v6109
    %6415 = vmatprep.subr.bf16.mxu0 %v6118
    %6416 = vmatpush1.bf16.msra.mxu0 %v6117
    %6417 = vmatprep.subr.bf16.mxu0 %v6126
    %6418 = vmatpush1.bf16.msra.mxu0 %v6125
    %6419 = vmatprep.subr.bf16.mxu0 %v6134
    %6420 = vmatpush1.bf16.msra.mxu0 %v6133
    %6421 = vmatprep.subr.bf16.mxu0 %v6142
    %6422 = vmatpush1.bf16.msra.mxu0 %v6141
    %6423 = vmatprep.subr.bf16.mxu0 %v6150
    %6424 = vmatpush1.bf16.msra.mxu0 %v6149
    %6425 = vmatprep.subr.bf16.mxu0 %v6158
    %6426 = vmatpush1.bf16.msra.mxu0 %v6157
    %6427 = vmatprep.subr.bf16.mxu0 %v6166
    %6428 = vmatpush1.bf16.msra.mxu0 %v6165
    %6429 = vmatprep.subr.bf16.mxu0 %v6174
    %6430 = vmatpush1.bf16.msra.mxu0 %v6173
    %6431 = vmatprep.subr.bf16.mxu0 %v6182
    %6432 = vmatpush1.bf16.msra.mxu0 %v6181
    %6433 = vmatprep.subr.bf16.mxu0 %v6190
    %6434 = vmatpush1.bf16.msra.mxu0 %v6189
    %6435 = vmatprep.mubr.bf16.mxu0 %v5552
    %6436 = vmatmul.mubr.bf16.gmra.mrb[0].mxu0 %v5551
    %v6437 = vpop.f32.mrb[0].mxu0
    %v6438 = vadd.f32 0.0, %v6437
    %v6439 = vpop.f32.mrb[0].mxu0
    %v6440 = vadd.f32 0.0, %v6439
    %v6441 = vpop.f32.mrb[0].mxu0
    %v6442 = vpop.f32.mrb[0].mxu0
    %6443 = vdwg.mxu0
    %6444 = vmatprep.subr.bf16.mxu0 %v6072
    %6445 = vmatpush1.bf16.msra.mxu0 %v6071
    %6446 = vmatprep.subr.bf16.mxu0 %v6080
    %6447 = vmatpush1.bf16.msra.mxu0 %v6079
    %6448 = vmatprep.subr.bf16.mxu0 %v6088
    %6449 = vmatpush1.bf16.msra.mxu0 %v6087
    %6450 = vmatprep.subr.bf16.mxu0 %v6096
    %6451 = vmatpush1.bf16.msra.mxu0 %v6095
    %6452 = vmatprep.subr.bf16.mxu0 %v6104
    %6453 = vmatpush1.bf16.msra.mxu0 %v6103
    %6454 = vmatprep.subr.bf16.mxu0 %v6112
    %6455 = vmatpush1.bf16.msra.mxu0 %v6111
    %6456 = vmatprep.subr.bf16.mxu0 %v6120
    %6457 = vmatpush1.bf16.msra.mxu0 %v6119
    %6458 = vmatprep.subr.bf16.mxu0 %v6128
    %6459 = vmatpush1.bf16.msra.mxu0 %v6127
    %6460 = vmatprep.subr.bf16.mxu0 %v6136
    %6461 = vmatpush1.bf16.msra.mxu0 %v6135
    %6462 = vmatprep.subr.bf16.mxu0 %v6144
    %6463 = vmatpush1.bf16.msra.mxu0 %v6143
    %6464 = vmatprep.subr.bf16.mxu0 %v6152
    %6465 = vmatpush1.bf16.msra.mxu0 %v6151
    %6466 = vmatprep.subr.bf16.mxu0 %v6160
    %6467 = vmatpush1.bf16.msra.mxu0 %v6159
    %6468 = vmatprep.subr.bf16.mxu0 %v6168
    %6469 = vmatpush1.bf16.msra.mxu0 %v6167
    %6470 = vmatprep.subr.bf16.mxu0 %v6176
    %6471 = vmatpush1.bf16.msra.mxu0 %v6175
    %6472 = vmatprep.subr.bf16.mxu0 %v6184
    %6473 = vmatpush1.bf16.msra.mxu0 %v6183
    %6474 = vmatprep.subr.bf16.mxu0 %v6192
    %6475 = vmatpush1.bf16.msra.mxu0 %v6191
    %6476 = vmatprep.mubr.bf16.mxu0 %v5552
    %6477 = vmatmul.mubr.bf16.gmra.mrb[0].mxu0 %v5551
    %v6478 = vpop.f32.mrb[0].mxu0
    %v6479 = vadd.f32 0.0, %v6478
    %v6480 = vpop.f32.mrb[0].mxu0
    %v6481 = vadd.f32 0.0, %v6480
    %v6482 = vpop.f32.mrb[0].mxu0
    %v6483 = vpop.f32.mrb[0].mxu0
    %6484 = vdwg.mxu0
    %v6485 = vld [vmem:[#allocation2 + $0xa0] sm:$0xff]
    %v6486 = vld [vmem:[#allocation2 + $0xa8] sm:$0xff]
    %v6487 = vld [vmem:[#allocation2 + $0xb0] sm:$0xff]
    %v6488 = vld [vmem:[#allocation2 + $0xb8] sm:$0xff]
    %v6489 = vadd.f32 %v6356, %v6485
    %v6490 = vadd.f32 %v6358, %v6486
    %v6491 = vadd.f32 %v6397, %v6487
    %v6492 = vadd.f32 %v6399, %v6488
    %v6493 = vld [vmem:[#allocation3 + $0x40] sm:$0xff]
    %v6494 = vld [vmem:[#allocation3 + $0x48] sm:$0xff]
    %v6495 = vld [vmem:[#allocation3 + $0x50] sm:$0xff]
    %v6496 = vld [vmem:[#allocation3 + $0x58] sm:$0xff]
    %v6497 = vadd.f32 %v6438, %v6493
    %v6498 = vadd.f32 %v6440, %v6494
    %v6499 = vadd.f32 %v6479, %v6495
    %v6500 = vadd.f32 %v6481, %v6496
    %v6501 = vxor.u32 %v6489, 2147483648
    %v6502 = vmul.f32 %v6501, 1.442695
    %v6503 = vpow.pop %v6502
    %v6504 = vadd.f32 %v6503, 1.0
    %v6505 = vrcp.pop %v6504
    %v6506 = vmul.f32 1.0, %v6505
    %v6507 = vxor.u32 %v6490, 2147483648
    %v6508 = vmul.f32 %v6507, 1.442695
    %v6509 = vpow.pop %v6508
    %v6510 = vadd.f32 %v6509, 1.0
    %v6511 = vrcp.pop %v6510
    %v6512 = vmul.f32 1.0, %v6511
    %v6513 = vtanh.pop %v6491
    %v6514 = vxor.u32 %v6492, 2147483648
    %v6515 = vmul.f32 %v6514, 1.442695
    %v6516 = vpow.pop %v6515
    %v6517 = vadd.f32 %v6516, 1.0
    %v6518 = vrcp.pop %v6517
    %v6519 = vmul.f32 1.0, %v6518
    %v6520 = vmul.f32 %v6512, %v5522
    %v6521 = vmul.f32 %v6506, %v6513
    %v6522 = vadd.f32 %v6520, %v6521
    %v6523 = vtanh.pop %v6522
    %v6524 = vmul.f32 %v6519, %v6523
    %v6525 = vxor.u32 %v6497, 2147483648
    %v6526 = vmul.f32 %v6525, 1.442695
    %v6527 = vpow.pop %v6526
    %v6528 = vadd.f32 %v6527, 1.0
    %v6529 = vrcp.pop %v6528
    %v6530 = vmul.f32 1.0, %v6529
    %v6531 = vxor.u32 %v6498, 2147483648
    %v6532 = vmul.f32 %v6531, 1.442695
    %v6533 = vpow.pop %v6532
    %v6534 = vadd.f32 %v6533, 1.0
    %v6535 = vrcp.pop %v6534
    %v6536 = vmul.f32 1.0, %v6535
    %v6537 = vtanh.pop %v6499
    %v6538 = vxor.u32 %v6500, 2147483648
    %v6539 = vmul.f32 %v6538, 1.442695
    %v6540 = vpow.pop %v6539
    %v6541 = vadd.f32 %v6540, 1.0
    %v6542 = vrcp.pop %v6541
    %v6543 = vmul.f32 1.0, %v6542
    %v6544 = vmul.f32 %v6536, %v5546
    %v6545 = vmul.f32 %v6530, %v6537
    %v6546 = vadd.f32 %v6544, %v6545
    %v6547 = vtanh.pop %v6546
    %v6548 = vmul.f32 %v6543, %v6547
    %6549 = vst [vmem:[#allocation4 + $0x50] sm:$0xff] %v6524
    %6550 = vst [vmem:[#allocation4 + $0x58] sm:$0xff] %v6548
    %v6551 = vpack.c.bf16 %v6524, %v6524
    %v6552 = vpack.c.bf16 %v6548, %v6548
    %v6553 = vld [vmem:[#allocation8] sm:$0xff]
    %v6554 = vld [vmem:[#allocation8 + $0x8] sm:$0xff]
    %v6555 = vld [vmem:[#allocation8 + $0x10] sm:$0xff]
    %v6556 = vld [vmem:[#allocation8 + $0x18] sm:$0xff]
    %v6557 = vld [vmem:[#allocation8 + $0x20] sm:$0xff]
    %v6558 = vld [vmem:[#allocation8 + $0x28] sm:$0xff]
    %v6559 = vld [vmem:[#allocation8 + $0x30] sm:$0xff]
    %v6560 = vld [vmem:[#allocation8 + $0x38] sm:$0xff]
    %v6561 = vld [vmem:[#allocation8 + $0x40] sm:$0xff]
    %v6562 = vld [vmem:[#allocation8 + $0x48] sm:$0xff]
    %v6563 = vld [vmem:[#allocation8 + $0x50] sm:$0xff]
    %v6564 = vld [vmem:[#allocation8 + $0x58] sm:$0xff]
    %v6565 = vld [vmem:[#allocation8 + $0x60] sm:$0xff]
    %v6566 = vld [vmem:[#allocation8 + $0x68] sm:$0xff]
    %v6567 = vld [vmem:[#allocation8 + $0x70] sm:$0xff]
    %v6568 = vld [vmem:[#allocation8 + $0x78] sm:$0xff]
    %v6569 = vld [vmem:[#allocation8 + $0x80] sm:$0xff]
    %v6570 = vld [vmem:[#allocation8 + $0x88] sm:$0xff]
    %v6571 = vld [vmem:[#allocation8 + $0x90] sm:$0xff]
    %v6572 = vld [vmem:[#allocation8 + $0x98] sm:$0xff]
    %v6573 = vld [vmem:[#allocation8 + $0xa0] sm:$0xff]
    %v6574 = vld [vmem:[#allocation8 + $0xa8] sm:$0xff]
    %v6575 = vld [vmem:[#allocation8 + $0xb0] sm:$0xff]
    %v6576 = vld [vmem:[#allocation8 + $0xb8] sm:$0xff]
    %v6577 = vld [vmem:[#allocation8 + $0xc0] sm:$0xff]
    %v6578 = vld [vmem:[#allocation8 + $0xc8] sm:$0xff]
    %v6579 = vld [vmem:[#allocation8 + $0xd0] sm:$0xff]
    %v6580 = vld [vmem:[#allocation8 + $0xd8] sm:$0xff]
    %v6581 = vld [vmem:[#allocation8 + $0xe0] sm:$0xff]
    %v6582 = vld [vmem:[#allocation8 + $0xe8] sm:$0xff]
    %v6583 = vld [vmem:[#allocation8 + $0xf0] sm:$0xff]
    %v6584 = vld [vmem:[#allocation8 + $0xf8] sm:$0xff]
    %v6585 = vld [vmem:[#allocation8 + $0x100] sm:$0xff]
    %v6586 = vld [vmem:[#allocation8 + $0x108] sm:$0xff]
    %v6587 = vld [vmem:[#allocation8 + $0x110] sm:$0xff]
    %v6588 = vld [vmem:[#allocation8 + $0x118] sm:$0xff]
    %v6589 = vld [vmem:[#allocation8 + $0x120] sm:$0xff]
    %v6590 = vld [vmem:[#allocation8 + $0x128] sm:$0xff]
    %v6591 = vld [vmem:[#allocation8 + $0x130] sm:$0xff]
    %v6592 = vld [vmem:[#allocation8 + $0x138] sm:$0xff]
    %v6593 = vld [vmem:[#allocation8 + $0x140] sm:$0xff]
    %v6594 = vld [vmem:[#allocation8 + $0x148] sm:$0xff]
    %v6595 = vld [vmem:[#allocation8 + $0x150] sm:$0xff]
    %v6596 = vld [vmem:[#allocation8 + $0x158] sm:$0xff]
    %v6597 = vld [vmem:[#allocation8 + $0x160] sm:$0xff]
    %v6598 = vld [vmem:[#allocation8 + $0x168] sm:$0xff]
    %v6599 = vld [vmem:[#allocation8 + $0x170] sm:$0xff]
    %v6600 = vld [vmem:[#allocation8 + $0x178] sm:$0xff]
    %v6601 = vld [vmem:[#allocation8 + $0x180] sm:$0xff]
    %v6602 = vld [vmem:[#allocation8 + $0x188] sm:$0xff]
    %v6603 = vld [vmem:[#allocation8 + $0x190] sm:$0xff]
    %v6604 = vld [vmem:[#allocation8 + $0x198] sm:$0xff]
    %v6605 = vld [vmem:[#allocation8 + $0x1a0] sm:$0xff]
    %v6606 = vld [vmem:[#allocation8 + $0x1a8] sm:$0xff]
    %v6607 = vld [vmem:[#allocation8 + $0x1b0] sm:$0xff]
    %v6608 = vld [vmem:[#allocation8 + $0x1b8] sm:$0xff]
    %v6609 = vld [vmem:[#allocation8 + $0x1c0] sm:$0xff]
    %v6610 = vld [vmem:[#allocation8 + $0x1c8] sm:$0xff]
    %v6611 = vld [vmem:[#allocation8 + $0x1d0] sm:$0xff]
    %v6612 = vld [vmem:[#allocation8 + $0x1d8] sm:$0xff]
    %v6613 = vld [vmem:[#allocation8 + $0x1e0] sm:$0xff]
    %v6614 = vld [vmem:[#allocation8 + $0x1e8] sm:$0xff]
    %v6615 = vld [vmem:[#allocation8 + $0x1f0] sm:$0xff]
    %v6616 = vld [vmem:[#allocation8 + $0x1f8] sm:$0xff]
    %v6617 = vld [vmem:[#allocation8 + $0x200] sm:$0xff]
    %v6618 = vld [vmem:[#allocation8 + $0x208] sm:$0xff]
    %v6619 = vld [vmem:[#allocation8 + $0x210] sm:$0xff]
    %v6620 = vld [vmem:[#allocation8 + $0x218] sm:$0xff]
    %v6621 = vld [vmem:[#allocation8 + $0x220] sm:$0xff]
    %v6622 = vld [vmem:[#allocation8 + $0x228] sm:$0xff]
    %v6623 = vld [vmem:[#allocation8 + $0x230] sm:$0xff]
    %v6624 = vld [vmem:[#allocation8 + $0x238] sm:$0xff]
    %v6625 = vld [vmem:[#allocation8 + $0x240] sm:$0xff]
    %v6626 = vld [vmem:[#allocation8 + $0x248] sm:$0xff]
    %v6627 = vld [vmem:[#allocation8 + $0x250] sm:$0xff]
    %v6628 = vld [vmem:[#allocation8 + $0x258] sm:$0xff]
    %v6629 = vld [vmem:[#allocation8 + $0x260] sm:$0xff]
    %v6630 = vld [vmem:[#allocation8 + $0x268] sm:$0xff]
    %v6631 = vld [vmem:[#allocation8 + $0x270] sm:$0xff]
    %v6632 = vld [vmem:[#allocation8 + $0x278] sm:$0xff]
    %v6633 = vld [vmem:[#allocation8 + $0x280] sm:$0xff]
    %v6634 = vld [vmem:[#allocation8 + $0x288] sm:$0xff]
    %v6635 = vld [vmem:[#allocation8 + $0x290] sm:$0xff]
    %v6636 = vld [vmem:[#allocation8 + $0x298] sm:$0xff]
    %v6637 = vld [vmem:[#allocation8 + $0x2a0] sm:$0xff]
    %v6638 = vld [vmem:[#allocation8 + $0x2a8] sm:$0xff]
    %v6639 = vld [vmem:[#allocation8 + $0x2b0] sm:$0xff]
    %v6640 = vld [vmem:[#allocation8 + $0x2b8] sm:$0xff]
    %v6641 = vld [vmem:[#allocation8 + $0x2c0] sm:$0xff]
    %v6642 = vld [vmem:[#allocation8 + $0x2c8] sm:$0xff]
    %v6643 = vld [vmem:[#allocation8 + $0x2d0] sm:$0xff]
    %v6644 = vld [vmem:[#allocation8 + $0x2d8] sm:$0xff]
    %v6645 = vld [vmem:[#allocation8 + $0x2e0] sm:$0xff]
    %v6646 = vld [vmem:[#allocation8 + $0x2e8] sm:$0xff]
    %v6647 = vld [vmem:[#allocation8 + $0x2f0] sm:$0xff]
    %v6648 = vld [vmem:[#allocation8 + $0x2f8] sm:$0xff]
    %v6649 = vld [vmem:[#allocation8 + $0x300] sm:$0xff]
    %v6650 = vld [vmem:[#allocation8 + $0x308] sm:$0xff]
    %v6651 = vld [vmem:[#allocation8 + $0x310] sm:$0xff]
    %v6652 = vld [vmem:[#allocation8 + $0x318] sm:$0xff]
    %v6653 = vld [vmem:[#allocation8 + $0x320] sm:$0xff]
    %v6654 = vld [vmem:[#allocation8 + $0x328] sm:$0xff]
    %v6655 = vld [vmem:[#allocation8 + $0x330] sm:$0xff]
    %v6656 = vld [vmem:[#allocation8 + $0x338] sm:$0xff]
    %v6657 = vld [vmem:[#allocation8 + $0x340] sm:$0xff]
    %v6658 = vld [vmem:[#allocation8 + $0x348] sm:$0xff]
    %v6659 = vld [vmem:[#allocation8 + $0x350] sm:$0xff]
    %v6660 = vld [vmem:[#allocation8 + $0x358] sm:$0xff]
    %v6661 = vld [vmem:[#allocation8 + $0x360] sm:$0xff]
    %v6662 = vld [vmem:[#allocation8 + $0x368] sm:$0xff]
    %v6663 = vld [vmem:[#allocation8 + $0x370] sm:$0xff]
    %v6664 = vld [vmem:[#allocation8 + $0x378] sm:$0xff]
    %v6665 = vld [vmem:[#allocation8 + $0x380] sm:$0xff]
    %v6666 = vld [vmem:[#allocation8 + $0x388] sm:$0xff]
    %v6667 = vld [vmem:[#allocation8 + $0x390] sm:$0xff]
    %v6668 = vld [vmem:[#allocation8 + $0x398] sm:$0xff]
    %v6669 = vld [vmem:[#allocation8 + $0x3a0] sm:$0xff]
    %v6670 = vld [vmem:[#allocation8 + $0x3a8] sm:$0xff]
    %v6671 = vld [vmem:[#allocation8 + $0x3b0] sm:$0xff]
    %v6672 = vld [vmem:[#allocation8 + $0x3b8] sm:$0xff]
    %v6673 = vld [vmem:[#allocation8 + $0x3c0] sm:$0xff]
    %v6674 = vld [vmem:[#allocation8 + $0x3c8] sm:$0xff]
    %v6675 = vld [vmem:[#allocation8 + $0x3d0] sm:$0xff]
    %v6676 = vld [vmem:[#allocation8 + $0x3d8] sm:$0xff]
    %v6677 = vld [vmem:[#allocation8 + $0x3e0] sm:$0xff]
    %v6678 = vld [vmem:[#allocation8 + $0x3e8] sm:$0xff]
    %v6679 = vld [vmem:[#allocation8 + $0x3f0] sm:$0xff]
    %v6680 = vld [vmem:[#allocation8 + $0x3f8] sm:$0xff]
    %v6809 = vunpack.c.l.b16 %v6553
    %v6810 = vunpack.c.h.b16 %v6553
    %v6811 = vunpack.c.l.b16 %v6554
    %v6812 = vunpack.c.h.b16 %v6554
    %v6813 = vunpack.c.l.b16 %v6555
    %v6814 = vunpack.c.h.b16 %v6555
    %v6815 = vunpack.c.l.b16 %v6556
    %v6816 = vunpack.c.h.b16 %v6556
    %v6817 = vunpack.c.l.b16 %v6557
    %v6818 = vunpack.c.h.b16 %v6557
    %v6819 = vunpack.c.l.b16 %v6558
    %v6820 = vunpack.c.h.b16 %v6558
    %v6821 = vunpack.c.l.b16 %v6559
    %v6822 = vunpack.c.h.b16 %v6559
    %v6823 = vunpack.c.l.b16 %v6560
    %v6824 = vunpack.c.h.b16 %v6560
    %v6825 = vunpack.c.l.b16 %v6561
    %v6826 = vunpack.c.h.b16 %v6561
    %v6827 = vunpack.c.l.b16 %v6562
    %v6828 = vunpack.c.h.b16 %v6562
    %v6829 = vunpack.c.l.b16 %v6563
    %v6830 = vunpack.c.h.b16 %v6563
    %v6831 = vunpack.c.l.b16 %v6564
    %v6832 = vunpack.c.h.b16 %v6564
    %v6833 = vunpack.c.l.b16 %v6565
    %v6834 = vunpack.c.h.b16 %v6565
    %v6835 = vunpack.c.l.b16 %v6566
    %v6836 = vunpack.c.h.b16 %v6566
    %v6837 = vunpack.c.l.b16 %v6567
    %v6838 = vunpack.c.h.b16 %v6567
    %v6839 = vunpack.c.l.b16 %v6568
    %v6840 = vunpack.c.h.b16 %v6568
    %v6841 = vunpack.c.l.b16 %v6569
    %v6842 = vunpack.c.h.b16 %v6569
    %v6843 = vunpack.c.l.b16 %v6570
    %v6844 = vunpack.c.h.b16 %v6570
    %v6845 = vunpack.c.l.b16 %v6571
    %v6846 = vunpack.c.h.b16 %v6571
    %v6847 = vunpack.c.l.b16 %v6572
    %v6848 = vunpack.c.h.b16 %v6572
    %v6849 = vunpack.c.l.b16 %v6573
    %v6850 = vunpack.c.h.b16 %v6573
    %v6851 = vunpack.c.l.b16 %v6574
    %v6852 = vunpack.c.h.b16 %v6574
    %v6853 = vunpack.c.l.b16 %v6575
    %v6854 = vunpack.c.h.b16 %v6575
    %v6855 = vunpack.c.l.b16 %v6576
    %v6856 = vunpack.c.h.b16 %v6576
    %v6857 = vunpack.c.l.b16 %v6577
    %v6858 = vunpack.c.h.b16 %v6577
    %v6859 = vunpack.c.l.b16 %v6578
    %v6860 = vunpack.c.h.b16 %v6578
    %v6861 = vunpack.c.l.b16 %v6579
    %v6862 = vunpack.c.h.b16 %v6579
    %v6863 = vunpack.c.l.b16 %v6580
    %v6864 = vunpack.c.h.b16 %v6580
    %v6865 = vunpack.c.l.b16 %v6581
    %v6866 = vunpack.c.h.b16 %v6581
    %v6867 = vunpack.c.l.b16 %v6582
    %v6868 = vunpack.c.h.b16 %v6582
    %v6869 = vunpack.c.l.b16 %v6583
    %v6870 = vunpack.c.h.b16 %v6583
    %v6871 = vunpack.c.l.b16 %v6584
    %v6872 = vunpack.c.h.b16 %v6584
    %v6873 = vunpack.c.l.b16 %v6585
    %v6874 = vunpack.c.h.b16 %v6585
    %v6875 = vunpack.c.l.b16 %v6586
    %v6876 = vunpack.c.h.b16 %v6586
    %v6877 = vunpack.c.l.b16 %v6587
    %v6878 = vunpack.c.h.b16 %v6587
    %v6879 = vunpack.c.l.b16 %v6588
    %v6880 = vunpack.c.h.b16 %v6588
    %v6881 = vunpack.c.l.b16 %v6589
    %v6882 = vunpack.c.h.b16 %v6589
    %v6883 = vunpack.c.l.b16 %v6590
    %v6884 = vunpack.c.h.b16 %v6590
    %v6885 = vunpack.c.l.b16 %v6591
    %v6886 = vunpack.c.h.b16 %v6591
    %v6887 = vunpack.c.l.b16 %v6592
    %v6888 = vunpack.c.h.b16 %v6592
    %v6889 = vunpack.c.l.b16 %v6593
    %v6890 = vunpack.c.h.b16 %v6593
    %v6891 = vunpack.c.l.b16 %v6594
    %v6892 = vunpack.c.h.b16 %v6594
    %v6893 = vunpack.c.l.b16 %v6595
    %v6894 = vunpack.c.h.b16 %v6595
    %v6895 = vunpack.c.l.b16 %v6596
    %v6896 = vunpack.c.h.b16 %v6596
    %v6897 = vunpack.c.l.b16 %v6597
    %v6898 = vunpack.c.h.b16 %v6597
    %v6899 = vunpack.c.l.b16 %v6598
    %v6900 = vunpack.c.h.b16 %v6598
    %v6901 = vunpack.c.l.b16 %v6599
    %v6902 = vunpack.c.h.b16 %v6599
    %v6903 = vunpack.c.l.b16 %v6600
    %v6904 = vunpack.c.h.b16 %v6600
    %v6905 = vunpack.c.l.b16 %v6601
    %v6906 = vunpack.c.h.b16 %v6601
    %v6907 = vunpack.c.l.b16 %v6602
    %v6908 = vunpack.c.h.b16 %v6602
    %v6909 = vunpack.c.l.b16 %v6603
    %v6910 = vunpack.c.h.b16 %v6603
    %v6911 = vunpack.c.l.b16 %v6604
    %v6912 = vunpack.c.h.b16 %v6604
    %v6913 = vunpack.c.l.b16 %v6605
    %v6914 = vunpack.c.h.b16 %v6605
    %v6915 = vunpack.c.l.b16 %v6606
    %v6916 = vunpack.c.h.b16 %v6606
    %v6917 = vunpack.c.l.b16 %v6607
    %v6918 = vunpack.c.h.b16 %v6607
    %v6919 = vunpack.c.l.b16 %v6608
    %v6920 = vunpack.c.h.b16 %v6608
    %v6921 = vunpack.c.l.b16 %v6609
    %v6922 = vunpack.c.h.b16 %v6609
    %v6923 = vunpack.c.l.b16 %v6610
    %v6924 = vunpack.c.h.b16 %v6610
    %v6925 = vunpack.c.l.b16 %v6611
    %v6926 = vunpack.c.h.b16 %v6611
    %v6927 = vunpack.c.l.b16 %v6612
    %v6928 = vunpack.c.h.b16 %v6612
    %v6929 = vunpack.c.l.b16 %v6613
    %v6930 = vunpack.c.h.b16 %v6613
    %v6931 = vunpack.c.l.b16 %v6614
    %v6932 = vunpack.c.h.b16 %v6614
    %v6933 = vunpack.c.l.b16 %v6615
    %v6934 = vunpack.c.h.b16 %v6615
    %v6935 = vunpack.c.l.b16 %v6616
    %v6936 = vunpack.c.h.b16 %v6616
    %v6937 = vunpack.c.l.b16 %v6617
    %v6938 = vunpack.c.h.b16 %v6617
    %v6939 = vunpack.c.l.b16 %v6618
    %v6940 = vunpack.c.h.b16 %v6618
    %v6941 = vunpack.c.l.b16 %v6619
    %v6942 = vunpack.c.h.b16 %v6619
    %v6943 = vunpack.c.l.b16 %v6620
    %v6944 = vunpack.c.h.b16 %v6620
    %v6945 = vunpack.c.l.b16 %v6621
    %v6946 = vunpack.c.h.b16 %v6621
    %v6947 = vunpack.c.l.b16 %v6622
    %v6948 = vunpack.c.h.b16 %v6622
    %v6949 = vunpack.c.l.b16 %v6623
    %v6950 = vunpack.c.h.b16 %v6623
    %v6951 = vunpack.c.l.b16 %v6624
    %v6952 = vunpack.c.h.b16 %v6624
    %v6953 = vunpack.c.l.b16 %v6625
    %v6954 = vunpack.c.h.b16 %v6625
    %v6955 = vunpack.c.l.b16 %v6626
    %v6956 = vunpack.c.h.b16 %v6626
    %v6957 = vunpack.c.l.b16 %v6627
    %v6958 = vunpack.c.h.b16 %v6627
    %v6959 = vunpack.c.l.b16 %v6628
    %v6960 = vunpack.c.h.b16 %v6628
    %v6961 = vunpack.c.l.b16 %v6629
    %v6962 = vunpack.c.h.b16 %v6629
    %v6963 = vunpack.c.l.b16 %v6630
    %v6964 = vunpack.c.h.b16 %v6630
    %v6965 = vunpack.c.l.b16 %v6631
    %v6966 = vunpack.c.h.b16 %v6631
    %v6967 = vunpack.c.l.b16 %v6632
    %v6968 = vunpack.c.h.b16 %v6632
    %v6969 = vunpack.c.l.b16 %v6633
    %v6970 = vunpack.c.h.b16 %v6633
    %v6971 = vunpack.c.l.b16 %v6634
    %v6972 = vunpack.c.h.b16 %v6634
    %v6973 = vunpack.c.l.b16 %v6635
    %v6974 = vunpack.c.h.b16 %v6635
    %v6975 = vunpack.c.l.b16 %v6636
    %v6976 = vunpack.c.h.b16 %v6636
    %v6977 = vunpack.c.l.b16 %v6637
    %v6978 = vunpack.c.h.b16 %v6637
    %v6979 = vunpack.c.l.b16 %v6638
    %v6980 = vunpack.c.h.b16 %v6638
    %v6981 = vunpack.c.l.b16 %v6639
    %v6982 = vunpack.c.h.b16 %v6639
    %v6983 = vunpack.c.l.b16 %v6640
    %v6984 = vunpack.c.h.b16 %v6640
    %v6985 = vunpack.c.l.b16 %v6641
    %v6986 = vunpack.c.h.b16 %v6641
    %v6987 = vunpack.c.l.b16 %v6642
    %v6988 = vunpack.c.h.b16 %v6642
    %v6989 = vunpack.c.l.b16 %v6643
    %v6990 = vunpack.c.h.b16 %v6643
    %v6991 = vunpack.c.l.b16 %v6644
    %v6992 = vunpack.c.h.b16 %v6644
    %v6993 = vunpack.c.l.b16 %v6645
    %v6994 = vunpack.c.h.b16 %v6645
    %v6995 = vunpack.c.l.b16 %v6646
    %v6996 = vunpack.c.h.b16 %v6646
    %v6997 = vunpack.c.l.b16 %v6647
    %v6998 = vunpack.c.h.b16 %v6647
    %v6999 = vunpack.c.l.b16 %v6648
    %v7000 = vunpack.c.h.b16 %v6648
    %v7001 = vunpack.c.l.b16 %v6649
    %v7002 = vunpack.c.h.b16 %v6649
    %v7003 = vunpack.c.l.b16 %v6650
    %v7004 = vunpack.c.h.b16 %v6650
    %v7005 = vunpack.c.l.b16 %v6651
    %v7006 = vunpack.c.h.b16 %v6651
    %v7007 = vunpack.c.l.b16 %v6652
    %v7008 = vunpack.c.h.b16 %v6652
    %v7009 = vunpack.c.l.b16 %v6653
    %v7010 = vunpack.c.h.b16 %v6653
    %v7011 = vunpack.c.l.b16 %v6654
    %v7012 = vunpack.c.h.b16 %v6654
    %v7013 = vunpack.c.l.b16 %v6655
    %v7014 = vunpack.c.h.b16 %v6655
    %v7015 = vunpack.c.l.b16 %v6656
    %v7016 = vunpack.c.h.b16 %v6656
    %v7017 = vunpack.c.l.b16 %v6657
    %v7018 = vunpack.c.h.b16 %v6657
    %v7019 = vunpack.c.l.b16 %v6658
    %v7020 = vunpack.c.h.b16 %v6658
    %v7021 = vunpack.c.l.b16 %v6659
    %v7022 = vunpack.c.h.b16 %v6659
    %v7023 = vunpack.c.l.b16 %v6660
    %v7024 = vunpack.c.h.b16 %v6660
    %v7025 = vunpack.c.l.b16 %v6661
    %v7026 = vunpack.c.h.b16 %v6661
    %v7027 = vunpack.c.l.b16 %v6662
    %v7028 = vunpack.c.h.b16 %v6662
    %v7029 = vunpack.c.l.b16 %v6663
    %v7030 = vunpack.c.h.b16 %v6663
    %v7031 = vunpack.c.l.b16 %v6664
    %v7032 = vunpack.c.h.b16 %v6664
    %v7033 = vunpack.c.l.b16 %v6665
    %v7034 = vunpack.c.h.b16 %v6665
    %v7035 = vunpack.c.l.b16 %v6666
    %v7036 = vunpack.c.h.b16 %v6666
    %v7037 = vunpack.c.l.b16 %v6667
    %v7038 = vunpack.c.h.b16 %v6667
    %v7039 = vunpack.c.l.b16 %v6668
    %v7040 = vunpack.c.h.b16 %v6668
    %v7041 = vunpack.c.l.b16 %v6669
    %v7042 = vunpack.c.h.b16 %v6669
    %v7043 = vunpack.c.l.b16 %v6670
    %v7044 = vunpack.c.h.b16 %v6670
    %v7045 = vunpack.c.l.b16 %v6671
    %v7046 = vunpack.c.h.b16 %v6671
    %v7047 = vunpack.c.l.b16 %v6672
    %v7048 = vunpack.c.h.b16 %v6672
    %v7049 = vunpack.c.l.b16 %v6673
    %v7050 = vunpack.c.h.b16 %v6673
    %v7051 = vunpack.c.l.b16 %v6674
    %v7052 = vunpack.c.h.b16 %v6674
    %v7053 = vunpack.c.l.b16 %v6675
    %v7054 = vunpack.c.h.b16 %v6675
    %v7055 = vunpack.c.l.b16 %v6676
    %v7056 = vunpack.c.h.b16 %v6676
    %v7057 = vunpack.c.l.b16 %v6677
    %v7058 = vunpack.c.h.b16 %v6677
    %v7059 = vunpack.c.l.b16 %v6678
    %v7060 = vunpack.c.h.b16 %v6678
    %v7061 = vunpack.c.l.b16 %v6679
    %v7062 = vunpack.c.h.b16 %v6679
    %v7063 = vunpack.c.l.b16 %v6680
    %v7064 = vunpack.c.h.b16 %v6680
    %v7065 = vpack.c.b16 %v6817, %v6809
    %v7066 = vpack.c.b16 %v6818, %v6810
    %v7067 = vpack.c.b16 %v6819, %v6811
    %v7068 = vpack.c.b16 %v6820, %v6812
    %v7069 = vpack.c.b16 %v6821, %v6813
    %v7070 = vpack.c.b16 %v6822, %v6814
    %v7071 = vpack.c.b16 %v6823, %v6815
    %v7072 = vpack.c.b16 %v6824, %v6816
    %v7073 = vpack.c.b16 %v6833, %v6825
    %v7074 = vpack.c.b16 %v6834, %v6826
    %v7075 = vpack.c.b16 %v6835, %v6827
    %v7076 = vpack.c.b16 %v6836, %v6828
    %v7077 = vpack.c.b16 %v6837, %v6829
    %v7078 = vpack.c.b16 %v6838, %v6830
    %v7079 = vpack.c.b16 %v6839, %v6831
    %v7080 = vpack.c.b16 %v6840, %v6832
    %v7081 = vpack.c.b16 %v6849, %v6841
    %v7082 = vpack.c.b16 %v6850, %v6842
    %v7083 = vpack.c.b16 %v6851, %v6843
    %v7084 = vpack.c.b16 %v6852, %v6844
    %v7085 = vpack.c.b16 %v6853, %v6845
    %v7086 = vpack.c.b16 %v6854, %v6846
    %v7087 = vpack.c.b16 %v6855, %v6847
    %v7088 = vpack.c.b16 %v6856, %v6848
    %v7089 = vpack.c.b16 %v6865, %v6857
    %v7090 = vpack.c.b16 %v6866, %v6858
    %v7091 = vpack.c.b16 %v6867, %v6859
    %v7092 = vpack.c.b16 %v6868, %v6860
    %v7093 = vpack.c.b16 %v6869, %v6861
    %v7094 = vpack.c.b16 %v6870, %v6862
    %v7095 = vpack.c.b16 %v6871, %v6863
    %v7096 = vpack.c.b16 %v6872, %v6864
    %v7097 = vpack.c.b16 %v6881, %v6873
    %v7098 = vpack.c.b16 %v6882, %v6874
    %v7099 = vpack.c.b16 %v6883, %v6875
    %v7100 = vpack.c.b16 %v6884, %v6876
    %v7101 = vpack.c.b16 %v6885, %v6877
    %v7102 = vpack.c.b16 %v6886, %v6878
    %v7103 = vpack.c.b16 %v6887, %v6879
    %v7104 = vpack.c.b16 %v6888, %v6880
    %v7105 = vpack.c.b16 %v6897, %v6889
    %v7106 = vpack.c.b16 %v6898, %v6890
    %v7107 = vpack.c.b16 %v6899, %v6891
    %v7108 = vpack.c.b16 %v6900, %v6892
    %v7109 = vpack.c.b16 %v6901, %v6893
    %v7110 = vpack.c.b16 %v6902, %v6894
    %v7111 = vpack.c.b16 %v6903, %v6895
    %v7112 = vpack.c.b16 %v6904, %v6896
    %v7113 = vpack.c.b16 %v6913, %v6905
    %v7114 = vpack.c.b16 %v6914, %v6906
    %v7115 = vpack.c.b16 %v6915, %v6907
    %v7116 = vpack.c.b16 %v6916, %v6908
    %v7117 = vpack.c.b16 %v6917, %v6909
    %v7118 = vpack.c.b16 %v6918, %v6910
    %v7119 = vpack.c.b16 %v6919, %v6911
    %v7120 = vpack.c.b16 %v6920, %v6912
    %v7121 = vpack.c.b16 %v6929, %v6921
    %v7122 = vpack.c.b16 %v6930, %v6922
    %v7123 = vpack.c.b16 %v6931, %v6923
    %v7124 = vpack.c.b16 %v6932, %v6924
    %v7125 = vpack.c.b16 %v6933, %v6925
    %v7126 = vpack.c.b16 %v6934, %v6926
    %v7127 = vpack.c.b16 %v6935, %v6927
    %v7128 = vpack.c.b16 %v6936, %v6928
    %v7129 = vpack.c.b16 %v6945, %v6937
    %v7130 = vpack.c.b16 %v6946, %v6938
    %v7131 = vpack.c.b16 %v6947, %v6939
    %v7132 = vpack.c.b16 %v6948, %v6940
    %v7133 = vpack.c.b16 %v6949, %v6941
    %v7134 = vpack.c.b16 %v6950, %v6942
    %v7135 = vpack.c.b16 %v6951, %v6943
    %v7136 = vpack.c.b16 %v6952, %v6944
    %v7137 = vpack.c.b16 %v6961, %v6953
    %v7138 = vpack.c.b16 %v6962, %v6954
    %v7139 = vpack.c.b16 %v6963, %v6955
    %v7140 = vpack.c.b16 %v6964, %v6956
    %v7141 = vpack.c.b16 %v6965, %v6957
    %v7142 = vpack.c.b16 %v6966, %v6958
    %v7143 = vpack.c.b16 %v6967, %v6959
    %v7144 = vpack.c.b16 %v6968, %v6960
    %v7145 = vpack.c.b16 %v6977, %v6969
    %v7146 = vpack.c.b16 %v6978, %v6970
    %v7147 = vpack.c.b16 %v6979, %v6971
    %v7148 = vpack.c.b16 %v6980, %v6972
    %v7149 = vpack.c.b16 %v6981, %v6973
    %v7150 = vpack.c.b16 %v6982, %v6974
    %v7151 = vpack.c.b16 %v6983, %v6975
    %v7152 = vpack.c.b16 %v6984, %v6976
    %v7153 = vpack.c.b16 %v6993, %v6985
    %v7154 = vpack.c.b16 %v6994, %v6986
    %v7155 = vpack.c.b16 %v6995, %v6987
    %v7156 = vpack.c.b16 %v6996, %v6988
    %v7157 = vpack.c.b16 %v6997, %v6989
    %v7158 = vpack.c.b16 %v6998, %v6990
    %v7159 = vpack.c.b16 %v6999, %v6991
    %v7160 = vpack.c.b16 %v7000, %v6992
    %v7161 = vpack.c.b16 %v7009, %v7001
    %v7162 = vpack.c.b16 %v7010, %v7002
    %v7163 = vpack.c.b16 %v7011, %v7003
    %v7164 = vpack.c.b16 %v7012, %v7004
    %v7165 = vpack.c.b16 %v7013, %v7005
    %v7166 = vpack.c.b16 %v7014, %v7006
    %v7167 = vpack.c.b16 %v7015, %v7007
    %v7168 = vpack.c.b16 %v7016, %v7008
    %v7169 = vpack.c.b16 %v7025, %v7017
    %v7170 = vpack.c.b16 %v7026, %v7018
    %v7171 = vpack.c.b16 %v7027, %v7019
    %v7172 = vpack.c.b16 %v7028, %v7020
    %v7173 = vpack.c.b16 %v7029, %v7021
    %v7174 = vpack.c.b16 %v7030, %v7022
    %v7175 = vpack.c.b16 %v7031, %v7023
    %v7176 = vpack.c.b16 %v7032, %v7024
    %v7177 = vpack.c.b16 %v7041, %v7033
    %v7178 = vpack.c.b16 %v7042, %v7034
    %v7179 = vpack.c.b16 %v7043, %v7035
    %v7180 = vpack.c.b16 %v7044, %v7036
    %v7181 = vpack.c.b16 %v7045, %v7037
    %v7182 = vpack.c.b16 %v7046, %v7038
    %v7183 = vpack.c.b16 %v7047, %v7039
    %v7184 = vpack.c.b16 %v7048, %v7040
    %v7185 = vpack.c.b16 %v7057, %v7049
    %v7186 = vpack.c.b16 %v7058, %v7050
    %v7187 = vpack.c.b16 %v7059, %v7051
    %v7188 = vpack.c.b16 %v7060, %v7052
    %v7189 = vpack.c.b16 %v7061, %v7053
    %v7190 = vpack.c.b16 %v7062, %v7054
    %v7191 = vpack.c.b16 %v7063, %v7055
    %v7192 = vpack.c.b16 %v7064, %v7056
    %7321 = vmatprep.subr.bf16.mxu0 %v7066
    %7322 = vmatpush1.bf16.msra.mxu0 %v7065
    %7323 = vmatprep.subr.bf16.mxu0 %v7074
    %7324 = vmatpush1.bf16.msra.mxu0 %v7073
    %7325 = vmatprep.subr.bf16.mxu0 %v7082
    %7326 = vmatpush1.bf16.msra.mxu0 %v7081
    %7327 = vmatprep.subr.bf16.mxu0 %v7090
    %7328 = vmatpush1.bf16.msra.mxu0 %v7089
    %7329 = vmatprep.subr.bf16.mxu0 %v7098
    %7330 = vmatpush1.bf16.msra.mxu0 %v7097
    %7331 = vmatprep.subr.bf16.mxu0 %v7106
    %7332 = vmatpush1.bf16.msra.mxu0 %v7105
    %7333 = vmatprep.subr.bf16.mxu0 %v7114
    %7334 = vmatpush1.bf16.msra.mxu0 %v7113
    %7335 = vmatprep.subr.bf16.mxu0 %v7122
    %7336 = vmatpush1.bf16.msra.mxu0 %v7121
    %7337 = vmatprep.subr.bf16.mxu0 %v7130
    %7338 = vmatpush1.bf16.msra.mxu0 %v7129
    %7339 = vmatprep.subr.bf16.mxu0 %v7138
    %7340 = vmatpush1.bf16.msra.mxu0 %v7137
    %7341 = vmatprep.subr.bf16.mxu0 %v7146
    %7342 = vmatpush1.bf16.msra.mxu0 %v7145
    %7343 = vmatprep.subr.bf16.mxu0 %v7154
    %7344 = vmatpush1.bf16.msra.mxu0 %v7153
    %7345 = vmatprep.subr.bf16.mxu0 %v7162
    %7346 = vmatpush1.bf16.msra.mxu0 %v7161
    %7347 = vmatprep.subr.bf16.mxu0 %v7170
    %7348 = vmatpush1.bf16.msra.mxu0 %v7169
    %7349 = vmatprep.subr.bf16.mxu0 %v7178
    %7350 = vmatpush1.bf16.msra.mxu0 %v7177
    %7351 = vmatprep.subr.bf16.mxu0 %v7186
    %7352 = vmatpush1.bf16.msra.mxu0 %v7185
    %7353 = vmatprep.mubr.bf16.mxu0 %v6552
    %7354 = vmatmul.mubr.bf16.gmra.mrb[0].mxu0 %v6551
    %v7355 = vpop.f32.mrb[0].mxu0
    %v7356 = vadd.f32 0.0, %v7355
    %v7357 = vpop.f32.mrb[0].mxu0
    %v7358 = vadd.f32 0.0, %v7357
    %v7359 = vpop.f32.mrb[0].mxu0
    %v7360 = vpop.f32.mrb[0].mxu0
    %7361 = vdwg.mxu0
    %7362 = vmatprep.subr.bf16.mxu0 %v7068
    %7363 = vmatpush1.bf16.msra.mxu0 %v7067
    %7364 = vmatprep.subr.bf16.mxu0 %v7076
    %7365 = vmatpush1.bf16.msra.mxu0 %v7075
    %7366 = vmatprep.subr.bf16.mxu0 %v7084
    %7367 = vmatpush1.bf16.msra.mxu0 %v7083
    %7368 = vmatprep.subr.bf16.mxu0 %v7092
    %7369 = vmatpush1.bf16.msra.mxu0 %v7091
    %7370 = vmatprep.subr.bf16.mxu0 %v7100
    %7371 = vmatpush1.bf16.msra.mxu0 %v7099
    %7372 = vmatprep.subr.bf16.mxu0 %v7108
    %7373 = vmatpush1.bf16.msra.mxu0 %v7107
    %7374 = vmatprep.subr.bf16.mxu0 %v7116
    %7375 = vmatpush1.bf16.msra.mxu0 %v7115
    %7376 = vmatprep.subr.bf16.mxu0 %v7124
    %7377 = vmatpush1.bf16.msra.mxu0 %v7123
    %7378 = vmatprep.subr.bf16.mxu0 %v7132
    %7379 = vmatpush1.bf16.msra.mxu0 %v7131
    %7380 = vmatprep.subr.bf16.mxu0 %v7140
    %7381 = vmatpush1.bf16.msra.mxu0 %v7139
    %7382 = vmatprep.subr.bf16.mxu0 %v7148
    %7383 = vmatpush1.bf16.msra.mxu0 %v7147
    %7384 = vmatprep.subr.bf16.mxu0 %v7156
    %7385 = vmatpush1.bf16.msra.mxu0 %v7155
    %7386 = vmatprep.subr.bf16.mxu0 %v7164
    %7387 = vmatpush1.bf16.msra.mxu0 %v7163
    %7388 = vmatprep.subr.bf16.mxu0 %v7172
    %7389 = vmatpush1.bf16.msra.mxu0 %v7171
    %7390 = vmatprep.subr.bf16.mxu0 %v7180
    %7391 = vmatpush1.bf16.msra.mxu0 %v7179
    %7392 = vmatprep.subr.bf16.mxu0 %v7188
    %7393 = vmatpush1.bf16.msra.mxu0 %v7187
    %7394 = vmatprep.mubr.bf16.mxu0 %v6552
    %7395 = vmatmul.mubr.bf16.gmra.mrb[0].mxu0 %v6551
    %v7396 = vpop.f32.mrb[0].mxu0
    %v7397 = vadd.f32 0.0, %v7396
    %v7398 = vpop.f32.mrb[0].mxu0
    %v7399 = vadd.f32 0.0, %v7398
    %v7400 = vpop.f32.mrb[0].mxu0
    %v7401 = vpop.f32.mrb[0].mxu0
    %7402 = vdwg.mxu0
    %7403 = vmatprep.subr.bf16.mxu0 %v7070
    %7404 = vmatpush1.bf16.msra.mxu0 %v7069
    %7405 = vmatprep.subr.bf16.mxu0 %v7078
    %7406 = vmatpush1.bf16.msra.mxu0 %v7077
    %7407 = vmatprep.subr.bf16.mxu0 %v7086
    %7408 = vmatpush1.bf16.msra.mxu0 %v7085
    %7409 = vmatprep.subr.bf16.mxu0 %v7094
    %7410 = vmatpush1.bf16.msra.mxu0 %v7093
    %7411 = vmatprep.subr.bf16.mxu0 %v7102
    %7412 = vmatpush1.bf16.msra.mxu0 %v7101
    %7413 = vmatprep.subr.bf16.mxu0 %v7110
    %7414 = vmatpush1.bf16.msra.mxu0 %v7109
    %7415 = vmatprep.subr.bf16.mxu0 %v7118
    %7416 = vmatpush1.bf16.msra.mxu0 %v7117
    %7417 = vmatprep.subr.bf16.mxu0 %v7126
    %7418 = vmatpush1.bf16.msra.mxu0 %v7125
    %7419 = vmatprep.subr.bf16.mxu0 %v7134
    %7420 = vmatpush1.bf16.msra.mxu0 %v7133
    %7421 = vmatprep.subr.bf16.mxu0 %v7142
    %7422 = vmatpush1.bf16.msra.mxu0 %v7141
    %7423 = vmatprep.subr.bf16.mxu0 %v7150
    %7424 = vmatpush1.bf16.msra.mxu0 %v7149
    %7425 = vmatprep.subr.bf16.mxu0 %v7158
    %7426 = vmatpush1.bf16.msra.mxu0 %v7157
    %7427 = vmatprep.subr.bf16.mxu0 %v7166
    %7428 = vmatpush1.bf16.msra.mxu0 %v7165
    %7429 = vmatprep.subr.bf16.mxu0 %v7174
    %7430 = vmatpush1.bf16.msra.mxu0 %v7173
    %7431 = vmatprep.subr.bf16.mxu0 %v7182
    %7432 = vmatpush1.bf16.msra.mxu0 %v7181
    %7433 = vmatprep.subr.bf16.mxu0 %v7190
    %7434 = vmatpush1.bf16.msra.mxu0 %v7189
    %7435 = vmatprep.mubr.bf16.mxu0 %v6552
    %7436 = vmatmul.mubr.bf16.gmra.mrb[0].mxu0 %v6551
    %v7437 = vpop.f32.mrb[0].mxu0
    %v7438 = vadd.f32 0.0, %v7437
    %v7439 = vpop.f32.mrb[0].mxu0
    %v7440 = vadd.f32 0.0, %v7439
    %v7441 = vpop.f32.mrb[0].mxu0
    %v7442 = vpop.f32.mrb[0].mxu0
    %7443 = vdwg.mxu0
    %7444 = vmatprep.subr.bf16.mxu0 %v7072
    %7445 = vmatpush1.bf16.msra.mxu0 %v7071
    %7446 = vmatprep.subr.bf16.mxu0 %v7080
    %7447 = vmatpush1.bf16.msra.mxu0 %v7079
    %7448 = vmatprep.subr.bf16.mxu0 %v7088
    %7449 = vmatpush1.bf16.msra.mxu0 %v7087
    %7450 = vmatprep.subr.bf16.mxu0 %v7096
    %7451 = vmatpush1.bf16.msra.mxu0 %v7095
    %7452 = vmatprep.subr.bf16.mxu0 %v7104
    %7453 = vmatpush1.bf16.msra.mxu0 %v7103
    %7454 = vmatprep.subr.bf16.mxu0 %v7112
    %7455 = vmatpush1.bf16.msra.mxu0 %v7111
    %7456 = vmatprep.subr.bf16.mxu0 %v7120
    %7457 = vmatpush1.bf16.msra.mxu0 %v7119
    %7458 = vmatprep.subr.bf16.mxu0 %v7128
    %7459 = vmatpush1.bf16.msra.mxu0 %v7127
    %7460 = vmatprep.subr.bf16.mxu0 %v7136
    %7461 = vmatpush1.bf16.msra.mxu0 %v7135
    %7462 = vmatprep.subr.bf16.mxu0 %v7144
    %7463 = vmatpush1.bf16.msra.mxu0 %v7143
    %7464 = vmatprep.subr.bf16.mxu0 %v7152
    %7465 = vmatpush1.bf16.msra.mxu0 %v7151
    %7466 = vmatprep.subr.bf16.mxu0 %v7160
    %7467 = vmatpush1.bf16.msra.mxu0 %v7159
    %7468 = vmatprep.subr.bf16.mxu0 %v7168
    %7469 = vmatpush1.bf16.msra.mxu0 %v7167
    %7470 = vmatprep.subr.bf16.mxu0 %v7176
    %7471 = vmatpush1.bf16.msra.mxu0 %v7175
    %7472 = vmatprep.subr.bf16.mxu0 %v7184
    %7473 = vmatpush1.bf16.msra.mxu0 %v7183
    %7474 = vmatprep.subr.bf16.mxu0 %v7192
    %7475 = vmatpush1.bf16.msra.mxu0 %v7191
    %7476 = vmatprep.mubr.bf16.mxu0 %v6552
    %7477 = vmatmul.mubr.bf16.gmra.mrb[0].mxu0 %v6551
    %v7478 = vpop.f32.mrb[0].mxu0
    %v7479 = vadd.f32 0.0, %v7478
    %v7480 = vpop.f32.mrb[0].mxu0
    %v7481 = vadd.f32 0.0, %v7480
    %v7482 = vpop.f32.mrb[0].mxu0
    %v7483 = vpop.f32.mrb[0].mxu0
    %7484 = vdwg.mxu0
    %v7485 = vld [vmem:[#allocation2 + $0xc0] sm:$0xff]
    %v7486 = vld [vmem:[#allocation2 + $0xc8] sm:$0xff]
    %v7487 = vld [vmem:[#allocation2 + $0xd0] sm:$0xff]
    %v7488 = vld [vmem:[#allocation2 + $0xd8] sm:$0xff]
    %v7489 = vadd.f32 %v7356, %v7485
    %v7490 = vadd.f32 %v7358, %v7486
    %v7491 = vadd.f32 %v7397, %v7487
    %v7492 = vadd.f32 %v7399, %v7488
    %v7493 = vld [vmem:[#allocation3 + $0x20] sm:$0xff]
    %v7494 = vld [vmem:[#allocation3 + $0x28] sm:$0xff]
    %v7495 = vld [vmem:[#allocation3 + $0x30] sm:$0xff]
    %v7496 = vld [vmem:[#allocation3 + $0x38] sm:$0xff]
    %v7497 = vadd.f32 %v7438, %v7493
    %v7498 = vadd.f32 %v7440, %v7494
    %v7499 = vadd.f32 %v7479, %v7495
    %v7500 = vadd.f32 %v7481, %v7496
    %v7501 = vxor.u32 %v7489, 2147483648
    %v7502 = vmul.f32 %v7501, 1.442695
    %v7503 = vpow.pop %v7502
    %v7504 = vadd.f32 %v7503, 1.0
    %v7505 = vrcp.pop %v7504
    %v7506 = vmul.f32 1.0, %v7505
    %v7507 = vxor.u32 %v7490, 2147483648
    %v7508 = vmul.f32 %v7507, 1.442695
    %v7509 = vpow.pop %v7508
    %v7510 = vadd.f32 %v7509, 1.0
    %v7511 = vrcp.pop %v7510
    %v7512 = vmul.f32 1.0, %v7511
    %v7513 = vtanh.pop %v7491
    %v7514 = vxor.u32 %v7492, 2147483648
    %v7515 = vmul.f32 %v7514, 1.442695
    %v7516 = vpow.pop %v7515
    %v7517 = vadd.f32 %v7516, 1.0
    %v7518 = vrcp.pop %v7517
    %v7519 = vmul.f32 1.0, %v7518
    %v7520 = vmul.f32 %v7512, %v6522
    %v7521 = vmul.f32 %v7506, %v7513
    %v7522 = vadd.f32 %v7520, %v7521
    %v7523 = vtanh.pop %v7522
    %v7524 = vmul.f32 %v7519, %v7523
    %v7525 = vxor.u32 %v7497, 2147483648
    %v7526 = vmul.f32 %v7525, 1.442695
    %v7527 = vpow.pop %v7526
    %v7528 = vadd.f32 %v7527, 1.0
    %v7529 = vrcp.pop %v7528
    %v7530 = vmul.f32 1.0, %v7529
    %v7531 = vxor.u32 %v7498, 2147483648
    %v7532 = vmul.f32 %v7531, 1.442695
    %v7533 = vpow.pop %v7532
    %v7534 = vadd.f32 %v7533, 1.0
    %v7535 = vrcp.pop %v7534
    %v7536 = vmul.f32 1.0, %v7535
    %v7537 = vtanh.pop %v7499
    %v7538 = vxor.u32 %v7500, 2147483648
    %v7539 = vmul.f32 %v7538, 1.442695
    %v7540 = vpow.pop %v7539
    %v7541 = vadd.f32 %v7540, 1.0
    %v7542 = vrcp.pop %v7541
    %v7543 = vmul.f32 1.0, %v7542
    %v7544 = vmul.f32 %v7536, %v6546
    %v7545 = vmul.f32 %v7530, %v7537
    %v7546 = vadd.f32 %v7544, %v7545
    %v7547 = vtanh.pop %v7546
    %v7548 = vmul.f32 %v7543, %v7547
    %7549 = vst [vmem:[#allocation4 + $0x60] sm:$0xff] %v7524
    %7550 = vst [vmem:[#allocation4 + $0x68] sm:$0xff] %v7548
    %v7551 = vpack.c.bf16 %v7524, %v7524
    %v7552 = vpack.c.bf16 %v7548, %v7548
    %v7553 = vld [vmem:[#allocation8] sm:$0xff]
    %v7554 = vld [vmem:[#allocation8 + $0x8] sm:$0xff]
    %v7555 = vld [vmem:[#allocation8 + $0x10] sm:$0xff]
    %v7556 = vld [vmem:[#allocation8 + $0x18] sm:$0xff]
    %v7557 = vld [vmem:[#allocation8 + $0x20] sm:$0xff]
    %v7558 = vld [vmem:[#allocation8 + $0x28] sm:$0xff]
    %v7559 = vld [vmem:[#allocation8 + $0x30] sm:$0xff]
    %v7560 = vld [vmem:[#allocation8 + $0x38] sm:$0xff]
    %v7561 = vld [vmem:[#allocation8 + $0x40] sm:$0xff]
    %v7562 = vld [vmem:[#allocation8 + $0x48] sm:$0xff]
    %v7563 = vld [vmem:[#allocation8 + $0x50] sm:$0xff]
    %v7564 = vld [vmem:[#allocation8 + $0x58] sm:$0xff]
    %v7565 = vld [vmem:[#allocation8 + $0x60] sm:$0xff]
    %v7566 = vld [vmem:[#allocation8 + $0x68] sm:$0xff]
    %v7567 = vld [vmem:[#allocation8 + $0x70] sm:$0xff]
    %v7568 = vld [vmem:[#allocation8 + $0x78] sm:$0xff]
    %v7569 = vld [vmem:[#allocation8 + $0x80] sm:$0xff]
    %v7570 = vld [vmem:[#allocation8 + $0x88] sm:$0xff]
    %v7571 = vld [vmem:[#allocation8 + $0x90] sm:$0xff]
    %v7572 = vld [vmem:[#allocation8 + $0x98] sm:$0xff]
    %v7573 = vld [vmem:[#allocation8 + $0xa0] sm:$0xff]
    %v7574 = vld [vmem:[#allocation8 + $0xa8] sm:$0xff]
    %v7575 = vld [vmem:[#allocation8 + $0xb0] sm:$0xff]
    %v7576 = vld [vmem:[#allocation8 + $0xb8] sm:$0xff]
    %v7577 = vld [vmem:[#allocation8 + $0xc0] sm:$0xff]
    %v7578 = vld [vmem:[#allocation8 + $0xc8] sm:$0xff]
    %v7579 = vld [vmem:[#allocation8 + $0xd0] sm:$0xff]
    %v7580 = vld [vmem:[#allocation8 + $0xd8] sm:$0xff]
    %v7581 = vld [vmem:[#allocation8 + $0xe0] sm:$0xff]
    %v7582 = vld [vmem:[#allocation8 + $0xe8] sm:$0xff]
    %v7583 = vld [vmem:[#allocation8 + $0xf0] sm:$0xff]
    %v7584 = vld [vmem:[#allocation8 + $0xf8] sm:$0xff]
    %v7585 = vld [vmem:[#allocation8 + $0x100] sm:$0xff]
    %v7586 = vld [vmem:[#allocation8 + $0x108] sm:$0xff]
    %v7587 = vld [vmem:[#allocation8 + $0x110] sm:$0xff]
    %v7588 = vld [vmem:[#allocation8 + $0x118] sm:$0xff]
    %v7589 = vld [vmem:[#allocation8 + $0x120] sm:$0xff]
    %v7590 = vld [vmem:[#allocation8 + $0x128] sm:$0xff]
    %v7591 = vld [vmem:[#allocation8 + $0x130] sm:$0xff]
    %v7592 = vld [vmem:[#allocation8 + $0x138] sm:$0xff]
    %v7593 = vld [vmem:[#allocation8 + $0x140] sm:$0xff]
    %v7594 = vld [vmem:[#allocation8 + $0x148] sm:$0xff]
    %v7595 = vld [vmem:[#allocation8 + $0x150] sm:$0xff]
    %v7596 = vld [vmem:[#allocation8 + $0x158] sm:$0xff]
    %v7597 = vld [vmem:[#allocation8 + $0x160] sm:$0xff]
    %v7598 = vld [vmem:[#allocation8 + $0x168] sm:$0xff]
    %v7599 = vld [vmem:[#allocation8 + $0x170] sm:$0xff]
    %v7600 = vld [vmem:[#allocation8 + $0x178] sm:$0xff]
    %v7601 = vld [vmem:[#allocation8 + $0x180] sm:$0xff]
    %v7602 = vld [vmem:[#allocation8 + $0x188] sm:$0xff]
    %v7603 = vld [vmem:[#allocation8 + $0x190] sm:$0xff]
    %v7604 = vld [vmem:[#allocation8 + $0x198] sm:$0xff]
    %v7605 = vld [vmem:[#allocation8 + $0x1a0] sm:$0xff]
    %v7606 = vld [vmem:[#allocation8 + $0x1a8] sm:$0xff]
    %v7607 = vld [vmem:[#allocation8 + $0x1b0] sm:$0xff]
    %v7608 = vld [vmem:[#allocation8 + $0x1b8] sm:$0xff]
    %v7609 = vld [vmem:[#allocation8 + $0x1c0] sm:$0xff]
    %v7610 = vld [vmem:[#allocation8 + $0x1c8] sm:$0xff]
    %v7611 = vld [vmem:[#allocation8 + $0x1d0] sm:$0xff]
    %v7612 = vld [vmem:[#allocation8 + $0x1d8] sm:$0xff]
    %v7613 = vld [vmem:[#allocation8 + $0x1e0] sm:$0xff]
    %v7614 = vld [vmem:[#allocation8 + $0x1e8] sm:$0xff]
    %v7615 = vld [vmem:[#allocation8 + $0x1f0] sm:$0xff]
    %v7616 = vld [vmem:[#allocation8 + $0x1f8] sm:$0xff]
    %v7617 = vld [vmem:[#allocation8 + $0x200] sm:$0xff]
    %v7618 = vld [vmem:[#allocation8 + $0x208] sm:$0xff]
    %v7619 = vld [vmem:[#allocation8 + $0x210] sm:$0xff]
    %v7620 = vld [vmem:[#allocation8 + $0x218] sm:$0xff]
    %v7621 = vld [vmem:[#allocation8 + $0x220] sm:$0xff]
    %v7622 = vld [vmem:[#allocation8 + $0x228] sm:$0xff]
    %v7623 = vld [vmem:[#allocation8 + $0x230] sm:$0xff]
    %v7624 = vld [vmem:[#allocation8 + $0x238] sm:$0xff]
    %v7625 = vld [vmem:[#allocation8 + $0x240] sm:$0xff]
    %v7626 = vld [vmem:[#allocation8 + $0x248] sm:$0xff]
    %v7627 = vld [vmem:[#allocation8 + $0x250] sm:$0xff]
    %v7628 = vld [vmem:[#allocation8 + $0x258] sm:$0xff]
    %v7629 = vld [vmem:[#allocation8 + $0x260] sm:$0xff]
    %v7630 = vld [vmem:[#allocation8 + $0x268] sm:$0xff]
    %v7631 = vld [vmem:[#allocation8 + $0x270] sm:$0xff]
    %v7632 = vld [vmem:[#allocation8 + $0x278] sm:$0xff]
    %v7633 = vld [vmem:[#allocation8 + $0x280] sm:$0xff]
    %v7634 = vld [vmem:[#allocation8 + $0x288] sm:$0xff]
    %v7635 = vld [vmem:[#allocation8 + $0x290] sm:$0xff]
    %v7636 = vld [vmem:[#allocation8 + $0x298] sm:$0xff]
    %v7637 = vld [vmem:[#allocation8 + $0x2a0] sm:$0xff]
    %v7638 = vld [vmem:[#allocation8 + $0x2a8] sm:$0xff]
    %v7639 = vld [vmem:[#allocation8 + $0x2b0] sm:$0xff]
    %v7640 = vld [vmem:[#allocation8 + $0x2b8] sm:$0xff]
    %v7641 = vld [vmem:[#allocation8 + $0x2c0] sm:$0xff]
    %v7642 = vld [vmem:[#allocation8 + $0x2c8] sm:$0xff]
    %v7643 = vld [vmem:[#allocation8 + $0x2d0] sm:$0xff]
    %v7644 = vld [vmem:[#allocation8 + $0x2d8] sm:$0xff]
    %v7645 = vld [vmem:[#allocation8 + $0x2e0] sm:$0xff]
    %v7646 = vld [vmem:[#allocation8 + $0x2e8] sm:$0xff]
    %v7647 = vld [vmem:[#allocation8 + $0x2f0] sm:$0xff]
    %v7648 = vld [vmem:[#allocation8 + $0x2f8] sm:$0xff]
    %v7649 = vld [vmem:[#allocation8 + $0x300] sm:$0xff]
    %v7650 = vld [vmem:[#allocation8 + $0x308] sm:$0xff]
    %v7651 = vld [vmem:[#allocation8 + $0x310] sm:$0xff]
    %v7652 = vld [vmem:[#allocation8 + $0x318] sm:$0xff]
    %v7653 = vld [vmem:[#allocation8 + $0x320] sm:$0xff]
    %v7654 = vld [vmem:[#allocation8 + $0x328] sm:$0xff]
    %v7655 = vld [vmem:[#allocation8 + $0x330] sm:$0xff]
    %v7656 = vld [vmem:[#allocation8 + $0x338] sm:$0xff]
    %v7657 = vld [vmem:[#allocation8 + $0x340] sm:$0xff]
    %v7658 = vld [vmem:[#allocation8 + $0x348] sm:$0xff]
    %v7659 = vld [vmem:[#allocation8 + $0x350] sm:$0xff]
    %v7660 = vld [vmem:[#allocation8 + $0x358] sm:$0xff]
    %v7661 = vld [vmem:[#allocation8 + $0x360] sm:$0xff]
    %v7662 = vld [vmem:[#allocation8 + $0x368] sm:$0xff]
    %v7663 = vld [vmem:[#allocation8 + $0x370] sm:$0xff]
    %v7664 = vld [vmem:[#allocation8 + $0x378] sm:$0xff]
    %v7665 = vld [vmem:[#allocation8 + $0x380] sm:$0xff]
    %v7666 = vld [vmem:[#allocation8 + $0x388] sm:$0xff]
    %v7667 = vld [vmem:[#allocation8 + $0x390] sm:$0xff]
    %v7668 = vld [vmem:[#allocation8 + $0x398] sm:$0xff]
    %v7669 = vld [vmem:[#allocation8 + $0x3a0] sm:$0xff]
    %v7670 = vld [vmem:[#allocation8 + $0x3a8] sm:$0xff]
    %v7671 = vld [vmem:[#allocation8 + $0x3b0] sm:$0xff]
    %v7672 = vld [vmem:[#allocation8 + $0x3b8] sm:$0xff]
    %v7673 = vld [vmem:[#allocation8 + $0x3c0] sm:$0xff]
    %v7674 = vld [vmem:[#allocation8 + $0x3c8] sm:$0xff]
    %v7675 = vld [vmem:[#allocation8 + $0x3d0] sm:$0xff]
    %v7676 = vld [vmem:[#allocation8 + $0x3d8] sm:$0xff]
    %v7677 = vld [vmem:[#allocation8 + $0x3e0] sm:$0xff]
    %v7678 = vld [vmem:[#allocation8 + $0x3e8] sm:$0xff]
    %v7679 = vld [vmem:[#allocation8 + $0x3f0] sm:$0xff]
    %v7680 = vld [vmem:[#allocation8 + $0x3f8] sm:$0xff]
    %v7809 = vunpack.c.l.b16 %v7553
    %v7810 = vunpack.c.h.b16 %v7553
    %v7811 = vunpack.c.l.b16 %v7554
    %v7812 = vunpack.c.h.b16 %v7554
    %v7813 = vunpack.c.l.b16 %v7555
    %v7814 = vunpack.c.h.b16 %v7555
    %v7815 = vunpack.c.l.b16 %v7556
    %v7816 = vunpack.c.h.b16 %v7556
    %v7817 = vunpack.c.l.b16 %v7557
    %v7818 = vunpack.c.h.b16 %v7557
    %v7819 = vunpack.c.l.b16 %v7558
    %v7820 = vunpack.c.h.b16 %v7558
    %v7821 = vunpack.c.l.b16 %v7559
    %v7822 = vunpack.c.h.b16 %v7559
    %v7823 = vunpack.c.l.b16 %v7560
    %v7824 = vunpack.c.h.b16 %v7560
    %v7825 = vunpack.c.l.b16 %v7561
    %v7826 = vunpack.c.h.b16 %v7561
    %v7827 = vunpack.c.l.b16 %v7562
    %v7828 = vunpack.c.h.b16 %v7562
    %v7829 = vunpack.c.l.b16 %v7563
    %v7830 = vunpack.c.h.b16 %v7563
    %v7831 = vunpack.c.l.b16 %v7564
    %v7832 = vunpack.c.h.b16 %v7564
    %v7833 = vunpack.c.l.b16 %v7565
    %v7834 = vunpack.c.h.b16 %v7565
    %v7835 = vunpack.c.l.b16 %v7566
    %v7836 = vunpack.c.h.b16 %v7566
    %v7837 = vunpack.c.l.b16 %v7567
    %v7838 = vunpack.c.h.b16 %v7567
    %v7839 = vunpack.c.l.b16 %v7568
    %v7840 = vunpack.c.h.b16 %v7568
    %v7841 = vunpack.c.l.b16 %v7569
    %v7842 = vunpack.c.h.b16 %v7569
    %v7843 = vunpack.c.l.b16 %v7570
    %v7844 = vunpack.c.h.b16 %v7570
    %v7845 = vunpack.c.l.b16 %v7571
    %v7846 = vunpack.c.h.b16 %v7571
    %v7847 = vunpack.c.l.b16 %v7572
    %v7848 = vunpack.c.h.b16 %v7572
    %v7849 = vunpack.c.l.b16 %v7573
    %v7850 = vunpack.c.h.b16 %v7573
    %v7851 = vunpack.c.l.b16 %v7574
    %v7852 = vunpack.c.h.b16 %v7574
    %v7853 = vunpack.c.l.b16 %v7575
    %v7854 = vunpack.c.h.b16 %v7575
    %v7855 = vunpack.c.l.b16 %v7576
    %v7856 = vunpack.c.h.b16 %v7576
    %v7857 = vunpack.c.l.b16 %v7577
    %v7858 = vunpack.c.h.b16 %v7577
    %v7859 = vunpack.c.l.b16 %v7578
    %v7860 = vunpack.c.h.b16 %v7578
    %v7861 = vunpack.c.l.b16 %v7579
    %v7862 = vunpack.c.h.b16 %v7579
    %v7863 = vunpack.c.l.b16 %v7580
    %v7864 = vunpack.c.h.b16 %v7580
    %v7865 = vunpack.c.l.b16 %v7581
    %v7866 = vunpack.c.h.b16 %v7581
    %v7867 = vunpack.c.l.b16 %v7582
    %v7868 = vunpack.c.h.b16 %v7582
    %v7869 = vunpack.c.l.b16 %v7583
    %v7870 = vunpack.c.h.b16 %v7583
    %v7871 = vunpack.c.l.b16 %v7584
    %v7872 = vunpack.c.h.b16 %v7584
    %v7873 = vunpack.c.l.b16 %v7585
    %v7874 = vunpack.c.h.b16 %v7585
    %v7875 = vunpack.c.l.b16 %v7586
    %v7876 = vunpack.c.h.b16 %v7586
    %v7877 = vunpack.c.l.b16 %v7587
    %v7878 = vunpack.c.h.b16 %v7587
    %v7879 = vunpack.c.l.b16 %v7588
    %v7880 = vunpack.c.h.b16 %v7588
    %v7881 = vunpack.c.l.b16 %v7589
    %v7882 = vunpack.c.h.b16 %v7589
    %v7883 = vunpack.c.l.b16 %v7590
    %v7884 = vunpack.c.h.b16 %v7590
    %v7885 = vunpack.c.l.b16 %v7591
    %v7886 = vunpack.c.h.b16 %v7591
    %v7887 = vunpack.c.l.b16 %v7592
    %v7888 = vunpack.c.h.b16 %v7592
    %v7889 = vunpack.c.l.b16 %v7593
    %v7890 = vunpack.c.h.b16 %v7593
    %v7891 = vunpack.c.l.b16 %v7594
    %v7892 = vunpack.c.h.b16 %v7594
    %v7893 = vunpack.c.l.b16 %v7595
    %v7894 = vunpack.c.h.b16 %v7595
    %v7895 = vunpack.c.l.b16 %v7596
    %v7896 = vunpack.c.h.b16 %v7596
    %v7897 = vunpack.c.l.b16 %v7597
    %v7898 = vunpack.c.h.b16 %v7597
    %v7899 = vunpack.c.l.b16 %v7598
    %v7900 = vunpack.c.h.b16 %v7598
    %v7901 = vunpack.c.l.b16 %v7599
    %v7902 = vunpack.c.h.b16 %v7599
    %v7903 = vunpack.c.l.b16 %v7600
    %v7904 = vunpack.c.h.b16 %v7600
    %v7905 = vunpack.c.l.b16 %v7601
    %v7906 = vunpack.c.h.b16 %v7601
    %v7907 = vunpack.c.l.b16 %v7602
    %v7908 = vunpack.c.h.b16 %v7602
    %v7909 = vunpack.c.l.b16 %v7603
    %v7910 = vunpack.c.h.b16 %v7603
    %v7911 = vunpack.c.l.b16 %v7604
    %v7912 = vunpack.c.h.b16 %v7604
    %v7913 = vunpack.c.l.b16 %v7605
    %v7914 = vunpack.c.h.b16 %v7605
    %v7915 = vunpack.c.l.b16 %v7606
    %v7916 = vunpack.c.h.b16 %v7606
    %v7917 = vunpack.c.l.b16 %v7607
    %v7918 = vunpack.c.h.b16 %v7607
    %v7919 = vunpack.c.l.b16 %v7608
    %v7920 = vunpack.c.h.b16 %v7608
    %v7921 = vunpack.c.l.b16 %v7609
    %v7922 = vunpack.c.h.b16 %v7609
    %v7923 = vunpack.c.l.b16 %v7610
    %v7924 = vunpack.c.h.b16 %v7610
    %v7925 = vunpack.c.l.b16 %v7611
    %v7926 = vunpack.c.h.b16 %v7611
    %v7927 = vunpack.c.l.b16 %v7612
    %v7928 = vunpack.c.h.b16 %v7612
    %v7929 = vunpack.c.l.b16 %v7613
    %v7930 = vunpack.c.h.b16 %v7613
    %v7931 = vunpack.c.l.b16 %v7614
    %v7932 = vunpack.c.h.b16 %v7614
    %v7933 = vunpack.c.l.b16 %v7615
    %v7934 = vunpack.c.h.b16 %v7615
    %v7935 = vunpack.c.l.b16 %v7616
    %v7936 = vunpack.c.h.b16 %v7616
    %v7937 = vunpack.c.l.b16 %v7617
    %v7938 = vunpack.c.h.b16 %v7617
    %v7939 = vunpack.c.l.b16 %v7618
    %v7940 = vunpack.c.h.b16 %v7618
    %v7941 = vunpack.c.l.b16 %v7619
    %v7942 = vunpack.c.h.b16 %v7619
    %v7943 = vunpack.c.l.b16 %v7620
    %v7944 = vunpack.c.h.b16 %v7620
    %v7945 = vunpack.c.l.b16 %v7621
    %v7946 = vunpack.c.h.b16 %v7621
    %v7947 = vunpack.c.l.b16 %v7622
    %v7948 = vunpack.c.h.b16 %v7622
    %v7949 = vunpack.c.l.b16 %v7623
    %v7950 = vunpack.c.h.b16 %v7623
    %v7951 = vunpack.c.l.b16 %v7624
    %v7952 = vunpack.c.h.b16 %v7624
    %v7953 = vunpack.c.l.b16 %v7625
    %v7954 = vunpack.c.h.b16 %v7625
    %v7955 = vunpack.c.l.b16 %v7626
    %v7956 = vunpack.c.h.b16 %v7626
    %v7957 = vunpack.c.l.b16 %v7627
    %v7958 = vunpack.c.h.b16 %v7627
    %v7959 = vunpack.c.l.b16 %v7628
    %v7960 = vunpack.c.h.b16 %v7628
    %v7961 = vunpack.c.l.b16 %v7629
    %v7962 = vunpack.c.h.b16 %v7629
    %v7963 = vunpack.c.l.b16 %v7630
    %v7964 = vunpack.c.h.b16 %v7630
    %v7965 = vunpack.c.l.b16 %v7631
    %v7966 = vunpack.c.h.b16 %v7631
    %v7967 = vunpack.c.l.b16 %v7632
    %v7968 = vunpack.c.h.b16 %v7632
    %v7969 = vunpack.c.l.b16 %v7633
    %v7970 = vunpack.c.h.b16 %v7633
    %v7971 = vunpack.c.l.b16 %v7634
    %v7972 = vunpack.c.h.b16 %v7634
    %v7973 = vunpack.c.l.b16 %v7635
    %v7974 = vunpack.c.h.b16 %v7635
    %v7975 = vunpack.c.l.b16 %v7636
    %v7976 = vunpack.c.h.b16 %v7636
    %v7977 = vunpack.c.l.b16 %v7637
    %v7978 = vunpack.c.h.b16 %v7637
    %v7979 = vunpack.c.l.b16 %v7638
    %v7980 = vunpack.c.h.b16 %v7638
    %v7981 = vunpack.c.l.b16 %v7639
    %v7982 = vunpack.c.h.b16 %v7639
    %v7983 = vunpack.c.l.b16 %v7640
    %v7984 = vunpack.c.h.b16 %v7640
    %v7985 = vunpack.c.l.b16 %v7641
    %v7986 = vunpack.c.h.b16 %v7641
    %v7987 = vunpack.c.l.b16 %v7642
    %v7988 = vunpack.c.h.b16 %v7642
    %v7989 = vunpack.c.l.b16 %v7643
    %v7990 = vunpack.c.h.b16 %v7643
    %v7991 = vunpack.c.l.b16 %v7644
    %v7992 = vunpack.c.h.b16 %v7644
    %v7993 = vunpack.c.l.b16 %v7645
    %v7994 = vunpack.c.h.b16 %v7645
    %v7995 = vunpack.c.l.b16 %v7646
    %v7996 = vunpack.c.h.b16 %v7646
    %v7997 = vunpack.c.l.b16 %v7647
    %v7998 = vunpack.c.h.b16 %v7647
    %v7999 = vunpack.c.l.b16 %v7648
    %v8000 = vunpack.c.h.b16 %v7648
    %v8001 = vunpack.c.l.b16 %v7649
    %v8002 = vunpack.c.h.b16 %v7649
    %v8003 = vunpack.c.l.b16 %v7650
    %v8004 = vunpack.c.h.b16 %v7650
    %v8005 = vunpack.c.l.b16 %v7651
    %v8006 = vunpack.c.h.b16 %v7651
    %v8007 = vunpack.c.l.b16 %v7652
    %v8008 = vunpack.c.h.b16 %v7652
    %v8009 = vunpack.c.l.b16 %v7653
    %v8010 = vunpack.c.h.b16 %v7653
    %v8011 = vunpack.c.l.b16 %v7654
    %v8012 = vunpack.c.h.b16 %v7654
    %v8013 = vunpack.c.l.b16 %v7655
    %v8014 = vunpack.c.h.b16 %v7655
    %v8015 = vunpack.c.l.b16 %v7656
    %v8016 = vunpack.c.h.b16 %v7656
    %v8017 = vunpack.c.l.b16 %v7657
    %v8018 = vunpack.c.h.b16 %v7657
    %v8019 = vunpack.c.l.b16 %v7658
    %v8020 = vunpack.c.h.b16 %v7658
    %v8021 = vunpack.c.l.b16 %v7659
    %v8022 = vunpack.c.h.b16 %v7659
    %v8023 = vunpack.c.l.b16 %v7660
    %v8024 = vunpack.c.h.b16 %v7660
    %v8025 = vunpack.c.l.b16 %v7661
    %v8026 = vunpack.c.h.b16 %v7661
    %v8027 = vunpack.c.l.b16 %v7662
    %v8028 = vunpack.c.h.b16 %v7662
    %v8029 = vunpack.c.l.b16 %v7663
    %v8030 = vunpack.c.h.b16 %v7663
    %v8031 = vunpack.c.l.b16 %v7664
    %v8032 = vunpack.c.h.b16 %v7664
    %v8033 = vunpack.c.l.b16 %v7665
    %v8034 = vunpack.c.h.b16 %v7665
    %v8035 = vunpack.c.l.b16 %v7666
    %v8036 = vunpack.c.h.b16 %v7666
    %v8037 = vunpack.c.l.b16 %v7667
    %v8038 = vunpack.c.h.b16 %v7667
    %v8039 = vunpack.c.l.b16 %v7668
    %v8040 = vunpack.c.h.b16 %v7668
    %v8041 = vunpack.c.l.b16 %v7669
    %v8042 = vunpack.c.h.b16 %v7669
    %v8043 = vunpack.c.l.b16 %v7670
    %v8044 = vunpack.c.h.b16 %v7670
    %v8045 = vunpack.c.l.b16 %v7671
    %v8046 = vunpack.c.h.b16 %v7671
    %v8047 = vunpack.c.l.b16 %v7672
    %v8048 = vunpack.c.h.b16 %v7672
    %v8049 = vunpack.c.l.b16 %v7673
    %v8050 = vunpack.c.h.b16 %v7673
    %v8051 = vunpack.c.l.b16 %v7674
    %v8052 = vunpack.c.h.b16 %v7674
    %v8053 = vunpack.c.l.b16 %v7675
    %v8054 = vunpack.c.h.b16 %v7675
    %v8055 = vunpack.c.l.b16 %v7676
    %v8056 = vunpack.c.h.b16 %v7676
    %v8057 = vunpack.c.l.b16 %v7677
    %v8058 = vunpack.c.h.b16 %v7677
    %v8059 = vunpack.c.l.b16 %v7678
    %v8060 = vunpack.c.h.b16 %v7678
    %v8061 = vunpack.c.l.b16 %v7679
    %v8062 = vunpack.c.h.b16 %v7679
    %v8063 = vunpack.c.l.b16 %v7680
    %v8064 = vunpack.c.h.b16 %v7680
    %v8065 = vpack.c.b16 %v7817, %v7809
    %v8066 = vpack.c.b16 %v7818, %v7810
    %v8067 = vpack.c.b16 %v7819, %v7811
    %v8068 = vpack.c.b16 %v7820, %v7812
    %v8069 = vpack.c.b16 %v7821, %v7813
    %v8070 = vpack.c.b16 %v7822, %v7814
    %v8071 = vpack.c.b16 %v7823, %v7815
    %v8072 = vpack.c.b16 %v7824, %v7816
    %v8073 = vpack.c.b16 %v7833, %v7825
    %v8074 = vpack.c.b16 %v7834, %v7826
    %v8075 = vpack.c.b16 %v7835, %v7827
    %v8076 = vpack.c.b16 %v7836, %v7828
    %v8077 = vpack.c.b16 %v7837, %v7829
    %v8078 = vpack.c.b16 %v7838, %v7830
    %v8079 = vpack.c.b16 %v7839, %v7831
    %v8080 = vpack.c.b16 %v7840, %v7832
    %v8081 = vpack.c.b16 %v7849, %v7841
    %v8082 = vpack.c.b16 %v7850, %v7842
    %v8083 = vpack.c.b16 %v7851, %v7843
    %v8084 = vpack.c.b16 %v7852, %v7844
    %v8085 = vpack.c.b16 %v7853, %v7845
    %v8086 = vpack.c.b16 %v7854, %v7846
    %v8087 = vpack.c.b16 %v7855, %v7847
    %v8088 = vpack.c.b16 %v7856, %v7848
    %v8089 = vpack.c.b16 %v7865, %v7857
    %v8090 = vpack.c.b16 %v7866, %v7858
    %v8091 = vpack.c.b16 %v7867, %v7859
    %v8092 = vpack.c.b16 %v7868, %v7860
    %v8093 = vpack.c.b16 %v7869, %v7861
    %v8094 = vpack.c.b16 %v7870, %v7862
    %v8095 = vpack.c.b16 %v7871, %v7863
    %v8096 = vpack.c.b16 %v7872, %v7864
    %v8097 = vpack.c.b16 %v7881, %v7873
    %v8098 = vpack.c.b16 %v7882, %v7874
    %v8099 = vpack.c.b16 %v7883, %v7875
    %v8100 = vpack.c.b16 %v7884, %v7876
    %v8101 = vpack.c.b16 %v7885, %v7877
    %v8102 = vpack.c.b16 %v7886, %v7878
    %v8103 = vpack.c.b16 %v7887, %v7879
    %v8104 = vpack.c.b16 %v7888, %v7880
    %v8105 = vpack.c.b16 %v7897, %v7889
    %v8106 = vpack.c.b16 %v7898, %v7890
    %v8107 = vpack.c.b16 %v7899, %v7891
    %v8108 = vpack.c.b16 %v7900, %v7892
    %v8109 = vpack.c.b16 %v7901, %v7893
    %v8110 = vpack.c.b16 %v7902, %v7894
    %v8111 = vpack.c.b16 %v7903, %v7895
    %v8112 = vpack.c.b16 %v7904, %v7896
    %v8113 = vpack.c.b16 %v7913, %v7905
    %v8114 = vpack.c.b16 %v7914, %v7906
    %v8115 = vpack.c.b16 %v7915, %v7907
    %v8116 = vpack.c.b16 %v7916, %v7908
    %v8117 = vpack.c.b16 %v7917, %v7909
    %v8118 = vpack.c.b16 %v7918, %v7910
    %v8119 = vpack.c.b16 %v7919, %v7911
    %v8120 = vpack.c.b16 %v7920, %v7912
    %v8121 = vpack.c.b16 %v7929, %v7921
    %v8122 = vpack.c.b16 %v7930, %v7922
    %v8123 = vpack.c.b16 %v7931, %v7923
    %v8124 = vpack.c.b16 %v7932, %v7924
    %v8125 = vpack.c.b16 %v7933, %v7925
    %v8126 = vpack.c.b16 %v7934, %v7926
    %v8127 = vpack.c.b16 %v7935, %v7927
    %v8128 = vpack.c.b16 %v7936, %v7928
    %v8129 = vpack.c.b16 %v7945, %v7937
    %v8130 = vpack.c.b16 %v7946, %v7938
    %v8131 = vpack.c.b16 %v7947, %v7939
    %v8132 = vpack.c.b16 %v7948, %v7940
    %v8133 = vpack.c.b16 %v7949, %v7941
    %v8134 = vpack.c.b16 %v7950, %v7942
    %v8135 = vpack.c.b16 %v7951, %v7943
    %v8136 = vpack.c.b16 %v7952, %v7944
    %v8137 = vpack.c.b16 %v7961, %v7953
    %v8138 = vpack.c.b16 %v7962, %v7954
    %v8139 = vpack.c.b16 %v7963, %v7955
    %v8140 = vpack.c.b16 %v7964, %v7956
    %v8141 = vpack.c.b16 %v7965, %v7957
    %v8142 = vpack.c.b16 %v7966, %v7958
    %v8143 = vpack.c.b16 %v7967, %v7959
    %v8144 = vpack.c.b16 %v7968, %v7960
    %v8145 = vpack.c.b16 %v7977, %v7969
    %v8146 = vpack.c.b16 %v7978, %v7970
    %v8147 = vpack.c.b16 %v7979, %v7971
    %v8148 = vpack.c.b16 %v7980, %v7972
    %v8149 = vpack.c.b16 %v7981, %v7973
    %v8150 = vpack.c.b16 %v7982, %v7974
    %v8151 = vpack.c.b16 %v7983, %v7975
    %v8152 = vpack.c.b16 %v7984, %v7976
    %v8153 = vpack.c.b16 %v7993, %v7985
    %v8154 = vpack.c.b16 %v7994, %v7986
    %v8155 = vpack.c.b16 %v7995, %v7987
    %v8156 = vpack.c.b16 %v7996, %v7988
    %v8157 = vpack.c.b16 %v7997, %v7989
    %v8158 = vpack.c.b16 %v7998, %v7990
    %v8159 = vpack.c.b16 %v7999, %v7991
    %v8160 = vpack.c.b16 %v8000, %v7992
    %v8161 = vpack.c.b16 %v8009, %v8001
    %v8162 = vpack.c.b16 %v8010, %v8002
    %v8163 = vpack.c.b16 %v8011, %v8003
    %v8164 = vpack.c.b16 %v8012, %v8004
    %v8165 = vpack.c.b16 %v8013, %v8005
    %v8166 = vpack.c.b16 %v8014, %v8006
    %v8167 = vpack.c.b16 %v8015, %v8007
    %v8168 = vpack.c.b16 %v8016, %v8008
    %v8169 = vpack.c.b16 %v8025, %v8017
    %v8170 = vpack.c.b16 %v8026, %v8018
    %v8171 = vpack.c.b16 %v8027, %v8019
    %v8172 = vpack.c.b16 %v8028, %v8020
    %v8173 = vpack.c.b16 %v8029, %v8021
    %v8174 = vpack.c.b16 %v8030, %v8022
    %v8175 = vpack.c.b16 %v8031, %v8023
    %v8176 = vpack.c.b16 %v8032, %v8024
    %v8177 = vpack.c.b16 %v8041, %v8033
    %v8178 = vpack.c.b16 %v8042, %v8034
    %v8179 = vpack.c.b16 %v8043, %v8035
    %v8180 = vpack.c.b16 %v8044, %v8036
    %v8181 = vpack.c.b16 %v8045, %v8037
    %v8182 = vpack.c.b16 %v8046, %v8038
    %v8183 = vpack.c.b16 %v8047, %v8039
    %v8184 = vpack.c.b16 %v8048, %v8040
    %v8185 = vpack.c.b16 %v8057, %v8049
    %v8186 = vpack.c.b16 %v8058, %v8050
    %v8187 = vpack.c.b16 %v8059, %v8051
    %v8188 = vpack.c.b16 %v8060, %v8052
    %v8189 = vpack.c.b16 %v8061, %v8053
    %v8190 = vpack.c.b16 %v8062, %v8054
    %v8191 = vpack.c.b16 %v8063, %v8055
    %v8192 = vpack.c.b16 %v8064, %v8056
    %8321 = vmatprep.subr.bf16.mxu0 %v8066
    %8322 = vmatpush1.bf16.msra.mxu0 %v8065
    %8323 = vmatprep.subr.bf16.mxu0 %v8074
    %8324 = vmatpush1.bf16.msra.mxu0 %v8073
    %8325 = vmatprep.subr.bf16.mxu0 %v8082
    %8326 = vmatpush1.bf16.msra.mxu0 %v8081
    %8327 = vmatprep.subr.bf16.mxu0 %v8090
    %8328 = vmatpush1.bf16.msra.mxu0 %v8089
    %8329 = vmatprep.subr.bf16.mxu0 %v8098
    %8330 = vmatpush1.bf16.msra.mxu0 %v8097
    %8331 = vmatprep.subr.bf16.mxu0 %v8106
    %8332 = vmatpush1.bf16.msra.mxu0 %v8105
    %8333 = vmatprep.subr.bf16.mxu0 %v8114
    %8334 = vmatpush1.bf16.msra.mxu0 %v8113
    %8335 = vmatprep.subr.bf16.mxu0 %v8122
    %8336 = vmatpush1.bf16.msra.mxu0 %v8121
    %8337 = vmatprep.subr.bf16.mxu0 %v8130
    %8338 = vmatpush1.bf16.msra.mxu0 %v8129
    %8339 = vmatprep.subr.bf16.mxu0 %v8138
    %8340 = vmatpush1.bf16.msra.mxu0 %v8137
    %8341 = vmatprep.subr.bf16.mxu0 %v8146
    %8342 = vmatpush1.bf16.msra.mxu0 %v8145
    %8343 = vmatprep.subr.bf16.mxu0 %v8154
    %8344 = vmatpush1.bf16.msra.mxu0 %v8153
    %8345 = vmatprep.subr.bf16.mxu0 %v8162
    %8346 = vmatpush1.bf16.msra.mxu0 %v8161
    %8347 = vmatprep.subr.bf16.mxu0 %v8170
    %8348 = vmatpush1.bf16.msra.mxu0 %v8169
    %8349 = vmatprep.subr.bf16.mxu0 %v8178
    %8350 = vmatpush1.bf16.msra.mxu0 %v8177
    %8351 = vmatprep.subr.bf16.mxu0 %v8186
    %8352 = vmatpush1.bf16.msra.mxu0 %v8185
    %8353 = vmatprep.mubr.bf16.mxu0 %v7552
    %8354 = vmatmul.mubr.bf16.gmra.mrb[0].mxu0 %v7551
    %v8355 = vpop.f32.mrb[0].mxu0
    %v8356 = vadd.f32 0.0, %v8355
    %v8357 = vpop.f32.mrb[0].mxu0
    %v8358 = vadd.f32 0.0, %v8357
    %v8359 = vpop.f32.mrb[0].mxu0
    %v8360 = vpop.f32.mrb[0].mxu0
    %8361 = vdwg.mxu0
    %8362 = vmatprep.subr.bf16.mxu0 %v8068
    %8363 = vmatpush1.bf16.msra.mxu0 %v8067
    %8364 = vmatprep.subr.bf16.mxu0 %v8076
    %8365 = vmatpush1.bf16.msra.mxu0 %v8075
    %8366 = vmatprep.subr.bf16.mxu0 %v8084
    %8367 = vmatpush1.bf16.msra.mxu0 %v8083
    %8368 = vmatprep.subr.bf16.mxu0 %v8092
    %8369 = vmatpush1.bf16.msra.mxu0 %v8091
    %8370 = vmatprep.subr.bf16.mxu0 %v8100
    %8371 = vmatpush1.bf16.msra.mxu0 %v8099
    %8372 = vmatprep.subr.bf16.mxu0 %v8108
    %8373 = vmatpush1.bf16.msra.mxu0 %v8107
    %8374 = vmatprep.subr.bf16.mxu0 %v8116
    %8375 = vmatpush1.bf16.msra.mxu0 %v8115
    %8376 = vmatprep.subr.bf16.mxu0 %v8124
    %8377 = vmatpush1.bf16.msra.mxu0 %v8123
    %8378 = vmatprep.subr.bf16.mxu0 %v8132
    %8379 = vmatpush1.bf16.msra.mxu0 %v8131
    %8380 = vmatprep.subr.bf16.mxu0 %v8140
    %8381 = vmatpush1.bf16.msra.mxu0 %v8139
    %8382 = vmatprep.subr.bf16.mxu0 %v8148
    %8383 = vmatpush1.bf16.msra.mxu0 %v8147
    %8384 = vmatprep.subr.bf16.mxu0 %v8156
    %8385 = vmatpush1.bf16.msra.mxu0 %v8155
    %8386 = vmatprep.subr.bf16.mxu0 %v8164
    %8387 = vmatpush1.bf16.msra.mxu0 %v8163
    %8388 = vmatprep.subr.bf16.mxu0 %v8172
    %8389 = vmatpush1.bf16.msra.mxu0 %v8171
    %8390 = vmatprep.subr.bf16.mxu0 %v8180
    %8391 = vmatpush1.bf16.msra.mxu0 %v8179
    %8392 = vmatprep.subr.bf16.mxu0 %v8188
    %8393 = vmatpush1.bf16.msra.mxu0 %v8187
    %8394 = vmatprep.mubr.bf16.mxu0 %v7552
    %8395 = vmatmul.mubr.bf16.gmra.mrb[0].mxu0 %v7551
    %v8396 = vpop.f32.mrb[0].mxu0
    %v8397 = vadd.f32 0.0, %v8396
    %v8398 = vpop.f32.mrb[0].mxu0
    %v8399 = vadd.f32 0.0, %v8398
    %v8400 = vpop.f32.mrb[0].mxu0
    %v8401 = vpop.f32.mrb[0].mxu0
    %8402 = vdwg.mxu0
    %8403 = vmatprep.subr.bf16.mxu0 %v8070
    %8404 = vmatpush1.bf16.msra.mxu0 %v8069
    %8405 = vmatprep.subr.bf16.mxu0 %v8078
    %8406 = vmatpush1.bf16.msra.mxu0 %v8077
    %8407 = vmatprep.subr.bf16.mxu0 %v8086
    %8408 = vmatpush1.bf16.msra.mxu0 %v8085
    %8409 = vmatprep.subr.bf16.mxu0 %v8094
    %8410 = vmatpush1.bf16.msra.mxu0 %v8093
    %8411 = vmatprep.subr.bf16.mxu0 %v8102
    %8412 = vmatpush1.bf16.msra.mxu0 %v8101
    %8413 = vmatprep.subr.bf16.mxu0 %v8110
    %8414 = vmatpush1.bf16.msra.mxu0 %v8109
    %8415 = vmatprep.subr.bf16.mxu0 %v8118
    %8416 = vmatpush1.bf16.msra.mxu0 %v8117
    %8417 = vmatprep.subr.bf16.mxu0 %v8126
    %8418 = vmatpush1.bf16.msra.mxu0 %v8125
    %8419 = vmatprep.subr.bf16.mxu0 %v8134
    %8420 = vmatpush1.bf16.msra.mxu0 %v8133
    %8421 = vmatprep.subr.bf16.mxu0 %v8142
    %8422 = vmatpush1.bf16.msra.mxu0 %v8141
    %8423 = vmatprep.subr.bf16.mxu0 %v8150
    %8424 = vmatpush1.bf16.msra.mxu0 %v8149
    %8425 = vmatprep.subr.bf16.mxu0 %v8158
    %8426 = vmatpush1.bf16.msra.mxu0 %v8157
    %8427 = vmatprep.subr.bf16.mxu0 %v8166
    %8428 = vmatpush1.bf16.msra.mxu0 %v8165
    %8429 = vmatprep.subr.bf16.mxu0 %v8174
    %8430 = vmatpush1.bf16.msra.mxu0 %v8173
    %8431 = vmatprep.subr.bf16.mxu0 %v8182
    %8432 = vmatpush1.bf16.msra.mxu0 %v8181
    %8433 = vmatprep.subr.bf16.mxu0 %v8190
    %8434 = vmatpush1.bf16.msra.mxu0 %v8189
    %8435 = vmatprep.mubr.bf16.mxu0 %v7552
    %8436 = vmatmul.mubr.bf16.gmra.mrb[0].mxu0 %v7551
    %v8437 = vpop.f32.mrb[0].mxu0
    %v8438 = vadd.f32 0.0, %v8437
    %v8439 = vpop.f32.mrb[0].mxu0
    %v8440 = vadd.f32 0.0, %v8439
    %v8441 = vpop.f32.mrb[0].mxu0
    %v8442 = vpop.f32.mrb[0].mxu0
    %8443 = vdwg.mxu0
    %8444 = vmatprep.subr.bf16.mxu0 %v8072
    %8445 = vmatpush1.bf16.msra.mxu0 %v8071
    %8446 = vmatprep.subr.bf16.mxu0 %v8080
    %8447 = vmatpush1.bf16.msra.mxu0 %v8079
    %8448 = vmatprep.subr.bf16.mxu0 %v8088
    %8449 = vmatpush1.bf16.msra.mxu0 %v8087
    %8450 = vmatprep.subr.bf16.mxu0 %v8096
    %8451 = vmatpush1.bf16.msra.mxu0 %v8095
    %8452 = vmatprep.subr.bf16.mxu0 %v8104
    %8453 = vmatpush1.bf16.msra.mxu0 %v8103
    %8454 = vmatprep.subr.bf16.mxu0 %v8112
    %8455 = vmatpush1.bf16.msra.mxu0 %v8111
    %8456 = vmatprep.subr.bf16.mxu0 %v8120
    %8457 = vmatpush1.bf16.msra.mxu0 %v8119
    %8458 = vmatprep.subr.bf16.mxu0 %v8128
    %8459 = vmatpush1.bf16.msra.mxu0 %v8127
    %8460 = vmatprep.subr.bf16.mxu0 %v8136
    %8461 = vmatpush1.bf16.msra.mxu0 %v8135
    %8462 = vmatprep.subr.bf16.mxu0 %v8144
    %8463 = vmatpush1.bf16.msra.mxu0 %v8143
    %8464 = vmatprep.subr.bf16.mxu0 %v8152
    %8465 = vmatpush1.bf16.msra.mxu0 %v8151
    %8466 = vmatprep.subr.bf16.mxu0 %v8160
    %8467 = vmatpush1.bf16.msra.mxu0 %v8159
    %8468 = vmatprep.subr.bf16.mxu0 %v8168
    %8469 = vmatpush1.bf16.msra.mxu0 %v8167
    %8470 = vmatprep.subr.bf16.mxu0 %v8176
    %8471 = vmatpush1.bf16.msra.mxu0 %v8175
    %8472 = vmatprep.subr.bf16.mxu0 %v8184
    %8473 = vmatpush1.bf16.msra.mxu0 %v8183
    %8474 = vmatprep.subr.bf16.mxu0 %v8192
    %8475 = vmatpush1.bf16.msra.mxu0 %v8191
    %8476 = vmatprep.mubr.bf16.mxu0 %v7552
    %8477 = vmatmul.mubr.bf16.gmra.mrb[0].mxu0 %v7551
    %v8478 = vpop.f32.mrb[0].mxu0
    %v8479 = vadd.f32 0.0, %v8478
    %v8480 = vpop.f32.mrb[0].mxu0
    %v8481 = vadd.f32 0.0, %v8480
    %v8482 = vpop.f32.mrb[0].mxu0
    %v8483 = vpop.f32.mrb[0].mxu0
    %8484 = vdwg.mxu0
    %v8485 = vld [vmem:[#allocation2 + $0xe0] sm:$0xff]
    %v8486 = vld [vmem:[#allocation2 + $0xe8] sm:$0xff]
    %v8487 = vld [vmem:[#allocation2 + $0xf0] sm:$0xff]
    %v8488 = vld [vmem:[#allocation2 + $0xf8] sm:$0xff]
    %v8489 = vadd.f32 %v8356, %v8485
    %v8490 = vadd.f32 %v8358, %v8486
    %v8491 = vadd.f32 %v8397, %v8487
    %v8492 = vadd.f32 %v8399, %v8488
    %v8493 = vld [vmem:[#allocation3] sm:$0xff]
    %v8494 = vld [vmem:[#allocation3 + $0x8] sm:$0xff]
    %v8495 = vld [vmem:[#allocation3 + $0x10] sm:$0xff]
    %v8496 = vld [vmem:[#allocation3 + $0x18] sm:$0xff]
    %v8497 = vadd.f32 %v8438, %v8493
    %v8498 = vadd.f32 %v8440, %v8494
    %v8499 = vadd.f32 %v8479, %v8495
    %v8500 = vadd.f32 %v8481, %v8496
    %v8501 = vxor.u32 %v8489, 2147483648
    %v8502 = vmul.f32 %v8501, 1.442695
    %v8503 = vpow.pop %v8502
    %v8504 = vadd.f32 %v8503, 1.0
    %v8505 = vrcp.pop %v8504
    %v8506 = vmul.f32 1.0, %v8505
    %v8507 = vxor.u32 %v8490, 2147483648
    %v8508 = vmul.f32 %v8507, 1.442695
    %v8509 = vpow.pop %v8508
    %v8510 = vadd.f32 %v8509, 1.0
    %v8511 = vrcp.pop %v8510
    %v8512 = vmul.f32 1.0, %v8511
    %v8513 = vtanh.pop %v8491
    %v8514 = vxor.u32 %v8492, 2147483648
    %v8515 = vmul.f32 %v8514, 1.442695
    %v8516 = vpow.pop %v8515
    %v8517 = vadd.f32 %v8516, 1.0
    %v8518 = vrcp.pop %v8517
    %v8519 = vmul.f32 1.0, %v8518
    %v8520 = vmul.f32 %v8512, %v7522
    %v8521 = vmul.f32 %v8506, %v8513
    %v8522 = vadd.f32 %v8520, %v8521
    %v8523 = vtanh.pop %v8522
    %v8524 = vmul.f32 %v8519, %v8523
    %v8525 = vxor.u32 %v8497, 2147483648
    %v8526 = vmul.f32 %v8525, 1.442695
    %v8527 = vpow.pop %v8526
    %v8528 = vadd.f32 %v8527, 1.0
    %v8529 = vrcp.pop %v8528
    %v8530 = vmul.f32 1.0, %v8529
    %v8531 = vxor.u32 %v8498, 2147483648
    %v8532 = vmul.f32 %v8531, 1.442695
    %v8533 = vpow.pop %v8532
    %v8534 = vadd.f32 %v8533, 1.0
    %v8535 = vrcp.pop %v8534
    %v8536 = vmul.f32 1.0, %v8535
    %v8537 = vtanh.pop %v8499
    %v8538 = vxor.u32 %v8500, 2147483648
    %v8539 = vmul.f32 %v8538, 1.442695
    %v8540 = vpow.pop %v8539
    %v8541 = vadd.f32 %v8540, 1.0
    %v8542 = vrcp.pop %v8541
    %v8543 = vmul.f32 1.0, %v8542
    %v8544 = vmul.f32 %v8536, %v7546
    %v8545 = vmul.f32 %v8530, %v8537
    %v8546 = vadd.f32 %v8544, %v8545
    %v8547 = vtanh.pop %v8546
    %v8548 = vmul.f32 %v8543, %v8547
    %8549 = vst [vmem:[#allocation4 + $0x70] sm:$0xff] %v8524
    %8550 = vst [vmem:[#allocation4 + $0x78] sm:$0xff] %v8548
    %v8551 = vld [vmem:[#allocation4] sm:$0xff]
    %v8552 = vld [vmem:[#allocation4 + $0x8] sm:$0xff]
    %v8553 = vld [vmem:[#allocation4 + $0x10] sm:$0xff]
    %v8554 = vld [vmem:[#allocation4 + $0x18] sm:$0xff]
    %v8555 = vld [vmem:[#allocation4 + $0x20] sm:$0xff]
    %v8556 = vld [vmem:[#allocation4 + $0x28] sm:$0xff]
    %v8557 = vld [vmem:[#allocation4 + $0x30] sm:$0xff]
    %v8558 = vld [vmem:[#allocation4 + $0x38] sm:$0xff]
    %v8559 = vld [vmem:[#allocation4 + $0x40] sm:$0xff]
    %v8560 = vld [vmem:[#allocation4 + $0x48] sm:$0xff]
    %v8561 = vld [vmem:[#allocation4 + $0x50] sm:$0xff]
    %v8562 = vld [vmem:[#allocation4 + $0x58] sm:$0xff]
    %v8563 = vld [vmem:[#allocation4 + $0x60] sm:$0xff]
    %v8564 = vld [vmem:[#allocation4 + $0x68] sm:$0xff]
    %v8565 = vld [vmem:[#allocation4 + $0x70] sm:$0xff]
    %v8566 = vld [vmem:[#allocation4 + $0x78] sm:$0xff]
    %v8567 = vpack.c.bf16 %v8553, %v8551
    %v8568 = vpack.c.bf16 %v8554, %v8552
    %v8569 = vpack.c.bf16 %v8557, %v8555
    %v8570 = vpack.c.bf16 %v8558, %v8556
    %v8571 = vpack.c.bf16 %v8561, %v8559
    %v8572 = vpack.c.bf16 %v8562, %v8560
    %v8573 = vpack.c.bf16 %v8565, %v8563
    %v8574 = vpack.c.bf16 %v8566, %v8564
    %v8575 = vld [vmem:[#allocation10] sm:$0xff]
    %v8576 = vld [vmem:[#allocation10 + $0x8] sm:$0xff]
    %v8577 = vld [vmem:[#allocation10 + $0x10] sm:$0xff]
    %v8578 = vld [vmem:[#allocation10 + $0x18] sm:$0xff]
    %v8579 = vld [vmem:[#allocation10 + $0x20] sm:$0xff]
    %v8580 = vld [vmem:[#allocation10 + $0x28] sm:$0xff]
    %v8581 = vld [vmem:[#allocation10 + $0x30] sm:$0xff]
    %v8582 = vld [vmem:[#allocation10 + $0x38] sm:$0xff]
    %v8583 = vld [vmem:[#allocation10 + $0x40] sm:$0xff]
    %v8584 = vld [vmem:[#allocation10 + $0x48] sm:$0xff]
    %v8585 = vld [vmem:[#allocation10 + $0x50] sm:$0xff]
    %v8586 = vld [vmem:[#allocation10 + $0x58] sm:$0xff]
    %v8587 = vld [vmem:[#allocation10 + $0x60] sm:$0xff]
    %v8588 = vld [vmem:[#allocation10 + $0x68] sm:$0xff]
    %v8589 = vld [vmem:[#allocation10 + $0x70] sm:$0xff]
    %v8590 = vld [vmem:[#allocation10 + $0x78] sm:$0xff]
    %v8591 = vld [vmem:[#allocation10 + $0x80] sm:$0xff]
    %v8592 = vld [vmem:[#allocation10 + $0x88] sm:$0xff]
    %v8593 = vld [vmem:[#allocation10 + $0x90] sm:$0xff]
    %v8594 = vld [vmem:[#allocation10 + $0x98] sm:$0xff]
    %v8595 = vld [vmem:[#allocation10 + $0xa0] sm:$0xff]
    %v8596 = vld [vmem:[#allocation10 + $0xa8] sm:$0xff]
    %v8597 = vld [vmem:[#allocation10 + $0xb0] sm:$0xff]
    %v8598 = vld [vmem:[#allocation10 + $0xb8] sm:$0xff]
    %v8599 = vld [vmem:[#allocation10 + $0xc0] sm:$0xff]
    %v8600 = vld [vmem:[#allocation10 + $0xc8] sm:$0xff]
    %v8601 = vld [vmem:[#allocation10 + $0xd0] sm:$0xff]
    %v8602 = vld [vmem:[#allocation10 + $0xd8] sm:$0xff]
    %v8603 = vld [vmem:[#allocation10 + $0xe0] sm:$0xff]
    %v8604 = vld [vmem:[#allocation10 + $0xe8] sm:$0xff]
    %v8605 = vld [vmem:[#allocation10 + $0xf0] sm:$0xff]
    %v8606 = vld [vmem:[#allocation10 + $0xf8] sm:$0xff]
    %v8607 = vld [vmem:[%s5] sm:$0x3]
    %v8609 = vlaneseq
    %v8610 = vshrl.u32 %v8609, 7
    %v8611 = vsub.s32 0, %v8610
    %v8612 = vrot.slane %v8607, %v8611
    %v8613 = vlaneseq
    %v8614 = vshrl.u32 %v8613, 7
    %v8615 = vsub.s32 1, %v8614
    %v8616 = vrot.slane %v8607, %v8615
    %v8651 = vunpack.c.l.b16 %v8575
    %v8652 = vunpack.c.h.b16 %v8575
    %v8653 = vunpack.c.l.b16 %v8576
    %v8654 = vunpack.c.h.b16 %v8576
    %v8655 = vunpack.c.l.b16 %v8577
    %v8656 = vunpack.c.h.b16 %v8577
    %v8657 = vunpack.c.l.b16 %v8578
    %v8658 = vunpack.c.h.b16 %v8578
    %v8659 = vunpack.c.l.b16 %v8579
    %v8660 = vunpack.c.h.b16 %v8579
    %v8661 = vunpack.c.l.b16 %v8580
    %v8662 = vunpack.c.h.b16 %v8580
    %v8663 = vunpack.c.l.b16 %v8581
    %v8664 = vunpack.c.h.b16 %v8581
    %v8665 = vunpack.c.l.b16 %v8582
    %v8666 = vunpack.c.h.b16 %v8582
    %v8667 = vunpack.c.l.b16 %v8583
    %v8668 = vunpack.c.h.b16 %v8583
    %v8669 = vunpack.c.l.b16 %v8584
    %v8670 = vunpack.c.h.b16 %v8584
    %v8671 = vunpack.c.l.b16 %v8585
    %v8672 = vunpack.c.h.b16 %v8585
    %v8673 = vunpack.c.l.b16 %v8586
    %v8674 = vunpack.c.h.b16 %v8586
    %v8675 = vunpack.c.l.b16 %v8587
    %v8676 = vunpack.c.h.b16 %v8587
    %v8677 = vunpack.c.l.b16 %v8588
    %v8678 = vunpack.c.h.b16 %v8588
    %v8679 = vunpack.c.l.b16 %v8589
    %v8680 = vunpack.c.h.b16 %v8589
    %v8681 = vunpack.c.l.b16 %v8590
    %v8682 = vunpack.c.h.b16 %v8590
    %v8683 = vunpack.c.l.b16 %v8591
    %v8684 = vunpack.c.h.b16 %v8591
    %v8685 = vunpack.c.l.b16 %v8592
    %v8686 = vunpack.c.h.b16 %v8592
    %v8687 = vunpack.c.l.b16 %v8593
    %v8688 = vunpack.c.h.b16 %v8593
    %v8689 = vunpack.c.l.b16 %v8594
    %v8690 = vunpack.c.h.b16 %v8594
    %v8691 = vunpack.c.l.b16 %v8595
    %v8692 = vunpack.c.h.b16 %v8595
    %v8693 = vunpack.c.l.b16 %v8596
    %v8694 = vunpack.c.h.b16 %v8596
    %v8695 = vunpack.c.l.b16 %v8597
    %v8696 = vunpack.c.h.b16 %v8597
    %v8697 = vunpack.c.l.b16 %v8598
    %v8698 = vunpack.c.h.b16 %v8598
    %v8699 = vunpack.c.l.b16 %v8599
    %v8700 = vunpack.c.h.b16 %v8599
    %v8701 = vunpack.c.l.b16 %v8600
    %v8702 = vunpack.c.h.b16 %v8600
    %v8703 = vunpack.c.l.b16 %v8601
    %v8704 = vunpack.c.h.b16 %v8601
    %v8705 = vunpack.c.l.b16 %v8602
    %v8706 = vunpack.c.h.b16 %v8602
    %v8707 = vunpack.c.l.b16 %v8603
    %v8708 = vunpack.c.h.b16 %v8603
    %v8709 = vunpack.c.l.b16 %v8604
    %v8710 = vunpack.c.h.b16 %v8604
    %v8711 = vunpack.c.l.b16 %v8605
    %v8712 = vunpack.c.h.b16 %v8605
    %v8713 = vunpack.c.l.b16 %v8606
    %v8714 = vunpack.c.h.b16 %v8606
    %v8715 = vpack.c.b16 %v8653, %v8651
    %v8716 = vpack.c.b16 %v8654, %v8652
    %v8717 = vpack.c.b16 %v8657, %v8655
    %v8718 = vpack.c.b16 %v8658, %v8656
    %v8719 = vpack.c.b16 %v8661, %v8659
    %v8720 = vpack.c.b16 %v8662, %v8660
    %v8721 = vpack.c.b16 %v8665, %v8663
    %v8722 = vpack.c.b16 %v8666, %v8664
    %v8723 = vpack.c.b16 %v8669, %v8667
    %v8724 = vpack.c.b16 %v8670, %v8668
    %v8725 = vpack.c.b16 %v8673, %v8671
    %v8726 = vpack.c.b16 %v8674, %v8672
    %v8727 = vpack.c.b16 %v8677, %v8675
    %v8728 = vpack.c.b16 %v8678, %v8676
    %v8729 = vpack.c.b16 %v8681, %v8679
    %v8730 = vpack.c.b16 %v8682, %v8680
    %v8731 = vpack.c.b16 %v8685, %v8683
    %v8732 = vpack.c.b16 %v8686, %v8684
    %v8733 = vpack.c.b16 %v8689, %v8687
    %v8734 = vpack.c.b16 %v8690, %v8688
    %v8735 = vpack.c.b16 %v8693, %v8691
    %v8736 = vpack.c.b16 %v8694, %v8692
    %v8737 = vpack.c.b16 %v8697, %v8695
    %v8738 = vpack.c.b16 %v8698, %v8696
    %v8739 = vpack.c.b16 %v8701, %v8699
    %v8740 = vpack.c.b16 %v8702, %v8700
    %v8741 = vpack.c.b16 %v8705, %v8703
    %v8742 = vpack.c.b16 %v8706, %v8704
    %v8743 = vpack.c.b16 %v8709, %v8707
    %v8744 = vpack.c.b16 %v8710, %v8708
    %v8745 = vpack.c.b16 %v8713, %v8711
    %v8746 = vpack.c.b16 %v8714, %v8712
    %8779 = vmatprep.subr.bf16.mxu0 %v8716
    %8780 = vmatpush1.bf16.msra.mxu0 %v8715
    %8781 = vmatprep.subr.bf16.mxu0 %v8718
    %8782 = vmatpush1.bf16.msra.mxu0 %v8717
    %8783 = vmatprep.subr.bf16.mxu0 %v8720
    %8784 = vmatpush1.bf16.msra.mxu0 %v8719
    %8785 = vmatprep.subr.bf16.mxu0 %v8722
    %8786 = vmatpush1.bf16.msra.mxu0 %v8721
    %8787 = vmatprep.subr.bf16.mxu0 %v8724
    %8788 = vmatpush1.bf16.msra.mxu0 %v8723
    %8789 = vmatprep.subr.bf16.mxu0 %v8726
    %8790 = vmatpush1.bf16.msra.mxu0 %v8725
    %8791 = vmatprep.subr.bf16.mxu0 %v8728
    %8792 = vmatpush1.bf16.msra.mxu0 %v8727
    %8793 = vmatprep.subr.bf16.mxu0 %v8730
    %8794 = vmatpush1.bf16.msra.mxu0 %v8729
    %8795 = vmatprep.subr.bf16.mxu0 %v8732
    %8796 = vmatpush1.bf16.msra.mxu0 %v8731
    %8797 = vmatprep.subr.bf16.mxu0 %v8734
    %8798 = vmatpush1.bf16.msra.mxu0 %v8733
    %8799 = vmatprep.subr.bf16.mxu0 %v8736
    %8800 = vmatpush1.bf16.msra.mxu0 %v8735
    %8801 = vmatprep.subr.bf16.mxu0 %v8738
    %8802 = vmatpush1.bf16.msra.mxu0 %v8737
    %8803 = vmatprep.subr.bf16.mxu0 %v8740
    %8804 = vmatpush1.bf16.msra.mxu0 %v8739
    %8805 = vmatprep.subr.bf16.mxu0 %v8742
    %8806 = vmatpush1.bf16.msra.mxu0 %v8741
    %8807 = vmatprep.subr.bf16.mxu0 %v8744
    %8808 = vmatpush1.bf16.msra.mxu0 %v8743
    %8809 = vmatprep.subr.bf16.mxu0 %v8746
    %8810 = vmatpush1.bf16.msra.mxu0 %v8745
    %8811 = vmatprep.mubr.bf16.mxu0 %v8568
    %8812 = vmatmul.mubr.bf16.gmra.mrb[0].mxu0 %v8567
    %v8813 = vpop.f32.mrb[0].mxu0
    %v8814 = vadd.f32 %v8612, %v8813
    %v8815 = vpop.f32.mrb[0].mxu0
    %v8816 = vadd.f32 %v8616, %v8815
    %v8817 = vpop.f32.mrb[0].mxu0
    %v8818 = vadd.f32 %v8612, %v8817
    %v8819 = vpop.f32.mrb[0].mxu0
    %v8820 = vadd.f32 %v8616, %v8819
    %8821 = vmatprep.mubr.bf16.mxu0 %v8570
    %8822 = vmatmul.mubr.bf16.gmra.mrb[0].mxu0 %v8569
    %v8823 = vpop.f32.mrb[0].mxu0
    %v8824 = vadd.f32 %v8612, %v8823
    %v8825 = vpop.f32.mrb[0].mxu0
    %v8826 = vadd.f32 %v8616, %v8825
    %v8827 = vpop.f32.mrb[0].mxu0
    %v8828 = vadd.f32 %v8612, %v8827
    %v8829 = vpop.f32.mrb[0].mxu0
    %v8830 = vadd.f32 %v8616, %v8829
    %8831 = vmatprep.mubr.bf16.mxu0 %v8572
    %8832 = vmatmul.mubr.bf16.gmra.mrb[0].mxu0 %v8571
    %v8833 = vpop.f32.mrb[0].mxu0
    %v8834 = vadd.f32 %v8612, %v8833
    %v8835 = vpop.f32.mrb[0].mxu0
    %v8836 = vadd.f32 %v8616, %v8835
    %v8837 = vpop.f32.mrb[0].mxu0
    %v8838 = vadd.f32 %v8612, %v8837
    %v8839 = vpop.f32.mrb[0].mxu0
    %v8840 = vadd.f32 %v8616, %v8839
    %8841 = vmatprep.mubr.bf16.mxu0 %v8574
    %8842 = vmatmul.mubr.bf16.gmra.mrb[0].mxu0 %v8573
    %v8843 = vpop.f32.mrb[0].mxu0
    %v8844 = vadd.f32 %v8612, %v8843
    %v8845 = vpop.f32.mrb[0].mxu0
    %v8846 = vadd.f32 %v8616, %v8845
    %v8847 = vpop.f32.mrb[0].mxu0
    %v8848 = vadd.f32 %v8612, %v8847
    %v8849 = vpop.f32.mrb[0].mxu0
    %v8850 = vadd.f32 %v8616, %v8849
    %8851 = vdwg.mxu0
    %8852 = vmax.xlane.f32.xlu0 %v8814
    %v8853 = vpop.xlane.xlu0 %8852
    %8854 = vmax.xlane.f32.xlu0 %v8818
    %v8855 = vpop.xlane.xlu0 %8854
    %8856 = vmax.xlane.f32.xlu0 %v8824
    %v8857 = vpop.xlane.xlu0 %8856
    %8858 = vmax.xlane.f32.xlu0 %v8828
    %v8859 = vpop.xlane.xlu0 %8858
    %8860 = vmax.xlane.f32.xlu0 %v8834
    %v8861 = vpop.xlane.xlu0 %8860
    %8862 = vmax.xlane.f32.xlu0 %v8838
    %v8863 = vpop.xlane.xlu0 %8862
    %8864 = vmax.xlane.f32.xlu0 %v8844
    %v8865 = vpop.xlane.xlu0 %8864
    %8866 = vmax.xlane.f32.xlu0 %v8848
    %v8867 = vpop.xlane.xlu0 %8866
    %v8868 = vsub.f32 %v8814, %v8853
    %v8869 = vsub.f32 %v8818, %v8855
    %v8870 = vsub.f32 %v8824, %v8857
    %v8871 = vsub.f32 %v8828, %v8859
    %v8872 = vsub.f32 %v8834, %v8861
    %v8873 = vsub.f32 %v8838, %v8863
    %v8874 = vsub.f32 %v8844, %v8865
    %v8875 = vsub.f32 %v8848, %v8867
    %v8876 = vmul.f32 %v8868, 1.442695
    %v8877 = vpow.pop %v8876
    %v8878 = vmul.f32 %v8869, 1.442695
    %v8879 = vpow.pop %v8878
    %v8880 = vmul.f32 %v8870, 1.442695
    %v8881 = vpow.pop %v8880
    %v8882 = vmul.f32 %v8871, 1.442695
    %v8883 = vpow.pop %v8882
    %v8884 = vmul.f32 %v8872, 1.442695
    %v8885 = vpow.pop %v8884
    %v8886 = vmul.f32 %v8873, 1.442695
    %v8887 = vpow.pop %v8886
    %v8888 = vmul.f32 %v8874, 1.442695
    %v8889 = vpow.pop %v8888
    %v8890 = vmul.f32 %v8875, 1.442695
    %v8891 = vpow.pop %v8890
    %8892 = vadd.xlane.f32.xlu0 %v8877
    %v8893 = vpop.xlane.xlu0 %8892
    %8894 = vadd.xlane.f32.xlu0 %v8879
    %v8895 = vpop.xlane.xlu0 %8894
    %8896 = vadd.xlane.f32.xlu0 %v8881
    %v8897 = vpop.xlane.xlu0 %8896
    %8898 = vadd.xlane.f32.xlu0 %v8883
    %v8899 = vpop.xlane.xlu0 %8898
    %8900 = vadd.xlane.f32.xlu0 %v8885
    %v8901 = vpop.xlane.xlu0 %8900
    %8902 = vadd.xlane.f32.xlu0 %v8887
    %v8903 = vpop.xlane.xlu0 %8902
    %8904 = vadd.xlane.f32.xlu0 %v8889
    %v8905 = vpop.xlane.xlu0 %8904
    %8906 = vadd.xlane.f32.xlu0 %v8891
    %v8907 = vpop.xlane.xlu0 %8906
    %v8908 = vlog2.pop %v8893
    %v8909 = vmul.f32 %v8908, 0.6931472
    %v8910 = vlog2.pop %v8895
    %v8911 = vmul.f32 %v8910, 0.6931472
    %v8912 = vlog2.pop %v8897
    %v8913 = vmul.f32 %v8912, 0.6931472
    %v8914 = vlog2.pop %v8899
    %v8915 = vmul.f32 %v8914, 0.6931472
    %v8916 = vlog2.pop %v8901
    %v8917 = vmul.f32 %v8916, 0.6931472
    %v8918 = vlog2.pop %v8903
    %v8919 = vmul.f32 %v8918, 0.6931472
    %v8920 = vlog2.pop %v8905
    %v8921 = vmul.f32 %v8920, 0.6931472
    %v8922 = vlog2.pop %v8907
    %v8923 = vmul.f32 %v8922, 0.6931472
    %v8924 = vsub.f32 %v8868, %v8909
    %v8925 = vsub.f32 %v8869, %v8911
    %v8926 = vsub.f32 %v8870, %v8913
    %v8927 = vsub.f32 %v8871, %v8915
    %v8928 = vsub.f32 %v8872, %v8917
    %v8929 = vsub.f32 %v8873, %v8919
    %v8930 = vsub.f32 %v8874, %v8921
    %v8931 = vsub.f32 %v8875, %v8923
    %8932 = vmax.xlane.f32.xlu0 %v8816
    %v8933 = vpop.xlane.xlu0 %8932
    %8934 = vmax.xlane.f32.xlu0 %v8820
    %v8935 = vpop.xlane.xlu0 %8934
    %8936 = vmax.xlane.f32.xlu0 %v8826
    %v8937 = vpop.xlane.xlu0 %8936
    %8938 = vmax.xlane.f32.xlu0 %v8830
    %v8939 = vpop.xlane.xlu0 %8938
    %8940 = vmax.xlane.f32.xlu0 %v8836
    %v8941 = vpop.xlane.xlu0 %8940
    %8942 = vmax.xlane.f32.xlu0 %v8840
    %v8943 = vpop.xlane.xlu0 %8942
    %8944 = vmax.xlane.f32.xlu0 %v8846
    %v8945 = vpop.xlane.xlu0 %8944
    %8946 = vmax.xlane.f32.xlu0 %v8850
    %v8947 = vpop.xlane.xlu0 %8946
    %v8948 = vsub.f32 %v8816, %v8933
    %v8949 = vsub.f32 %v8820, %v8935
    %v8950 = vsub.f32 %v8826, %v8937
    %v8951 = vsub.f32 %v8830, %v8939
    %v8952 = vsub.f32 %v8836, %v8941
    %v8953 = vsub.f32 %v8840, %v8943
    %v8954 = vsub.f32 %v8846, %v8945
    %v8955 = vsub.f32 %v8850, %v8947
    %v8956 = vmul.f32 %v8948, 1.442695
    %v8957 = vpow.pop %v8956
    %v8958 = vmul.f32 %v8949, 1.442695
    %v8959 = vpow.pop %v8958
    %v8960 = vmul.f32 %v8950, 1.442695
    %v8961 = vpow.pop %v8960
    %v8962 = vmul.f32 %v8951, 1.442695
    %v8963 = vpow.pop %v8962
    %v8964 = vmul.f32 %v8952, 1.442695
    %v8965 = vpow.pop %v8964
    %v8966 = vmul.f32 %v8953, 1.442695
    %v8967 = vpow.pop %v8966
    %v8968 = vmul.f32 %v8954, 1.442695
    %v8969 = vpow.pop %v8968
    %v8970 = vmul.f32 %v8955, 1.442695
    %v8971 = vpow.pop %v8970
    %8972 = vadd.xlane.f32.xlu0 %v8957
    %v8973 = vpop.xlane.xlu0 %8972
    %8974 = vadd.xlane.f32.xlu0 %v8959
    %v8975 = vpop.xlane.xlu0 %8974
    %8976 = vadd.xlane.f32.xlu0 %v8961
    %v8977 = vpop.xlane.xlu0 %8976
    %8978 = vadd.xlane.f32.xlu0 %v8963
    %v8979 = vpop.xlane.xlu0 %8978
    %8980 = vadd.xlane.f32.xlu0 %v8965
    %v8981 = vpop.xlane.xlu0 %8980
    %8982 = vadd.xlane.f32.xlu0 %v8967
    %v8983 = vpop.xlane.xlu0 %8982
    %8984 = vadd.xlane.f32.xlu0 %v8969
    %v8985 = vpop.xlane.xlu0 %8984
    %8986 = vadd.xlane.f32.xlu0 %v8971
    %v8987 = vpop.xlane.xlu0 %8986
    %v8988 = vlog2.pop %v8973
    %v8989 = vmul.f32 %v8988, 0.6931472
    %v8990 = vlog2.pop %v8975
    %v8991 = vmul.f32 %v8990, 0.6931472
    %v8992 = vlog2.pop %v8977
    %v8993 = vmul.f32 %v8992, 0.6931472
    %v8994 = vlog2.pop %v8979
    %v8995 = vmul.f32 %v8994, 0.6931472
    %v8996 = vlog2.pop %v8981
    %v8997 = vmul.f32 %v8996, 0.6931472
    %v8998 = vlog2.pop %v8983
    %v8999 = vmul.f32 %v8998, 0.6931472
    %v9000 = vlog2.pop %v8985
    %v9001 = vmul.f32 %v9000, 0.6931472
    %v9002 = vlog2.pop %v8987
    %v9003 = vmul.f32 %v9002, 0.6931472
    %v9004 = vsub.f32 %v8948, %v8989
    %v9005 = vsub.f32 %v8949, %v8991
    %v9006 = vsub.f32 %v8950, %v8993
    %v9007 = vsub.f32 %v8951, %v8995
    %v9008 = vsub.f32 %v8952, %v8997
    %v9009 = vsub.f32 %v8953, %v8999
    %v9010 = vsub.f32 %v8954, %v9001
    %v9011 = vsub.f32 %v8955, %v9003
    %v9012 = vadd.f32 %v8924, %v9004
    %v9013 = vadd.f32 %v8925, %v9005
    %v9014 = vadd.f32 %v8926, %v9006
    %v9015 = vadd.f32 %v8927, %v9007
    %v9016 = vadd.f32 %v8928, %v9008
    %v9017 = vadd.f32 %v8929, %v9009
    %v9018 = vadd.f32 %v8930, %v9010
    %v9019 = vadd.f32 %v8931, %v9011
    %9020 = vst [vmem:[#allocation11] sm:$0xff] %v9012
    %9021 = vst [vmem:[#allocation11 + $0x8] sm:$0xff] %v9013
    %9022 = vst [vmem:[#allocation11 + $0x10] sm:$0xff] %v9014
    %9023 = vst [vmem:[#allocation11 + $0x18] sm:$0xff] %v9015
    %9024 = vst [vmem:[#allocation11 + $0x20] sm:$0xff] %v9016
    %9025 = vst [vmem:[#allocation11 + $0x28] sm:$0xff] %v9017
    %9026 = vst [vmem:[#allocation11 + $0x30] sm:$0xff] %v9018
    %9027 = vst [vmem:[#allocation11 + $0x38] sm:$0xff] %v9019
    // Predicated region
    $region38: #{tpu_custom_call.1} parent=1 // pred_check
      _
    $region39: #{tpu_custom_call.1} parent=1 // pred_check_branch
      %9029 = sbr.rel (0) target = $region41
    $region40: #{tpu_custom_call.1} parent=1 // pred_region
      %s9031 = ssub.s32 1024, 1024
      %9032 = vsyncadd [#allocation7], %s9031
      %s9033 = sshll.u32 [#allocation11], 4
      %s9034 = int_to_ptr.vmem [resolvable:$true] %s9033
      %9039 = dma.vmem_to_hbm [thread:$0]  %s9034, 1024, %s6, [#allocation7], 128, 128, 8
    $region41: #{tpu_custom_call.1} parent=1 // pred_fallthru
      _
    // Predicated region
    $region42: #{tpu_custom_call.1} parent=1 // pred_check
      _
    $region43: #{tpu_custom_call.1} parent=1 // pred_check_branch
      %9041 = sbr.rel (0) target = $region45
    $region44: #{tpu_custom_call.1} parent=1 // pred_region
      %9042 = dma.done [#allocation7], 1024
    $region45: #{tpu_custom_call.1} parent=1 // pred_fallthru
      _
    %9043 = vsyncpa [#allocation6], 1
    %9044 = vsyncpa [#allocation9], 1
    %9045 = vsyncpa [#allocation7], 1

</llo_original>
